<compile_context>
chip_gen: v6e
topology: v6e:2x2x1
jax: 0.10.0
libtpu: 0.0.40
codegen_flags: <defaults>
</compile_context>

<pallas_src>
import jax
import jax.numpy as jnp
import numpy as np
from jax import lax
from jax.experimental import pallas as pl
from jax.experimental.pallas import tpu as pltpu


def _lags_for_T(T):
    """Temporal-difference lags implied by the PyTorch forward for a given T."""
    lag1 = 1 if T >= 2 else 0
    lag2 = 2 if T >= 2 else 0
    if T > 2:
        lag3 = 3
    elif T == 2:
        lag3 = 1
    else:
        lag3 = 0
    return (lag1, lag2, lag3)


def _make_tts_kernel(T, H, W, CB):
    lags = _lags_for_T(T)

    def kernel(x_ref, convw_ref, convb_ref, mixw_ref, o_ref, xs_ref):
        # x_ref    : VMEM (T, H, W, CB)        channel-last input tile (lane = channel)
        # convw_ref: VMEM (81, CB)             row = conv_i*27 + kt*9 + kh*3 + kw
        # convb_ref: VMEM (3, CB)              per-conv bias, per channel
        # mixw_ref : SMEM (3,)                 self.weights
        # o_ref    : VMEM (T, H, W, CB)
        # xs_ref   : VMEM (3, T, H+2, W, CB)   3 W-shifted, H-padded copies of x

        # ---- hoist: build the 3 sublane(W)-shifted copies once per step.
        # After this, every conv tap is a leading-axis (T / H) slice of xs_ref.
        # Full re-zero each step keeps the halo correct on every core under
        # megacore grid sharding (scratch persists across iterations).
        xs_ref[...] = jnp.zeros_like(xs_ref)
        xs_ref[1, :, 1:1 + H, :, :] = x_ref[...]                       # kw = 1
        if W > 1:
            xs_ref[0, :, 1:1 + H, 1:W, :] = x_ref[:, :, 0:W - 1, :]    # kw = 0 (w-1)
            xs_ref[2, :, 1:1 + H, 0:W - 1, :] = x_ref[:, :, 1:W, :]    # kw = 2 (w+1)

        def spatial_sum(i, kt, tlo, tlen):
            # Sum of the 9 spatial taps of conv i / temporal tap kt applied to
            # source frames [tlo, tlo+tlen).  Returns (tlen, H, W, CB).
            s = None
            for kh in range(3):
                for kw in range(3):
                    wrow = convw_ref[i * 27 + kt * 9 + kh * 3 + kw, :]
                    term = xs_ref[kw, tlo:tlo + tlen, kh:kh + H, :, :] * wrow
                    s = term if s is None else s + term
            return s

        # ---- three depthwise 3x3x3 convs (temporal dilation 1/2/3), fused
        # temporal differencing, sigmoid(.)-0.5 mixing, accumulated into o_ref.
        for i, d in enumerate((1, 2, 3)):
            # centre temporal tap (kt=1) contributes to every output frame.
            acc = spatial_sum(i, 1, 0, T) + convb_ref[i, :]
            if d < T:
                # kt=0 reads frame t-d -> valid for outputs t in [d, T)
                past = spatial_sum(i, 0, 0, T - d)
                acc = jnp.concatenate([acc[:d], acc[d:] + past], axis=0)
                # kt=2 reads frame t+d -> valid for outputs t in [0, T-d)
                futr = spatial_sum(i, 2, d, T - d)
                acc = jnp.concatenate([acc[:T - d] + futr, acc[T - d:]], axis=0)

            # Temporal difference: frame t minus frame (t - lag); the first
            # `lag` frames pass through unchanged (matches the torch.cat loop).
            lag = lags[i]
            if 0 < lag < T:
                acc = jnp.concatenate(
                    [acc[:lag], acc[lag:] - acc[:T - lag]], axis=0)

            # sigmoid(a) - 0.5 == 0.5 * tanh(a / 2): one EUP op per element.
            term = (0.5 * mixw_ref[i]) * jnp.tanh(0.5 * acc)
            if i == 0:
                o_ref[...] = term
            else:
                o_ref[...] += term

        o_ref[...] = o_ref[...] * x_ref[...]

    return kernel


def _pick_cb(C, T, H, W, budget_bytes=6 << 20):
    """Channel block: largest multiple of 128 dividing C whose hoist scratch
    fits the VMEM budget (lane-dense); falls back to the whole C otherwise."""
    if C % 128 != 0:
        return C
    for k in (8, 4, 2, 1):
        cb = 128 * k
        if C % cb == 0 and 3 * T * (H + 2) * W * cb * 4 <= budget_bytes:
            return cb
    return 128


def tts_forward(x, w1, w2, w3, b1, b2, b3, mixw):
    """x: (B, C, T, H, W) f32; w_i: (C, 3, 3, 3); b_i: (C,); mixw: (3,)."""
    B, C, T, H, W = x.shape
    CB = _pick_cb(C, T, H, W)
    NC = C // CB

    # Channel-last, lane-dense layout for the kernel.
    xt = jnp.transpose(x.astype(jnp.float32), (0, 2, 3, 4, 1))   # (B, T, H, W, C)

    # (81, C): row = conv_i*27 + kt*9 + kh*3 + kw, lane = channel.
    convw = jnp.concatenate(
        [w1.reshape(C, 27).T, w2.reshape(C, 27).T, w3.reshape(C, 27).T],
        axis=0).astype(jnp.float32)
    convb = jnp.stack([b1, b2, b3], axis=0).astype(jnp.float32)   # (3, C)
    mixw = mixw.astype(jnp.float32)

    kernel = _make_tts_kernel(T, H, W, CB)
    grid_spec = pltpu.PrefetchScalarGridSpec(
        num_scalar_prefetch=0,
        grid=(NC, B),                 # channel-block outer -> weights stay resident
        in_specs=[
            pl.BlockSpec((None, T, H, W, CB), lambda cb, b: (b, 0, 0, 0, cb)),
            pl.BlockSpec((81, CB), lambda cb, b: (0, cb)),
            pl.BlockSpec((3, CB), lambda cb, b: (0, cb)),
            pl.BlockSpec(memory_space=pltpu.MemorySpace.SMEM),
        ],
        out_specs=pl.BlockSpec((None, T, H, W, CB),
                               lambda cb, b: (b, 0, 0, 0, cb)),
        scratch_shapes=[pltpu.VMEM((3, T, H + 2, W, CB), jnp.float32)],
    )
    out = pl.pallas_call(
        kernel,
        out_shape=jax.ShapeDtypeStruct((B, T, H, W, C), jnp.float32),
        grid_spec=grid_spec,
        compiler_params=pltpu.CompilerParams(
            dimension_semantics=("parallel", "parallel"),
            vmem_limit_bytes=32 * 1024 * 1024),
    )(xt, convw, convb, mixw)
    return jnp.transpose(out, (0, 4, 1, 2, 3))    # back to (B, C, T, H, W)


def tts_reference(x, w1, w2, w3, b1, b2, b3, mixw):
    """Plain-JAX reference of the PyTorch forward (for validation)."""
    B, C, T, H, W = x.shape

    def dwconv(w, b, d):
        out = lax.conv_general_dilated(
            x, w[:, None].astype(jnp.float32),            # (C, 1, 3, 3, 3)
            window_strides=(1, 1, 1),
            padding=((d, d), (1, 1), (1, 1)),
            rhs_dilation=(d, 1, 1),
            dimension_numbers=('NCDHW', 'OIDHW', 'NCDHW'),
            feature_group_count=C)
        return out + b[None, :, None, None, None]

    i1, i2, i3 = dwconv(w1, b1, 1), dwconv(w2, b2, 2), dwconv(w3, b3, 3)
    lag1, lag2, lag3 = _lags_for_T(T)

    def tdiff(a, lag):
        if lag <= 0 or lag >= T:
            return a
        return jnp.concatenate(
            [a[:, :, :lag], a[:, :, lag:] - a[:, :, :T - lag]], axis=2)

    o1, o2, o3 = tdiff(i1, lag1), tdiff(i2, lag2), tdiff(i3, lag3)
    return (x * (jax.nn.sigmoid(o1) - 0.5) * mixw[0]
            + x * (jax.nn.sigmoid(o2) - 0.5) * mixw[1]
            + x * (jax.nn.sigmoid(o3) - 0.5) * mixw[2])


if __name__ == "__main__":
    key = jax.random.PRNGKey(0)
    B, C, T, H, W = 2, 128, 4, 8, 8   # C multiple of 128 -> full lane density
    ks = jax.random.split(key, 7)
    x = jax.random.normal(ks[0], (B, C, T, H, W), jnp.float32)
    # deterministic synthetic parameters (shapes from nn.Conv3d(C, C, 3, groups=C))
    w1 = 0.1 * jax.random.normal(ks[1], (C, 3, 3, 3), jnp.float32)
    w2 = 0.1 * jax.random.normal(ks[2], (C, 3, 3, 3), jnp.float32)
    w3 = 0.1 * jax.random.normal(ks[3], (C, 3, 3, 3), jnp.float32)
    b1 = 0.1 * jax.random.normal(ks[4], (C,), jnp.float32)
    b2 = 0.1 * jax.random.normal(ks[5], (C,), jnp.float32)
    b3 = 0.1 * jax.random.normal(ks[6], (C,), jnp.float32)
    mixw = jnp.ones((3,), jnp.float32) / 3.0   # == nn.Parameter(torch.ones(3)/3)

    out = jax.block_until_ready(tts_forward(x, w1, w2, w3, b1, b2, b3, mixw))
    ref = jax.block_until_ready(tts_reference(x, w1, w2, w3, b1, b2, b3, mixw))
    np.testing.assert_allclose(np.asarray(out), np.asarray(ref),
                               rtol=5e-5, atol=5e-5)
    print("KERNEL_OK")
</pallas_src>

<mosaic_0001>
module attributes {stable_mosaic.version = 11 : i64} {
  func.func @kernel(%arg0: i32, %arg1: i32, %arg2: memref<1x4x8x8x128xf32, #tpu.memory_space<vmem>>, %arg3: memref<81x128xf32, #tpu.memory_space<vmem>>, %arg4: memref<3x128xf32, #tpu.memory_space<vmem>>, %arg5: memref<3xf32, #tpu.memory_space<smem>>, %arg6: memref<1x4x8x8x128xf32, #tpu.memory_space<vmem>>, %arg7: memref<3x4x10x8x128xf32, #tpu.memory_space<vmem>>) attributes {dimension_semantics = [#tpu.dimension_semantics<parallel>, #tpu.dimension_semantics<parallel>], iteration_bounds = array<i64: 1, 2>, scalar_prefetch = 0 : i64, scratch_operands = 1 : i64, tpu.core_type = #tpu.core_type<tc>, window_params = [{transform_indices = @transform_0, window_bounds = array<i64: 1, 4, 8, 8, 128>}, {transform_indices = @transform_1, window_bounds = array<i64: 81, 128>}, {transform_indices = @transform_2, window_bounds = array<i64: 3, 128>}, {transform_indices = @transform_3, window_bounds = array<i64: 3>}, {transform_indices = @transform_4, window_bounds = array<i64: 1, 4, 8, 8, 128>}]} {
    %cst = arith.constant 0.000000e+00 : f32
    %0 = vector.broadcast %cst : f32 to vector<3x4x10x8x128xf32>
    %c0 = arith.constant 0 : index
    %c0_0 = arith.constant 0 : index
    %c0_1 = arith.constant 0 : index
    %c0_2 = arith.constant 0 : index
    %c0_3 = arith.constant 0 : index
    %1 = vector.load %arg7[%c0, %c0_0, %c0_1, %c0_2, %c0_3] : memref<3x4x10x8x128xf32, #tpu.memory_space<vmem>>, vector<3x4x10x8x128xf32>
    tpu.vector_store %arg7[%c0, %c0_0, %c0_1, %c0_2, %c0_3], %0 {strides = array<i32>} : memref<3x4x10x8x128xf32, #tpu.memory_space<vmem>>, vector<3x4x10x8x128xf32>,
    %c0_4 = arith.constant 0 : index
    %c0_5 = arith.constant 0 : index
    %c0_6 = arith.constant 0 : index
    %c0_7 = arith.constant 0 : index
    %c0_8 = arith.constant 0 : index
    %2 = vector.load %arg2[%c0_4, %c0_5, %c0_6, %c0_7, %c0_8] : memref<1x4x8x8x128xf32, #tpu.memory_space<vmem>>, vector<1x4x8x8x128xf32>
    %3 = vector.shape_cast %2 : vector<1x4x8x8x128xf32> to vector<4x8x8x128xf32>
    %c1 = arith.constant 1 : index
    %c0_9 = arith.constant 0 : index
    %c1_10 = arith.constant 1 : index
    %c0_11 = arith.constant 0 : index
    %c0_12 = arith.constant 0 : index
    %4 = vector.load %arg7[%c1, %c0_9, %c1_10, %c0_11, %c0_12] : memref<3x4x10x8x128xf32, #tpu.memory_space<vmem>>, vector<1x4x8x8x128xf32>
    %5 = vector.shape_cast %4 : vector<1x4x8x8x128xf32> to vector<4x8x8x128xf32>
    %6 = vector.shape_cast %3 : vector<4x8x8x128xf32> to vector<1x4x8x8x128xf32>
    tpu.vector_store %arg7[%c1, %c0_9, %c1_10, %c0_11, %c0_12], %6 {strides = array<i32>} : memref<3x4x10x8x128xf32, #tpu.memory_space<vmem>>, vector<1x4x8x8x128xf32>,
    %c0_13 = arith.constant 0 : index
    %c0_14 = arith.constant 0 : index
    %c0_15 = arith.constant 0 : index
    %c0_16 = arith.constant 0 : index
    %c0_17 = arith.constant 0 : index
    %7 = vector.load %arg2[%c0_13, %c0_14, %c0_15, %c0_16, %c0_17] : memref<1x4x8x8x128xf32, #tpu.memory_space<vmem>>, vector<1x4x8x7x128xf32>
    %8 = vector.shape_cast %7 : vector<1x4x8x7x128xf32> to vector<4x8x7x128xf32>
    %c0_18 = arith.constant 0 : index
    %c0_19 = arith.constant 0 : index
    %c1_20 = arith.constant 1 : index
    %c1_21 = arith.constant 1 : index
    %c0_22 = arith.constant 0 : index
    %9 = vector.load %arg7[%c0_18, %c0_19, %c1_20, %c1_21, %c0_22] : memref<3x4x10x8x128xf32, #tpu.memory_space<vmem>>, vector<1x4x8x7x128xf32>
    %10 = vector.shape_cast %9 : vector<1x4x8x7x128xf32> to vector<4x8x7x128xf32>
    %11 = vector.shape_cast %8 : vector<4x8x7x128xf32> to vector<1x4x8x7x128xf32>
    tpu.vector_store %arg7[%c0_18, %c0_19, %c1_20, %c1_21, %c0_22], %11 {strides = array<i32>} : memref<3x4x10x8x128xf32, #tpu.memory_space<vmem>>, vector<1x4x8x7x128xf32>,
    %c0_23 = arith.constant 0 : index
    %c0_24 = arith.constant 0 : index
    %c0_25 = arith.constant 0 : index
    %c1_26 = arith.constant 1 : index
    %c0_27 = arith.constant 0 : index
    %12 = vector.load %arg2[%c0_23, %c0_24, %c0_25, %c1_26, %c0_27] : memref<1x4x8x8x128xf32, #tpu.memory_space<vmem>>, vector<1x4x8x7x128xf32>
    %13 = vector.shape_cast %12 : vector<1x4x8x7x128xf32> to vector<4x8x7x128xf32>
    %c2 = arith.constant 2 : index
    %c0_28 = arith.constant 0 : index
    %c1_29 = arith.constant 1 : index
    %c0_30 = arith.constant 0 : index
    %c0_31 = arith.constant 0 : index
    %14 = vector.load %arg7[%c2, %c0_28, %c1_29, %c0_30, %c0_31] : memref<3x4x10x8x128xf32, #tpu.memory_space<vmem>>, vector<1x4x8x7x128xf32>
    %15 = vector.shape_cast %14 : vector<1x4x8x7x128xf32> to vector<4x8x7x128xf32>
    %16 = vector.shape_cast %13 : vector<4x8x7x128xf32> to vector<1x4x8x7x128xf32>
    tpu.vector_store %arg7[%c2, %c0_28, %c1_29, %c0_30, %c0_31], %16 {strides = array<i32>} : memref<3x4x10x8x128xf32, #tpu.memory_space<vmem>>, vector<1x4x8x7x128xf32>,
    %c9 = arith.constant 9 : index
    %c0_32 = arith.constant 0 : index
    %17 = vector.load %arg3[%c9, %c0_32] : memref<81x128xf32, #tpu.memory_space<vmem>>, vector<1x128xf32>
    %18 = vector.shape_cast %17 : vector<1x128xf32> to vector<128xf32>
    %c0_33 = arith.constant 0 : index
    %c0_34 = arith.constant 0 : index
    %c0_35 = arith.constant 0 : index
    %c0_36 = arith.constant 0 : index
    %c0_37 = arith.constant 0 : index
    %19 = vector.load %arg7[%c0_33, %c0_34, %c0_35, %c0_36, %c0_37] : memref<3x4x10x8x128xf32, #tpu.memory_space<vmem>>, vector<1x4x8x8x128xf32>
    %20 = vector.shape_cast %19 : vector<1x4x8x8x128xf32> to vector<4x8x8x128xf32>
    %21 = vector.shape_cast %18 : vector<128xf32> to vector<1x1x1x128xf32>
    %22 = vector.broadcast %21 : vector<1x1x1x128xf32> to vector<4x8x8x128xf32>
    %23 = arith.mulf %20, %22 : vector<4x8x8x128xf32>
    %c10 = arith.constant 10 : index
    %c0_38 = arith.constant 0 : index
    %24 = vector.load %arg3[%c10, %c0_38] : memref<81x128xf32, #tpu.memory_space<vmem>>, vector<1x128xf32>
    %25 = vector.shape_cast %24 : vector<1x128xf32> to vector<128xf32>
    %c1_39 = arith.constant 1 : index
    %c0_40 = arith.constant 0 : index
    %c0_41 = arith.constant 0 : index
    %c0_42 = arith.constant 0 : index
    %c0_43 = arith.constant 0 : index
    %26 = vector.load %arg7[%c1_39, %c0_40, %c0_41, %c0_42, %c0_43] : memref<3x4x10x8x128xf32, #tpu.memory_space<vmem>>, vector<1x4x8x8x128xf32>
    %27 = vector.shape_cast %26 : vector<1x4x8x8x128xf32> to vector<4x8x8x128xf32>
    %28 = vector.shape_cast %25 : vector<128xf32> to vector<1x1x1x128xf32>
    %29 = vector.broadcast %28 : vector<1x1x1x128xf32> to vector<4x8x8x128xf32>
    %30 = arith.mulf %27, %29 : vector<4x8x8x128xf32>
    %31 = arith.addf %23, %30 : vector<4x8x8x128xf32>
    %c11 = arith.constant 11 : index
    %c0_44 = arith.constant 0 : index
    %32 = vector.load %arg3[%c11, %c0_44] : memref<81x128xf32, #tpu.memory_space<vmem>>, vector<1x128xf32>
    %33 = vector.shape_cast %32 : vector<1x128xf32> to vector<128xf32>
    %c2_45 = arith.constant 2 : index
    %c0_46 = arith.constant 0 : index
    %c0_47 = arith.constant 0 : index
    %c0_48 = arith.constant 0 : index
    %c0_49 = arith.constant 0 : index
    %34 = vector.load %arg7[%c2_45, %c0_46, %c0_47, %c0_48, %c0_49] : memref<3x4x10x8x128xf32, #tpu.memory_space<vmem>>, vector<1x4x8x8x128xf32>
    %35 = vector.shape_cast %34 : vector<1x4x8x8x128xf32> to vector<4x8x8x128xf32>
    %36 = vector.shape_cast %33 : vector<128xf32> to vector<1x1x1x128xf32>
    %37 = vector.broadcast %36 : vector<1x1x1x128xf32> to vector<4x8x8x128xf32>
    %38 = arith.mulf %35, %37 : vector<4x8x8x128xf32>
    %39 = arith.addf %31, %38 : vector<4x8x8x128xf32>
    %c12 = arith.constant 12 : index
    %c0_50 = arith.constant 0 : index
    %40 = vector.load %arg3[%c12, %c0_50] : memref<81x128xf32, #tpu.memory_space<vmem>>, vector<1x128xf32>
    %41 = vector.shape_cast %40 : vector<1x128xf32> to vector<128xf32>
    %c0_51 = arith.constant 0 : index
    %c0_52 = arith.constant 0 : index
    %c1_53 = arith.constant 1 : index
    %c0_54 = arith.constant 0 : index
    %c0_55 = arith.constant 0 : index
    %42 = vector.load %arg7[%c0_51, %c0_52, %c1_53, %c0_54, %c0_55] : memref<3x4x10x8x128xf32, #tpu.memory_space<vmem>>, vector<1x4x8x8x128xf32>
    %43 = vector.shape_cast %42 : vector<1x4x8x8x128xf32> to vector<4x8x8x128xf32>
    %44 = vector.shape_cast %41 : vector<128xf32> to vector<1x1x1x128xf32>
    %45 = vector.broadcast %44 : vector<1x1x1x128xf32> to vector<4x8x8x128xf32>
    %46 = arith.mulf %43, %45 : vector<4x8x8x128xf32>
    %47 = arith.addf %39, %46 : vector<4x8x8x128xf32>
    %c13 = arith.constant 13 : index
    %c0_56 = arith.constant 0 : index
    %48 = vector.load %arg3[%c13, %c0_56] : memref<81x128xf32, #tpu.memory_space<vmem>>, vector<1x128xf32>
    %49 = vector.shape_cast %48 : vector<1x128xf32> to vector<128xf32>
    %c1_57 = arith.constant 1 : index
    %c0_58 = arith.constant 0 : index
    %c1_59 = arith.constant 1 : index
    %c0_60 = arith.constant 0 : index
    %c0_61 = arith.constant 0 : index
    %50 = vector.load %arg7[%c1_57, %c0_58, %c1_59, %c0_60, %c0_61] : memref<3x4x10x8x128xf32, #tpu.memory_space<vmem>>, vector<1x4x8x8x128xf32>
    %51 = vector.shape_cast %50 : vector<1x4x8x8x128xf32> to vector<4x8x8x128xf32>
    %52 = vector.shape_cast %49 : vector<128xf32> to vector<1x1x1x128xf32>
    %53 = vector.broadcast %52 : vector<1x1x1x128xf32> to vector<4x8x8x128xf32>
    %54 = arith.mulf %51, %53 : vector<4x8x8x128xf32>
    %55 = arith.addf %47, %54 : vector<4x8x8x128xf32>
    %c14 = arith.constant 14 : index
    %c0_62 = arith.constant 0 : index
    %56 = vector.load %arg3[%c14, %c0_62] : memref<81x128xf32, #tpu.memory_space<vmem>>, vector<1x128xf32>
    %57 = vector.shape_cast %56 : vector<1x128xf32> to vector<128xf32>
    %c2_63 = arith.constant 2 : index
    %c0_64 = arith.constant 0 : index
    %c1_65 = arith.constant 1 : index
    %c0_66 = arith.constant 0 : index
    %c0_67 = arith.constant 0 : index
    %58 = vector.load %arg7[%c2_63, %c0_64, %c1_65, %c0_66, %c0_67] : memref<3x4x10x8x128xf32, #tpu.memory_space<vmem>>, vector<1x4x8x8x128xf32>
    %59 = vector.shape_cast %58 : vector<1x4x8x8x128xf32> to vector<4x8x8x128xf32>
    %60 = vector.shape_cast %57 : vector<128xf32> to vector<1x1x1x128xf32>
    %61 = vector.broadcast %60 : vector<1x1x1x128xf32> to vector<4x8x8x128xf32>
    %62 = arith.mulf %59, %61 : vector<4x8x8x128xf32>
    %63 = arith.addf %55, %62 : vector<4x8x8x128xf32>
    %c15 = arith.constant 15 : index
    %c0_68 = arith.constant 0 : index
    %64 = vector.load %arg3[%c15, %c0_68] : memref<81x128xf32, #tpu.memory_space<vmem>>, vector<1x128xf32>
    %65 = vector.shape_cast %64 : vector<1x128xf32> to vector<128xf32>
    %c0_69 = arith.constant 0 : index
    %c0_70 = arith.constant 0 : index
    %c2_71 = arith.constant 2 : index
    %c0_72 = arith.constant 0 : index
    %c0_73 = arith.constant 0 : index
    %66 = vector.load %arg7[%c0_69, %c0_70, %c2_71, %c0_72, %c0_73] : memref<3x4x10x8x128xf32, #tpu.memory_space<vmem>>, vector<1x4x8x8x128xf32>
    %67 = vector.shape_cast %66 : vector<1x4x8x8x128xf32> to vector<4x8x8x128xf32>
    %68 = vector.shape_cast %65 : vector<128xf32> to vector<1x1x1x128xf32>
    %69 = vector.broadcast %68 : vector<1x1x1x128xf32> to vector<4x8x8x128xf32>
    %70 = arith.mulf %67, %69 : vector<4x8x8x128xf32>
    %71 = arith.addf %63, %70 : vector<4x8x8x128xf32>
    %c16 = arith.constant 16 : index
    %c0_74 = arith.constant 0 : index
    %72 = vector.load %arg3[%c16, %c0_74] : memref<81x128xf32, #tpu.memory_space<vmem>>, vector<1x128xf32>
    %73 = vector.shape_cast %72 : vector<1x128xf32> to vector<128xf32>
    %c1_75 = arith.constant 1 : index
    %c0_76 = arith.constant 0 : index
    %c2_77 = arith.constant 2 : index
    %c0_78 = arith.constant 0 : index
    %c0_79 = arith.constant 0 : index
    %74 = vector.load %arg7[%c1_75, %c0_76, %c2_77, %c0_78, %c0_79] : memref<3x4x10x8x128xf32, #tpu.memory_space<vmem>>, vector<1x4x8x8x128xf32>
    %75 = vector.shape_cast %74 : vector<1x4x8x8x128xf32> to vector<4x8x8x128xf32>
    %76 = vector.shape_cast %73 : vector<128xf32> to vector<1x1x1x128xf32>
    %77 = vector.broadcast %76 : vector<1x1x1x128xf32> to vector<4x8x8x128xf32>
    %78 = arith.mulf %75, %77 : vector<4x8x8x128xf32>
    %79 = arith.addf %71, %78 : vector<4x8x8x128xf32>
    %c17 = arith.constant 17 : index
    %c0_80 = arith.constant 0 : index
    %80 = vector.load %arg3[%c17, %c0_80] : memref<81x128xf32, #tpu.memory_space<vmem>>, vector<1x128xf32>
    %81 = vector.shape_cast %80 : vector<1x128xf32> to vector<128xf32>
    %c2_81 = arith.constant 2 : index
    %c0_82 = arith.constant 0 : index
    %c2_83 = arith.constant 2 : index
    %c0_84 = arith.constant 0 : index
    %c0_85 = arith.constant 0 : index
    %82 = vector.load %arg7[%c2_81, %c0_82, %c2_83, %c0_84, %c0_85] : memref<3x4x10x8x128xf32, #tpu.memory_space<vmem>>, vector<1x4x8x8x128xf32>
    %83 = vector.shape_cast %82 : vector<1x4x8x8x128xf32> to vector<4x8x8x128xf32>
    %84 = vector.shape_cast %81 : vector<128xf32> to vector<1x1x1x128xf32>
    %85 = vector.broadcast %84 : vector<1x1x1x128xf32> to vector<4x8x8x128xf32>
    %86 = arith.mulf %83, %85 : vector<4x8x8x128xf32>
    %87 = arith.addf %79, %86 : vector<4x8x8x128xf32>
    %c0_86 = arith.constant 0 : index
    %c0_87 = arith.constant 0 : index
    %88 = vector.load %arg4[%c0_86, %c0_87] : memref<3x128xf32, #tpu.memory_space<vmem>>, vector<1x128xf32>
    %89 = vector.shape_cast %88 : vector<1x128xf32> to vector<128xf32>
    %90 = vector.shape_cast %89 : vector<128xf32> to vector<1x1x1x128xf32>
    %91 = vector.broadcast %90 : vector<1x1x1x128xf32> to vector<4x8x8x128xf32>
    %92 = arith.addf %87, %91 : vector<4x8x8x128xf32>
    %c0_88 = arith.constant 0 : index
    %c0_89 = arith.constant 0 : index
    %93 = vector.load %arg3[%c0_88, %c0_89] : memref<81x128xf32, #tpu.memory_space<vmem>>, vector<1x128xf32>
    %94 = vector.shape_cast %93 : vector<1x128xf32> to vector<128xf32>
    %c0_90 = arith.constant 0 : index
    %c0_91 = arith.constant 0 : index
    %c0_92 = arith.constant 0 : index
    %c0_93 = arith.constant 0 : index
    %c0_94 = arith.constant 0 : index
    %95 = vector.load %arg7[%c0_90, %c0_91, %c0_92, %c0_93, %c0_94] : memref<3x4x10x8x128xf32, #tpu.memory_space<vmem>>, vector<1x3x8x8x128xf32>
    %96 = vector.shape_cast %95 : vector<1x3x8x8x128xf32> to vector<3x8x8x128xf32>
    %97 = vector.shape_cast %94 : vector<128xf32> to vector<1x1x1x128xf32>
    %98 = vector.broadcast %97 : vector<1x1x1x128xf32> to vector<3x8x8x128xf32>
    %99 = arith.mulf %96, %98 : vector<3x8x8x128xf32>
    %c1_95 = arith.constant 1 : index
    %c0_96 = arith.constant 0 : index
    %100 = vector.load %arg3[%c1_95, %c0_96] : memref<81x128xf32, #tpu.memory_space<vmem>>, vector<1x128xf32>
    %101 = vector.shape_cast %100 : vector<1x128xf32> to vector<128xf32>
    %c1_97 = arith.constant 1 : index
    %c0_98 = arith.constant 0 : index
    %c0_99 = arith.constant 0 : index
    %c0_100 = arith.constant 0 : index
    %c0_101 = arith.constant 0 : index
    %102 = vector.load %arg7[%c1_97, %c0_98, %c0_99, %c0_100, %c0_101] : memref<3x4x10x8x128xf32, #tpu.memory_space<vmem>>, vector<1x3x8x8x128xf32>
    %103 = vector.shape_cast %102 : vector<1x3x8x8x128xf32> to vector<3x8x8x128xf32>
    %104 = vector.shape_cast %101 : vector<128xf32> to vector<1x1x1x128xf32>
    %105 = vector.broadcast %104 : vector<1x1x1x128xf32> to vector<3x8x8x128xf32>
    %106 = arith.mulf %103, %105 : vector<3x8x8x128xf32>
    %107 = arith.addf %99, %106 : vector<3x8x8x128xf32>
    %c2_102 = arith.constant 2 : index
    %c0_103 = arith.constant 0 : index
    %108 = vector.load %arg3[%c2_102, %c0_103] : memref<81x128xf32, #tpu.memory_space<vmem>>, vector<1x128xf32>
    %109 = vector.shape_cast %108 : vector<1x128xf32> to vector<128xf32>
    %c2_104 = arith.constant 2 : index
    %c0_105 = arith.constant 0 : index
    %c0_106 = arith.constant 0 : index
    %c0_107 = arith.constant 0 : index
    %c0_108 = arith.constant 0 : index
    %110 = vector.load %arg7[%c2_104, %c0_105, %c0_106, %c0_107, %c0_108] : memref<3x4x10x8x128xf32, #tpu.memory_space<vmem>>, vector<1x3x8x8x128xf32>
    %111 = vector.shape_cast %110 : vector<1x3x8x8x128xf32> to vector<3x8x8x128xf32>
    %112 = vector.shape_cast %109 : vector<128xf32> to vector<1x1x1x128xf32>
    %113 = vector.broadcast %112 : vector<1x1x1x128xf32> to vector<3x8x8x128xf32>
    %114 = arith.mulf %111, %113 : vector<3x8x8x128xf32>
    %115 = arith.addf %107, %114 : vector<3x8x8x128xf32>
    %c3 = arith.constant 3 : index
    %c0_109 = arith.constant 0 : index
    %116 = vector.load %arg3[%c3, %c0_109] : memref<81x128xf32, #tpu.memory_space<vmem>>, vector<1x128xf32>
    %117 = vector.shape_cast %116 : vector<1x128xf32> to vector<128xf32>
    %c0_110 = arith.constant 0 : index
    %c0_111 = arith.constant 0 : index
    %c1_112 = arith.constant 1 : index
    %c0_113 = arith.constant 0 : index
    %c0_114 = arith.constant 0 : index
    %118 = vector.load %arg7[%c0_110, %c0_111, %c1_112, %c0_113, %c0_114] : memref<3x4x10x8x128xf32, #tpu.memory_space<vmem>>, vector<1x3x8x8x128xf32>
    %119 = vector.shape_cast %118 : vector<1x3x8x8x128xf32> to vector<3x8x8x128xf32>
    %120 = vector.shape_cast %117 : vector<128xf32> to vector<1x1x1x128xf32>
    %121 = vector.broadcast %120 : vector<1x1x1x128xf32> to vector<3x8x8x128xf32>
    %122 = arith.mulf %119, %121 : vector<3x8x8x128xf32>
    %123 = arith.addf %115, %122 : vector<3x8x8x128xf32>
    %c4 = arith.constant 4 : index
    %c0_115 = arith.constant 0 : index
    %124 = vector.load %arg3[%c4, %c0_115] : memref<81x128xf32, #tpu.memory_space<vmem>>, vector<1x128xf32>
    %125 = vector.shape_cast %124 : vector<1x128xf32> to vector<128xf32>
    %c1_116 = arith.constant 1 : index
    %c0_117 = arith.constant 0 : index
    %c1_118 = arith.constant 1 : index
    %c0_119 = arith.constant 0 : index
    %c0_120 = arith.constant 0 : index
    %126 = vector.load %arg7[%c1_116, %c0_117, %c1_118, %c0_119, %c0_120] : memref<3x4x10x8x128xf32, #tpu.memory_space<vmem>>, vector<1x3x8x8x128xf32>
    %127 = vector.shape_cast %126 : vector<1x3x8x8x128xf32> to vector<3x8x8x128xf32>
    %128 = vector.shape_cast %125 : vector<128xf32> to vector<1x1x1x128xf32>
    %129 = vector.broadcast %128 : vector<1x1x1x128xf32> to vector<3x8x8x128xf32>
    %130 = arith.mulf %127, %129 : vector<3x8x8x128xf32>
    %131 = arith.addf %123, %130 : vector<3x8x8x128xf32>
    %c5 = arith.constant 5 : index
    %c0_121 = arith.constant 0 : index
    %132 = vector.load %arg3[%c5, %c0_121] : memref<81x128xf32, #tpu.memory_space<vmem>>, vector<1x128xf32>
    %133 = vector.shape_cast %132 : vector<1x128xf32> to vector<128xf32>
    %c2_122 = arith.constant 2 : index
    %c0_123 = arith.constant 0 : index
    %c1_124 = arith.constant 1 : index
    %c0_125 = arith.constant 0 : index
    %c0_126 = arith.constant 0 : index
    %134 = vector.load %arg7[%c2_122, %c0_123, %c1_124, %c0_125, %c0_126] : memref<3x4x10x8x128xf32, #tpu.memory_space<vmem>>, vector<1x3x8x8x128xf32>
    %135 = vector.shape_cast %134 : vector<1x3x8x8x128xf32> to vector<3x8x8x128xf32>
    %136 = vector.shape_cast %133 : vector<128xf32> to vector<1x1x1x128xf32>
    %137 = vector.broadcast %136 : vector<1x1x1x128xf32> to vector<3x8x8x128xf32>
    %138 = arith.mulf %135, %137 : vector<3x8x8x128xf32>
    %139 = arith.addf %131, %138 : vector<3x8x8x128xf32>
    %c6 = arith.constant 6 : index
    %c0_127 = arith.constant 0 : index
    %140 = vector.load %arg3[%c6, %c0_127] : memref<81x128xf32, #tpu.memory_space<vmem>>, vector<1x128xf32>
    %141 = vector.shape_cast %140 : vector<1x128xf32> to vector<128xf32>
    %c0_128 = arith.constant 0 : index
    %c0_129 = arith.constant 0 : index
    %c2_130 = arith.constant 2 : index
    %c0_131 = arith.constant 0 : index
    %c0_132 = arith.constant 0 : index
    %142 = vector.load %arg7[%c0_128, %c0_129, %c2_130, %c0_131, %c0_132] : memref<3x4x10x8x128xf32, #tpu.memory_space<vmem>>, vector<1x3x8x8x128xf32>
    %143 = vector.shape_cast %142 : vector<1x3x8x8x128xf32> to vector<3x8x8x128xf32>
    %144 = vector.shape_cast %141 : vector<128xf32> to vector<1x1x1x128xf32>
    %145 = vector.broadcast %144 : vector<1x1x1x128xf32> to vector<3x8x8x128xf32>
    %146 = arith.mulf %143, %145 : vector<3x8x8x128xf32>
    %147 = arith.addf %139, %146 : vector<3x8x8x128xf32>
    %c7 = arith.constant 7 : index
    %c0_133 = arith.constant 0 : index
    %148 = vector.load %arg3[%c7, %c0_133] : memref<81x128xf32, #tpu.memory_space<vmem>>, vector<1x128xf32>
    %149 = vector.shape_cast %148 : vector<1x128xf32> to vector<128xf32>
    %c1_134 = arith.constant 1 : index
    %c0_135 = arith.constant 0 : index
    %c2_136 = arith.constant 2 : index
    %c0_137 = arith.constant 0 : index
    %c0_138 = arith.constant 0 : index
    %150 = vector.load %arg7[%c1_134, %c0_135, %c2_136, %c0_137, %c0_138] : memref<3x4x10x8x128xf32, #tpu.memory_space<vmem>>, vector<1x3x8x8x128xf32>
    %151 = vector.shape_cast %150 : vector<1x3x8x8x128xf32> to vector<3x8x8x128xf32>
    %152 = vector.shape_cast %149 : vector<128xf32> to vector<1x1x1x128xf32>
    %153 = vector.broadcast %152 : vector<1x1x1x128xf32> to vector<3x8x8x128xf32>
    %154 = arith.mulf %151, %153 : vector<3x8x8x128xf32>
    %155 = arith.addf %147, %154 : vector<3x8x8x128xf32>
    %c8 = arith.constant 8 : index
    %c0_139 = arith.constant 0 : index
    %156 = vector.load %arg3[%c8, %c0_139] : memref<81x128xf32, #tpu.memory_space<vmem>>, vector<1x128xf32>
    %157 = vector.shape_cast %156 : vector<1x128xf32> to vector<128xf32>
    %c2_140 = arith.constant 2 : index
    %c0_141 = arith.constant 0 : index
    %c2_142 = arith.constant 2 : index
    %c0_143 = arith.constant 0 : index
    %c0_144 = arith.constant 0 : index
    %158 = vector.load %arg7[%c2_140, %c0_141, %c2_142, %c0_143, %c0_144] : memref<3x4x10x8x128xf32, #tpu.memory_space<vmem>>, vector<1x3x8x8x128xf32>
    %159 = vector.shape_cast %158 : vector<1x3x8x8x128xf32> to vector<3x8x8x128xf32>
    %160 = vector.shape_cast %157 : vector<128xf32> to vector<1x1x1x128xf32>
    %161 = vector.broadcast %160 : vector<1x1x1x128xf32> to vector<3x8x8x128xf32>
    %162 = arith.mulf %159, %161 : vector<3x8x8x128xf32>
    %163 = arith.addf %155, %162 : vector<3x8x8x128xf32>
    %164 = vector.extract_strided_slice %92 {offsets = [0, 0, 0, 0], sizes = [1, 8, 8, 128], strides = [1, 1, 1, 1]} : vector<4x8x8x128xf32> to vector<1x8x8x128xf32>
    %165 = vector.extract_strided_slice %92 {offsets = [1, 0, 0, 0], sizes = [3, 8, 8, 128], strides = [1, 1, 1, 1]} : vector<4x8x8x128xf32> to vector<3x8x8x128xf32>
    %166 = arith.addf %165, %163 : vector<3x8x8x128xf32>
    %167 = tpu.concatenate %164, %166 in 0 : vector<1x8x8x128xf32>, vector<3x8x8x128xf32> -> vector<4x8x8x128xf32>
    %c18 = arith.constant 18 : index
    %c0_145 = arith.constant 0 : index
    %168 = vector.load %arg3[%c18, %c0_145] : memref<81x128xf32, #tpu.memory_space<vmem>>, vector<1x128xf32>
    %169 = vector.shape_cast %168 : vector<1x128xf32> to vector<128xf32>
    %c0_146 = arith.constant 0 : index
    %c1_147 = arith.constant 1 : index
    %c0_148 = arith.constant 0 : index
    %c0_149 = arith.constant 0 : index
    %c0_150 = arith.constant 0 : index
    %170 = vector.load %arg7[%c0_146, %c1_147, %c0_148, %c0_149, %c0_150] : memref<3x4x10x8x128xf32, #tpu.memory_space<vmem>>, vector<1x3x8x8x128xf32>
    %171 = vector.shape_cast %170 : vector<1x3x8x8x128xf32> to vector<3x8x8x128xf32>
    %172 = vector.shape_cast %169 : vector<128xf32> to vector<1x1x1x128xf32>
    %173 = vector.broadcast %172 : vector<1x1x1x128xf32> to vector<3x8x8x128xf32>
    %174 = arith.mulf %171, %173 : vector<3x8x8x128xf32>
    %c19 = arith.constant 19 : index
    %c0_151 = arith.constant 0 : index
    %175 = vector.load %arg3[%c19, %c0_151] : memref<81x128xf32, #tpu.memory_space<vmem>>, vector<1x128xf32>
    %176 = vector.shape_cast %175 : vector<1x128xf32> to vector<128xf32>
    %c1_152 = arith.constant 1 : index
    %c1_153 = arith.constant 1 : index
    %c0_154 = arith.constant 0 : index
    %c0_155 = arith.constant 0 : index
    %c0_156 = arith.constant 0 : index
    %177 = vector.load %arg7[%c1_152, %c1_153, %c0_154, %c0_155, %c0_156] : memref<3x4x10x8x128xf32, #tpu.memory_space<vmem>>, vector<1x3x8x8x128xf32>
    %178 = vector.shape_cast %177 : vector<1x3x8x8x128xf32> to vector<3x8x8x128xf32>
    %179 = vector.shape_cast %176 : vector<128xf32> to vector<1x1x1x128xf32>
    %180 = vector.broadcast %179 : vector<1x1x1x128xf32> to vector<3x8x8x128xf32>
    %181 = arith.mulf %178, %180 : vector<3x8x8x128xf32>
    %182 = arith.addf %174, %181 : vector<3x8x8x128xf32>
    %c20 = arith.constant 20 : index
    %c0_157 = arith.constant 0 : index
    %183 = vector.load %arg3[%c20, %c0_157] : memref<81x128xf32, #tpu.memory_space<vmem>>, vector<1x128xf32>
    %184 = vector.shape_cast %183 : vector<1x128xf32> to vector<128xf32>
    %c2_158 = arith.constant 2 : index
    %c1_159 = arith.constant 1 : index
    %c0_160 = arith.constant 0 : index
    %c0_161 = arith.constant 0 : index
    %c0_162 = arith.constant 0 : index
    %185 = vector.load %arg7[%c2_158, %c1_159, %c0_160, %c0_161, %c0_162] : memref<3x4x10x8x128xf32, #tpu.memory_space<vmem>>, vector<1x3x8x8x128xf32>
    %186 = vector.shape_cast %185 : vector<1x3x8x8x128xf32> to vector<3x8x8x128xf32>
    %187 = vector.shape_cast %184 : vector<128xf32> to vector<1x1x1x128xf32>
    %188 = vector.broadcast %187 : vector<1x1x1x128xf32> to vector<3x8x8x128xf32>
    %189 = arith.mulf %186, %188 : vector<3x8x8x128xf32>
    %190 = arith.addf %182, %189 : vector<3x8x8x128xf32>
    %c21 = arith.constant 21 : index
    %c0_163 = arith.constant 0 : index
    %191 = vector.load %arg3[%c21, %c0_163] : memref<81x128xf32, #tpu.memory_space<vmem>>, vector<1x128xf32>
    %192 = vector.shape_cast %191 : vector<1x128xf32> to vector<128xf32>
    %c0_164 = arith.constant 0 : index
    %c1_165 = arith.constant 1 : index
    %c1_166 = arith.constant 1 : index
    %c0_167 = arith.constant 0 : index
    %c0_168 = arith.constant 0 : index
    %193 = vector.load %arg7[%c0_164, %c1_165, %c1_166, %c0_167, %c0_168] : memref<3x4x10x8x128xf32, #tpu.memory_space<vmem>>, vector<1x3x8x8x128xf32>
    %194 = vector.shape_cast %193 : vector<1x3x8x8x128xf32> to vector<3x8x8x128xf32>
    %195 = vector.shape_cast %192 : vector<128xf32> to vector<1x1x1x128xf32>
    %196 = vector.broadcast %195 : vector<1x1x1x128xf32> to vector<3x8x8x128xf32>
    %197 = arith.mulf %194, %196 : vector<3x8x8x128xf32>
    %198 = arith.addf %190, %197 : vector<3x8x8x128xf32>
    %c22 = arith.constant 22 : index
    %c0_169 = arith.constant 0 : index
    %199 = vector.load %arg3[%c22, %c0_169] : memref<81x128xf32, #tpu.memory_space<vmem>>, vector<1x128xf32>
    %200 = vector.shape_cast %199 : vector<1x128xf32> to vector<128xf32>
    %c1_170 = arith.constant 1 : index
    %c1_171 = arith.constant 1 : index
    %c1_172 = arith.constant 1 : index
    %c0_173 = arith.constant 0 : index
    %c0_174 = arith.constant 0 : index
    %201 = vector.load %arg7[%c1_170, %c1_171, %c1_172, %c0_173, %c0_174] : memref<3x4x10x8x128xf32, #tpu.memory_space<vmem>>, vector<1x3x8x8x128xf32>
    %202 = vector.shape_cast %201 : vector<1x3x8x8x128xf32> to vector<3x8x8x128xf32>
    %203 = vector.shape_cast %200 : vector<128xf32> to vector<1x1x1x128xf32>
    %204 = vector.broadcast %203 : vector<1x1x1x128xf32> to vector<3x8x8x128xf32>
    %205 = arith.mulf %202, %204 : vector<3x8x8x128xf32>
    %206 = arith.addf %198, %205 : vector<3x8x8x128xf32>
    %c23 = arith.constant 23 : index
    %c0_175 = arith.constant 0 : index
    %207 = vector.load %arg3[%c23, %c0_175] : memref<81x128xf32, #tpu.memory_space<vmem>>, vector<1x128xf32>
    %208 = vector.shape_cast %207 : vector<1x128xf32> to vector<128xf32>
    %c2_176 = arith.constant 2 : index
    %c1_177 = arith.constant 1 : index
    %c1_178 = arith.constant 1 : index
    %c0_179 = arith.constant 0 : index
    %c0_180 = arith.constant 0 : index
    %209 = vector.load %arg7[%c2_176, %c1_177, %c1_178, %c0_179, %c0_180] : memref<3x4x10x8x128xf32, #tpu.memory_space<vmem>>, vector<1x3x8x8x128xf32>
    %210 = vector.shape_cast %209 : vector<1x3x8x8x128xf32> to vector<3x8x8x128xf32>
    %211 = vector.shape_cast %208 : vector<128xf32> to vector<1x1x1x128xf32>
    %212 = vector.broadcast %211 : vector<1x1x1x128xf32> to vector<3x8x8x128xf32>
    %213 = arith.mulf %210, %212 : vector<3x8x8x128xf32>
    %214 = arith.addf %206, %213 : vector<3x8x8x128xf32>
    %c24 = arith.constant 24 : index
    %c0_181 = arith.constant 0 : index
    %215 = vector.load %arg3[%c24, %c0_181] : memref<81x128xf32, #tpu.memory_space<vmem>>, vector<1x128xf32>
    %216 = vector.shape_cast %215 : vector<1x128xf32> to vector<128xf32>
    %c0_182 = arith.constant 0 : index
    %c1_183 = arith.constant 1 : index
    %c2_184 = arith.constant 2 : index
    %c0_185 = arith.constant 0 : index
    %c0_186 = arith.constant 0 : index
    %217 = vector.load %arg7[%c0_182, %c1_183, %c2_184, %c0_185, %c0_186] : memref<3x4x10x8x128xf32, #tpu.memory_space<vmem>>, vector<1x3x8x8x128xf32>
    %218 = vector.shape_cast %217 : vector<1x3x8x8x128xf32> to vector<3x8x8x128xf32>
    %219 = vector.shape_cast %216 : vector<128xf32> to vector<1x1x1x128xf32>
    %220 = vector.broadcast %219 : vector<1x1x1x128xf32> to vector<3x8x8x128xf32>
    %221 = arith.mulf %218, %220 : vector<3x8x8x128xf32>
    %222 = arith.addf %214, %221 : vector<3x8x8x128xf32>
    %c25 = arith.constant 25 : index
    %c0_187 = arith.constant 0 : index
    %223 = vector.load %arg3[%c25, %c0_187] : memref<81x128xf32, #tpu.memory_space<vmem>>, vector<1x128xf32>
    %224 = vector.shape_cast %223 : vector<1x128xf32> to vector<128xf32>
    %c1_188 = arith.constant 1 : index
    %c1_189 = arith.constant 1 : index
    %c2_190 = arith.constant 2 : index
    %c0_191 = arith.constant 0 : index
    %c0_192 = arith.constant 0 : index
    %225 = vector.load %arg7[%c1_188, %c1_189, %c2_190, %c0_191, %c0_192] : memref<3x4x10x8x128xf32, #tpu.memory_space<vmem>>, vector<1x3x8x8x128xf32>
    %226 = vector.shape_cast %225 : vector<1x3x8x8x128xf32> to vector<3x8x8x128xf32>
    %227 = vector.shape_cast %224 : vector<128xf32> to vector<1x1x1x128xf32>
    %228 = vector.broadcast %227 : vector<1x1x1x128xf32> to vector<3x8x8x128xf32>
    %229 = arith.mulf %226, %228 : vector<3x8x8x128xf32>
    %230 = arith.addf %222, %229 : vector<3x8x8x128xf32>
    %c26 = arith.constant 26 : index
    %c0_193 = arith.constant 0 : index
    %231 = vector.load %arg3[%c26, %c0_193] : memref<81x128xf32, #tpu.memory_space<vmem>>, vector<1x128xf32>
    %232 = vector.shape_cast %231 : vector<1x128xf32> to vector<128xf32>
    %c2_194 = arith.constant 2 : index
    %c1_195 = arith.constant 1 : index
    %c2_196 = arith.constant 2 : index
    %c0_197 = arith.constant 0 : index
    %c0_198 = arith.constant 0 : index
    %233 = vector.load %arg7[%c2_194, %c1_195, %c2_196, %c0_197, %c0_198] : memref<3x4x10x8x128xf32, #tpu.memory_space<vmem>>, vector<1x3x8x8x128xf32>
    %234 = vector.shape_cast %233 : vector<1x3x8x8x128xf32> to vector<3x8x8x128xf32>
    %235 = vector.shape_cast %232 : vector<128xf32> to vector<1x1x1x128xf32>
    %236 = vector.broadcast %235 : vector<1x1x1x128xf32> to vector<3x8x8x128xf32>
    %237 = arith.mulf %234, %236 : vector<3x8x8x128xf32>
    %238 = arith.addf %230, %237 : vector<3x8x8x128xf32>
    %239 = vector.extract_strided_slice %167 {offsets = [0, 0, 0, 0], sizes = [3, 8, 8, 128], strides = [1, 1, 1, 1]} : vector<4x8x8x128xf32> to vector<3x8x8x128xf32>
    %240 = arith.addf %239, %238 : vector<3x8x8x128xf32>
    %241 = vector.extract_strided_slice %167 {offsets = [3, 0, 0, 0], sizes = [1, 8, 8, 128], strides = [1, 1, 1, 1]} : vector<4x8x8x128xf32> to vector<1x8x8x128xf32>
    %242 = tpu.concatenate %240, %241 in 0 : vector<3x8x8x128xf32>, vector<1x8x8x128xf32> -> vector<4x8x8x128xf32>
    %243 = vector.extract_strided_slice %242 {offsets = [0, 0, 0, 0], sizes = [1, 8, 8, 128], strides = [1, 1, 1, 1]} : vector<4x8x8x128xf32> to vector<1x8x8x128xf32>
    %244 = vector.extract_strided_slice %242 {offsets = [1, 0, 0, 0], sizes = [3, 8, 8, 128], strides = [1, 1, 1, 1]} : vector<4x8x8x128xf32> to vector<3x8x8x128xf32>
    %245 = vector.extract_strided_slice %242 {offsets = [0, 0, 0, 0], sizes = [3, 8, 8, 128], strides = [1, 1, 1, 1]} : vector<4x8x8x128xf32> to vector<3x8x8x128xf32>
    %246 = arith.subf %244, %245 : vector<3x8x8x128xf32>
    %247 = tpu.concatenate %243, %246 in 0 : vector<1x8x8x128xf32>, vector<3x8x8x128xf32> -> vector<4x8x8x128xf32>
    %c0_199 = arith.constant 0 : index
    %248 = memref.load %arg5[%c0_199] : memref<3xf32, #tpu.memory_space<smem>>
    %cst_200 = arith.constant 5.000000e-01 : f32
    %249 = arith.mulf %cst_200, %248 : f32
    %cst_201 = arith.constant 5.000000e-01 : f32
    %250 = vector.broadcast %cst_201 : f32 to vector<4x8x8x128xf32>
    %251 = arith.mulf %250, %247 : vector<4x8x8x128xf32>
    %252 = math.tanh %251 : vector<4x8x8x128xf32>
    %253 = vector.broadcast %249 : f32 to vector<4x8x8x128xf32>
    %254 = arith.mulf %253, %252 : vector<4x8x8x128xf32>
    %c0_202 = arith.constant 0 : index
    %c0_203 = arith.constant 0 : index
    %c0_204 = arith.constant 0 : index
    %c0_205 = arith.constant 0 : index
    %c0_206 = arith.constant 0 : index
    %255 = vector.load %arg6[%c0_202, %c0_203, %c0_204, %c0_205, %c0_206] : memref<1x4x8x8x128xf32, #tpu.memory_space<vmem>>, vector<1x4x8x8x128xf32>
    %256 = vector.shape_cast %255 : vector<1x4x8x8x128xf32> to vector<4x8x8x128xf32>
    %257 = vector.shape_cast %254 : vector<4x8x8x128xf32> to vector<1x4x8x8x128xf32>
    tpu.vector_store %arg6[%c0_202, %c0_203, %c0_204, %c0_205, %c0_206], %257 {strides = array<i32>} : memref<1x4x8x8x128xf32, #tpu.memory_space<vmem>>, vector<1x4x8x8x128xf32>,
    %c36 = arith.constant 36 : index
    %c0_207 = arith.constant 0 : index
    %258 = vector.load %arg3[%c36, %c0_207] : memref<81x128xf32, #tpu.memory_space<vmem>>, vector<1x128xf32>
    %259 = vector.shape_cast %258 : vector<1x128xf32> to vector<128xf32>
    %c0_208 = arith.constant 0 : index
    %c0_209 = arith.constant 0 : index
    %c0_210 = arith.constant 0 : index
    %c0_211 = arith.constant 0 : index
    %c0_212 = arith.constant 0 : index
    %260 = vector.load %arg7[%c0_208, %c0_209, %c0_210, %c0_211, %c0_212] : memref<3x4x10x8x128xf32, #tpu.memory_space<vmem>>, vector<1x4x8x8x128xf32>
    %261 = vector.shape_cast %260 : vector<1x4x8x8x128xf32> to vector<4x8x8x128xf32>
    %262 = vector.shape_cast %259 : vector<128xf32> to vector<1x1x1x128xf32>
    %263 = vector.broadcast %262 : vector<1x1x1x128xf32> to vector<4x8x8x128xf32>
    %264 = arith.mulf %261, %263 : vector<4x8x8x128xf32>
    %c37 = arith.constant 37 : index
    %c0_213 = arith.constant 0 : index
    %265 = vector.load %arg3[%c37, %c0_213] : memref<81x128xf32, #tpu.memory_space<vmem>>, vector<1x128xf32>
    %266 = vector.shape_cast %265 : vector<1x128xf32> to vector<128xf32>
    %c1_214 = arith.constant 1 : index
    %c0_215 = arith.constant 0 : index
    %c0_216 = arith.constant 0 : index
    %c0_217 = arith.constant 0 : index
    %c0_218 = arith.constant 0 : index
    %267 = vector.load %arg7[%c1_214, %c0_215, %c0_216, %c0_217, %c0_218] : memref<3x4x10x8x128xf32, #tpu.memory_space<vmem>>, vector<1x4x8x8x128xf32>
    %268 = vector.shape_cast %267 : vector<1x4x8x8x128xf32> to vector<4x8x8x128xf32>
    %269 = vector.shape_cast %266 : vector<128xf32> to vector<1x1x1x128xf32>
    %270 = vector.broadcast %269 : vector<1x1x1x128xf32> to vector<4x8x8x128xf32>
    %271 = arith.mulf %268, %270 : vector<4x8x8x128xf32>
    %272 = arith.addf %264, %271 : vector<4x8x8x128xf32>
    %c38 = arith.constant 38 : index
    %c0_219 = arith.constant 0 : index
    %273 = vector.load %arg3[%c38, %c0_219] : memref<81x128xf32, #tpu.memory_space<vmem>>, vector<1x128xf32>
    %274 = vector.shape_cast %273 : vector<1x128xf32> to vector<128xf32>
    %c2_220 = arith.constant 2 : index
    %c0_221 = arith.constant 0 : index
    %c0_222 = arith.constant 0 : index
    %c0_223 = arith.constant 0 : index
    %c0_224 = arith.constant 0 : index
    %275 = vector.load %arg7[%c2_220, %c0_221, %c0_222, %c0_223, %c0_224] : memref<3x4x10x8x128xf32, #tpu.memory_space<vmem>>, vector<1x4x8x8x128xf32>
    %276 = vector.shape_cast %275 : vector<1x4x8x8x128xf32> to vector<4x8x8x128xf32>
    %277 = vector.shape_cast %274 : vector<128xf32> to vector<1x1x1x128xf32>
    %278 = vector.broadcast %277 : vector<1x1x1x128xf32> to vector<4x8x8x128xf32>
    %279 = arith.mulf %276, %278 : vector<4x8x8x128xf32>
    %280 = arith.addf %272, %279 : vector<4x8x8x128xf32>
    %c39 = arith.constant 39 : index
    %c0_225 = arith.constant 0 : index
    %281 = vector.load %arg3[%c39, %c0_225] : memref<81x128xf32, #tpu.memory_space<vmem>>, vector<1x128xf32>
    %282 = vector.shape_cast %281 : vector<1x128xf32> to vector<128xf32>
    %c0_226 = arith.constant 0 : index
    %c0_227 = arith.constant 0 : index
    %c1_228 = arith.constant 1 : index
    %c0_229 = arith.constant 0 : index
    %c0_230 = arith.constant 0 : index
    %283 = vector.load %arg7[%c0_226, %c0_227, %c1_228, %c0_229, %c0_230] : memref<3x4x10x8x128xf32, #tpu.memory_space<vmem>>, vector<1x4x8x8x128xf32>
    %284 = vector.shape_cast %283 : vector<1x4x8x8x128xf32> to vector<4x8x8x128xf32>
    %285 = vector.shape_cast %282 : vector<128xf32> to vector<1x1x1x128xf32>
    %286 = vector.broadcast %285 : vector<1x1x1x128xf32> to vector<4x8x8x128xf32>
    %287 = arith.mulf %284, %286 : vector<4x8x8x128xf32>
    %288 = arith.addf %280, %287 : vector<4x8x8x128xf32>
    %c40 = arith.constant 40 : index
    %c0_231 = arith.constant 0 : index
    %289 = vector.load %arg3[%c40, %c0_231] : memref<81x128xf32, #tpu.memory_space<vmem>>, vector<1x128xf32>
    %290 = vector.shape_cast %289 : vector<1x128xf32> to vector<128xf32>
    %c1_232 = arith.constant 1 : index
    %c0_233 = arith.constant 0 : index
    %c1_234 = arith.constant 1 : index
    %c0_235 = arith.constant 0 : index
    %c0_236 = arith.constant 0 : index
    %291 = vector.load %arg7[%c1_232, %c0_233, %c1_234, %c0_235, %c0_236] : memref<3x4x10x8x128xf32, #tpu.memory_space<vmem>>, vector<1x4x8x8x128xf32>
    %292 = vector.shape_cast %291 : vector<1x4x8x8x128xf32> to vector<4x8x8x128xf32>
    %293 = vector.shape_cast %290 : vector<128xf32> to vector<1x1x1x128xf32>
    %294 = vector.broadcast %293 : vector<1x1x1x128xf32> to vector<4x8x8x128xf32>
    %295 = arith.mulf %292, %294 : vector<4x8x8x128xf32>
    %296 = arith.addf %288, %295 : vector<4x8x8x128xf32>
    %c41 = arith.constant 41 : index
    %c0_237 = arith.constant 0 : index
    %297 = vector.load %arg3[%c41, %c0_237] : memref<81x128xf32, #tpu.memory_space<vmem>>, vector<1x128xf32>
    %298 = vector.shape_cast %297 : vector<1x128xf32> to vector<128xf32>
    %c2_238 = arith.constant 2 : index
    %c0_239 = arith.constant 0 : index
    %c1_240 = arith.constant 1 : index
    %c0_241 = arith.constant 0 : index
    %c0_242 = arith.constant 0 : index
    %299 = vector.load %arg7[%c2_238, %c0_239, %c1_240, %c0_241, %c0_242] : memref<3x4x10x8x128xf32, #tpu.memory_space<vmem>>, vector<1x4x8x8x128xf32>
    %300 = vector.shape_cast %299 : vector<1x4x8x8x128xf32> to vector<4x8x8x128xf32>
    %301 = vector.shape_cast %298 : vector<128xf32> to vector<1x1x1x128xf32>
    %302 = vector.broadcast %301 : vector<1x1x1x128xf32> to vector<4x8x8x128xf32>
    %303 = arith.mulf %300, %302 : vector<4x8x8x128xf32>
    %304 = arith.addf %296, %303 : vector<4x8x8x128xf32>
    %c42 = arith.constant 42 : index
    %c0_243 = arith.constant 0 : index
    %305 = vector.load %arg3[%c42, %c0_243] : memref<81x128xf32, #tpu.memory_space<vmem>>, vector<1x128xf32>
    %306 = vector.shape_cast %305 : vector<1x128xf32> to vector<128xf32>
    %c0_244 = arith.constant 0 : index
    %c0_245 = arith.constant 0 : index
    %c2_246 = arith.constant 2 : index
    %c0_247 = arith.constant 0 : index
    %c0_248 = arith.constant 0 : index
    %307 = vector.load %arg7[%c0_244, %c0_245, %c2_246, %c0_247, %c0_248] : memref<3x4x10x8x128xf32, #tpu.memory_space<vmem>>, vector<1x4x8x8x128xf32>
    %308 = vector.shape_cast %307 : vector<1x4x8x8x128xf32> to vector<4x8x8x128xf32>
    %309 = vector.shape_cast %306 : vector<128xf32> to vector<1x1x1x128xf32>
    %310 = vector.broadcast %309 : vector<1x1x1x128xf32> to vector<4x8x8x128xf32>
    %311 = arith.mulf %308, %310 : vector<4x8x8x128xf32>
    %312 = arith.addf %304, %311 : vector<4x8x8x128xf32>
    %c43 = arith.constant 43 : index
    %c0_249 = arith.constant 0 : index
    %313 = vector.load %arg3[%c43, %c0_249] : memref<81x128xf32, #tpu.memory_space<vmem>>, vector<1x128xf32>
    %314 = vector.shape_cast %313 : vector<1x128xf32> to vector<128xf32>
    %c1_250 = arith.constant 1 : index
    %c0_251 = arith.constant 0 : index
    %c2_252 = arith.constant 2 : index
    %c0_253 = arith.constant 0 : index
    %c0_254 = arith.constant 0 : index
    %315 = vector.load %arg7[%c1_250, %c0_251, %c2_252, %c0_253, %c0_254] : memref<3x4x10x8x128xf32, #tpu.memory_space<vmem>>, vector<1x4x8x8x128xf32>
    %316 = vector.shape_cast %315 : vector<1x4x8x8x128xf32> to vector<4x8x8x128xf32>
    %317 = vector.shape_cast %314 : vector<128xf32> to vector<1x1x1x128xf32>
    %318 = vector.broadcast %317 : vector<1x1x1x128xf32> to vector<4x8x8x128xf32>
    %319 = arith.mulf %316, %318 : vector<4x8x8x128xf32>
    %320 = arith.addf %312, %319 : vector<4x8x8x128xf32>
    %c44 = arith.constant 44 : index
    %c0_255 = arith.constant 0 : index
    %321 = vector.load %arg3[%c44, %c0_255] : memref<81x128xf32, #tpu.memory_space<vmem>>, vector<1x128xf32>
    %322 = vector.shape_cast %321 : vector<1x128xf32> to vector<128xf32>
    %c2_256 = arith.constant 2 : index
    %c0_257 = arith.constant 0 : index
    %c2_258 = arith.constant 2 : index
    %c0_259 = arith.constant 0 : index
    %c0_260 = arith.constant 0 : index
    %323 = vector.load %arg7[%c2_256, %c0_257, %c2_258, %c0_259, %c0_260] : memref<3x4x10x8x128xf32, #tpu.memory_space<vmem>>, vector<1x4x8x8x128xf32>
    %324 = vector.shape_cast %323 : vector<1x4x8x8x128xf32> to vector<4x8x8x128xf32>
    %325 = vector.shape_cast %322 : vector<128xf32> to vector<1x1x1x128xf32>
    %326 = vector.broadcast %325 : vector<1x1x1x128xf32> to vector<4x8x8x128xf32>
    %327 = arith.mulf %324, %326 : vector<4x8x8x128xf32>
    %328 = arith.addf %320, %327 : vector<4x8x8x128xf32>
    %c1_261 = arith.constant 1 : index
    %c0_262 = arith.constant 0 : index
    %329 = vector.load %arg4[%c1_261, %c0_262] : memref<3x128xf32, #tpu.memory_space<vmem>>, vector<1x128xf32>
    %330 = vector.shape_cast %329 : vector<1x128xf32> to vector<128xf32>
    %331 = vector.shape_cast %330 : vector<128xf32> to vector<1x1x1x128xf32>
    %332 = vector.broadcast %331 : vector<1x1x1x128xf32> to vector<4x8x8x128xf32>
    %333 = arith.addf %328, %332 : vector<4x8x8x128xf32>
    %c27 = arith.constant 27 : index
    %c0_263 = arith.constant 0 : index
    %334 = vector.load %arg3[%c27, %c0_263] : memref<81x128xf32, #tpu.memory_space<vmem>>, vector<1x128xf32>
    %335 = vector.shape_cast %334 : vector<1x128xf32> to vector<128xf32>
    %c0_264 = arith.constant 0 : index
    %c0_265 = arith.constant 0 : index
    %c0_266 = arith.constant 0 : index
    %c0_267 = arith.constant 0 : index
    %c0_268 = arith.constant 0 : index
    %336 = vector.load %arg7[%c0_264, %c0_265, %c0_266, %c0_267, %c0_268] : memref<3x4x10x8x128xf32, #tpu.memory_space<vmem>>, vector<1x2x8x8x128xf32>
    %337 = vector.shape_cast %336 : vector<1x2x8x8x128xf32> to vector<2x8x8x128xf32>
    %338 = vector.shape_cast %335 : vector<128xf32> to vector<1x1x1x128xf32>
    %339 = vector.broadcast %338 : vector<1x1x1x128xf32> to vector<2x8x8x128xf32>
    %340 = arith.mulf %337, %339 : vector<2x8x8x128xf32>
    %c28 = arith.constant 28 : index
    %c0_269 = arith.constant 0 : index
    %341 = vector.load %arg3[%c28, %c0_269] : memref<81x128xf32, #tpu.memory_space<vmem>>, vector<1x128xf32>
    %342 = vector.shape_cast %341 : vector<1x128xf32> to vector<128xf32>
    %c1_270 = arith.constant 1 : index
    %c0_271 = arith.constant 0 : index
    %c0_272 = arith.constant 0 : index
    %c0_273 = arith.constant 0 : index
    %c0_274 = arith.constant 0 : index
    %343 = vector.load %arg7[%c1_270, %c0_271, %c0_272, %c0_273, %c0_274] : memref<3x4x10x8x128xf32, #tpu.memory_space<vmem>>, vector<1x2x8x8x128xf32>
    %344 = vector.shape_cast %343 : vector<1x2x8x8x128xf32> to vector<2x8x8x128xf32>
    %345 = vector.shape_cast %342 : vector<128xf32> to vector<1x1x1x128xf32>
    %346 = vector.broadcast %345 : vector<1x1x1x128xf32> to vector<2x8x8x128xf32>
    %347 = arith.mulf %344, %346 : vector<2x8x8x128xf32>
    %348 = arith.addf %340, %347 : vector<2x8x8x128xf32>
    %c29 = arith.constant 29 : index
    %c0_275 = arith.constant 0 : index
    %349 = vector.load %arg3[%c29, %c0_275] : memref<81x128xf32, #tpu.memory_space<vmem>>, vector<1x128xf32>
    %350 = vector.shape_cast %349 : vector<1x128xf32> to vector<128xf32>
    %c2_276 = arith.constant 2 : index
    %c0_277 = arith.constant 0 : index
    %c0_278 = arith.constant 0 : index
    %c0_279 = arith.constant 0 : index
    %c0_280 = arith.constant 0 : index
    %351 = vector.load %arg7[%c2_276, %c0_277, %c0_278, %c0_279, %c0_280] : memref<3x4x10x8x128xf32, #tpu.memory_space<vmem>>, vector<1x2x8x8x128xf32>
    %352 = vector.shape_cast %351 : vector<1x2x8x8x128xf32> to vector<2x8x8x128xf32>
    %353 = vector.shape_cast %350 : vector<128xf32> to vector<1x1x1x128xf32>
    %354 = vector.broadcast %353 : vector<1x1x1x128xf32> to vector<2x8x8x128xf32>
    %355 = arith.mulf %352, %354 : vector<2x8x8x128xf32>
    %356 = arith.addf %348, %355 : vector<2x8x8x128xf32>
    %c30 = arith.constant 30 : index
    %c0_281 = arith.constant 0 : index
    %357 = vector.load %arg3[%c30, %c0_281] : memref<81x128xf32, #tpu.memory_space<vmem>>, vector<1x128xf32>
    %358 = vector.shape_cast %357 : vector<1x128xf32> to vector<128xf32>
    %c0_282 = arith.constant 0 : index
    %c0_283 = arith.constant 0 : index
    %c1_284 = arith.constant 1 : index
    %c0_285 = arith.constant 0 : index
    %c0_286 = arith.constant 0 : index
    %359 = vector.load %arg7[%c0_282, %c0_283, %c1_284, %c0_285, %c0_286] : memref<3x4x10x8x128xf32, #tpu.memory_space<vmem>>, vector<1x2x8x8x128xf32>
    %360 = vector.shape_cast %359 : vector<1x2x8x8x128xf32> to vector<2x8x8x128xf32>
    %361 = vector.shape_cast %358 : vector<128xf32> to vector<1x1x1x128xf32>
    %362 = vector.broadcast %361 : vector<1x1x1x128xf32> to vector<2x8x8x128xf32>
    %363 = arith.mulf %360, %362 : vector<2x8x8x128xf32>
    %364 = arith.addf %356, %363 : vector<2x8x8x128xf32>
    %c31 = arith.constant 31 : index
    %c0_287 = arith.constant 0 : index
    %365 = vector.load %arg3[%c31, %c0_287] : memref<81x128xf32, #tpu.memory_space<vmem>>, vector<1x128xf32>
    %366 = vector.shape_cast %365 : vector<1x128xf32> to vector<128xf32>
    %c1_288 = arith.constant 1 : index
    %c0_289 = arith.constant 0 : index
    %c1_290 = arith.constant 1 : index
    %c0_291 = arith.constant 0 : index
    %c0_292 = arith.constant 0 : index
    %367 = vector.load %arg7[%c1_288, %c0_289, %c1_290, %c0_291, %c0_292] : memref<3x4x10x8x128xf32, #tpu.memory_space<vmem>>, vector<1x2x8x8x128xf32>
    %368 = vector.shape_cast %367 : vector<1x2x8x8x128xf32> to vector<2x8x8x128xf32>
    %369 = vector.shape_cast %366 : vector<128xf32> to vector<1x1x1x128xf32>
    %370 = vector.broadcast %369 : vector<1x1x1x128xf32> to vector<2x8x8x128xf32>
    %371 = arith.mulf %368, %370 : vector<2x8x8x128xf32>
    %372 = arith.addf %364, %371 : vector<2x8x8x128xf32>
    %c32 = arith.constant 32 : index
    %c0_293 = arith.constant 0 : index
    %373 = vector.load %arg3[%c32, %c0_293] : memref<81x128xf32, #tpu.memory_space<vmem>>, vector<1x128xf32>
    %374 = vector.shape_cast %373 : vector<1x128xf32> to vector<128xf32>
    %c2_294 = arith.constant 2 : index
    %c0_295 = arith.constant 0 : index
    %c1_296 = arith.constant 1 : index
    %c0_297 = arith.constant 0 : index
    %c0_298 = arith.constant 0 : index
    %375 = vector.load %arg7[%c2_294, %c0_295, %c1_296, %c0_297, %c0_298] : memref<3x4x10x8x128xf32, #tpu.memory_space<vmem>>, vector<1x2x8x8x128xf32>
    %376 = vector.shape_cast %375 : vector<1x2x8x8x128xf32> to vector<2x8x8x128xf32>
    %377 = vector.shape_cast %374 : vector<128xf32> to vector<1x1x1x128xf32>
    %378 = vector.broadcast %377 : vector<1x1x1x128xf32> to vector<2x8x8x128xf32>
    %379 = arith.mulf %376, %378 : vector<2x8x8x128xf32>
    %380 = arith.addf %372, %379 : vector<2x8x8x128xf32>
    %c33 = arith.constant 33 : index
    %c0_299 = arith.constant 0 : index
    %381 = vector.load %arg3[%c33, %c0_299] : memref<81x128xf32, #tpu.memory_space<vmem>>, vector<1x128xf32>
    %382 = vector.shape_cast %381 : vector<1x128xf32> to vector<128xf32>
    %c0_300 = arith.constant 0 : index
    %c0_301 = arith.constant 0 : index
    %c2_302 = arith.constant 2 : index
    %c0_303 = arith.constant 0 : index
    %c0_304 = arith.constant 0 : index
    %383 = vector.load %arg7[%c0_300, %c0_301, %c2_302, %c0_303, %c0_304] : memref<3x4x10x8x128xf32, #tpu.memory_space<vmem>>, vector<1x2x8x8x128xf32>
    %384 = vector.shape_cast %383 : vector<1x2x8x8x128xf32> to vector<2x8x8x128xf32>
    %385 = vector.shape_cast %382 : vector<128xf32> to vector<1x1x1x128xf32>
    %386 = vector.broadcast %385 : vector<1x1x1x128xf32> to vector<2x8x8x128xf32>
    %387 = arith.mulf %384, %386 : vector<2x8x8x128xf32>
    %388 = arith.addf %380, %387 : vector<2x8x8x128xf32>
    %c34 = arith.constant 34 : index
    %c0_305 = arith.constant 0 : index
    %389 = vector.load %arg3[%c34, %c0_305] : memref<81x128xf32, #tpu.memory_space<vmem>>, vector<1x128xf32>
    %390 = vector.shape_cast %389 : vector<1x128xf32> to vector<128xf32>
    %c1_306 = arith.constant 1 : index
    %c0_307 = arith.constant 0 : index
    %c2_308 = arith.constant 2 : index
    %c0_309 = arith.constant 0 : index
    %c0_310 = arith.constant 0 : index
    %391 = vector.load %arg7[%c1_306, %c0_307, %c2_308, %c0_309, %c0_310] : memref<3x4x10x8x128xf32, #tpu.memory_space<vmem>>, vector<1x2x8x8x128xf32>
    %392 = vector.shape_cast %391 : vector<1x2x8x8x128xf32> to vector<2x8x8x128xf32>
    %393 = vector.shape_cast %390 : vector<128xf32> to vector<1x1x1x128xf32>
    %394 = vector.broadcast %393 : vector<1x1x1x128xf32> to vector<2x8x8x128xf32>
    %395 = arith.mulf %392, %394 : vector<2x8x8x128xf32>
    %396 = arith.addf %388, %395 : vector<2x8x8x128xf32>
    %c35 = arith.constant 35 : index
    %c0_311 = arith.constant 0 : index
    %397 = vector.load %arg3[%c35, %c0_311] : memref<81x128xf32, #tpu.memory_space<vmem>>, vector<1x128xf32>
    %398 = vector.shape_cast %397 : vector<1x128xf32> to vector<128xf32>
    %c2_312 = arith.constant 2 : index
    %c0_313 = arith.constant 0 : index
    %c2_314 = arith.constant 2 : index
    %c0_315 = arith.constant 0 : index
    %c0_316 = arith.constant 0 : index
    %399 = vector.load %arg7[%c2_312, %c0_313, %c2_314, %c0_315, %c0_316] : memref<3x4x10x8x128xf32, #tpu.memory_space<vmem>>, vector<1x2x8x8x128xf32>
    %400 = vector.shape_cast %399 : vector<1x2x8x8x128xf32> to vector<2x8x8x128xf32>
    %401 = vector.shape_cast %398 : vector<128xf32> to vector<1x1x1x128xf32>
    %402 = vector.broadcast %401 : vector<1x1x1x128xf32> to vector<2x8x8x128xf32>
    %403 = arith.mulf %400, %402 : vector<2x8x8x128xf32>
    %404 = arith.addf %396, %403 : vector<2x8x8x128xf32>
    %405 = vector.extract_strided_slice %333 {offsets = [0, 0, 0, 0], sizes = [2, 8, 8, 128], strides = [1, 1, 1, 1]} : vector<4x8x8x128xf32> to vector<2x8x8x128xf32>
    %406 = vector.extract_strided_slice %333 {offsets = [2, 0, 0, 0], sizes = [2, 8, 8, 128], strides = [1, 1, 1, 1]} : vector<4x8x8x128xf32> to vector<2x8x8x128xf32>
    %407 = arith.addf %406, %404 : vector<2x8x8x128xf32>
    %408 = tpu.concatenate %405, %407 in 0 : vector<2x8x8x128xf32>, vector<2x8x8x128xf32> -> vector<4x8x8x128xf32>
    %c45 = arith.constant 45 : index
    %c0_317 = arith.constant 0 : index
    %409 = vector.load %arg3[%c45, %c0_317] : memref<81x128xf32, #tpu.memory_space<vmem>>, vector<1x128xf32>
    %410 = vector.shape_cast %409 : vector<1x128xf32> to vector<128xf32>
    %c0_318 = arith.constant 0 : index
    %c2_319 = arith.constant 2 : index
    %c0_320 = arith.constant 0 : index
    %c0_321 = arith.constant 0 : index
    %c0_322 = arith.constant 0 : index
    %411 = vector.load %arg7[%c0_318, %c2_319, %c0_320, %c0_321, %c0_322] : memref<3x4x10x8x128xf32, #tpu.memory_space<vmem>>, vector<1x2x8x8x128xf32>
    %412 = vector.shape_cast %411 : vector<1x2x8x8x128xf32> to vector<2x8x8x128xf32>
    %413 = vector.shape_cast %410 : vector<128xf32> to vector<1x1x1x128xf32>
    %414 = vector.broadcast %413 : vector<1x1x1x128xf32> to vector<2x8x8x128xf32>
    %415 = arith.mulf %412, %414 : vector<2x8x8x128xf32>
    %c46 = arith.constant 46 : index
    %c0_323 = arith.constant 0 : index
    %416 = vector.load %arg3[%c46, %c0_323] : memref<81x128xf32, #tpu.memory_space<vmem>>, vector<1x128xf32>
    %417 = vector.shape_cast %416 : vector<1x128xf32> to vector<128xf32>
    %c1_324 = arith.constant 1 : index
    %c2_325 = arith.constant 2 : index
    %c0_326 = arith.constant 0 : index
    %c0_327 = arith.constant 0 : index
    %c0_328 = arith.constant 0 : index
    %418 = vector.load %arg7[%c1_324, %c2_325, %c0_326, %c0_327, %c0_328] : memref<3x4x10x8x128xf32, #tpu.memory_space<vmem>>, vector<1x2x8x8x128xf32>
    %419 = vector.shape_cast %418 : vector<1x2x8x8x128xf32> to vector<2x8x8x128xf32>
    %420 = vector.shape_cast %417 : vector<128xf32> to vector<1x1x1x128xf32>
    %421 = vector.broadcast %420 : vector<1x1x1x128xf32> to vector<2x8x8x128xf32>
    %422 = arith.mulf %419, %421 : vector<2x8x8x128xf32>
    %423 = arith.addf %415, %422 : vector<2x8x8x128xf32>
    %c47 = arith.constant 47 : index
    %c0_329 = arith.constant 0 : index
    %424 = vector.load %arg3[%c47, %c0_329] : memref<81x128xf32, #tpu.memory_space<vmem>>, vector<1x128xf32>
    %425 = vector.shape_cast %424 : vector<1x128xf32> to vector<128xf32>
    %c2_330 = arith.constant 2 : index
    %c2_331 = arith.constant 2 : index
    %c0_332 = arith.constant 0 : index
    %c0_333 = arith.constant 0 : index
    %c0_334 = arith.constant 0 : index
    %426 = vector.load %arg7[%c2_330, %c2_331, %c0_332, %c0_333, %c0_334] : memref<3x4x10x8x128xf32, #tpu.memory_space<vmem>>, vector<1x2x8x8x128xf32>
    %427 = vector.shape_cast %426 : vector<1x2x8x8x128xf32> to vector<2x8x8x128xf32>
    %428 = vector.shape_cast %425 : vector<128xf32> to vector<1x1x1x128xf32>
    %429 = vector.broadcast %428 : vector<1x1x1x128xf32> to vector<2x8x8x128xf32>
    %430 = arith.mulf %427, %429 : vector<2x8x8x128xf32>
    %431 = arith.addf %423, %430 : vector<2x8x8x128xf32>
    %c48 = arith.constant 48 : index
    %c0_335 = arith.constant 0 : index
    %432 = vector.load %arg3[%c48, %c0_335] : memref<81x128xf32, #tpu.memory_space<vmem>>, vector<1x128xf32>
    %433 = vector.shape_cast %432 : vector<1x128xf32> to vector<128xf32>
    %c0_336 = arith.constant 0 : index
    %c2_337 = arith.constant 2 : index
    %c1_338 = arith.constant 1 : index
    %c0_339 = arith.constant 0 : index
    %c0_340 = arith.constant 0 : index
    %434 = vector.load %arg7[%c0_336, %c2_337, %c1_338, %c0_339, %c0_340] : memref<3x4x10x8x128xf32, #tpu.memory_space<vmem>>, vector<1x2x8x8x128xf32>
    %435 = vector.shape_cast %434 : vector<1x2x8x8x128xf32> to vector<2x8x8x128xf32>
    %436 = vector.shape_cast %433 : vector<128xf32> to vector<1x1x1x128xf32>
    %437 = vector.broadcast %436 : vector<1x1x1x128xf32> to vector<2x8x8x128xf32>
    %438 = arith.mulf %435, %437 : vector<2x8x8x128xf32>
    %439 = arith.addf %431, %438 : vector<2x8x8x128xf32>
    %c49 = arith.constant 49 : index
    %c0_341 = arith.constant 0 : index
    %440 = vector.load %arg3[%c49, %c0_341] : memref<81x128xf32, #tpu.memory_space<vmem>>, vector<1x128xf32>
    %441 = vector.shape_cast %440 : vector<1x128xf32> to vector<128xf32>
    %c1_342 = arith.constant 1 : index
    %c2_343 = arith.constant 2 : index
    %c1_344 = arith.constant 1 : index
    %c0_345 = arith.constant 0 : index
    %c0_346 = arith.constant 0 : index
    %442 = vector.load %arg7[%c1_342, %c2_343, %c1_344, %c0_345, %c0_346] : memref<3x4x10x8x128xf32, #tpu.memory_space<vmem>>, vector<1x2x8x8x128xf32>
    %443 = vector.shape_cast %442 : vector<1x2x8x8x128xf32> to vector<2x8x8x128xf32>
    %444 = vector.shape_cast %441 : vector<128xf32> to vector<1x1x1x128xf32>
    %445 = vector.broadcast %444 : vector<1x1x1x128xf32> to vector<2x8x8x128xf32>
    %446 = arith.mulf %443, %445 : vector<2x8x8x128xf32>
    %447 = arith.addf %439, %446 : vector<2x8x8x128xf32>
    %c50 = arith.constant 50 : index
    %c0_347 = arith.constant 0 : index
    %448 = vector.load %arg3[%c50, %c0_347] : memref<81x128xf32, #tpu.memory_space<vmem>>, vector<1x128xf32>
    %449 = vector.shape_cast %448 : vector<1x128xf32> to vector<128xf32>
    %c2_348 = arith.constant 2 : index
    %c2_349 = arith.constant 2 : index
    %c1_350 = arith.constant 1 : index
    %c0_351 = arith.constant 0 : index
    %c0_352 = arith.constant 0 : index
    %450 = vector.load %arg7[%c2_348, %c2_349, %c1_350, %c0_351, %c0_352] : memref<3x4x10x8x128xf32, #tpu.memory_space<vmem>>, vector<1x2x8x8x128xf32>
    %451 = vector.shape_cast %450 : vector<1x2x8x8x128xf32> to vector<2x8x8x128xf32>
    %452 = vector.shape_cast %449 : vector<128xf32> to vector<1x1x1x128xf32>
    %453 = vector.broadcast %452 : vector<1x1x1x128xf32> to vector<2x8x8x128xf32>
    %454 = arith.mulf %451, %453 : vector<2x8x8x128xf32>
    %455 = arith.addf %447, %454 : vector<2x8x8x128xf32>
    %c51 = arith.constant 51 : index
    %c0_353 = arith.constant 0 : index
    %456 = vector.load %arg3[%c51, %c0_353] : memref<81x128xf32, #tpu.memory_space<vmem>>, vector<1x128xf32>
    %457 = vector.shape_cast %456 : vector<1x128xf32> to vector<128xf32>
    %c0_354 = arith.constant 0 : index
    %c2_355 = arith.constant 2 : index
    %c2_356 = arith.constant 2 : index
    %c0_357 = arith.constant 0 : index
    %c0_358 = arith.constant 0 : index
    %458 = vector.load %arg7[%c0_354, %c2_355, %c2_356, %c0_357, %c0_358] : memref<3x4x10x8x128xf32, #tpu.memory_space<vmem>>, vector<1x2x8x8x128xf32>
    %459 = vector.shape_cast %458 : vector<1x2x8x8x128xf32> to vector<2x8x8x128xf32>
    %460 = vector.shape_cast %457 : vector<128xf32> to vector<1x1x1x128xf32>
    %461 = vector.broadcast %460 : vector<1x1x1x128xf32> to vector<2x8x8x128xf32>
    %462 = arith.mulf %459, %461 : vector<2x8x8x128xf32>
    %463 = arith.addf %455, %462 : vector<2x8x8x128xf32>
    %c52 = arith.constant 52 : index
    %c0_359 = arith.constant 0 : index
    %464 = vector.load %arg3[%c52, %c0_359] : memref<81x128xf32, #tpu.memory_space<vmem>>, vector<1x128xf32>
    %465 = vector.shape_cast %464 : vector<1x128xf32> to vector<128xf32>
    %c1_360 = arith.constant 1 : index
    %c2_361 = arith.constant 2 : index
    %c2_362 = arith.constant 2 : index
    %c0_363 = arith.constant 0 : index
    %c0_364 = arith.constant 0 : index
    %466 = vector.load %arg7[%c1_360, %c2_361, %c2_362, %c0_363, %c0_364] : memref<3x4x10x8x128xf32, #tpu.memory_space<vmem>>, vector<1x2x8x8x128xf32>
    %467 = vector.shape_cast %466 : vector<1x2x8x8x128xf32> to vector<2x8x8x128xf32>
    %468 = vector.shape_cast %465 : vector<128xf32> to vector<1x1x1x128xf32>
    %469 = vector.broadcast %468 : vector<1x1x1x128xf32> to vector<2x8x8x128xf32>
    %470 = arith.mulf %467, %469 : vector<2x8x8x128xf32>
    %471 = arith.addf %463, %470 : vector<2x8x8x128xf32>
    %c53 = arith.constant 53 : index
    %c0_365 = arith.constant 0 : index
    %472 = vector.load %arg3[%c53, %c0_365] : memref<81x128xf32, #tpu.memory_space<vmem>>, vector<1x128xf32>
    %473 = vector.shape_cast %472 : vector<1x128xf32> to vector<128xf32>
    %c2_366 = arith.constant 2 : index
    %c2_367 = arith.constant 2 : index
    %c2_368 = arith.constant 2 : index
    %c0_369 = arith.constant 0 : index
    %c0_370 = arith.constant 0 : index
    %474 = vector.load %arg7[%c2_366, %c2_367, %c2_368, %c0_369, %c0_370] : memref<3x4x10x8x128xf32, #tpu.memory_space<vmem>>, vector<1x2x8x8x128xf32>
    %475 = vector.shape_cast %474 : vector<1x2x8x8x128xf32> to vector<2x8x8x128xf32>
    %476 = vector.shape_cast %473 : vector<128xf32> to vector<1x1x1x128xf32>
    %477 = vector.broadcast %476 : vector<1x1x1x128xf32> to vector<2x8x8x128xf32>
    %478 = arith.mulf %475, %477 : vector<2x8x8x128xf32>
    %479 = arith.addf %471, %478 : vector<2x8x8x128xf32>
    %480 = vector.extract_strided_slice %408 {offsets = [0, 0, 0, 0], sizes = [2, 8, 8, 128], strides = [1, 1, 1, 1]} : vector<4x8x8x128xf32> to vector<2x8x8x128xf32>
    %481 = arith.addf %480, %479 : vector<2x8x8x128xf32>
    %482 = vector.extract_strided_slice %408 {offsets = [2, 0, 0, 0], sizes = [2, 8, 8, 128], strides = [1, 1, 1, 1]} : vector<4x8x8x128xf32> to vector<2x8x8x128xf32>
    %483 = tpu.concatenate %481, %482 in 0 : vector<2x8x8x128xf32>, vector<2x8x8x128xf32> -> vector<4x8x8x128xf32>
    %484 = vector.extract_strided_slice %483 {offsets = [0, 0, 0, 0], sizes = [2, 8, 8, 128], strides = [1, 1, 1, 1]} : vector<4x8x8x128xf32> to vector<2x8x8x128xf32>
    %485 = vector.extract_strided_slice %483 {offsets = [2, 0, 0, 0], sizes = [2, 8, 8, 128], strides = [1, 1, 1, 1]} : vector<4x8x8x128xf32> to vector<2x8x8x128xf32>
    %486 = vector.extract_strided_slice %483 {offsets = [0, 0, 0, 0], sizes = [2, 8, 8, 128], strides = [1, 1, 1, 1]} : vector<4x8x8x128xf32> to vector<2x8x8x128xf32>
    %487 = arith.subf %485, %486 : vector<2x8x8x128xf32>
    %488 = tpu.concatenate %484, %487 in 0 : vector<2x8x8x128xf32>, vector<2x8x8x128xf32> -> vector<4x8x8x128xf32>
    %c1_371 = arith.constant 1 : index
    %489 = memref.load %arg5[%c1_371] : memref<3xf32, #tpu.memory_space<smem>>
    %cst_372 = arith.constant 5.000000e-01 : f32
    %490 = arith.mulf %cst_372, %489 : f32
    %cst_373 = arith.constant 5.000000e-01 : f32
    %491 = vector.broadcast %cst_373 : f32 to vector<4x8x8x128xf32>
    %492 = arith.mulf %491, %488 : vector<4x8x8x128xf32>
    %493 = math.tanh %492 : vector<4x8x8x128xf32>
    %494 = vector.broadcast %490 : f32 to vector<4x8x8x128xf32>
    %495 = arith.mulf %494, %493 : vector<4x8x8x128xf32>
    %c0_374 = arith.constant 0 : index
    %c0_375 = arith.constant 0 : index
    %c0_376 = arith.constant 0 : index
    %c0_377 = arith.constant 0 : index
    %c0_378 = arith.constant 0 : index
    %496 = vector.load %arg6[%c0_374, %c0_375, %c0_376, %c0_377, %c0_378] : memref<1x4x8x8x128xf32, #tpu.memory_space<vmem>>, vector<1x4x8x8x128xf32>
    %497 = vector.shape_cast %496 : vector<1x4x8x8x128xf32> to vector<4x8x8x128xf32>
    %498 = arith.addf %497, %495 : vector<4x8x8x128xf32>
    %c0_379 = arith.constant 0 : index
    %c0_380 = arith.constant 0 : index
    %c0_381 = arith.constant 0 : index
    %c0_382 = arith.constant 0 : index
    %c0_383 = arith.constant 0 : index
    %499 = vector.load %arg6[%c0_379, %c0_380, %c0_381, %c0_382, %c0_383] : memref<1x4x8x8x128xf32, #tpu.memory_space<vmem>>, vector<1x4x8x8x128xf32>
    %500 = vector.shape_cast %499 : vector<1x4x8x8x128xf32> to vector<4x8x8x128xf32>
    %501 = vector.shape_cast %498 : vector<4x8x8x128xf32> to vector<1x4x8x8x128xf32>
    tpu.vector_store %arg6[%c0_379, %c0_380, %c0_381, %c0_382, %c0_383], %501 {strides = array<i32>} : memref<1x4x8x8x128xf32, #tpu.memory_space<vmem>>, vector<1x4x8x8x128xf32>,
    %c63 = arith.constant 63 : index
    %c0_384 = arith.constant 0 : index
    %502 = vector.load %arg3[%c63, %c0_384] : memref<81x128xf32, #tpu.memory_space<vmem>>, vector<1x128xf32>
    %503 = vector.shape_cast %502 : vector<1x128xf32> to vector<128xf32>
    %c0_385 = arith.constant 0 : index
    %c0_386 = arith.constant 0 : index
    %c0_387 = arith.constant 0 : index
    %c0_388 = arith.constant 0 : index
    %c0_389 = arith.constant 0 : index
    %504 = vector.load %arg7[%c0_385, %c0_386, %c0_387, %c0_388, %c0_389] : memref<3x4x10x8x128xf32, #tpu.memory_space<vmem>>, vector<1x4x8x8x128xf32>
    %505 = vector.shape_cast %504 : vector<1x4x8x8x128xf32> to vector<4x8x8x128xf32>
    %506 = vector.shape_cast %503 : vector<128xf32> to vector<1x1x1x128xf32>
    %507 = vector.broadcast %506 : vector<1x1x1x128xf32> to vector<4x8x8x128xf32>
    %508 = arith.mulf %505, %507 : vector<4x8x8x128xf32>
    %c64 = arith.constant 64 : index
    %c0_390 = arith.constant 0 : index
    %509 = vector.load %arg3[%c64, %c0_390] : memref<81x128xf32, #tpu.memory_space<vmem>>, vector<1x128xf32>
    %510 = vector.shape_cast %509 : vector<1x128xf32> to vector<128xf32>
    %c1_391 = arith.constant 1 : index
    %c0_392 = arith.constant 0 : index
    %c0_393 = arith.constant 0 : index
    %c0_394 = arith.constant 0 : index
    %c0_395 = arith.constant 0 : index
    %511 = vector.load %arg7[%c1_391, %c0_392, %c0_393, %c0_394, %c0_395] : memref<3x4x10x8x128xf32, #tpu.memory_space<vmem>>, vector<1x4x8x8x128xf32>
    %512 = vector.shape_cast %511 : vector<1x4x8x8x128xf32> to vector<4x8x8x128xf32>
    %513 = vector.shape_cast %510 : vector<128xf32> to vector<1x1x1x128xf32>
    %514 = vector.broadcast %513 : vector<1x1x1x128xf32> to vector<4x8x8x128xf32>
    %515 = arith.mulf %512, %514 : vector<4x8x8x128xf32>
    %516 = arith.addf %508, %515 : vector<4x8x8x128xf32>
    %c65 = arith.constant 65 : index
    %c0_396 = arith.constant 0 : index
    %517 = vector.load %arg3[%c65, %c0_396] : memref<81x128xf32, #tpu.memory_space<vmem>>, vector<1x128xf32>
    %518 = vector.shape_cast %517 : vector<1x128xf32> to vector<128xf32>
    %c2_397 = arith.constant 2 : index
    %c0_398 = arith.constant 0 : index
    %c0_399 = arith.constant 0 : index
    %c0_400 = arith.constant 0 : index
    %c0_401 = arith.constant 0 : index
    %519 = vector.load %arg7[%c2_397, %c0_398, %c0_399, %c0_400, %c0_401] : memref<3x4x10x8x128xf32, #tpu.memory_space<vmem>>, vector<1x4x8x8x128xf32>
    %520 = vector.shape_cast %519 : vector<1x4x8x8x128xf32> to vector<4x8x8x128xf32>
    %521 = vector.shape_cast %518 : vector<128xf32> to vector<1x1x1x128xf32>
    %522 = vector.broadcast %521 : vector<1x1x1x128xf32> to vector<4x8x8x128xf32>
    %523 = arith.mulf %520, %522 : vector<4x8x8x128xf32>
    %524 = arith.addf %516, %523 : vector<4x8x8x128xf32>
    %c66 = arith.constant 66 : index
    %c0_402 = arith.constant 0 : index
    %525 = vector.load %arg3[%c66, %c0_402] : memref<81x128xf32, #tpu.memory_space<vmem>>, vector<1x128xf32>
    %526 = vector.shape_cast %525 : vector<1x128xf32> to vector<128xf32>
    %c0_403 = arith.constant 0 : index
    %c0_404 = arith.constant 0 : index
    %c1_405 = arith.constant 1 : index
    %c0_406 = arith.constant 0 : index
    %c0_407 = arith.constant 0 : index
    %527 = vector.load %arg7[%c0_403, %c0_404, %c1_405, %c0_406, %c0_407] : memref<3x4x10x8x128xf32, #tpu.memory_space<vmem>>, vector<1x4x8x8x128xf32>
    %528 = vector.shape_cast %527 : vector<1x4x8x8x128xf32> to vector<4x8x8x128xf32>
    %529 = vector.shape_cast %526 : vector<128xf32> to vector<1x1x1x128xf32>
    %530 = vector.broadcast %529 : vector<1x1x1x128xf32> to vector<4x8x8x128xf32>
    %531 = arith.mulf %528, %530 : vector<4x8x8x128xf32>
    %532 = arith.addf %524, %531 : vector<4x8x8x128xf32>
    %c67 = arith.constant 67 : index
    %c0_408 = arith.constant 0 : index
    %533 = vector.load %arg3[%c67, %c0_408] : memref<81x128xf32, #tpu.memory_space<vmem>>, vector<1x128xf32>
    %534 = vector.shape_cast %533 : vector<1x128xf32> to vector<128xf32>
    %c1_409 = arith.constant 1 : index
    %c0_410 = arith.constant 0 : index
    %c1_411 = arith.constant 1 : index
    %c0_412 = arith.constant 0 : index
    %c0_413 = arith.constant 0 : index
    %535 = vector.load %arg7[%c1_409, %c0_410, %c1_411, %c0_412, %c0_413] : memref<3x4x10x8x128xf32, #tpu.memory_space<vmem>>, vector<1x4x8x8x128xf32>
    %536 = vector.shape_cast %535 : vector<1x4x8x8x128xf32> to vector<4x8x8x128xf32>
    %537 = vector.shape_cast %534 : vector<128xf32> to vector<1x1x1x128xf32>
    %538 = vector.broadcast %537 : vector<1x1x1x128xf32> to vector<4x8x8x128xf32>
    %539 = arith.mulf %536, %538 : vector<4x8x8x128xf32>
    %540 = arith.addf %532, %539 : vector<4x8x8x128xf32>
    %c68 = arith.constant 68 : index
    %c0_414 = arith.constant 0 : index
    %541 = vector.load %arg3[%c68, %c0_414] : memref<81x128xf32, #tpu.memory_space<vmem>>, vector<1x128xf32>
    %542 = vector.shape_cast %541 : vector<1x128xf32> to vector<128xf32>
    %c2_415 = arith.constant 2 : index
    %c0_416 = arith.constant 0 : index
    %c1_417 = arith.constant 1 : index
    %c0_418 = arith.constant 0 : index
    %c0_419 = arith.constant 0 : index
    %543 = vector.load %arg7[%c2_415, %c0_416, %c1_417, %c0_418, %c0_419] : memref<3x4x10x8x128xf32, #tpu.memory_space<vmem>>, vector<1x4x8x8x128xf32>
    %544 = vector.shape_cast %543 : vector<1x4x8x8x128xf32> to vector<4x8x8x128xf32>
    %545 = vector.shape_cast %542 : vector<128xf32> to vector<1x1x1x128xf32>
    %546 = vector.broadcast %545 : vector<1x1x1x128xf32> to vector<4x8x8x128xf32>
    %547 = arith.mulf %544, %546 : vector<4x8x8x128xf32>
    %548 = arith.addf %540, %547 : vector<4x8x8x128xf32>
    %c69 = arith.constant 69 : index
    %c0_420 = arith.constant 0 : index
    %549 = vector.load %arg3[%c69, %c0_420] : memref<81x128xf32, #tpu.memory_space<vmem>>, vector<1x128xf32>
    %550 = vector.shape_cast %549 : vector<1x128xf32> to vector<128xf32>
    %c0_421 = arith.constant 0 : index
    %c0_422 = arith.constant 0 : index
    %c2_423 = arith.constant 2 : index
    %c0_424 = arith.constant 0 : index
    %c0_425 = arith.constant 0 : index
    %551 = vector.load %arg7[%c0_421, %c0_422, %c2_423, %c0_424, %c0_425] : memref<3x4x10x8x128xf32, #tpu.memory_space<vmem>>, vector<1x4x8x8x128xf32>
    %552 = vector.shape_cast %551 : vector<1x4x8x8x128xf32> to vector<4x8x8x128xf32>
    %553 = vector.shape_cast %550 : vector<128xf32> to vector<1x1x1x128xf32>
    %554 = vector.broadcast %553 : vector<1x1x1x128xf32> to vector<4x8x8x128xf32>
    %555 = arith.mulf %552, %554 : vector<4x8x8x128xf32>
    %556 = arith.addf %548, %555 : vector<4x8x8x128xf32>
    %c70 = arith.constant 70 : index
    %c0_426 = arith.constant 0 : index
    %557 = vector.load %arg3[%c70, %c0_426] : memref<81x128xf32, #tpu.memory_space<vmem>>, vector<1x128xf32>
    %558 = vector.shape_cast %557 : vector<1x128xf32> to vector<128xf32>
    %c1_427 = arith.constant 1 : index
    %c0_428 = arith.constant 0 : index
    %c2_429 = arith.constant 2 : index
    %c0_430 = arith.constant 0 : index
    %c0_431 = arith.constant 0 : index
    %559 = vector.load %arg7[%c1_427, %c0_428, %c2_429, %c0_430, %c0_431] : memref<3x4x10x8x128xf32, #tpu.memory_space<vmem>>, vector<1x4x8x8x128xf32>
    %560 = vector.shape_cast %559 : vector<1x4x8x8x128xf32> to vector<4x8x8x128xf32>
    %561 = vector.shape_cast %558 : vector<128xf32> to vector<1x1x1x128xf32>
    %562 = vector.broadcast %561 : vector<1x1x1x128xf32> to vector<4x8x8x128xf32>
    %563 = arith.mulf %560, %562 : vector<4x8x8x128xf32>
    %564 = arith.addf %556, %563 : vector<4x8x8x128xf32>
    %c71 = arith.constant 71 : index
    %c0_432 = arith.constant 0 : index
    %565 = vector.load %arg3[%c71, %c0_432] : memref<81x128xf32, #tpu.memory_space<vmem>>, vector<1x128xf32>
    %566 = vector.shape_cast %565 : vector<1x128xf32> to vector<128xf32>
    %c2_433 = arith.constant 2 : index
    %c0_434 = arith.constant 0 : index
    %c2_435 = arith.constant 2 : index
    %c0_436 = arith.constant 0 : index
    %c0_437 = arith.constant 0 : index
    %567 = vector.load %arg7[%c2_433, %c0_434, %c2_435, %c0_436, %c0_437] : memref<3x4x10x8x128xf32, #tpu.memory_space<vmem>>, vector<1x4x8x8x128xf32>
    %568 = vector.shape_cast %567 : vector<1x4x8x8x128xf32> to vector<4x8x8x128xf32>
    %569 = vector.shape_cast %566 : vector<128xf32> to vector<1x1x1x128xf32>
    %570 = vector.broadcast %569 : vector<1x1x1x128xf32> to vector<4x8x8x128xf32>
    %571 = arith.mulf %568, %570 : vector<4x8x8x128xf32>
    %572 = arith.addf %564, %571 : vector<4x8x8x128xf32>
    %c2_438 = arith.constant 2 : index
    %c0_439 = arith.constant 0 : index
    %573 = vector.load %arg4[%c2_438, %c0_439] : memref<3x128xf32, #tpu.memory_space<vmem>>, vector<1x128xf32>
    %574 = vector.shape_cast %573 : vector<1x128xf32> to vector<128xf32>
    %575 = vector.shape_cast %574 : vector<128xf32> to vector<1x1x1x128xf32>
    %576 = vector.broadcast %575 : vector<1x1x1x128xf32> to vector<4x8x8x128xf32>
    %577 = arith.addf %572, %576 : vector<4x8x8x128xf32>
    %c54 = arith.constant 54 : index
    %c0_440 = arith.constant 0 : index
    %578 = vector.load %arg3[%c54, %c0_440] : memref<81x128xf32, #tpu.memory_space<vmem>>, vector<1x128xf32>
    %579 = vector.shape_cast %578 : vector<1x128xf32> to vector<128xf32>
    %c0_441 = arith.constant 0 : index
    %c0_442 = arith.constant 0 : index
    %c0_443 = arith.constant 0 : index
    %c0_444 = arith.constant 0 : index
    %c0_445 = arith.constant 0 : index
    %580 = vector.load %arg7[%c0_441, %c0_442, %c0_443, %c0_444, %c0_445] : memref<3x4x10x8x128xf32, #tpu.memory_space<vmem>>, vector<1x1x8x8x128xf32>
    %581 = vector.shape_cast %580 : vector<1x1x8x8x128xf32> to vector<1x8x8x128xf32>
    %582 = vector.shape_cast %579 : vector<128xf32> to vector<1x1x1x128xf32>
    %583 = vector.broadcast %582 : vector<1x1x1x128xf32> to vector<1x8x8x128xf32>
    %584 = arith.mulf %581, %583 : vector<1x8x8x128xf32>
    %c55 = arith.constant 55 : index
    %c0_446 = arith.constant 0 : index
    %585 = vector.load %arg3[%c55, %c0_446] : memref<81x128xf32, #tpu.memory_space<vmem>>, vector<1x128xf32>
    %586 = vector.shape_cast %585 : vector<1x128xf32> to vector<128xf32>
    %c1_447 = arith.constant 1 : index
    %c0_448 = arith.constant 0 : index
    %c0_449 = arith.constant 0 : index
    %c0_450 = arith.constant 0 : index
    %c0_451 = arith.constant 0 : index
    %587 = vector.load %arg7[%c1_447, %c0_448, %c0_449, %c0_450, %c0_451] : memref<3x4x10x8x128xf32, #tpu.memory_space<vmem>>, vector<1x1x8x8x128xf32>
    %588 = vector.shape_cast %587 : vector<1x1x8x8x128xf32> to vector<1x8x8x128xf32>
    %589 = vector.shape_cast %586 : vector<128xf32> to vector<1x1x1x128xf32>
    %590 = vector.broadcast %589 : vector<1x1x1x128xf32> to vector<1x8x8x128xf32>
    %591 = arith.mulf %588, %590 : vector<1x8x8x128xf32>
    %592 = arith.addf %584, %591 : vector<1x8x8x128xf32>
    %c56 = arith.constant 56 : index
    %c0_452 = arith.constant 0 : index
    %593 = vector.load %arg3[%c56, %c0_452] : memref<81x128xf32, #tpu.memory_space<vmem>>, vector<1x128xf32>
    %594 = vector.shape_cast %593 : vector<1x128xf32> to vector<128xf32>
    %c2_453 = arith.constant 2 : index
    %c0_454 = arith.constant 0 : index
    %c0_455 = arith.constant 0 : index
    %c0_456 = arith.constant 0 : index
    %c0_457 = arith.constant 0 : index
    %595 = vector.load %arg7[%c2_453, %c0_454, %c0_455, %c0_456, %c0_457] : memref<3x4x10x8x128xf32, #tpu.memory_space<vmem>>, vector<1x1x8x8x128xf32>
    %596 = vector.shape_cast %595 : vector<1x1x8x8x128xf32> to vector<1x8x8x128xf32>
    %597 = vector.shape_cast %594 : vector<128xf32> to vector<1x1x1x128xf32>
    %598 = vector.broadcast %597 : vector<1x1x1x128xf32> to vector<1x8x8x128xf32>
    %599 = arith.mulf %596, %598 : vector<1x8x8x128xf32>
    %600 = arith.addf %592, %599 : vector<1x8x8x128xf32>
    %c57 = arith.constant 57 : index
    %c0_458 = arith.constant 0 : index
    %601 = vector.load %arg3[%c57, %c0_458] : memref<81x128xf32, #tpu.memory_space<vmem>>, vector<1x128xf32>
    %602 = vector.shape_cast %601 : vector<1x128xf32> to vector<128xf32>
    %c0_459 = arith.constant 0 : index
    %c0_460 = arith.constant 0 : index
    %c1_461 = arith.constant 1 : index
    %c0_462 = arith.constant 0 : index
    %c0_463 = arith.constant 0 : index
    %603 = vector.load %arg7[%c0_459, %c0_460, %c1_461, %c0_462, %c0_463] : memref<3x4x10x8x128xf32, #tpu.memory_space<vmem>>, vector<1x1x8x8x128xf32>
    %604 = vector.shape_cast %603 : vector<1x1x8x8x128xf32> to vector<1x8x8x128xf32>
    %605 = vector.shape_cast %602 : vector<128xf32> to vector<1x1x1x128xf32>
    %606 = vector.broadcast %605 : vector<1x1x1x128xf32> to vector<1x8x8x128xf32>
    %607 = arith.mulf %604, %606 : vector<1x8x8x128xf32>
    %608 = arith.addf %600, %607 : vector<1x8x8x128xf32>
    %c58 = arith.constant 58 : index
    %c0_464 = arith.constant 0 : index
    %609 = vector.load %arg3[%c58, %c0_464] : memref<81x128xf32, #tpu.memory_space<vmem>>, vector<1x128xf32>
    %610 = vector.shape_cast %609 : vector<1x128xf32> to vector<128xf32>
    %c1_465 = arith.constant 1 : index
    %c0_466 = arith.constant 0 : index
    %c1_467 = arith.constant 1 : index
    %c0_468 = arith.constant 0 : index
    %c0_469 = arith.constant 0 : index
    %611 = vector.load %arg7[%c1_465, %c0_466, %c1_467, %c0_468, %c0_469] : memref<3x4x10x8x128xf32, #tpu.memory_space<vmem>>, vector<1x1x8x8x128xf32>
    %612 = vector.shape_cast %611 : vector<1x1x8x8x128xf32> to vector<1x8x8x128xf32>
    %613 = vector.shape_cast %610 : vector<128xf32> to vector<1x1x1x128xf32>
    %614 = vector.broadcast %613 : vector<1x1x1x128xf32> to vector<1x8x8x128xf32>
    %615 = arith.mulf %612, %614 : vector<1x8x8x128xf32>
    %616 = arith.addf %608, %615 : vector<1x8x8x128xf32>
    %c59 = arith.constant 59 : index
    %c0_470 = arith.constant 0 : index
    %617 = vector.load %arg3[%c59, %c0_470] : memref<81x128xf32, #tpu.memory_space<vmem>>, vector<1x128xf32>
    %618 = vector.shape_cast %617 : vector<1x128xf32> to vector<128xf32>
    %c2_471 = arith.constant 2 : index
    %c0_472 = arith.constant 0 : index
    %c1_473 = arith.constant 1 : index
    %c0_474 = arith.constant 0 : index
    %c0_475 = arith.constant 0 : index
    %619 = vector.load %arg7[%c2_471, %c0_472, %c1_473, %c0_474, %c0_475] : memref<3x4x10x8x128xf32, #tpu.memory_space<vmem>>, vector<1x1x8x8x128xf32>
    %620 = vector.shape_cast %619 : vector<1x1x8x8x128xf32> to vector<1x8x8x128xf32>
    %621 = vector.shape_cast %618 : vector<128xf32> to vector<1x1x1x128xf32>
    %622 = vector.broadcast %621 : vector<1x1x1x128xf32> to vector<1x8x8x128xf32>
    %623 = arith.mulf %620, %622 : vector<1x8x8x128xf32>
    %624 = arith.addf %616, %623 : vector<1x8x8x128xf32>
    %c60 = arith.constant 60 : index
    %c0_476 = arith.constant 0 : index
    %625 = vector.load %arg3[%c60, %c0_476] : memref<81x128xf32, #tpu.memory_space<vmem>>, vector<1x128xf32>
    %626 = vector.shape_cast %625 : vector<1x128xf32> to vector<128xf32>
    %c0_477 = arith.constant 0 : index
    %c0_478 = arith.constant 0 : index
    %c2_479 = arith.constant 2 : index
    %c0_480 = arith.constant 0 : index
    %c0_481 = arith.constant 0 : index
    %627 = vector.load %arg7[%c0_477, %c0_478, %c2_479, %c0_480, %c0_481] : memref<3x4x10x8x128xf32, #tpu.memory_space<vmem>>, vector<1x1x8x8x128xf32>
    %628 = vector.shape_cast %627 : vector<1x1x8x8x128xf32> to vector<1x8x8x128xf32>
    %629 = vector.shape_cast %626 : vector<128xf32> to vector<1x1x1x128xf32>
    %630 = vector.broadcast %629 : vector<1x1x1x128xf32> to vector<1x8x8x128xf32>
    %631 = arith.mulf %628, %630 : vector<1x8x8x128xf32>
    %632 = arith.addf %624, %631 : vector<1x8x8x128xf32>
    %c61 = arith.constant 61 : index
    %c0_482 = arith.constant 0 : index
    %633 = vector.load %arg3[%c61, %c0_482] : memref<81x128xf32, #tpu.memory_space<vmem>>, vector<1x128xf32>
    %634 = vector.shape_cast %633 : vector<1x128xf32> to vector<128xf32>
    %c1_483 = arith.constant 1 : index
    %c0_484 = arith.constant 0 : index
    %c2_485 = arith.constant 2 : index
    %c0_486 = arith.constant 0 : index
    %c0_487 = arith.constant 0 : index
    %635 = vector.load %arg7[%c1_483, %c0_484, %c2_485, %c0_486, %c0_487] : memref<3x4x10x8x128xf32, #tpu.memory_space<vmem>>, vector<1x1x8x8x128xf32>
    %636 = vector.shape_cast %635 : vector<1x1x8x8x128xf32> to vector<1x8x8x128xf32>
    %637 = vector.shape_cast %634 : vector<128xf32> to vector<1x1x1x128xf32>
    %638 = vector.broadcast %637 : vector<1x1x1x128xf32> to vector<1x8x8x128xf32>
    %639 = arith.mulf %636, %638 : vector<1x8x8x128xf32>
    %640 = arith.addf %632, %639 : vector<1x8x8x128xf32>
    %c62 = arith.constant 62 : index
    %c0_488 = arith.constant 0 : index
    %641 = vector.load %arg3[%c62, %c0_488] : memref<81x128xf32, #tpu.memory_space<vmem>>, vector<1x128xf32>
    %642 = vector.shape_cast %641 : vector<1x128xf32> to vector<128xf32>
    %c2_489 = arith.constant 2 : index
    %c0_490 = arith.constant 0 : index
    %c2_491 = arith.constant 2 : index
    %c0_492 = arith.constant 0 : index
    %c0_493 = arith.constant 0 : index
    %643 = vector.load %arg7[%c2_489, %c0_490, %c2_491, %c0_492, %c0_493] : memref<3x4x10x8x128xf32, #tpu.memory_space<vmem>>, vector<1x1x8x8x128xf32>
    %644 = vector.shape_cast %643 : vector<1x1x8x8x128xf32> to vector<1x8x8x128xf32>
    %645 = vector.shape_cast %642 : vector<128xf32> to vector<1x1x1x128xf32>
    %646 = vector.broadcast %645 : vector<1x1x1x128xf32> to vector<1x8x8x128xf32>
    %647 = arith.mulf %644, %646 : vector<1x8x8x128xf32>
    %648 = arith.addf %640, %647 : vector<1x8x8x128xf32>
    %649 = vector.extract_strided_slice %577 {offsets = [0, 0, 0, 0], sizes = [3, 8, 8, 128], strides = [1, 1, 1, 1]} : vector<4x8x8x128xf32> to vector<3x8x8x128xf32>
    %650 = vector.extract_strided_slice %577 {offsets = [3, 0, 0, 0], sizes = [1, 8, 8, 128], strides = [1, 1, 1, 1]} : vector<4x8x8x128xf32> to vector<1x8x8x128xf32>
    %651 = arith.addf %650, %648 : vector<1x8x8x128xf32>
    %652 = tpu.concatenate %649, %651 in 0 : vector<3x8x8x128xf32>, vector<1x8x8x128xf32> -> vector<4x8x8x128xf32>
    %c72 = arith.constant 72 : index
    %c0_494 = arith.constant 0 : index
    %653 = vector.load %arg3[%c72, %c0_494] : memref<81x128xf32, #tpu.memory_space<vmem>>, vector<1x128xf32>
    %654 = vector.shape_cast %653 : vector<1x128xf32> to vector<128xf32>
    %c0_495 = arith.constant 0 : index
    %c3_496 = arith.constant 3 : index
    %c0_497 = arith.constant 0 : index
    %c0_498 = arith.constant 0 : index
    %c0_499 = arith.constant 0 : index
    %655 = vector.load %arg7[%c0_495, %c3_496, %c0_497, %c0_498, %c0_499] : memref<3x4x10x8x128xf32, #tpu.memory_space<vmem>>, vector<1x1x8x8x128xf32>
    %656 = vector.shape_cast %655 : vector<1x1x8x8x128xf32> to vector<1x8x8x128xf32>
    %657 = vector.shape_cast %654 : vector<128xf32> to vector<1x1x1x128xf32>
    %658 = vector.broadcast %657 : vector<1x1x1x128xf32> to vector<1x8x8x128xf32>
    %659 = arith.mulf %656, %658 : vector<1x8x8x128xf32>
    %c73 = arith.constant 73 : index
    %c0_500 = arith.constant 0 : index
    %660 = vector.load %arg3[%c73, %c0_500] : memref<81x128xf32, #tpu.memory_space<vmem>>, vector<1x128xf32>
    %661 = vector.shape_cast %660 : vector<1x128xf32> to vector<128xf32>
    %c1_501 = arith.constant 1 : index
    %c3_502 = arith.constant 3 : index
    %c0_503 = arith.constant 0 : index
    %c0_504 = arith.constant 0 : index
    %c0_505 = arith.constant 0 : index
    %662 = vector.load %arg7[%c1_501, %c3_502, %c0_503, %c0_504, %c0_505] : memref<3x4x10x8x128xf32, #tpu.memory_space<vmem>>, vector<1x1x8x8x128xf32>
    %663 = vector.shape_cast %662 : vector<1x1x8x8x128xf32> to vector<1x8x8x128xf32>
    %664 = vector.shape_cast %661 : vector<128xf32> to vector<1x1x1x128xf32>
    %665 = vector.broadcast %664 : vector<1x1x1x128xf32> to vector<1x8x8x128xf32>
    %666 = arith.mulf %663, %665 : vector<1x8x8x128xf32>
    %667 = arith.addf %659, %666 : vector<1x8x8x128xf32>
    %c74 = arith.constant 74 : index
    %c0_506 = arith.constant 0 : index
    %668 = vector.load %arg3[%c74, %c0_506] : memref<81x128xf32, #tpu.memory_space<vmem>>, vector<1x128xf32>
    %669 = vector.shape_cast %668 : vector<1x128xf32> to vector<128xf32>
    %c2_507 = arith.constant 2 : index
    %c3_508 = arith.constant 3 : index
    %c0_509 = arith.constant 0 : index
    %c0_510 = arith.constant 0 : index
    %c0_511 = arith.constant 0 : index
    %670 = vector.load %arg7[%c2_507, %c3_508, %c0_509, %c0_510, %c0_511] : memref<3x4x10x8x128xf32, #tpu.memory_space<vmem>>, vector<1x1x8x8x128xf32>
    %671 = vector.shape_cast %670 : vector<1x1x8x8x128xf32> to vector<1x8x8x128xf32>
    %672 = vector.shape_cast %669 : vector<128xf32> to vector<1x1x1x128xf32>
    %673 = vector.broadcast %672 : vector<1x1x1x128xf32> to vector<1x8x8x128xf32>
    %674 = arith.mulf %671, %673 : vector<1x8x8x128xf32>
    %675 = arith.addf %667, %674 : vector<1x8x8x128xf32>
    %c75 = arith.constant 75 : index
    %c0_512 = arith.constant 0 : index
    %676 = vector.load %arg3[%c75, %c0_512] : memref<81x128xf32, #tpu.memory_space<vmem>>, vector<1x128xf32>
    %677 = vector.shape_cast %676 : vector<1x128xf32> to vector<128xf32>
    %c0_513 = arith.constant 0 : index
    %c3_514 = arith.constant 3 : index
    %c1_515 = arith.constant 1 : index
    %c0_516 = arith.constant 0 : index
    %c0_517 = arith.constant 0 : index
    %678 = vector.load %arg7[%c0_513, %c3_514, %c1_515, %c0_516, %c0_517] : memref<3x4x10x8x128xf32, #tpu.memory_space<vmem>>, vector<1x1x8x8x128xf32>
    %679 = vector.shape_cast %678 : vector<1x1x8x8x128xf32> to vector<1x8x8x128xf32>
    %680 = vector.shape_cast %677 : vector<128xf32> to vector<1x1x1x128xf32>
    %681 = vector.broadcast %680 : vector<1x1x1x128xf32> to vector<1x8x8x128xf32>
    %682 = arith.mulf %679, %681 : vector<1x8x8x128xf32>
    %683 = arith.addf %675, %682 : vector<1x8x8x128xf32>
    %c76 = arith.constant 76 : index
    %c0_518 = arith.constant 0 : index
    %684 = vector.load %arg3[%c76, %c0_518] : memref<81x128xf32, #tpu.memory_space<vmem>>, vector<1x128xf32>
    %685 = vector.shape_cast %684 : vector<1x128xf32> to vector<128xf32>
    %c1_519 = arith.constant 1 : index
    %c3_520 = arith.constant 3 : index
    %c1_521 = arith.constant 1 : index
    %c0_522 = arith.constant 0 : index
    %c0_523 = arith.constant 0 : index
    %686 = vector.load %arg7[%c1_519, %c3_520, %c1_521, %c0_522, %c0_523] : memref<3x4x10x8x128xf32, #tpu.memory_space<vmem>>, vector<1x1x8x8x128xf32>
    %687 = vector.shape_cast %686 : vector<1x1x8x8x128xf32> to vector<1x8x8x128xf32>
    %688 = vector.shape_cast %685 : vector<128xf32> to vector<1x1x1x128xf32>
    %689 = vector.broadcast %688 : vector<1x1x1x128xf32> to vector<1x8x8x128xf32>
    %690 = arith.mulf %687, %689 : vector<1x8x8x128xf32>
    %691 = arith.addf %683, %690 : vector<1x8x8x128xf32>
    %c77 = arith.constant 77 : index
    %c0_524 = arith.constant 0 : index
    %692 = vector.load %arg3[%c77, %c0_524] : memref<81x128xf32, #tpu.memory_space<vmem>>, vector<1x128xf32>
    %693 = vector.shape_cast %692 : vector<1x128xf32> to vector<128xf32>
    %c2_525 = arith.constant 2 : index
    %c3_526 = arith.constant 3 : index
    %c1_527 = arith.constant 1 : index
    %c0_528 = arith.constant 0 : index
    %c0_529 = arith.constant 0 : index
    %694 = vector.load %arg7[%c2_525, %c3_526, %c1_527, %c0_528, %c0_529] : memref<3x4x10x8x128xf32, #tpu.memory_space<vmem>>, vector<1x1x8x8x128xf32>
    %695 = vector.shape_cast %694 : vector<1x1x8x8x128xf32> to vector<1x8x8x128xf32>
    %696 = vector.shape_cast %693 : vector<128xf32> to vector<1x1x1x128xf32>
    %697 = vector.broadcast %696 : vector<1x1x1x128xf32> to vector<1x8x8x128xf32>
    %698 = arith.mulf %695, %697 : vector<1x8x8x128xf32>
    %699 = arith.addf %691, %698 : vector<1x8x8x128xf32>
    %c78 = arith.constant 78 : index
    %c0_530 = arith.constant 0 : index
    %700 = vector.load %arg3[%c78, %c0_530] : memref<81x128xf32, #tpu.memory_space<vmem>>, vector<1x128xf32>
    %701 = vector.shape_cast %700 : vector<1x128xf32> to vector<128xf32>
    %c0_531 = arith.constant 0 : index
    %c3_532 = arith.constant 3 : index
    %c2_533 = arith.constant 2 : index
    %c0_534 = arith.constant 0 : index
    %c0_535 = arith.constant 0 : index
    %702 = vector.load %arg7[%c0_531, %c3_532, %c2_533, %c0_534, %c0_535] : memref<3x4x10x8x128xf32, #tpu.memory_space<vmem>>, vector<1x1x8x8x128xf32>
    %703 = vector.shape_cast %702 : vector<1x1x8x8x128xf32> to vector<1x8x8x128xf32>
    %704 = vector.shape_cast %701 : vector<128xf32> to vector<1x1x1x128xf32>
    %705 = vector.broadcast %704 : vector<1x1x1x128xf32> to vector<1x8x8x128xf32>
    %706 = arith.mulf %703, %705 : vector<1x8x8x128xf32>
    %707 = arith.addf %699, %706 : vector<1x8x8x128xf32>
    %c79 = arith.constant 79 : index
    %c0_536 = arith.constant 0 : index
    %708 = vector.load %arg3[%c79, %c0_536] : memref<81x128xf32, #tpu.memory_space<vmem>>, vector<1x128xf32>
    %709 = vector.shape_cast %708 : vector<1x128xf32> to vector<128xf32>
    %c1_537 = arith.constant 1 : index
    %c3_538 = arith.constant 3 : index
    %c2_539 = arith.constant 2 : index
    %c0_540 = arith.constant 0 : index
    %c0_541 = arith.constant 0 : index
    %710 = vector.load %arg7[%c1_537, %c3_538, %c2_539, %c0_540, %c0_541] : memref<3x4x10x8x128xf32, #tpu.memory_space<vmem>>, vector<1x1x8x8x128xf32>
    %711 = vector.shape_cast %710 : vector<1x1x8x8x128xf32> to vector<1x8x8x128xf32>
    %712 = vector.shape_cast %709 : vector<128xf32> to vector<1x1x1x128xf32>
    %713 = vector.broadcast %712 : vector<1x1x1x128xf32> to vector<1x8x8x128xf32>
    %714 = arith.mulf %711, %713 : vector<1x8x8x128xf32>
    %715 = arith.addf %707, %714 : vector<1x8x8x128xf32>
    %c80 = arith.constant 80 : index
    %c0_542 = arith.constant 0 : index
    %716 = vector.load %arg3[%c80, %c0_542] : memref<81x128xf32, #tpu.memory_space<vmem>>, vector<1x128xf32>
    %717 = vector.shape_cast %716 : vector<1x128xf32> to vector<128xf32>
    %c2_543 = arith.constant 2 : index
    %c3_544 = arith.constant 3 : index
    %c2_545 = arith.constant 2 : index
    %c0_546 = arith.constant 0 : index
    %c0_547 = arith.constant 0 : index
    %718 = vector.load %arg7[%c2_543, %c3_544, %c2_545, %c0_546, %c0_547] : memref<3x4x10x8x128xf32, #tpu.memory_space<vmem>>, vector<1x1x8x8x128xf32>
    %719 = vector.shape_cast %718 : vector<1x1x8x8x128xf32> to vector<1x8x8x128xf32>
    %720 = vector.shape_cast %717 : vector<128xf32> to vector<1x1x1x128xf32>
    %721 = vector.broadcast %720 : vector<1x1x1x128xf32> to vector<1x8x8x128xf32>
    %722 = arith.mulf %719, %721 : vector<1x8x8x128xf32>
    %723 = arith.addf %715, %722 : vector<1x8x8x128xf32>
    %724 = vector.extract_strided_slice %652 {offsets = [0, 0, 0, 0], sizes = [1, 8, 8, 128], strides = [1, 1, 1, 1]} : vector<4x8x8x128xf32> to vector<1x8x8x128xf32>
    %725 = arith.addf %724, %723 : vector<1x8x8x128xf32>
    %726 = vector.extract_strided_slice %652 {offsets = [1, 0, 0, 0], sizes = [3, 8, 8, 128], strides = [1, 1, 1, 1]} : vector<4x8x8x128xf32> to vector<3x8x8x128xf32>
    %727 = tpu.concatenate %725, %726 in 0 : vector<1x8x8x128xf32>, vector<3x8x8x128xf32> -> vector<4x8x8x128xf32>
    %728 = vector.extract_strided_slice %727 {offsets = [0, 0, 0, 0], sizes = [3, 8, 8, 128], strides = [1, 1, 1, 1]} : vector<4x8x8x128xf32> to vector<3x8x8x128xf32>
    %729 = vector.extract_strided_slice %727 {offsets = [3, 0, 0, 0], sizes = [1, 8, 8, 128], strides = [1, 1, 1, 1]} : vector<4x8x8x128xf32> to vector<1x8x8x128xf32>
    %730 = vector.extract_strided_slice %727 {offsets = [0, 0, 0, 0], sizes = [1, 8, 8, 128], strides = [1, 1, 1, 1]} : vector<4x8x8x128xf32> to vector<1x8x8x128xf32>
    %731 = arith.subf %729, %730 : vector<1x8x8x128xf32>
    %732 = tpu.concatenate %728, %731 in 0 : vector<3x8x8x128xf32>, vector<1x8x8x128xf32> -> vector<4x8x8x128xf32>
    %c2_548 = arith.constant 2 : index
    %733 = memref.load %arg5[%c2_548] : memref<3xf32, #tpu.memory_space<smem>>
    %cst_549 = arith.constant 5.000000e-01 : f32
    %734 = arith.mulf %cst_549, %733 : f32
    %cst_550 = arith.constant 5.000000e-01 : f32
    %735 = vector.broadcast %cst_550 : f32 to vector<4x8x8x128xf32>
    %736 = arith.mulf %735, %732 : vector<4x8x8x128xf32>
    %737 = math.tanh %736 : vector<4x8x8x128xf32>
    %738 = vector.broadcast %734 : f32 to vector<4x8x8x128xf32>
    %739 = arith.mulf %738, %737 : vector<4x8x8x128xf32>
    %c0_551 = arith.constant 0 : index
    %c0_552 = arith.constant 0 : index
    %c0_553 = arith.constant 0 : index
    %c0_554 = arith.constant 0 : index
    %c0_555 = arith.constant 0 : index
    %740 = vector.load %arg6[%c0_551, %c0_552, %c0_553, %c0_554, %c0_555] : memref<1x4x8x8x128xf32, #tpu.memory_space<vmem>>, vector<1x4x8x8x128xf32>
    %741 = vector.shape_cast %740 : vector<1x4x8x8x128xf32> to vector<4x8x8x128xf32>
    %742 = arith.addf %741, %739 : vector<4x8x8x128xf32>
    %c0_556 = arith.constant 0 : index
    %c0_557 = arith.constant 0 : index
    %c0_558 = arith.constant 0 : index
    %c0_559 = arith.constant 0 : index
    %c0_560 = arith.constant 0 : index
    %743 = vector.load %arg6[%c0_556, %c0_557, %c0_558, %c0_559, %c0_560] : memref<1x4x8x8x128xf32, #tpu.memory_space<vmem>>, vector<1x4x8x8x128xf32>
    %744 = vector.shape_cast %743 : vector<1x4x8x8x128xf32> to vector<4x8x8x128xf32>
    %745 = vector.shape_cast %742 : vector<4x8x8x128xf32> to vector<1x4x8x8x128xf32>
    tpu.vector_store %arg6[%c0_556, %c0_557, %c0_558, %c0_559, %c0_560], %745 {strides = array<i32>} : memref<1x4x8x8x128xf32, #tpu.memory_space<vmem>>, vector<1x4x8x8x128xf32>,
    %c0_561 = arith.constant 0 : index
    %c0_562 = arith.constant 0 : index
    %c0_563 = arith.constant 0 : index
    %c0_564 = arith.constant 0 : index
    %c0_565 = arith.constant 0 : index
    %746 = vector.load %arg6[%c0_561, %c0_562, %c0_563, %c0_564, %c0_565] : memref<1x4x8x8x128xf32, #tpu.memory_space<vmem>>, vector<1x4x8x8x128xf32>
    %747 = vector.shape_cast %746 : vector<1x4x8x8x128xf32> to vector<4x8x8x128xf32>
    %c0_566 = arith.constant 0 : index
    %c0_567 = arith.constant 0 : index
    %c0_568 = arith.constant 0 : index
    %c0_569 = arith.constant 0 : index
    %c0_570 = arith.constant 0 : index
    %748 = vector.load %arg2[%c0_566, %c0_567, %c0_568, %c0_569, %c0_570] : memref<1x4x8x8x128xf32, #tpu.memory_space<vmem>>, vector<1x4x8x8x128xf32>
    %749 = vector.shape_cast %748 : vector<1x4x8x8x128xf32> to vector<4x8x8x128xf32>
    %750 = arith.mulf %747, %749 : vector<4x8x8x128xf32>
    %c0_571 = arith.constant 0 : index
    %c0_572 = arith.constant 0 : index
    %c0_573 = arith.constant 0 : index
    %c0_574 = arith.constant 0 : index
    %c0_575 = arith.constant 0 : index
    %751 = vector.load %arg6[%c0_571, %c0_572, %c0_573, %c0_574, %c0_575] : memref<1x4x8x8x128xf32, #tpu.memory_space<vmem>>, vector<1x4x8x8x128xf32>
    %752 = vector.shape_cast %751 : vector<1x4x8x8x128xf32> to vector<4x8x8x128xf32>
    %753 = vector.shape_cast %750 : vector<4x8x8x128xf32> to vector<1x4x8x8x128xf32>
    tpu.vector_store %arg6[%c0_571, %c0_572, %c0_573, %c0_574, %c0_575], %753 {strides = array<i32>} : memref<1x4x8x8x128xf32, #tpu.memory_space<vmem>>, vector<1x4x8x8x128xf32>,
    return
  }
  func.func @transform_0(%arg0: i32, %arg1: i32) -> (i32, i32, i32, i32, i32) {
    %c0_i32 = arith.constant 0 : i32
    %c0_i32_0 = arith.constant 0 : i32
    %c0_i32_1 = arith.constant 0 : i32
    %c0_i32_2 = arith.constant 0 : i32
    return %arg1, %c0_i32, %c0_i32_0, %c0_i32_1, %arg0 : i32, i32, i32, i32, i32
  }
  func.func @transform_1(%arg0: i32, %arg1: i32) -> (i32, i32) {
    %c0_i32 = arith.constant 0 : i32
    %c0_i32_0 = arith.constant 0 : i32
    return %c0_i32, %arg0 : i32, i32
  }
  func.func @transform_2(%arg0: i32, %arg1: i32) -> (i32, i32) {
    %c0_i32 = arith.constant 0 : i32
    %c0_i32_0 = arith.constant 0 : i32
    return %c0_i32, %arg0 : i32, i32
  }
  func.func @transform_3(%arg0: i32, %arg1: i32) -> i32 {
    %c0_i32 = arith.constant 0 : i32
    %c0_i32_0 = arith.constant 0 : i32
    return %c0_i32 : i32
  }
  func.func @transform_4(%arg0: i32, %arg1: i32) -> (i32, i32, i32, i32, i32) {
    %c0_i32 = arith.constant 0 : i32
    %c0_i32_0 = arith.constant 0 : i32
    %c0_i32_1 = arith.constant 0 : i32
    %c0_i32_2 = arith.constant 0 : i32
    return %arg1, %c0_i32, %c0_i32_0, %c0_i32_1, %arg0 : i32, i32, i32, i32, i32
  }
}

</mosaic_0001>

<llo_original>
// kernel: tpu_custom_call.1
$region0: #{tpu_custom_call.1}
  #allocation0 [shape = 'u32[]', space=smem, size = 0x4, offset = 0x4, fixed_abs, tag = 'smem constant byte address 0x4 - core index']
  #allocation1 [shape = 'u32[144,128]{1,0:T(1,128)}', space=vmem, size = 0x12000, scoped, tag = 'internal scratch']
  #allocation2 [shape = 'f32[3,4,10,8,128]{4,3,2,1,0:T(8,128)}', space=vmem, size = 0x78000, scoped, tag = 'scratch operand']
  %s0 = inlined_call_operand.hbm [shape: f32[2,4,8,8,128], index: 0, kind: input, shape index: {}]
  %s1 = inlined_call_operand.hbm [shape: f32[81,128], index: 1, kind: input, shape index: {}]
  %s2 = inlined_call_operand.hbm [shape: f32[3,128], index: 2, kind: input, shape index: {}]
  %s3 = inlined_call_operand.vmem [shape: f32[3], index: 3, kind: input, shape index: {}]
  %s4 = inlined_call_operand.hbm [shape: f32[2,4,8,8,128], index: 4, kind: output, shape index: {}]
  %s5 = sld [smem:[#allocation0]]
  $region65: #{tpu_custom_call.1} parent=0
    _
  %s7 = ssub.s32 1, %s5
  %s8 = scalar_select 0, %s7, %s5
  $region1: #{tpu_custom_call.1} parent=0
    #allocation3 [shape = 'u8[262144]{0}', space=vmem, size = 0x40000, scoped, tag = 'input window, operand 0']
    #allocation4 [shape = 's32[2]{0}', space=sflag, size = 0x8, scoped, tag = 'scoped memory for tpu_custom_call.1']
    #allocation5 [shape = 's32[2]{0}', space=sflag, size = 0x8, scoped, tag = 'scoped memory for tpu_custom_call.1']
    #allocation6 [shape = 's32[2]{0}', space=sflag, size = 0x8, scoped, tag = 'scoped memory for tpu_custom_call.1']
    #allocation7 [shape = 'u8[45056]{0}', space=vmem, size = 0xb000, scoped, tag = 'input window, operand 1, single buffered']
    #allocation8 [shape = 's32[1]{0}', space=sflag, size = 0x4, scoped, tag = 'scoped memory for tpu_custom_call.1']
    #allocation9 [shape = 'u8[2048]{0}', space=vmem, size = 0x800, scoped, tag = 'input window, operand 2, single buffered']
    #allocation10 [shape = 'u8[512]{0}', space=smem, size = 0x200, scoped, tag = 'input window, operand 3, single buffered']
    #allocation11 [shape = 'u8[262144]{0}', space=vmem, size = 0x40000, scoped, tag = 'output window, operand 0']
    %9 = vsyncpa [#allocation4], 0
    %s10 = scalar_lea.sflag [#allocation4], 1
    %11 = vsyncpa %s10, 0
    %12 = vsyncpa [#allocation8], 0
    %13 = vsyncpa [#allocation6], 0
    %14 = vsyncpa [#allocation5], 0
    %s15 = scalar_lea.sflag [#allocation5], 1
    %16 = vsyncpa %s15, 0
    loop: start=0, step=1, limit=4
    $region2: #{tpu_custom_call.1} parent=1 // loop_pre_header
      _
    $region3: #{tpu_custom_call.1} parent=1 // loop_header
      %s18 = sphi 0, %s22
      %p19 = scmp.ge.s32.totalorder %s18, 4
      %s25 = sphi 0, %s37
      %s26 = sphi 0, %s33
      %s27 = sphi 0, %s25
      %s28 = sphi 0, %s26
      %s29 = sphi 0, %s27
      %s30 = sphi 0, %s28
      %s42 = sphi 0, %s44
      %s45 = sphi 0, %s42
      %s46 = sphi 0, %s45
      %s62 = sphi 0, %s46
      %s68 = sphi 0, %s70
      %s71 = sphi 0, %s68
      %s72 = sphi 0, %s71
      %s88 = sphi 0, %s72
      %s94 = sphi 0, %s96
      %s97 = sphi 0, %s94
      %s98 = sphi 0, %s97
      %s114 = sphi 0, %s98
      %s118 = sphi 0, %s118
      %s120 = sphi 0, %s118
      %s121 = sphi 0, %s120
      %s135 = sphi 0, %s121
      %s143 = sphi 0, %s145
      %s146 = sphi 0, %s143
      %s147 = sphi 0, %s146
      %s163 = sphi 0, %s147
    $region4: #{tpu_custom_call.1} parent=1 // loop_header_branch
      %21 = sbr.rel (%p19) target = $region8
    $region5: #{tpu_custom_call.1} parent=1 // loop_body
      %s23 = ssub.s32 %s18, 1
      %s24 = ssub.s32 %s18, 2
      %s31 = sadd.s32 1, %s26
      %p32 = scmp.ge.s32.totalorder %s31, 2
      %s33 = scalar_select %p32, 0, %s31
      %s34 = sadd.s32 1, %s25
      %s35 = scalar_select %p32, %s34, %s25
      %p36 = scmp.ge.s32.totalorder %s35, 1
      %s37 = scalar_select %p36, 0, %s35
      %s38 = ssub.s32 %s26, %s33
      %s39 = ssub.s32 %s25, %s37
      %s40 = sor.u32 %s38, %s39
      %p41 = scmp.eq.s32.totalorder %s40, 0
      %s43 = sadd.s32 %s42, 1
      %s44 = scalar_select %p41, %s42, %s43
      %p47 = pneg %p41
      %p48 = scmp.eq.s32.totalorder %s18, 1
      %p49 = por %p47, %p48
      %p50 = scmp.ne.s32.totalorder %s42, %s45
      %p51 = scmp.eq.s32.totalorder %s18, 0
      %p52 = por %p50, %p51
      %p53 = scmp.ne.s32.totalorder %s42, %s45
      %p54 = scmp.eq.s32.totalorder %s23, 1
      %p55 = por %p53, %p54
      %p56 = scmp.ne.s32.totalorder %s45, %s46
      %p57 = scmp.eq.s32.totalorder %s23, 0
      %p58 = por %p56, %p57
      %p59 = scmp.ne.s32.totalorder %s45, %s46
      %p60 = scmp.eq.s32.totalorder %s24, 1
      %p61 = por %p59, %p60
      %p63 = scmp.ne.s32.totalorder %s46, %s62
      %p64 = scmp.eq.s32.totalorder %s24, 0
      %p65 = por %p63, %p64
      %s66 = ssub.s32 %s25, %s37
      %p67 = scmp.eq.s32.totalorder %s66, 0
      %s69 = sadd.s32 %s68, 1
      %s70 = scalar_select %p67, %s68, %s69
      %p73 = pneg %p67
      %p74 = scmp.eq.s32.totalorder %s18, 1
      %p75 = por %p73, %p74
      %p76 = scmp.ne.s32.totalorder %s68, %s71
      %p77 = scmp.eq.s32.totalorder %s18, 0
      %p78 = por %p76, %p77
      %p79 = scmp.ne.s32.totalorder %s68, %s71
      %p80 = scmp.eq.s32.totalorder %s23, 1
      %p81 = por %p79, %p80
      %p82 = scmp.ne.s32.totalorder %s71, %s72
      %p83 = scmp.eq.s32.totalorder %s23, 0
      %p84 = por %p82, %p83
      %p85 = scmp.ne.s32.totalorder %s71, %s72
      %p86 = scmp.eq.s32.totalorder %s24, 1
      %p87 = por %p85, %p86
      %p89 = scmp.ne.s32.totalorder %s72, %s88
      %p90 = scmp.eq.s32.totalorder %s24, 0
      %p91 = por %p89, %p90
      %s92 = ssub.s32 %s25, %s37
      %p93 = scmp.eq.s32.totalorder %s92, 0
      %s95 = sadd.s32 %s94, 1
      %s96 = scalar_select %p93, %s94, %s95
      %p99 = pneg %p93
      %p100 = scmp.eq.s32.totalorder %s18, 1
      %p101 = por %p99, %p100
      %p102 = scmp.ne.s32.totalorder %s94, %s97
      %p103 = scmp.eq.s32.totalorder %s18, 0
      %p104 = por %p102, %p103
      %p105 = scmp.ne.s32.totalorder %s94, %s97
      %p106 = scmp.eq.s32.totalorder %s23, 1
      %p107 = por %p105, %p106
      %p108 = scmp.ne.s32.totalorder %s97, %s98
      %p109 = scmp.eq.s32.totalorder %s23, 0
      %p110 = por %p108, %p109
      %p111 = scmp.ne.s32.totalorder %s97, %s98
      %p112 = scmp.eq.s32.totalorder %s24, 1
      %p113 = por %p111, %p112
      %p115 = scmp.ne.s32.totalorder %s98, %s114
      %p116 = scmp.eq.s32.totalorder %s24, 0
      %p117 = por %p115, %p116
      %s119 = sadd.s32 %s118, 1
      %p122 = scmp.eq.s32.totalorder %s18, 1
      %p123 = scmp.ne.s32.totalorder %s118, %s120
      %p124 = scmp.eq.s32.totalorder %s18, 0
      %p125 = por %p123, %p124
      %p126 = scmp.ne.s32.totalorder %s118, %s120
      %p127 = scmp.eq.s32.totalorder %s23, 1
      %p128 = por %p126, %p127
      %p129 = scmp.ne.s32.totalorder %s120, %s121
      %p130 = scmp.eq.s32.totalorder %s23, 0
      %p131 = por %p129, %p130
      %p132 = scmp.ne.s32.totalorder %s120, %s121
      %p133 = scmp.eq.s32.totalorder %s24, 1
      %p134 = por %p132, %p133
      %p136 = scmp.ne.s32.totalorder %s121, %s135
      %p137 = scmp.eq.s32.totalorder %s24, 0
      %p138 = por %p136, %p137
      %s139 = ssub.s32 %s26, %s33
      %s140 = ssub.s32 %s25, %s37
      %s141 = sor.u32 %s139, %s140
      %p142 = scmp.eq.s32.totalorder %s141, 0
      %s144 = sadd.s32 %s143, 1
      %s145 = scalar_select %p142, %s143, %s144
      %p148 = pneg %p142
      %p149 = scmp.eq.s32.totalorder %s18, 1
      %p150 = por %p148, %p149
      %p151 = scmp.ne.s32.totalorder %s143, %s146
      %p152 = scmp.eq.s32.totalorder %s18, 0
      %p153 = por %p151, %p152
      %p154 = scmp.ne.s32.totalorder %s143, %s146
      %p155 = scmp.eq.s32.totalorder %s23, 1
      %p156 = por %p154, %p155
      %p157 = scmp.ne.s32.totalorder %s146, %s147
      %p158 = scmp.eq.s32.totalorder %s23, 0
      %p159 = por %p157, %p158
      %p160 = scmp.ne.s32.totalorder %s146, %s147
      %p161 = scmp.eq.s32.totalorder %s24, 1
      %p162 = por %p160, %p161
      %p164 = scmp.ne.s32.totalorder %s147, %s163
      %p165 = scmp.eq.s32.totalorder %s24, 0
      %p166 = por %p164, %p165
      %p167 = scmp.le.s32.totalorder 1, %s18
      %p168 = scmp.lt.s32.totalorder %s18, 3
      %p169 = pnand %p167, %p168
      %p170 = pneg %p169
      // Predicated region
      $region9: #{tpu_custom_call.1} parent=5 // pred_check
        _
      $region10: #{tpu_custom_call.1} parent=5 // pred_check_branch
        %172 = sbr.rel (%p169) target = $region12
      $region11: #{tpu_custom_call.1} parent=5 // pred_region
        %s173 = ssub.s32 %s18, 1
        // Predicated region
        $region13: #{tpu_custom_call.1} parent=11 // pred_check
          %p174 = pneg %p84
        $region14: #{tpu_custom_call.1} parent=11 // pred_check_branch
          %176 = sbr.rel (%p174) target = $region16
        $region15: #{tpu_custom_call.1} parent=11 // pred_region
          %s178 = ssub.s32 1408, 1408
          %179 = vsyncadd [#allocation8], %s178
          %s180 = smul.addr %s27, 128
          %s181 = scalar_lea.hbm %s1, %s180
          %s182 = sshll.u32 [#allocation7], 4
          %s183 = int_to_ptr.vmem [resolvable:$true] %s182
          %188 = dma.hbm_to_vmem [thread:$0]  %s181, 1408, %s183, [#allocation8], 128, 128, 8
        $region16: #{tpu_custom_call.1} parent=11 // pred_fallthru
          _
        // Predicated region
        $region17: #{tpu_custom_call.1} parent=11 // pred_check
          %p189 = pneg %p110
        $region18: #{tpu_custom_call.1} parent=11 // pred_check_branch
          %191 = sbr.rel (%p189) target = $region20
        $region19: #{tpu_custom_call.1} parent=11 // pred_region
          %s193 = ssub.s32 64, 64
          %194 = vsyncadd [#allocation8], %s193
          %s195 = smul.addr %s27, 64
          %s196 = scalar_lea.hbm %s2, %s195
          %s198 = sshll.u32 [#allocation9], 4
          %s199 = int_to_ptr.vmem [resolvable:$true] %s198
          %201 = dma.hbm_to_vmem [thread:$0]  %s196, 64, %s199, [#allocation8]
        $region20: #{tpu_custom_call.1} parent=11 // pred_fallthru
          _
        // Predicated region
        $region21: #{tpu_custom_call.1} parent=11 // pred_check
          %p202 = pneg %p131
        $region22: #{tpu_custom_call.1} parent=11 // pred_check_branch
          %204 = sbr.rel (%p202) target = $region24
        $region23: #{tpu_custom_call.1} parent=11 // pred_region
          %s206 = ssub.s32 16, 16
          %207 = vsyncadd [#allocation6], %s206
          %s209 = sshll.u32 %s3, 4
          %s210 = int_to_ptr.vmem [resolvable:$true] %s209
          %212 = dma.vmem_to_smem %s210, 16, [#allocation10], [#allocation6]
        $region24: #{tpu_custom_call.1} parent=11 // pred_fallthru
          _
      $region12: #{tpu_custom_call.1} parent=5 // pred_fallthru
        _
      %p213 = scmp.lt.s32.totalorder %s18, 2
      // Predicated region
      $region25: #{tpu_custom_call.1} parent=5 // pred_check
        %p214 = pneg %p213
      $region26: #{tpu_custom_call.1} parent=5 // pred_check_branch
        %216 = sbr.rel (%p214) target = $region28
      $region27: #{tpu_custom_call.1} parent=5 // pred_region
        // Predicated region
        $region29: #{tpu_custom_call.1} parent=27 // pred_check
          %p217 = pneg %p52
        $region30: #{tpu_custom_call.1} parent=27 // pred_check_branch
          %219 = sbr.rel (%p217) target = $region32
        $region31: #{tpu_custom_call.1} parent=27 // pred_region
          %s220 = sand.u32 %s42, 1
          %s221 = scalar_lea.sflag [#allocation4], %s220
          %s222 = sand.u32 %s42, 1
          %s223 = smul.addr %s222, 256
          %s224 = scalar_lea.vmem [#allocation3], %s223
          %s226 = ssub.s32 4096, 4096
          %227 = vsyncadd %s221, %s226
          %s228 = smul.addr %s26, 32
          %s229 = sadd.s32 %s25, %s228
          %s230 = smul.addr %s229, 128
          %s231 = scalar_lea.hbm %s0, %s230
          %s232 = sshll.u32 %s224, 4
          %s233 = int_to_ptr.vmem [resolvable:$true] %s232
          %238 = dma.hbm_to_vmem [thread:$0]  %s231, 4096, %s233, %s221, 128, 128, 8
        $region32: #{tpu_custom_call.1} parent=27 // pred_fallthru
          _
      $region28: #{tpu_custom_call.1} parent=5 // pred_fallthru
        _
      %p239 = scmp.le.s32.totalorder 1, %s18
      %p240 = scmp.lt.s32.totalorder %s18, 3
      %p241 = pnand %p239, %p240
      %p242 = pneg %p241
      // Predicated region
      $region33: #{tpu_custom_call.1} parent=5 // pred_check
        _
      $region34: #{tpu_custom_call.1} parent=5 // pred_check_branch
        %244 = sbr.rel (%p241) target = $region36
      $region35: #{tpu_custom_call.1} parent=5 // pred_region
        %s245 = ssub.s32 %s18, 1
        %s246 = sand.u32 %s45, 1
        %s247 = scalar_lea.sflag [#allocation4], %s246
        %s248 = sand.u32 %s45, 1
        %s249 = smul.addr %s248, 256
        %s250 = scalar_lea.vmem [#allocation3], %s249
        // Predicated region
        $region37: #{tpu_custom_call.1} parent=35 // pred_check
          %p251 = pneg %p58
        $region38: #{tpu_custom_call.1} parent=35 // pred_check_branch
          %253 = sbr.rel (%p251) target = $region40
        $region39: #{tpu_custom_call.1} parent=35 // pred_region
          %254 = dma.done %s247, 4096
        $region40: #{tpu_custom_call.1} parent=35 // pred_fallthru
          _
        // Predicated region
        $region41: #{tpu_custom_call.1} parent=35 // pred_check
          %p255 = pneg %p84
        $region42: #{tpu_custom_call.1} parent=35 // pred_check_branch
          %257 = sbr.rel (%p255) target = $region44
        $region43: #{tpu_custom_call.1} parent=35 // pred_region
          %258 = dma.done [#allocation8], 1408
        $region44: #{tpu_custom_call.1} parent=35 // pred_fallthru
          _
        // Predicated region
        $region45: #{tpu_custom_call.1} parent=35 // pred_check
          %p259 = pneg %p110
        $region46: #{tpu_custom_call.1} parent=35 // pred_check_branch
          %261 = sbr.rel (%p259) target = $region48
        $region47: #{tpu_custom_call.1} parent=35 // pred_region
          %262 = dma.done [#allocation8], 64
        $region48: #{tpu_custom_call.1} parent=35 // pred_fallthru
          _
        // Predicated region
        $region49: #{tpu_custom_call.1} parent=35 // pred_check
          %p263 = pneg %p131
        $region50: #{tpu_custom_call.1} parent=35 // pred_check_branch
          %265 = sbr.rel (%p263) target = $region52
        $region51: #{tpu_custom_call.1} parent=35 // pred_region
          %266 = dma.done [#allocation6], 16
        $region52: #{tpu_custom_call.1} parent=35 // pred_fallthru
          _
        %267 = sfence
        %s268 = sand.u32 %s45, 1
        %s269 = scalar_lea.sflag [#allocation4], %s268
        %s270 = sand.u32 %s45, 1
        %s271 = smul.addr %s270, 256
        %s272 = scalar_lea.vmem [#allocation3], %s271
        %p273 = pneg %p58
        %p274 = pneg %p55
        %p275 = pneg %p84
        %p276 = pneg %p81
        %p277 = pneg %p110
        %p278 = pneg %p107
        %p279 = pneg %p131
        %p280 = pneg %p128
        %p281 = pneg %p159
        %p282 = pneg %p156
        %s283 = sand.u32 %s146, 1
        %s284 = scalar_lea.sflag [#allocation5], %s283
        %s285 = sand.u32 %s146, 1
        %s286 = smul.addr %s285, 256
        %s287 = scalar_lea.vmem [#allocation11], %s286
        %288 = vst [vmem:[#allocation2] sm:$0xff] 0.0
        %289 = vst [vmem:[#allocation2 + $0x8] sm:$0xff] 0.0
        %290 = vst [vmem:[#allocation2 + $0x10] sm:$0xff] 0.0
        %291 = vst [vmem:[#allocation2 + $0x18] sm:$0xff] 0.0
        %292 = vst [vmem:[#allocation2 + $0x20] sm:$0xff] 0.0
        %293 = vst [vmem:[#allocation2 + $0x28] sm:$0xff] 0.0
        %294 = vst [vmem:[#allocation2 + $0x30] sm:$0xff] 0.0
        %295 = vst [vmem:[#allocation2 + $0x38] sm:$0xff] 0.0
        %296 = vst [vmem:[#allocation2 + $0x40] sm:$0xff] 0.0
        %297 = vst [vmem:[#allocation2 + $0x48] sm:$0xff] 0.0
        %298 = vst [vmem:[#allocation2 + $0x50] sm:$0xff] 0.0
        %299 = vst [vmem:[#allocation2 + $0x58] sm:$0xff] 0.0
        %300 = vst [vmem:[#allocation2 + $0x60] sm:$0xff] 0.0
        %301 = vst [vmem:[#allocation2 + $0x68] sm:$0xff] 0.0
        %302 = vst [vmem:[#allocation2 + $0x70] sm:$0xff] 0.0
        %303 = vst [vmem:[#allocation2 + $0x78] sm:$0xff] 0.0
        %304 = vst [vmem:[#allocation2 + $0x80] sm:$0xff] 0.0
        %305 = vst [vmem:[#allocation2 + $0x88] sm:$0xff] 0.0
        %306 = vst [vmem:[#allocation2 + $0x90] sm:$0xff] 0.0
        %307 = vst [vmem:[#allocation2 + $0x98] sm:$0xff] 0.0
        %308 = vst [vmem:[#allocation2 + $0xa0] sm:$0xff] 0.0
        %309 = vst [vmem:[#allocation2 + $0xa8] sm:$0xff] 0.0
        %310 = vst [vmem:[#allocation2 + $0xb0] sm:$0xff] 0.0
        %311 = vst [vmem:[#allocation2 + $0xb8] sm:$0xff] 0.0
        %312 = vst [vmem:[#allocation2 + $0xc0] sm:$0xff] 0.0
        %313 = vst [vmem:[#allocation2 + $0xc8] sm:$0xff] 0.0
        %314 = vst [vmem:[#allocation2 + $0xd0] sm:$0xff] 0.0
        %315 = vst [vmem:[#allocation2 + $0xd8] sm:$0xff] 0.0
        %316 = vst [vmem:[#allocation2 + $0xe0] sm:$0xff] 0.0
        %317 = vst [vmem:[#allocation2 + $0xe8] sm:$0xff] 0.0
        %318 = vst [vmem:[#allocation2 + $0xf0] sm:$0xff] 0.0
        %319 = vst [vmem:[#allocation2 + $0xf8] sm:$0xff] 0.0
        %320 = vst [vmem:[#allocation2 + $0x100] sm:$0xff] 0.0
        %321 = vst [vmem:[#allocation2 + $0x108] sm:$0xff] 0.0
        %322 = vst [vmem:[#allocation2 + $0x110] sm:$0xff] 0.0
        %323 = vst [vmem:[#allocation2 + $0x118] sm:$0xff] 0.0
        %324 = vst [vmem:[#allocation2 + $0x120] sm:$0xff] 0.0
        %325 = vst [vmem:[#allocation2 + $0x128] sm:$0xff] 0.0
        %326 = vst [vmem:[#allocation2 + $0x130] sm:$0xff] 0.0
        %327 = vst [vmem:[#allocation2 + $0x138] sm:$0xff] 0.0
        %328 = vst [vmem:[#allocation2 + $0x140] sm:$0xff] 0.0
        %329 = vst [vmem:[#allocation2 + $0x148] sm:$0xff] 0.0
        %330 = vst [vmem:[#allocation2 + $0x150] sm:$0xff] 0.0
        %331 = vst [vmem:[#allocation2 + $0x158] sm:$0xff] 0.0
        %332 = vst [vmem:[#allocation2 + $0x160] sm:$0xff] 0.0
        %333 = vst [vmem:[#allocation2 + $0x168] sm:$0xff] 0.0
        %334 = vst [vmem:[#allocation2 + $0x170] sm:$0xff] 0.0
        %335 = vst [vmem:[#allocation2 + $0x178] sm:$0xff] 0.0
        %336 = vst [vmem:[#allocation2 + $0x180] sm:$0xff] 0.0
        %337 = vst [vmem:[#allocation2 + $0x188] sm:$0xff] 0.0
        %338 = vst [vmem:[#allocation2 + $0x190] sm:$0xff] 0.0
        %339 = vst [vmem:[#allocation2 + $0x198] sm:$0xff] 0.0
        %340 = vst [vmem:[#allocation2 + $0x1a0] sm:$0xff] 0.0
        %341 = vst [vmem:[#allocation2 + $0x1a8] sm:$0xff] 0.0
        %342 = vst [vmem:[#allocation2 + $0x1b0] sm:$0xff] 0.0
        %343 = vst [vmem:[#allocation2 + $0x1b8] sm:$0xff] 0.0
        %344 = vst [vmem:[#allocation2 + $0x1c0] sm:$0xff] 0.0
        %345 = vst [vmem:[#allocation2 + $0x1c8] sm:$0xff] 0.0
        %346 = vst [vmem:[#allocation2 + $0x1d0] sm:$0xff] 0.0
        %347 = vst [vmem:[#allocation2 + $0x1d8] sm:$0xff] 0.0
        %348 = vst [vmem:[#allocation2 + $0x1e0] sm:$0xff] 0.0
        %349 = vst [vmem:[#allocation2 + $0x1e8] sm:$0xff] 0.0
        %350 = vst [vmem:[#allocation2 + $0x1f0] sm:$0xff] 0.0
        %351 = vst [vmem:[#allocation2 + $0x1f8] sm:$0xff] 0.0
        %352 = vst [vmem:[#allocation2 + $0x200] sm:$0xff] 0.0
        %353 = vst [vmem:[#allocation2 + $0x208] sm:$0xff] 0.0
        %354 = vst [vmem:[#allocation2 + $0x210] sm:$0xff] 0.0
        %355 = vst [vmem:[#allocation2 + $0x218] sm:$0xff] 0.0
        %356 = vst [vmem:[#allocation2 + $0x220] sm:$0xff] 0.0
        %357 = vst [vmem:[#allocation2 + $0x228] sm:$0xff] 0.0
        %358 = vst [vmem:[#allocation2 + $0x230] sm:$0xff] 0.0
        %359 = vst [vmem:[#allocation2 + $0x238] sm:$0xff] 0.0
        %360 = vst [vmem:[#allocation2 + $0x240] sm:$0xff] 0.0
        %361 = vst [vmem:[#allocation2 + $0x248] sm:$0xff] 0.0
        %362 = vst [vmem:[#allocation2 + $0x250] sm:$0xff] 0.0
        %363 = vst [vmem:[#allocation2 + $0x258] sm:$0xff] 0.0
        %364 = vst [vmem:[#allocation2 + $0x260] sm:$0xff] 0.0
        %365 = vst [vmem:[#allocation2 + $0x268] sm:$0xff] 0.0
        %366 = vst [vmem:[#allocation2 + $0x270] sm:$0xff] 0.0
        %367 = vst [vmem:[#allocation2 + $0x278] sm:$0xff] 0.0
        %368 = vst [vmem:[#allocation2 + $0x280] sm:$0xff] 0.0
        %369 = vst [vmem:[#allocation2 + $0x288] sm:$0xff] 0.0
        %370 = vst [vmem:[#allocation2 + $0x290] sm:$0xff] 0.0
        %371 = vst [vmem:[#allocation2 + $0x298] sm:$0xff] 0.0
        %372 = vst [vmem:[#allocation2 + $0x2a0] sm:$0xff] 0.0
        %373 = vst [vmem:[#allocation2 + $0x2a8] sm:$0xff] 0.0
        %374 = vst [vmem:[#allocation2 + $0x2b0] sm:$0xff] 0.0
        %375 = vst [vmem:[#allocation2 + $0x2b8] sm:$0xff] 0.0
        %376 = vst [vmem:[#allocation2 + $0x2c0] sm:$0xff] 0.0
        %377 = vst [vmem:[#allocation2 + $0x2c8] sm:$0xff] 0.0
        %378 = vst [vmem:[#allocation2 + $0x2d0] sm:$0xff] 0.0
        %379 = vst [vmem:[#allocation2 + $0x2d8] sm:$0xff] 0.0
        %380 = vst [vmem:[#allocation2 + $0x2e0] sm:$0xff] 0.0
        %381 = vst [vmem:[#allocation2 + $0x2e8] sm:$0xff] 0.0
        %382 = vst [vmem:[#allocation2 + $0x2f0] sm:$0xff] 0.0
        %383 = vst [vmem:[#allocation2 + $0x2f8] sm:$0xff] 0.0
        %384 = vst [vmem:[#allocation2 + $0x300] sm:$0xff] 0.0
        %385 = vst [vmem:[#allocation2 + $0x308] sm:$0xff] 0.0
        %386 = vst [vmem:[#allocation2 + $0x310] sm:$0xff] 0.0
        %387 = vst [vmem:[#allocation2 + $0x318] sm:$0xff] 0.0
        %388 = vst [vmem:[#allocation2 + $0x320] sm:$0xff] 0.0
        %389 = vst [vmem:[#allocation2 + $0x328] sm:$0xff] 0.0
        %390 = vst [vmem:[#allocation2 + $0x330] sm:$0xff] 0.0
        %391 = vst [vmem:[#allocation2 + $0x338] sm:$0xff] 0.0
        %392 = vst [vmem:[#allocation2 + $0x340] sm:$0xff] 0.0
        %393 = vst [vmem:[#allocation2 + $0x348] sm:$0xff] 0.0
        %394 = vst [vmem:[#allocation2 + $0x350] sm:$0xff] 0.0
        %395 = vst [vmem:[#allocation2 + $0x358] sm:$0xff] 0.0
        %396 = vst [vmem:[#allocation2 + $0x360] sm:$0xff] 0.0
        %397 = vst [vmem:[#allocation2 + $0x368] sm:$0xff] 0.0
        %398 = vst [vmem:[#allocation2 + $0x370] sm:$0xff] 0.0
        %399 = vst [vmem:[#allocation2 + $0x378] sm:$0xff] 0.0
        %400 = vst [vmem:[#allocation2 + $0x380] sm:$0xff] 0.0
        %401 = vst [vmem:[#allocation2 + $0x388] sm:$0xff] 0.0
        %402 = vst [vmem:[#allocation2 + $0x390] sm:$0xff] 0.0
        %403 = vst [vmem:[#allocation2 + $0x398] sm:$0xff] 0.0
        %404 = vst [vmem:[#allocation2 + $0x3a0] sm:$0xff] 0.0
        %405 = vst [vmem:[#allocation2 + $0x3a8] sm:$0xff] 0.0
        %406 = vst [vmem:[#allocation2 + $0x3b0] sm:$0xff] 0.0
        %407 = vst [vmem:[#allocation2 + $0x3b8] sm:$0xff] 0.0
        %v408 = vld [vmem:[%s250] sm:$0xff]
        %v409 = vld [vmem:[%s250 + $0x8] sm:$0xff]
        %v410 = vld [vmem:[%s250 + $0x10] sm:$0xff]
        %v411 = vld [vmem:[%s250 + $0x18] sm:$0xff]
        %v412 = vld [vmem:[%s250 + $0x20] sm:$0xff]
        %v413 = vld [vmem:[%s250 + $0x28] sm:$0xff]
        %v414 = vld [vmem:[%s250 + $0x30] sm:$0xff]
        %v415 = vld [vmem:[%s250 + $0x38] sm:$0xff]
        %v416 = vld [vmem:[%s250 + $0x40] sm:$0xff]
        %v417 = vld [vmem:[%s250 + $0x48] sm:$0xff]
        %v418 = vld [vmem:[%s250 + $0x50] sm:$0xff]
        %v419 = vld [vmem:[%s250 + $0x58] sm:$0xff]
        %v420 = vld [vmem:[%s250 + $0x60] sm:$0xff]
        %v421 = vld [vmem:[%s250 + $0x68] sm:$0xff]
        %v422 = vld [vmem:[%s250 + $0x70] sm:$0xff]
        %v423 = vld [vmem:[%s250 + $0x78] sm:$0xff]
        %v424 = vld [vmem:[%s250 + $0x80] sm:$0xff]
        %v425 = vld [vmem:[%s250 + $0x88] sm:$0xff]
        %v426 = vld [vmem:[%s250 + $0x90] sm:$0xff]
        %v427 = vld [vmem:[%s250 + $0x98] sm:$0xff]
        %v428 = vld [vmem:[%s250 + $0xa0] sm:$0xff]
        %v429 = vld [vmem:[%s250 + $0xa8] sm:$0xff]
        %v430 = vld [vmem:[%s250 + $0xb0] sm:$0xff]
        %v431 = vld [vmem:[%s250 + $0xb8] sm:$0xff]
        %v432 = vld [vmem:[%s250 + $0xc0] sm:$0xff]
        %v433 = vld [vmem:[%s250 + $0xc8] sm:$0xff]
        %v434 = vld [vmem:[%s250 + $0xd0] sm:$0xff]
        %v435 = vld [vmem:[%s250 + $0xd8] sm:$0xff]
        %v436 = vld [vmem:[%s250 + $0xe0] sm:$0xff]
        %v437 = vld [vmem:[%s250 + $0xe8] sm:$0xff]
        %v438 = vld [vmem:[%s250 + $0xf0] sm:$0xff]
        %v439 = vld [vmem:[%s250 + $0xf8] sm:$0xff]
        %s440 = scalar_lea.vmem [#allocation2], 328
        %441 = vst [vmem:[%s440] sm:$0xff] %v408
        %442 = vst [vmem:[%s440 + $0x8] sm:$0xff] %v409
        %443 = vst [vmem:[%s440 + $0x10] sm:$0xff] %v410
        %444 = vst [vmem:[%s440 + $0x18] sm:$0xff] %v411
        %445 = vst [vmem:[%s440 + $0x20] sm:$0xff] %v412
        %446 = vst [vmem:[%s440 + $0x28] sm:$0xff] %v413
        %447 = vst [vmem:[%s440 + $0x30] sm:$0xff] %v414
        %448 = vst [vmem:[%s440 + $0x38] sm:$0xff] %v415
        %449 = vst [vmem:[%s440 + $0x50] sm:$0xff] %v416
        %450 = vst [vmem:[%s440 + $0x58] sm:$0xff] %v417
        %451 = vst [vmem:[%s440 + $0x60] sm:$0xff] %v418
        %452 = vst [vmem:[%s440 + $0x68] sm:$0xff] %v419
        %453 = vst [vmem:[%s440 + $0x70] sm:$0xff] %v420
        %454 = vst [vmem:[%s440 + $0x78] sm:$0xff] %v421
        %455 = vst [vmem:[%s440 + $0x80] sm:$0xff] %v422
        %456 = vst [vmem:[%s440 + $0x88] sm:$0xff] %v423
        %457 = vst [vmem:[%s440 + $0xa0] sm:$0xff] %v424
        %458 = vst [vmem:[%s440 + $0xa8] sm:$0xff] %v425
        %459 = vst [vmem:[%s440 + $0xb0] sm:$0xff] %v426
        %460 = vst [vmem:[%s440 + $0xb8] sm:$0xff] %v427
        %461 = vst [vmem:[%s440 + $0xc0] sm:$0xff] %v428
        %462 = vst [vmem:[%s440 + $0xc8] sm:$0xff] %v429
        %463 = vst [vmem:[%s440 + $0xd0] sm:$0xff] %v430
        %464 = vst [vmem:[%s440 + $0xd8] sm:$0xff] %v431
        %465 = vst [vmem:[%s440 + $0xf0] sm:$0xff] %v432
        %466 = vst [vmem:[%s440 + $0xf8] sm:$0xff] %v433
        %467 = vst [vmem:[%s440 + $0x100] sm:$0xff] %v434
        %468 = vst [vmem:[%s440 + $0x108] sm:$0xff] %v435
        %469 = vst [vmem:[%s440 + $0x110] sm:$0xff] %v436
        %470 = vst [vmem:[%s440 + $0x118] sm:$0xff] %v437
        %471 = vst [vmem:[%s440 + $0x120] sm:$0xff] %v438
        %472 = vst [vmem:[%s440 + $0x128] sm:$0xff] %v439
        %v473 = vld [vmem:[%s250] sm:$0x7f]
        %v474 = vld [vmem:[%s250 + $0x8] sm:$0x7f]
        %v475 = vld [vmem:[%s250 + $0x10] sm:$0x7f]
        %v476 = vld [vmem:[%s250 + $0x18] sm:$0x7f]
        %v477 = vld [vmem:[%s250 + $0x20] sm:$0x7f]
        %v478 = vld [vmem:[%s250 + $0x28] sm:$0x7f]
        %v479 = vld [vmem:[%s250 + $0x30] sm:$0x7f]
        %v480 = vld [vmem:[%s250 + $0x38] sm:$0x7f]
        %v481 = vld [vmem:[%s250 + $0x40] sm:$0x7f]
        %v482 = vld [vmem:[%s250 + $0x48] sm:$0x7f]
        %v483 = vld [vmem:[%s250 + $0x50] sm:$0x7f]
        %v484 = vld [vmem:[%s250 + $0x58] sm:$0x7f]
        %v485 = vld [vmem:[%s250 + $0x60] sm:$0x7f]
        %v486 = vld [vmem:[%s250 + $0x68] sm:$0x7f]
        %v487 = vld [vmem:[%s250 + $0x70] sm:$0x7f]
        %v488 = vld [vmem:[%s250 + $0x78] sm:$0x7f]
        %v489 = vld [vmem:[%s250 + $0x80] sm:$0x7f]
        %v490 = vld [vmem:[%s250 + $0x88] sm:$0x7f]
        %v491 = vld [vmem:[%s250 + $0x90] sm:$0x7f]
        %v492 = vld [vmem:[%s250 + $0x98] sm:$0x7f]
        %v493 = vld [vmem:[%s250 + $0xa0] sm:$0x7f]
        %v494 = vld [vmem:[%s250 + $0xa8] sm:$0x7f]
        %v495 = vld [vmem:[%s250 + $0xb0] sm:$0x7f]
        %v496 = vld [vmem:[%s250 + $0xb8] sm:$0x7f]
        %v497 = vld [vmem:[%s250 + $0xc0] sm:$0x7f]
        %v498 = vld [vmem:[%s250 + $0xc8] sm:$0x7f]
        %v499 = vld [vmem:[%s250 + $0xd0] sm:$0x7f]
        %v500 = vld [vmem:[%s250 + $0xd8] sm:$0x7f]
        %v501 = vld [vmem:[%s250 + $0xe0] sm:$0x7f]
        %v502 = vld [vmem:[%s250 + $0xe8] sm:$0x7f]
        %v503 = vld [vmem:[%s250 + $0xf0] sm:$0x7f]
        %v504 = vld [vmem:[%s250 + $0xf8] sm:$0x7f]
        %s505 = scalar_lea.vmem [#allocation2], 8
        %506 = vst [vmem:[%s505 + $0x1] sm:$0x7f] %v473
        %507 = vst [vmem:[%s505 + $0x9] sm:$0x7f] %v474
        %508 = vst [vmem:[%s505 + $0x11] sm:$0x7f] %v475
        %509 = vst [vmem:[%s505 + $0x19] sm:$0x7f] %v476
        %510 = vst [vmem:[%s505 + $0x21] sm:$0x7f] %v477
        %511 = vst [vmem:[%s505 + $0x29] sm:$0x7f] %v478
        %512 = vst [vmem:[%s505 + $0x31] sm:$0x7f] %v479
        %513 = vst [vmem:[%s505 + $0x39] sm:$0x7f] %v480
        %514 = vst [vmem:[%s505 + $0x51] sm:$0x7f] %v481
        %515 = vst [vmem:[%s505 + $0x59] sm:$0x7f] %v482
        %516 = vst [vmem:[%s505 + $0x61] sm:$0x7f] %v483
        %517 = vst [vmem:[%s505 + $0x69] sm:$0x7f] %v484
        %518 = vst [vmem:[%s505 + $0x71] sm:$0x7f] %v485
        %519 = vst [vmem:[%s505 + $0x79] sm:$0x7f] %v486
        %520 = vst [vmem:[%s505 + $0x81] sm:$0x7f] %v487
        %521 = vst [vmem:[%s505 + $0x89] sm:$0x7f] %v488
        %522 = vst [vmem:[%s505 + $0xa1] sm:$0x7f] %v489
        %523 = vst [vmem:[%s505 + $0xa9] sm:$0x7f] %v490
        %524 = vst [vmem:[%s505 + $0xb1] sm:$0x7f] %v491
        %525 = vst [vmem:[%s505 + $0xb9] sm:$0x7f] %v492
        %526 = vst [vmem:[%s505 + $0xc1] sm:$0x7f] %v493
        %527 = vst [vmem:[%s505 + $0xc9] sm:$0x7f] %v494
        %528 = vst [vmem:[%s505 + $0xd1] sm:$0x7f] %v495
        %529 = vst [vmem:[%s505 + $0xd9] sm:$0x7f] %v496
        %530 = vst [vmem:[%s505 + $0xf1] sm:$0x7f] %v497
        %531 = vst [vmem:[%s505 + $0xf9] sm:$0x7f] %v498
        %532 = vst [vmem:[%s505 + $0x101] sm:$0x7f] %v499
        %533 = vst [vmem:[%s505 + $0x109] sm:$0x7f] %v500
        %534 = vst [vmem:[%s505 + $0x111] sm:$0x7f] %v501
        %535 = vst [vmem:[%s505 + $0x119] sm:$0x7f] %v502
        %536 = vst [vmem:[%s505 + $0x121] sm:$0x7f] %v503
        %537 = vst [vmem:[%s505 + $0x129] sm:$0x7f] %v504
        %v538 = vld [vmem:[%s250 + $0x1] sm:$0x7f]
        %v539 = vld [vmem:[%s250 + $0x9] sm:$0x7f]
        %v540 = vld [vmem:[%s250 + $0x11] sm:$0x7f]
        %v541 = vld [vmem:[%s250 + $0x19] sm:$0x7f]
        %v542 = vld [vmem:[%s250 + $0x21] sm:$0x7f]
        %v543 = vld [vmem:[%s250 + $0x29] sm:$0x7f]
        %v544 = vld [vmem:[%s250 + $0x31] sm:$0x7f]
        %v545 = vld [vmem:[%s250 + $0x39] sm:$0x7f]
        %v546 = vld [vmem:[%s250 + $0x41] sm:$0x7f]
        %v547 = vld [vmem:[%s250 + $0x49] sm:$0x7f]
        %v548 = vld [vmem:[%s250 + $0x51] sm:$0x7f]
        %v549 = vld [vmem:[%s250 + $0x59] sm:$0x7f]
        %v550 = vld [vmem:[%s250 + $0x61] sm:$0x7f]
        %v551 = vld [vmem:[%s250 + $0x69] sm:$0x7f]
        %v552 = vld [vmem:[%s250 + $0x71] sm:$0x7f]
        %v553 = vld [vmem:[%s250 + $0x79] sm:$0x7f]
        %v554 = vld [vmem:[%s250 + $0x81] sm:$0x7f]
        %v555 = vld [vmem:[%s250 + $0x89] sm:$0x7f]
        %v556 = vld [vmem:[%s250 + $0x91] sm:$0x7f]
        %v557 = vld [vmem:[%s250 + $0x99] sm:$0x7f]
        %v558 = vld [vmem:[%s250 + $0xa1] sm:$0x7f]
        %v559 = vld [vmem:[%s250 + $0xa9] sm:$0x7f]
        %v560 = vld [vmem:[%s250 + $0xb1] sm:$0x7f]
        %v561 = vld [vmem:[%s250 + $0xb9] sm:$0x7f]
        %v562 = vld [vmem:[%s250 + $0xc1] sm:$0x7f]
        %v563 = vld [vmem:[%s250 + $0xc9] sm:$0x7f]
        %v564 = vld [vmem:[%s250 + $0xd1] sm:$0x7f]
        %v565 = vld [vmem:[%s250 + $0xd9] sm:$0x7f]
        %v566 = vld [vmem:[%s250 + $0xe1] sm:$0x7f]
        %v567 = vld [vmem:[%s250 + $0xe9] sm:$0x7f]
        %v568 = vld [vmem:[%s250 + $0xf1] sm:$0x7f]
        %v569 = vld [vmem:[%s250 + $0xf9] sm:$0x7f]
        %s570 = scalar_lea.vmem [#allocation2], 648
        %571 = vst [vmem:[%s570] sm:$0x7f] %v538
        %572 = vst [vmem:[%s570 + $0x8] sm:$0x7f] %v539
        %573 = vst [vmem:[%s570 + $0x10] sm:$0x7f] %v540
        %574 = vst [vmem:[%s570 + $0x18] sm:$0x7f] %v541
        %575 = vst [vmem:[%s570 + $0x20] sm:$0x7f] %v542
        %576 = vst [vmem:[%s570 + $0x28] sm:$0x7f] %v543
        %577 = vst [vmem:[%s570 + $0x30] sm:$0x7f] %v544
        %578 = vst [vmem:[%s570 + $0x38] sm:$0x7f] %v545
        %579 = vst [vmem:[%s570 + $0x50] sm:$0x7f] %v546
        %580 = vst [vmem:[%s570 + $0x58] sm:$0x7f] %v547
        %581 = vst [vmem:[%s570 + $0x60] sm:$0x7f] %v548
        %582 = vst [vmem:[%s570 + $0x68] sm:$0x7f] %v549
        %583 = vst [vmem:[%s570 + $0x70] sm:$0x7f] %v550
        %584 = vst [vmem:[%s570 + $0x78] sm:$0x7f] %v551
        %585 = vst [vmem:[%s570 + $0x80] sm:$0x7f] %v552
        %586 = vst [vmem:[%s570 + $0x88] sm:$0x7f] %v553
        %587 = vst [vmem:[%s570 + $0xa0] sm:$0x7f] %v554
        %588 = vst [vmem:[%s570 + $0xa8] sm:$0x7f] %v555
        %589 = vst [vmem:[%s570 + $0xb0] sm:$0x7f] %v556
        %590 = vst [vmem:[%s570 + $0xb8] sm:$0x7f] %v557
        %591 = vst [vmem:[%s570 + $0xc0] sm:$0x7f] %v558
        %592 = vst [vmem:[%s570 + $0xc8] sm:$0x7f] %v559
        %593 = vst [vmem:[%s570 + $0xd0] sm:$0x7f] %v560
        %594 = vst [vmem:[%s570 + $0xd8] sm:$0x7f] %v561
        %595 = vst [vmem:[%s570 + $0xf0] sm:$0x7f] %v562
        %596 = vst [vmem:[%s570 + $0xf8] sm:$0x7f] %v563
        %597 = vst [vmem:[%s570 + $0x100] sm:$0x7f] %v564
        %598 = vst [vmem:[%s570 + $0x108] sm:$0x7f] %v565
        %599 = vst [vmem:[%s570 + $0x110] sm:$0x7f] %v566
        %600 = vst [vmem:[%s570 + $0x118] sm:$0x7f] %v567
        %601 = vst [vmem:[%s570 + $0x120] sm:$0x7f] %v568
        %602 = vst [vmem:[%s570 + $0x128] sm:$0x7f] %v569
        %v603 = vld [vmem:[#allocation7 + $0x9] sm:$0x1]
        %v604 = vld [vmem:[#allocation2] sm:$0xff]
        %v605 = vld [vmem:[#allocation2 + $0x8] sm:$0xff]
        %v606 = vld [vmem:[#allocation2 + $0x10] sm:$0xff]
        %v607 = vld [vmem:[#allocation2 + $0x18] sm:$0xff]
        %v608 = vld [vmem:[#allocation2 + $0x20] sm:$0xff]
        %v609 = vld [vmem:[#allocation2 + $0x28] sm:$0xff]
        %v610 = vld [vmem:[#allocation2 + $0x30] sm:$0xff]
        %v611 = vld [vmem:[#allocation2 + $0x38] sm:$0xff]
        %v612 = vld [vmem:[#allocation2 + $0x50] sm:$0xff]
        %v613 = vld [vmem:[#allocation2 + $0x58] sm:$0xff]
        %v614 = vld [vmem:[#allocation2 + $0x60] sm:$0xff]
        %v615 = vld [vmem:[#allocation2 + $0x68] sm:$0xff]
        %v616 = vld [vmem:[#allocation2 + $0x70] sm:$0xff]
        %v617 = vld [vmem:[#allocation2 + $0x78] sm:$0xff]
        %v618 = vld [vmem:[#allocation2 + $0x80] sm:$0xff]
        %v619 = vld [vmem:[#allocation2 + $0x88] sm:$0xff]
        %v620 = vld [vmem:[#allocation2 + $0xa0] sm:$0xff]
        %v621 = vld [vmem:[#allocation2 + $0xa8] sm:$0xff]
        %v622 = vld [vmem:[#allocation2 + $0xb0] sm:$0xff]
        %v623 = vld [vmem:[#allocation2 + $0xb8] sm:$0xff]
        %v624 = vld [vmem:[#allocation2 + $0xc0] sm:$0xff]
        %v625 = vld [vmem:[#allocation2 + $0xc8] sm:$0xff]
        %v626 = vld [vmem:[#allocation2 + $0xd0] sm:$0xff]
        %v627 = vld [vmem:[#allocation2 + $0xd8] sm:$0xff]
        %v628 = vld [vmem:[#allocation2 + $0xf0] sm:$0xff]
        %v629 = vld [vmem:[#allocation2 + $0xf8] sm:$0xff]
        %v630 = vld [vmem:[#allocation2 + $0x100] sm:$0xff]
        %v631 = vld [vmem:[#allocation2 + $0x108] sm:$0xff]
        %v632 = vld [vmem:[#allocation2 + $0x110] sm:$0xff]
        %v633 = vld [vmem:[#allocation2 + $0x118] sm:$0xff]
        %v634 = vld [vmem:[#allocation2 + $0x120] sm:$0xff]
        %v635 = vld [vmem:[#allocation2 + $0x128] sm:$0xff]
        %v636 = vlaneseq
        %v637 = vshrl.u32 %v636, 7
        %v638 = vsub.s32 0, %v637
        %v639 = vrot.slane %v603, %v638
        %v640 = vmul.f32 %v604, %v639
        %v641 = vmul.f32 %v605, %v639
        %v642 = vmul.f32 %v606, %v639
        %v643 = vmul.f32 %v607, %v639
        %v644 = vmul.f32 %v608, %v639
        %v645 = vmul.f32 %v609, %v639
        %v646 = vmul.f32 %v610, %v639
        %v647 = vmul.f32 %v611, %v639
        %v648 = vmul.f32 %v612, %v639
        %v649 = vmul.f32 %v613, %v639
        %v650 = vmul.f32 %v614, %v639
        %v651 = vmul.f32 %v615, %v639
        %v652 = vmul.f32 %v616, %v639
        %v653 = vmul.f32 %v617, %v639
        %v654 = vmul.f32 %v618, %v639
        %v655 = vmul.f32 %v619, %v639
        %v656 = vmul.f32 %v620, %v639
        %v657 = vmul.f32 %v621, %v639
        %v658 = vmul.f32 %v622, %v639
        %v659 = vmul.f32 %v623, %v639
        %v660 = vmul.f32 %v624, %v639
        %v661 = vmul.f32 %v625, %v639
        %v662 = vmul.f32 %v626, %v639
        %v663 = vmul.f32 %v627, %v639
        %v664 = vmul.f32 %v628, %v639
        %v665 = vmul.f32 %v629, %v639
        %v666 = vmul.f32 %v630, %v639
        %v667 = vmul.f32 %v631, %v639
        %v668 = vmul.f32 %v632, %v639
        %v669 = vmul.f32 %v633, %v639
        %v670 = vmul.f32 %v634, %v639
        %v671 = vmul.f32 %v635, %v639
        %v672 = vld [vmem:[#allocation7 + $0xa] sm:$0x1]
        %s673 = scalar_lea.vmem [#allocation2], 320
        %v674 = vld [vmem:[%s673] sm:$0xff]
        %v675 = vld [vmem:[%s673 + $0x8] sm:$0xff]
        %v676 = vld [vmem:[%s673 + $0x10] sm:$0xff]
        %v677 = vld [vmem:[%s673 + $0x18] sm:$0xff]
        %v678 = vld [vmem:[%s673 + $0x20] sm:$0xff]
        %v679 = vld [vmem:[%s673 + $0x28] sm:$0xff]
        %v680 = vld [vmem:[%s673 + $0x30] sm:$0xff]
        %v681 = vld [vmem:[%s673 + $0x38] sm:$0xff]
        %v682 = vld [vmem:[%s673 + $0x50] sm:$0xff]
        %v683 = vld [vmem:[%s673 + $0x58] sm:$0xff]
        %v684 = vld [vmem:[%s673 + $0x60] sm:$0xff]
        %v685 = vld [vmem:[%s673 + $0x68] sm:$0xff]
        %v686 = vld [vmem:[%s673 + $0x70] sm:$0xff]
        %v687 = vld [vmem:[%s673 + $0x78] sm:$0xff]
        %v688 = vld [vmem:[%s673 + $0x80] sm:$0xff]
        %v689 = vld [vmem:[%s673 + $0x88] sm:$0xff]
        %v690 = vld [vmem:[%s673 + $0xa0] sm:$0xff]
        %v691 = vld [vmem:[%s673 + $0xa8] sm:$0xff]
        %v692 = vld [vmem:[%s673 + $0xb0] sm:$0xff]
        %v693 = vld [vmem:[%s673 + $0xb8] sm:$0xff]
        %v694 = vld [vmem:[%s673 + $0xc0] sm:$0xff]
        %v695 = vld [vmem:[%s673 + $0xc8] sm:$0xff]
        %v696 = vld [vmem:[%s673 + $0xd0] sm:$0xff]
        %v697 = vld [vmem:[%s673 + $0xd8] sm:$0xff]
        %v698 = vld [vmem:[%s673 + $0xf0] sm:$0xff]
        %v699 = vld [vmem:[%s673 + $0xf8] sm:$0xff]
        %v700 = vld [vmem:[%s673 + $0x100] sm:$0xff]
        %v701 = vld [vmem:[%s673 + $0x108] sm:$0xff]
        %v702 = vld [vmem:[%s673 + $0x110] sm:$0xff]
        %v703 = vld [vmem:[%s673 + $0x118] sm:$0xff]
        %v704 = vld [vmem:[%s673 + $0x120] sm:$0xff]
        %v705 = vld [vmem:[%s673 + $0x128] sm:$0xff]
        %v706 = vlaneseq
        %v707 = vshrl.u32 %v706, 7
        %v708 = vsub.s32 0, %v707
        %v709 = vrot.slane %v672, %v708
        %v710 = vmul.f32 %v674, %v709
        %v711 = vmul.f32 %v675, %v709
        %v712 = vmul.f32 %v676, %v709
        %v713 = vmul.f32 %v677, %v709
        %v714 = vmul.f32 %v678, %v709
        %v715 = vmul.f32 %v679, %v709
        %v716 = vmul.f32 %v680, %v709
        %v717 = vmul.f32 %v681, %v709
        %v718 = vmul.f32 %v682, %v709
        %v719 = vmul.f32 %v683, %v709
        %v720 = vmul.f32 %v684, %v709
        %v721 = vmul.f32 %v685, %v709
        %v722 = vmul.f32 %v686, %v709
        %v723 = vmul.f32 %v687, %v709
        %v724 = vmul.f32 %v688, %v709
        %v725 = vmul.f32 %v689, %v709
        %v726 = vmul.f32 %v690, %v709
        %v727 = vmul.f32 %v691, %v709
        %v728 = vmul.f32 %v692, %v709
        %v729 = vmul.f32 %v693, %v709
        %v730 = vmul.f32 %v694, %v709
        %v731 = vmul.f32 %v695, %v709
        %v732 = vmul.f32 %v696, %v709
        %v733 = vmul.f32 %v697, %v709
        %v734 = vmul.f32 %v698, %v709
        %v735 = vmul.f32 %v699, %v709
        %v736 = vmul.f32 %v700, %v709
        %v737 = vmul.f32 %v701, %v709
        %v738 = vmul.f32 %v702, %v709
        %v739 = vmul.f32 %v703, %v709
        %v740 = vmul.f32 %v704, %v709
        %v741 = vmul.f32 %v705, %v709
        %v742 = vadd.f32 %v640, %v710
        %v743 = vadd.f32 %v641, %v711
        %v744 = vadd.f32 %v642, %v712
        %v745 = vadd.f32 %v643, %v713
        %v746 = vadd.f32 %v644, %v714
        %v747 = vadd.f32 %v645, %v715
        %v748 = vadd.f32 %v646, %v716
        %v749 = vadd.f32 %v647, %v717
        %v750 = vadd.f32 %v648, %v718
        %v751 = vadd.f32 %v649, %v719
        %v752 = vadd.f32 %v650, %v720
        %v753 = vadd.f32 %v651, %v721
        %v754 = vadd.f32 %v652, %v722
        %v755 = vadd.f32 %v653, %v723
        %v756 = vadd.f32 %v654, %v724
        %v757 = vadd.f32 %v655, %v725
        %v758 = vadd.f32 %v656, %v726
        %v759 = vadd.f32 %v657, %v727
        %v760 = vadd.f32 %v658, %v728
        %v761 = vadd.f32 %v659, %v729
        %v762 = vadd.f32 %v660, %v730
        %v763 = vadd.f32 %v661, %v731
        %v764 = vadd.f32 %v662, %v732
        %v765 = vadd.f32 %v663, %v733
        %v766 = vadd.f32 %v664, %v734
        %v767 = vadd.f32 %v665, %v735
        %v768 = vadd.f32 %v666, %v736
        %v769 = vadd.f32 %v667, %v737
        %v770 = vadd.f32 %v668, %v738
        %v771 = vadd.f32 %v669, %v739
        %v772 = vadd.f32 %v670, %v740
        %v773 = vadd.f32 %v671, %v741
        %v774 = vld [vmem:[#allocation7 + $0xb] sm:$0x1]
        %s775 = scalar_lea.vmem [#allocation2], 640
        %v776 = vld [vmem:[%s775] sm:$0xff]
        %v777 = vld [vmem:[%s775 + $0x8] sm:$0xff]
        %v778 = vld [vmem:[%s775 + $0x10] sm:$0xff]
        %v779 = vld [vmem:[%s775 + $0x18] sm:$0xff]
        %v780 = vld [vmem:[%s775 + $0x20] sm:$0xff]
        %v781 = vld [vmem:[%s775 + $0x28] sm:$0xff]
        %v782 = vld [vmem:[%s775 + $0x30] sm:$0xff]
        %v783 = vld [vmem:[%s775 + $0x38] sm:$0xff]
        %v784 = vld [vmem:[%s775 + $0x50] sm:$0xff]
        %v785 = vld [vmem:[%s775 + $0x58] sm:$0xff]
        %v786 = vld [vmem:[%s775 + $0x60] sm:$0xff]
        %v787 = vld [vmem:[%s775 + $0x68] sm:$0xff]
        %v788 = vld [vmem:[%s775 + $0x70] sm:$0xff]
        %v789 = vld [vmem:[%s775 + $0x78] sm:$0xff]
        %v790 = vld [vmem:[%s775 + $0x80] sm:$0xff]
        %v791 = vld [vmem:[%s775 + $0x88] sm:$0xff]
        %v792 = vld [vmem:[%s775 + $0xa0] sm:$0xff]
        %v793 = vld [vmem:[%s775 + $0xa8] sm:$0xff]
        %v794 = vld [vmem:[%s775 + $0xb0] sm:$0xff]
        %v795 = vld [vmem:[%s775 + $0xb8] sm:$0xff]
        %v796 = vld [vmem:[%s775 + $0xc0] sm:$0xff]
        %v797 = vld [vmem:[%s775 + $0xc8] sm:$0xff]
        %v798 = vld [vmem:[%s775 + $0xd0] sm:$0xff]
        %v799 = vld [vmem:[%s775 + $0xd8] sm:$0xff]
        %v800 = vld [vmem:[%s775 + $0xf0] sm:$0xff]
        %v801 = vld [vmem:[%s775 + $0xf8] sm:$0xff]
        %v802 = vld [vmem:[%s775 + $0x100] sm:$0xff]
        %v803 = vld [vmem:[%s775 + $0x108] sm:$0xff]
        %v804 = vld [vmem:[%s775 + $0x110] sm:$0xff]
        %v805 = vld [vmem:[%s775 + $0x118] sm:$0xff]
        %v806 = vld [vmem:[%s775 + $0x120] sm:$0xff]
        %v807 = vld [vmem:[%s775 + $0x128] sm:$0xff]
        %v808 = vlaneseq
        %v809 = vshrl.u32 %v808, 7
        %v810 = vsub.s32 0, %v809
        %v811 = vrot.slane %v774, %v810
        %v812 = vmul.f32 %v776, %v811
        %v813 = vmul.f32 %v777, %v811
        %v814 = vmul.f32 %v778, %v811
        %v815 = vmul.f32 %v779, %v811
        %v816 = vmul.f32 %v780, %v811
        %v817 = vmul.f32 %v781, %v811
        %v818 = vmul.f32 %v782, %v811
        %v819 = vmul.f32 %v783, %v811
        %v820 = vmul.f32 %v784, %v811
        %v821 = vmul.f32 %v785, %v811
        %v822 = vmul.f32 %v786, %v811
        %v823 = vmul.f32 %v787, %v811
        %v824 = vmul.f32 %v788, %v811
        %v825 = vmul.f32 %v789, %v811
        %v826 = vmul.f32 %v790, %v811
        %v827 = vmul.f32 %v791, %v811
        %v828 = vmul.f32 %v792, %v811
        %v829 = vmul.f32 %v793, %v811
        %v830 = vmul.f32 %v794, %v811
        %v831 = vmul.f32 %v795, %v811
        %v832 = vmul.f32 %v796, %v811
        %v833 = vmul.f32 %v797, %v811
        %v834 = vmul.f32 %v798, %v811
        %v835 = vmul.f32 %v799, %v811
        %v836 = vmul.f32 %v800, %v811
        %v837 = vmul.f32 %v801, %v811
        %v838 = vmul.f32 %v802, %v811
        %v839 = vmul.f32 %v803, %v811
        %v840 = vmul.f32 %v804, %v811
        %v841 = vmul.f32 %v805, %v811
        %v842 = vmul.f32 %v806, %v811
        %v843 = vmul.f32 %v807, %v811
        %v844 = vadd.f32 %v742, %v812
        %v845 = vadd.f32 %v743, %v813
        %v846 = vadd.f32 %v744, %v814
        %v847 = vadd.f32 %v745, %v815
        %v848 = vadd.f32 %v746, %v816
        %v849 = vadd.f32 %v747, %v817
        %v850 = vadd.f32 %v748, %v818
        %v851 = vadd.f32 %v749, %v819
        %v852 = vadd.f32 %v750, %v820
        %v853 = vadd.f32 %v751, %v821
        %v854 = vadd.f32 %v752, %v822
        %v855 = vadd.f32 %v753, %v823
        %v856 = vadd.f32 %v754, %v824
        %v857 = vadd.f32 %v755, %v825
        %v858 = vadd.f32 %v756, %v826
        %v859 = vadd.f32 %v757, %v827
        %v860 = vadd.f32 %v758, %v828
        %v861 = vadd.f32 %v759, %v829
        %v862 = vadd.f32 %v760, %v830
        %v863 = vadd.f32 %v761, %v831
        %v864 = vadd.f32 %v762, %v832
        %v865 = vadd.f32 %v763, %v833
        %v866 = vadd.f32 %v764, %v834
        %v867 = vadd.f32 %v765, %v835
        %v868 = vadd.f32 %v766, %v836
        %v869 = vadd.f32 %v767, %v837
        %v870 = vadd.f32 %v768, %v838
        %v871 = vadd.f32 %v769, %v839
        %v872 = vadd.f32 %v770, %v840
        %v873 = vadd.f32 %v771, %v841
        %v874 = vadd.f32 %v772, %v842
        %v875 = vadd.f32 %v773, %v843
        %v876 = vld [vmem:[#allocation7 + $0xc] sm:$0x1]
        %v877 = vld [vmem:[%s505] sm:$0xff]
        %v878 = vld [vmem:[%s505 + $0x8] sm:$0xff]
        %v879 = vld [vmem:[%s505 + $0x10] sm:$0xff]
        %v880 = vld [vmem:[%s505 + $0x18] sm:$0xff]
        %v881 = vld [vmem:[%s505 + $0x20] sm:$0xff]
        %v882 = vld [vmem:[%s505 + $0x28] sm:$0xff]
        %v883 = vld [vmem:[%s505 + $0x30] sm:$0xff]
        %v884 = vld [vmem:[%s505 + $0x38] sm:$0xff]
        %v885 = vld [vmem:[%s505 + $0x50] sm:$0xff]
        %v886 = vld [vmem:[%s505 + $0x58] sm:$0xff]
        %v887 = vld [vmem:[%s505 + $0x60] sm:$0xff]
        %v888 = vld [vmem:[%s505 + $0x68] sm:$0xff]
        %v889 = vld [vmem:[%s505 + $0x70] sm:$0xff]
        %v890 = vld [vmem:[%s505 + $0x78] sm:$0xff]
        %v891 = vld [vmem:[%s505 + $0x80] sm:$0xff]
        %v892 = vld [vmem:[%s505 + $0x88] sm:$0xff]
        %v893 = vld [vmem:[%s505 + $0xa0] sm:$0xff]
        %v894 = vld [vmem:[%s505 + $0xa8] sm:$0xff]
        %v895 = vld [vmem:[%s505 + $0xb0] sm:$0xff]
        %v896 = vld [vmem:[%s505 + $0xb8] sm:$0xff]
        %v897 = vld [vmem:[%s505 + $0xc0] sm:$0xff]
        %v898 = vld [vmem:[%s505 + $0xc8] sm:$0xff]
        %v899 = vld [vmem:[%s505 + $0xd0] sm:$0xff]
        %v900 = vld [vmem:[%s505 + $0xd8] sm:$0xff]
        %v901 = vld [vmem:[%s505 + $0xf0] sm:$0xff]
        %v902 = vld [vmem:[%s505 + $0xf8] sm:$0xff]
        %v903 = vld [vmem:[%s505 + $0x100] sm:$0xff]
        %v904 = vld [vmem:[%s505 + $0x108] sm:$0xff]
        %v905 = vld [vmem:[%s505 + $0x110] sm:$0xff]
        %v906 = vld [vmem:[%s505 + $0x118] sm:$0xff]
        %v907 = vld [vmem:[%s505 + $0x120] sm:$0xff]
        %v908 = vld [vmem:[%s505 + $0x128] sm:$0xff]
        %v909 = vlaneseq
        %v910 = vshrl.u32 %v909, 7
        %v911 = vsub.s32 0, %v910
        %v912 = vrot.slane %v876, %v911
        %v913 = vmul.f32 %v877, %v912
        %v914 = vmul.f32 %v878, %v912
        %v915 = vmul.f32 %v879, %v912
        %v916 = vmul.f32 %v880, %v912
        %v917 = vmul.f32 %v881, %v912
        %v918 = vmul.f32 %v882, %v912
        %v919 = vmul.f32 %v883, %v912
        %v920 = vmul.f32 %v884, %v912
        %v921 = vmul.f32 %v885, %v912
        %v922 = vmul.f32 %v886, %v912
        %v923 = vmul.f32 %v887, %v912
        %v924 = vmul.f32 %v888, %v912
        %v925 = vmul.f32 %v889, %v912
        %v926 = vmul.f32 %v890, %v912
        %v927 = vmul.f32 %v891, %v912
        %v928 = vmul.f32 %v892, %v912
        %v929 = vmul.f32 %v893, %v912
        %v930 = vmul.f32 %v894, %v912
        %v931 = vmul.f32 %v895, %v912
        %v932 = vmul.f32 %v896, %v912
        %v933 = vmul.f32 %v897, %v912
        %v934 = vmul.f32 %v898, %v912
        %v935 = vmul.f32 %v899, %v912
        %v936 = vmul.f32 %v900, %v912
        %v937 = vmul.f32 %v901, %v912
        %v938 = vmul.f32 %v902, %v912
        %v939 = vmul.f32 %v903, %v912
        %v940 = vmul.f32 %v904, %v912
        %v941 = vmul.f32 %v905, %v912
        %v942 = vmul.f32 %v906, %v912
        %v943 = vmul.f32 %v907, %v912
        %v944 = vmul.f32 %v908, %v912
        %v945 = vadd.f32 %v844, %v913
        %v946 = vadd.f32 %v845, %v914
        %v947 = vadd.f32 %v846, %v915
        %v948 = vadd.f32 %v847, %v916
        %v949 = vadd.f32 %v848, %v917
        %v950 = vadd.f32 %v849, %v918
        %v951 = vadd.f32 %v850, %v919
        %v952 = vadd.f32 %v851, %v920
        %v953 = vadd.f32 %v852, %v921
        %v954 = vadd.f32 %v853, %v922
        %v955 = vadd.f32 %v854, %v923
        %v956 = vadd.f32 %v855, %v924
        %v957 = vadd.f32 %v856, %v925
        %v958 = vadd.f32 %v857, %v926
        %v959 = vadd.f32 %v858, %v927
        %v960 = vadd.f32 %v859, %v928
        %v961 = vadd.f32 %v860, %v929
        %v962 = vadd.f32 %v861, %v930
        %v963 = vadd.f32 %v862, %v931
        %v964 = vadd.f32 %v863, %v932
        %v965 = vadd.f32 %v864, %v933
        %v966 = vadd.f32 %v865, %v934
        %v967 = vadd.f32 %v866, %v935
        %v968 = vadd.f32 %v867, %v936
        %v969 = vadd.f32 %v868, %v937
        %v970 = vadd.f32 %v869, %v938
        %v971 = vadd.f32 %v870, %v939
        %v972 = vadd.f32 %v871, %v940
        %v973 = vadd.f32 %v872, %v941
        %v974 = vadd.f32 %v873, %v942
        %v975 = vadd.f32 %v874, %v943
        %v976 = vadd.f32 %v875, %v944
        %v977 = vld [vmem:[#allocation7 + $0xd] sm:$0x1]
        %v978 = vld [vmem:[%s440] sm:$0xff]
        %v979 = vld [vmem:[%s440 + $0x8] sm:$0xff]
        %v980 = vld [vmem:[%s440 + $0x10] sm:$0xff]
        %v981 = vld [vmem:[%s440 + $0x18] sm:$0xff]
        %v982 = vld [vmem:[%s440 + $0x20] sm:$0xff]
        %v983 = vld [vmem:[%s440 + $0x28] sm:$0xff]
        %v984 = vld [vmem:[%s440 + $0x30] sm:$0xff]
        %v985 = vld [vmem:[%s440 + $0x38] sm:$0xff]
        %v986 = vld [vmem:[%s440 + $0x50] sm:$0xff]
        %v987 = vld [vmem:[%s440 + $0x58] sm:$0xff]
        %v988 = vld [vmem:[%s440 + $0x60] sm:$0xff]
        %v989 = vld [vmem:[%s440 + $0x68] sm:$0xff]
        %v990 = vld [vmem:[%s440 + $0x70] sm:$0xff]
        %v991 = vld [vmem:[%s440 + $0x78] sm:$0xff]
        %v992 = vld [vmem:[%s440 + $0x80] sm:$0xff]
        %v993 = vld [vmem:[%s440 + $0x88] sm:$0xff]
        %v994 = vld [vmem:[%s440 + $0xa0] sm:$0xff]
        %v995 = vld [vmem:[%s440 + $0xa8] sm:$0xff]
        %v996 = vld [vmem:[%s440 + $0xb0] sm:$0xff]
        %v997 = vld [vmem:[%s440 + $0xb8] sm:$0xff]
        %v998 = vld [vmem:[%s440 + $0xc0] sm:$0xff]
        %v999 = vld [vmem:[%s440 + $0xc8] sm:$0xff]
        %v1000 = vld [vmem:[%s440 + $0xd0] sm:$0xff]
        %v1001 = vld [vmem:[%s440 + $0xd8] sm:$0xff]
        %v1002 = vld [vmem:[%s440 + $0xf0] sm:$0xff]
        %v1003 = vld [vmem:[%s440 + $0xf8] sm:$0xff]
        %v1004 = vld [vmem:[%s440 + $0x100] sm:$0xff]
        %v1005 = vld [vmem:[%s440 + $0x108] sm:$0xff]
        %v1006 = vld [vmem:[%s440 + $0x110] sm:$0xff]
        %v1007 = vld [vmem:[%s440 + $0x118] sm:$0xff]
        %v1008 = vld [vmem:[%s440 + $0x120] sm:$0xff]
        %v1009 = vld [vmem:[%s440 + $0x128] sm:$0xff]
        %v1010 = vlaneseq
        %v1011 = vshrl.u32 %v1010, 7
        %v1012 = vsub.s32 0, %v1011
        %v1013 = vrot.slane %v977, %v1012
        %v1014 = vmul.f32 %v978, %v1013
        %v1015 = vmul.f32 %v979, %v1013
        %v1016 = vmul.f32 %v980, %v1013
        %v1017 = vmul.f32 %v981, %v1013
        %v1018 = vmul.f32 %v982, %v1013
        %v1019 = vmul.f32 %v983, %v1013
        %v1020 = vmul.f32 %v984, %v1013
        %v1021 = vmul.f32 %v985, %v1013
        %v1022 = vmul.f32 %v986, %v1013
        %v1023 = vmul.f32 %v987, %v1013
        %v1024 = vmul.f32 %v988, %v1013
        %v1025 = vmul.f32 %v989, %v1013
        %v1026 = vmul.f32 %v990, %v1013
        %v1027 = vmul.f32 %v991, %v1013
        %v1028 = vmul.f32 %v992, %v1013
        %v1029 = vmul.f32 %v993, %v1013
        %v1030 = vmul.f32 %v994, %v1013
        %v1031 = vmul.f32 %v995, %v1013
        %v1032 = vmul.f32 %v996, %v1013
        %v1033 = vmul.f32 %v997, %v1013
        %v1034 = vmul.f32 %v998, %v1013
        %v1035 = vmul.f32 %v999, %v1013
        %v1036 = vmul.f32 %v1000, %v1013
        %v1037 = vmul.f32 %v1001, %v1013
        %v1038 = vmul.f32 %v1002, %v1013
        %v1039 = vmul.f32 %v1003, %v1013
        %v1040 = vmul.f32 %v1004, %v1013
        %v1041 = vmul.f32 %v1005, %v1013
        %v1042 = vmul.f32 %v1006, %v1013
        %v1043 = vmul.f32 %v1007, %v1013
        %v1044 = vmul.f32 %v1008, %v1013
        %v1045 = vmul.f32 %v1009, %v1013
        %v1046 = vadd.f32 %v945, %v1014
        %v1047 = vadd.f32 %v946, %v1015
        %v1048 = vadd.f32 %v947, %v1016
        %v1049 = vadd.f32 %v948, %v1017
        %v1050 = vadd.f32 %v949, %v1018
        %v1051 = vadd.f32 %v950, %v1019
        %v1052 = vadd.f32 %v951, %v1020
        %v1053 = vadd.f32 %v952, %v1021
        %v1054 = vadd.f32 %v953, %v1022
        %v1055 = vadd.f32 %v954, %v1023
        %v1056 = vadd.f32 %v955, %v1024
        %v1057 = vadd.f32 %v956, %v1025
        %v1058 = vadd.f32 %v957, %v1026
        %v1059 = vadd.f32 %v958, %v1027
        %v1060 = vadd.f32 %v959, %v1028
        %v1061 = vadd.f32 %v960, %v1029
        %v1062 = vadd.f32 %v961, %v1030
        %v1063 = vadd.f32 %v962, %v1031
        %v1064 = vadd.f32 %v963, %v1032
        %v1065 = vadd.f32 %v964, %v1033
        %v1066 = vadd.f32 %v965, %v1034
        %v1067 = vadd.f32 %v966, %v1035
        %v1068 = vadd.f32 %v967, %v1036
        %v1069 = vadd.f32 %v968, %v1037
        %v1070 = vadd.f32 %v969, %v1038
        %v1071 = vadd.f32 %v970, %v1039
        %v1072 = vadd.f32 %v971, %v1040
        %v1073 = vadd.f32 %v972, %v1041
        %v1074 = vadd.f32 %v973, %v1042
        %v1075 = vadd.f32 %v974, %v1043
        %v1076 = vadd.f32 %v975, %v1044
        %v1077 = vadd.f32 %v976, %v1045
        %v1078 = vld [vmem:[#allocation7 + $0xe] sm:$0x1]
        %v1079 = vld [vmem:[%s570] sm:$0xff]
        %v1080 = vld [vmem:[%s570 + $0x8] sm:$0xff]
        %v1081 = vld [vmem:[%s570 + $0x10] sm:$0xff]
        %v1082 = vld [vmem:[%s570 + $0x18] sm:$0xff]
        %v1083 = vld [vmem:[%s570 + $0x20] sm:$0xff]
        %v1084 = vld [vmem:[%s570 + $0x28] sm:$0xff]
        %v1085 = vld [vmem:[%s570 + $0x30] sm:$0xff]
        %v1086 = vld [vmem:[%s570 + $0x38] sm:$0xff]
        %v1087 = vld [vmem:[%s570 + $0x50] sm:$0xff]
        %v1088 = vld [vmem:[%s570 + $0x58] sm:$0xff]
        %v1089 = vld [vmem:[%s570 + $0x60] sm:$0xff]
        %v1090 = vld [vmem:[%s570 + $0x68] sm:$0xff]
        %v1091 = vld [vmem:[%s570 + $0x70] sm:$0xff]
        %v1092 = vld [vmem:[%s570 + $0x78] sm:$0xff]
        %v1093 = vld [vmem:[%s570 + $0x80] sm:$0xff]
        %v1094 = vld [vmem:[%s570 + $0x88] sm:$0xff]
        %v1095 = vld [vmem:[%s570 + $0xa0] sm:$0xff]
        %v1096 = vld [vmem:[%s570 + $0xa8] sm:$0xff]
        %v1097 = vld [vmem:[%s570 + $0xb0] sm:$0xff]
        %v1098 = vld [vmem:[%s570 + $0xb8] sm:$0xff]
        %v1099 = vld [vmem:[%s570 + $0xc0] sm:$0xff]
        %v1100 = vld [vmem:[%s570 + $0xc8] sm:$0xff]
        %v1101 = vld [vmem:[%s570 + $0xd0] sm:$0xff]
        %v1102 = vld [vmem:[%s570 + $0xd8] sm:$0xff]
        %v1103 = vld [vmem:[%s570 + $0xf0] sm:$0xff]
        %v1104 = vld [vmem:[%s570 + $0xf8] sm:$0xff]
        %v1105 = vld [vmem:[%s570 + $0x100] sm:$0xff]
        %v1106 = vld [vmem:[%s570 + $0x108] sm:$0xff]
        %v1107 = vld [vmem:[%s570 + $0x110] sm:$0xff]
        %v1108 = vld [vmem:[%s570 + $0x118] sm:$0xff]
        %v1109 = vld [vmem:[%s570 + $0x120] sm:$0xff]
        %v1110 = vld [vmem:[%s570 + $0x128] sm:$0xff]
        %v1111 = vlaneseq
        %v1112 = vshrl.u32 %v1111, 7
        %v1113 = vsub.s32 0, %v1112
        %v1114 = vrot.slane %v1078, %v1113
        %v1115 = vmul.f32 %v1079, %v1114
        %v1116 = vmul.f32 %v1080, %v1114
        %v1117 = vmul.f32 %v1081, %v1114
        %v1118 = vmul.f32 %v1082, %v1114
        %v1119 = vmul.f32 %v1083, %v1114
        %v1120 = vmul.f32 %v1084, %v1114
        %v1121 = vmul.f32 %v1085, %v1114
        %v1122 = vmul.f32 %v1086, %v1114
        %v1123 = vmul.f32 %v1087, %v1114
        %v1124 = vmul.f32 %v1088, %v1114
        %v1125 = vmul.f32 %v1089, %v1114
        %v1126 = vmul.f32 %v1090, %v1114
        %v1127 = vmul.f32 %v1091, %v1114
        %v1128 = vmul.f32 %v1092, %v1114
        %v1129 = vmul.f32 %v1093, %v1114
        %v1130 = vmul.f32 %v1094, %v1114
        %v1131 = vmul.f32 %v1095, %v1114
        %v1132 = vmul.f32 %v1096, %v1114
        %v1133 = vmul.f32 %v1097, %v1114
        %v1134 = vmul.f32 %v1098, %v1114
        %v1135 = vmul.f32 %v1099, %v1114
        %v1136 = vmul.f32 %v1100, %v1114
        %v1137 = vmul.f32 %v1101, %v1114
        %v1138 = vmul.f32 %v1102, %v1114
        %v1139 = vmul.f32 %v1103, %v1114
        %v1140 = vmul.f32 %v1104, %v1114
        %v1141 = vmul.f32 %v1105, %v1114
        %v1142 = vmul.f32 %v1106, %v1114
        %v1143 = vmul.f32 %v1107, %v1114
        %v1144 = vmul.f32 %v1108, %v1114
        %v1145 = vmul.f32 %v1109, %v1114
        %v1146 = vmul.f32 %v1110, %v1114
        %v1147 = vadd.f32 %v1046, %v1115
        %v1148 = vadd.f32 %v1047, %v1116
        %v1149 = vadd.f32 %v1048, %v1117
        %v1150 = vadd.f32 %v1049, %v1118
        %v1151 = vadd.f32 %v1050, %v1119
        %v1152 = vadd.f32 %v1051, %v1120
        %v1153 = vadd.f32 %v1052, %v1121
        %v1154 = vadd.f32 %v1053, %v1122
        %v1155 = vadd.f32 %v1054, %v1123
        %v1156 = vadd.f32 %v1055, %v1124
        %v1157 = vadd.f32 %v1056, %v1125
        %v1158 = vadd.f32 %v1057, %v1126
        %v1159 = vadd.f32 %v1058, %v1127
        %v1160 = vadd.f32 %v1059, %v1128
        %v1161 = vadd.f32 %v1060, %v1129
        %v1162 = vadd.f32 %v1061, %v1130
        %v1163 = vadd.f32 %v1062, %v1131
        %v1164 = vadd.f32 %v1063, %v1132
        %v1165 = vadd.f32 %v1064, %v1133
        %v1166 = vadd.f32 %v1065, %v1134
        %v1167 = vadd.f32 %v1066, %v1135
        %v1168 = vadd.f32 %v1067, %v1136
        %v1169 = vadd.f32 %v1068, %v1137
        %v1170 = vadd.f32 %v1069, %v1138
        %v1171 = vadd.f32 %v1070, %v1139
        %v1172 = vadd.f32 %v1071, %v1140
        %v1173 = vadd.f32 %v1072, %v1141
        %v1174 = vadd.f32 %v1073, %v1142
        %v1175 = vadd.f32 %v1074, %v1143
        %v1176 = vadd.f32 %v1075, %v1144
        %v1177 = vadd.f32 %v1076, %v1145
        %v1178 = vadd.f32 %v1077, %v1146
        %v1179 = vld [vmem:[#allocation7 + $0xf] sm:$0x1]
        %s1180 = scalar_lea.vmem [#allocation2], 16
        %v1181 = vld [vmem:[%s1180] sm:$0xff]
        %v1182 = vld [vmem:[%s1180 + $0x8] sm:$0xff]
        %v1183 = vld [vmem:[%s1180 + $0x10] sm:$0xff]
        %v1184 = vld [vmem:[%s1180 + $0x18] sm:$0xff]
        %v1185 = vld [vmem:[%s1180 + $0x20] sm:$0xff]
        %v1186 = vld [vmem:[%s1180 + $0x28] sm:$0xff]
        %v1187 = vld [vmem:[%s1180 + $0x30] sm:$0xff]
        %v1188 = vld [vmem:[%s1180 + $0x38] sm:$0xff]
        %v1189 = vld [vmem:[%s1180 + $0x50] sm:$0xff]
        %v1190 = vld [vmem:[%s1180 + $0x58] sm:$0xff]
        %v1191 = vld [vmem:[%s1180 + $0x60] sm:$0xff]
        %v1192 = vld [vmem:[%s1180 + $0x68] sm:$0xff]
        %v1193 = vld [vmem:[%s1180 + $0x70] sm:$0xff]
        %v1194 = vld [vmem:[%s1180 + $0x78] sm:$0xff]
        %v1195 = vld [vmem:[%s1180 + $0x80] sm:$0xff]
        %v1196 = vld [vmem:[%s1180 + $0x88] sm:$0xff]
        %v1197 = vld [vmem:[%s1180 + $0xa0] sm:$0xff]
        %v1198 = vld [vmem:[%s1180 + $0xa8] sm:$0xff]
        %v1199 = vld [vmem:[%s1180 + $0xb0] sm:$0xff]
        %v1200 = vld [vmem:[%s1180 + $0xb8] sm:$0xff]
        %v1201 = vld [vmem:[%s1180 + $0xc0] sm:$0xff]
        %v1202 = vld [vmem:[%s1180 + $0xc8] sm:$0xff]
        %v1203 = vld [vmem:[%s1180 + $0xd0] sm:$0xff]
        %v1204 = vld [vmem:[%s1180 + $0xd8] sm:$0xff]
        %v1205 = vld [vmem:[%s1180 + $0xf0] sm:$0xff]
        %v1206 = vld [vmem:[%s1180 + $0xf8] sm:$0xff]
        %v1207 = vld [vmem:[%s1180 + $0x100] sm:$0xff]
        %v1208 = vld [vmem:[%s1180 + $0x108] sm:$0xff]
        %v1209 = vld [vmem:[%s1180 + $0x110] sm:$0xff]
        %v1210 = vld [vmem:[%s1180 + $0x118] sm:$0xff]
        %v1211 = vld [vmem:[%s1180 + $0x120] sm:$0xff]
        %v1212 = vld [vmem:[%s1180 + $0x128] sm:$0xff]
        %v1213 = vlaneseq
        %v1214 = vshrl.u32 %v1213, 7
        %v1215 = vsub.s32 0, %v1214
        %v1216 = vrot.slane %v1179, %v1215
        %v1217 = vmul.f32 %v1181, %v1216
        %v1218 = vmul.f32 %v1182, %v1216
        %v1219 = vmul.f32 %v1183, %v1216
        %v1220 = vmul.f32 %v1184, %v1216
        %v1221 = vmul.f32 %v1185, %v1216
        %v1222 = vmul.f32 %v1186, %v1216
        %v1223 = vmul.f32 %v1187, %v1216
        %v1224 = vmul.f32 %v1188, %v1216
        %v1225 = vmul.f32 %v1189, %v1216
        %v1226 = vmul.f32 %v1190, %v1216
        %v1227 = vmul.f32 %v1191, %v1216
        %v1228 = vmul.f32 %v1192, %v1216
        %v1229 = vmul.f32 %v1193, %v1216
        %v1230 = vmul.f32 %v1194, %v1216
        %v1231 = vmul.f32 %v1195, %v1216
        %v1232 = vmul.f32 %v1196, %v1216
        %v1233 = vmul.f32 %v1197, %v1216
        %v1234 = vmul.f32 %v1198, %v1216
        %v1235 = vmul.f32 %v1199, %v1216
        %v1236 = vmul.f32 %v1200, %v1216
        %v1237 = vmul.f32 %v1201, %v1216
        %v1238 = vmul.f32 %v1202, %v1216
        %v1239 = vmul.f32 %v1203, %v1216
        %v1240 = vmul.f32 %v1204, %v1216
        %v1241 = vmul.f32 %v1205, %v1216
        %v1242 = vmul.f32 %v1206, %v1216
        %v1243 = vmul.f32 %v1207, %v1216
        %v1244 = vmul.f32 %v1208, %v1216
        %v1245 = vmul.f32 %v1209, %v1216
        %v1246 = vmul.f32 %v1210, %v1216
        %v1247 = vmul.f32 %v1211, %v1216
        %v1248 = vmul.f32 %v1212, %v1216
        %v1249 = vadd.f32 %v1147, %v1217
        %v1250 = vadd.f32 %v1148, %v1218
        %v1251 = vadd.f32 %v1149, %v1219
        %v1252 = vadd.f32 %v1150, %v1220
        %v1253 = vadd.f32 %v1151, %v1221
        %v1254 = vadd.f32 %v1152, %v1222
        %v1255 = vadd.f32 %v1153, %v1223
        %v1256 = vadd.f32 %v1154, %v1224
        %v1257 = vadd.f32 %v1155, %v1225
        %v1258 = vadd.f32 %v1156, %v1226
        %v1259 = vadd.f32 %v1157, %v1227
        %v1260 = vadd.f32 %v1158, %v1228
        %v1261 = vadd.f32 %v1159, %v1229
        %v1262 = vadd.f32 %v1160, %v1230
        %v1263 = vadd.f32 %v1161, %v1231
        %v1264 = vadd.f32 %v1162, %v1232
        %v1265 = vadd.f32 %v1163, %v1233
        %v1266 = vadd.f32 %v1164, %v1234
        %v1267 = vadd.f32 %v1165, %v1235
        %v1268 = vadd.f32 %v1166, %v1236
        %v1269 = vadd.f32 %v1167, %v1237
        %v1270 = vadd.f32 %v1168, %v1238
        %v1271 = vadd.f32 %v1169, %v1239
        %v1272 = vadd.f32 %v1170, %v1240
        %v1273 = vadd.f32 %v1171, %v1241
        %v1274 = vadd.f32 %v1172, %v1242
        %v1275 = vadd.f32 %v1173, %v1243
        %v1276 = vadd.f32 %v1174, %v1244
        %v1277 = vadd.f32 %v1175, %v1245
        %v1278 = vadd.f32 %v1176, %v1246
        %v1279 = vadd.f32 %v1177, %v1247
        %v1280 = vadd.f32 %v1178, %v1248
        %v1281 = vld [vmem:[#allocation7 + $0x10] sm:$0x1]
        %s1282 = scalar_lea.vmem [#allocation2], 336
        %v1283 = vld [vmem:[%s1282] sm:$0xff]
        %v1284 = vld [vmem:[%s1282 + $0x8] sm:$0xff]
        %v1285 = vld [vmem:[%s1282 + $0x10] sm:$0xff]
        %v1286 = vld [vmem:[%s1282 + $0x18] sm:$0xff]
        %v1287 = vld [vmem:[%s1282 + $0x20] sm:$0xff]
        %v1288 = vld [vmem:[%s1282 + $0x28] sm:$0xff]
        %v1289 = vld [vmem:[%s1282 + $0x30] sm:$0xff]
        %v1290 = vld [vmem:[%s1282 + $0x38] sm:$0xff]
        %v1291 = vld [vmem:[%s1282 + $0x50] sm:$0xff]
        %v1292 = vld [vmem:[%s1282 + $0x58] sm:$0xff]
        %v1293 = vld [vmem:[%s1282 + $0x60] sm:$0xff]
        %v1294 = vld [vmem:[%s1282 + $0x68] sm:$0xff]
        %v1295 = vld [vmem:[%s1282 + $0x70] sm:$0xff]
        %v1296 = vld [vmem:[%s1282 + $0x78] sm:$0xff]
        %v1297 = vld [vmem:[%s1282 + $0x80] sm:$0xff]
        %v1298 = vld [vmem:[%s1282 + $0x88] sm:$0xff]
        %v1299 = vld [vmem:[%s1282 + $0xa0] sm:$0xff]
        %v1300 = vld [vmem:[%s1282 + $0xa8] sm:$0xff]
        %v1301 = vld [vmem:[%s1282 + $0xb0] sm:$0xff]
        %v1302 = vld [vmem:[%s1282 + $0xb8] sm:$0xff]
        %v1303 = vld [vmem:[%s1282 + $0xc0] sm:$0xff]
        %v1304 = vld [vmem:[%s1282 + $0xc8] sm:$0xff]
        %v1305 = vld [vmem:[%s1282 + $0xd0] sm:$0xff]
        %v1306 = vld [vmem:[%s1282 + $0xd8] sm:$0xff]
        %v1307 = vld [vmem:[%s1282 + $0xf0] sm:$0xff]
        %v1308 = vld [vmem:[%s1282 + $0xf8] sm:$0xff]
        %v1309 = vld [vmem:[%s1282 + $0x100] sm:$0xff]
        %v1310 = vld [vmem:[%s1282 + $0x108] sm:$0xff]
        %v1311 = vld [vmem:[%s1282 + $0x110] sm:$0xff]
        %v1312 = vld [vmem:[%s1282 + $0x118] sm:$0xff]
        %v1313 = vld [vmem:[%s1282 + $0x120] sm:$0xff]
        %v1314 = vld [vmem:[%s1282 + $0x128] sm:$0xff]
        %v1315 = vlaneseq
        %v1316 = vshrl.u32 %v1315, 7
        %v1317 = vsub.s32 0, %v1316
        %v1318 = vrot.slane %v1281, %v1317
        %v1319 = vmul.f32 %v1283, %v1318
        %v1320 = vmul.f32 %v1284, %v1318
        %v1321 = vmul.f32 %v1285, %v1318
        %v1322 = vmul.f32 %v1286, %v1318
        %v1323 = vmul.f32 %v1287, %v1318
        %v1324 = vmul.f32 %v1288, %v1318
        %v1325 = vmul.f32 %v1289, %v1318
        %v1326 = vmul.f32 %v1290, %v1318
        %v1327 = vmul.f32 %v1291, %v1318
        %v1328 = vmul.f32 %v1292, %v1318
        %v1329 = vmul.f32 %v1293, %v1318
        %v1330 = vmul.f32 %v1294, %v1318
        %v1331 = vmul.f32 %v1295, %v1318
        %v1332 = vmul.f32 %v1296, %v1318
        %v1333 = vmul.f32 %v1297, %v1318
        %v1334 = vmul.f32 %v1298, %v1318
        %v1335 = vmul.f32 %v1299, %v1318
        %v1336 = vmul.f32 %v1300, %v1318
        %v1337 = vmul.f32 %v1301, %v1318
        %v1338 = vmul.f32 %v1302, %v1318
        %v1339 = vmul.f32 %v1303, %v1318
        %v1340 = vmul.f32 %v1304, %v1318
        %v1341 = vmul.f32 %v1305, %v1318
        %v1342 = vmul.f32 %v1306, %v1318
        %v1343 = vmul.f32 %v1307, %v1318
        %v1344 = vmul.f32 %v1308, %v1318
        %v1345 = vmul.f32 %v1309, %v1318
        %v1346 = vmul.f32 %v1310, %v1318
        %v1347 = vmul.f32 %v1311, %v1318
        %v1348 = vmul.f32 %v1312, %v1318
        %v1349 = vmul.f32 %v1313, %v1318
        %v1350 = vmul.f32 %v1314, %v1318
        %v1351 = vadd.f32 %v1249, %v1319
        %v1352 = vadd.f32 %v1250, %v1320
        %v1353 = vadd.f32 %v1251, %v1321
        %v1354 = vadd.f32 %v1252, %v1322
        %v1355 = vadd.f32 %v1253, %v1323
        %v1356 = vadd.f32 %v1254, %v1324
        %v1357 = vadd.f32 %v1255, %v1325
        %v1358 = vadd.f32 %v1256, %v1326
        %v1359 = vadd.f32 %v1257, %v1327
        %v1360 = vadd.f32 %v1258, %v1328
        %v1361 = vadd.f32 %v1259, %v1329
        %v1362 = vadd.f32 %v1260, %v1330
        %v1363 = vadd.f32 %v1261, %v1331
        %v1364 = vadd.f32 %v1262, %v1332
        %v1365 = vadd.f32 %v1263, %v1333
        %v1366 = vadd.f32 %v1264, %v1334
        %v1367 = vadd.f32 %v1265, %v1335
        %v1368 = vadd.f32 %v1266, %v1336
        %v1369 = vadd.f32 %v1267, %v1337
        %v1370 = vadd.f32 %v1268, %v1338
        %v1371 = vadd.f32 %v1269, %v1339
        %v1372 = vadd.f32 %v1270, %v1340
        %v1373 = vadd.f32 %v1271, %v1341
        %v1374 = vadd.f32 %v1272, %v1342
        %v1375 = vadd.f32 %v1273, %v1343
        %v1376 = vadd.f32 %v1274, %v1344
        %v1377 = vadd.f32 %v1275, %v1345
        %v1378 = vadd.f32 %v1276, %v1346
        %v1379 = vadd.f32 %v1277, %v1347
        %v1380 = vadd.f32 %v1278, %v1348
        %v1381 = vadd.f32 %v1279, %v1349
        %v1382 = vadd.f32 %v1280, %v1350
        %v1383 = vld [vmem:[#allocation7 + $0x11] sm:$0x1]
        %s1384 = scalar_lea.vmem [#allocation2], 656
        %v1385 = vld [vmem:[%s1384] sm:$0xff]
        %v1386 = vld [vmem:[%s1384 + $0x8] sm:$0xff]
        %v1387 = vld [vmem:[%s1384 + $0x10] sm:$0xff]
        %v1388 = vld [vmem:[%s1384 + $0x18] sm:$0xff]
        %v1389 = vld [vmem:[%s1384 + $0x20] sm:$0xff]
        %v1390 = vld [vmem:[%s1384 + $0x28] sm:$0xff]
        %v1391 = vld [vmem:[%s1384 + $0x30] sm:$0xff]
        %v1392 = vld [vmem:[%s1384 + $0x38] sm:$0xff]
        %v1393 = vld [vmem:[%s1384 + $0x50] sm:$0xff]
        %v1394 = vld [vmem:[%s1384 + $0x58] sm:$0xff]
        %v1395 = vld [vmem:[%s1384 + $0x60] sm:$0xff]
        %v1396 = vld [vmem:[%s1384 + $0x68] sm:$0xff]
        %v1397 = vld [vmem:[%s1384 + $0x70] sm:$0xff]
        %v1398 = vld [vmem:[%s1384 + $0x78] sm:$0xff]
        %v1399 = vld [vmem:[%s1384 + $0x80] sm:$0xff]
        %v1400 = vld [vmem:[%s1384 + $0x88] sm:$0xff]
        %v1401 = vld [vmem:[%s1384 + $0xa0] sm:$0xff]
        %v1402 = vld [vmem:[%s1384 + $0xa8] sm:$0xff]
        %v1403 = vld [vmem:[%s1384 + $0xb0] sm:$0xff]
        %v1404 = vld [vmem:[%s1384 + $0xb8] sm:$0xff]
        %v1405 = vld [vmem:[%s1384 + $0xc0] sm:$0xff]
        %v1406 = vld [vmem:[%s1384 + $0xc8] sm:$0xff]
        %v1407 = vld [vmem:[%s1384 + $0xd0] sm:$0xff]
        %v1408 = vld [vmem:[%s1384 + $0xd8] sm:$0xff]
        %v1409 = vld [vmem:[%s1384 + $0xf0] sm:$0xff]
        %v1410 = vld [vmem:[%s1384 + $0xf8] sm:$0xff]
        %v1411 = vld [vmem:[%s1384 + $0x100] sm:$0xff]
        %v1412 = vld [vmem:[%s1384 + $0x108] sm:$0xff]
        %v1413 = vld [vmem:[%s1384 + $0x110] sm:$0xff]
        %v1414 = vld [vmem:[%s1384 + $0x118] sm:$0xff]
        %v1415 = vld [vmem:[%s1384 + $0x120] sm:$0xff]
        %v1416 = vld [vmem:[%s1384 + $0x128] sm:$0xff]
        %v1417 = vlaneseq
        %v1418 = vshrl.u32 %v1417, 7
        %v1419 = vsub.s32 0, %v1418
        %v1420 = vrot.slane %v1383, %v1419
        %v1421 = vmul.f32 %v1385, %v1420
        %v1422 = vmul.f32 %v1386, %v1420
        %v1423 = vmul.f32 %v1387, %v1420
        %v1424 = vmul.f32 %v1388, %v1420
        %v1425 = vmul.f32 %v1389, %v1420
        %v1426 = vmul.f32 %v1390, %v1420
        %v1427 = vmul.f32 %v1391, %v1420
        %v1428 = vmul.f32 %v1392, %v1420
        %v1429 = vmul.f32 %v1393, %v1420
        %v1430 = vmul.f32 %v1394, %v1420
        %v1431 = vmul.f32 %v1395, %v1420
        %v1432 = vmul.f32 %v1396, %v1420
        %v1433 = vmul.f32 %v1397, %v1420
        %v1434 = vmul.f32 %v1398, %v1420
        %v1435 = vmul.f32 %v1399, %v1420
        %v1436 = vmul.f32 %v1400, %v1420
        %v1437 = vmul.f32 %v1401, %v1420
        %v1438 = vmul.f32 %v1402, %v1420
        %v1439 = vmul.f32 %v1403, %v1420
        %v1440 = vmul.f32 %v1404, %v1420
        %v1441 = vmul.f32 %v1405, %v1420
        %v1442 = vmul.f32 %v1406, %v1420
        %v1443 = vmul.f32 %v1407, %v1420
        %v1444 = vmul.f32 %v1408, %v1420
        %v1445 = vmul.f32 %v1409, %v1420
        %v1446 = vmul.f32 %v1410, %v1420
        %v1447 = vmul.f32 %v1411, %v1420
        %v1448 = vmul.f32 %v1412, %v1420
        %v1449 = vmul.f32 %v1413, %v1420
        %v1450 = vmul.f32 %v1414, %v1420
        %v1451 = vmul.f32 %v1415, %v1420
        %v1452 = vmul.f32 %v1416, %v1420
        %v1453 = vadd.f32 %v1351, %v1421
        %v1454 = vadd.f32 %v1352, %v1422
        %v1455 = vadd.f32 %v1353, %v1423
        %v1456 = vadd.f32 %v1354, %v1424
        %v1457 = vadd.f32 %v1355, %v1425
        %v1458 = vadd.f32 %v1356, %v1426
        %v1459 = vadd.f32 %v1357, %v1427
        %v1460 = vadd.f32 %v1358, %v1428
        %v1461 = vadd.f32 %v1359, %v1429
        %v1462 = vadd.f32 %v1360, %v1430
        %v1463 = vadd.f32 %v1361, %v1431
        %v1464 = vadd.f32 %v1362, %v1432
        %v1465 = vadd.f32 %v1363, %v1433
        %v1466 = vadd.f32 %v1364, %v1434
        %v1467 = vadd.f32 %v1365, %v1435
        %v1468 = vadd.f32 %v1366, %v1436
        %v1469 = vadd.f32 %v1367, %v1437
        %v1470 = vadd.f32 %v1368, %v1438
        %v1471 = vadd.f32 %v1369, %v1439
        %v1472 = vadd.f32 %v1370, %v1440
        %v1473 = vadd.f32 %v1371, %v1441
        %v1474 = vadd.f32 %v1372, %v1442
        %v1475 = vadd.f32 %v1373, %v1443
        %v1476 = vadd.f32 %v1374, %v1444
        %v1477 = vadd.f32 %v1375, %v1445
        %v1478 = vadd.f32 %v1376, %v1446
        %v1479 = vadd.f32 %v1377, %v1447
        %v1480 = vadd.f32 %v1378, %v1448
        %v1481 = vadd.f32 %v1379, %v1449
        %v1482 = vadd.f32 %v1380, %v1450
        %v1483 = vadd.f32 %v1381, %v1451
        %v1484 = vadd.f32 %v1382, %v1452
        %v1485 = vld [vmem:[#allocation9] sm:$0x1]
        %v1486 = vlaneseq
        %v1487 = vshrl.u32 %v1486, 7
        %v1488 = vsub.s32 0, %v1487
        %v1489 = vrot.slane %v1485, %v1488
        %v1490 = vadd.f32 %v1453, %v1489
        %v1491 = vadd.f32 %v1454, %v1489
        %v1492 = vadd.f32 %v1455, %v1489
        %v1493 = vadd.f32 %v1456, %v1489
        %v1494 = vadd.f32 %v1457, %v1489
        %v1495 = vadd.f32 %v1458, %v1489
        %v1496 = vadd.f32 %v1459, %v1489
        %v1497 = vadd.f32 %v1460, %v1489
        %v1498 = vadd.f32 %v1461, %v1489
        %v1499 = vadd.f32 %v1462, %v1489
        %v1500 = vadd.f32 %v1463, %v1489
        %v1501 = vadd.f32 %v1464, %v1489
        %v1502 = vadd.f32 %v1465, %v1489
        %v1503 = vadd.f32 %v1466, %v1489
        %v1504 = vadd.f32 %v1467, %v1489
        %v1505 = vadd.f32 %v1468, %v1489
        %v1506 = vadd.f32 %v1469, %v1489
        %v1507 = vadd.f32 %v1470, %v1489
        %v1508 = vadd.f32 %v1471, %v1489
        %v1509 = vadd.f32 %v1472, %v1489
        %v1510 = vadd.f32 %v1473, %v1489
        %v1511 = vadd.f32 %v1474, %v1489
        %v1512 = vadd.f32 %v1475, %v1489
        %v1513 = vadd.f32 %v1476, %v1489
        %v1514 = vadd.f32 %v1477, %v1489
        %v1515 = vadd.f32 %v1478, %v1489
        %v1516 = vadd.f32 %v1479, %v1489
        %v1517 = vadd.f32 %v1480, %v1489
        %v1518 = vadd.f32 %v1481, %v1489
        %v1519 = vadd.f32 %v1482, %v1489
        %v1520 = vadd.f32 %v1483, %v1489
        %v1521 = vadd.f32 %v1484, %v1489
        %v1522 = vld [vmem:[#allocation7] sm:$0x1]
        %v1523 = vlaneseq
        %v1524 = vshrl.u32 %v1523, 7
        %v1525 = vsub.s32 0, %v1524
        %v1526 = vrot.slane %v1522, %v1525
        %v1527 = vmul.f32 %v604, %v1526
        %v1528 = vmul.f32 %v605, %v1526
        %v1529 = vmul.f32 %v606, %v1526
        %v1530 = vmul.f32 %v607, %v1526
        %v1531 = vmul.f32 %v608, %v1526
        %v1532 = vmul.f32 %v609, %v1526
        %v1533 = vmul.f32 %v610, %v1526
        %v1534 = vmul.f32 %v611, %v1526
        %v1535 = vmul.f32 %v612, %v1526
        %v1536 = vmul.f32 %v613, %v1526
        %v1537 = vmul.f32 %v614, %v1526
        %v1538 = vmul.f32 %v615, %v1526
        %v1539 = vmul.f32 %v616, %v1526
        %v1540 = vmul.f32 %v617, %v1526
        %v1541 = vmul.f32 %v618, %v1526
        %v1542 = vmul.f32 %v619, %v1526
        %v1543 = vmul.f32 %v620, %v1526
        %v1544 = vmul.f32 %v621, %v1526
        %v1545 = vmul.f32 %v622, %v1526
        %v1546 = vmul.f32 %v623, %v1526
        %v1547 = vmul.f32 %v624, %v1526
        %v1548 = vmul.f32 %v625, %v1526
        %v1549 = vmul.f32 %v626, %v1526
        %v1550 = vmul.f32 %v627, %v1526
        %v1551 = vld [vmem:[#allocation7 + $0x1] sm:$0x1]
        %v1552 = vlaneseq
        %v1553 = vshrl.u32 %v1552, 7
        %v1554 = vsub.s32 0, %v1553
        %v1555 = vrot.slane %v1551, %v1554
        %v1556 = vmul.f32 %v674, %v1555
        %v1557 = vmul.f32 %v675, %v1555
        %v1558 = vmul.f32 %v676, %v1555
        %v1559 = vmul.f32 %v677, %v1555
        %v1560 = vmul.f32 %v678, %v1555
        %v1561 = vmul.f32 %v679, %v1555
        %v1562 = vmul.f32 %v680, %v1555
        %v1563 = vmul.f32 %v681, %v1555
        %v1564 = vmul.f32 %v682, %v1555
        %v1565 = vmul.f32 %v683, %v1555
        %v1566 = vmul.f32 %v684, %v1555
        %v1567 = vmul.f32 %v685, %v1555
        %v1568 = vmul.f32 %v686, %v1555
        %v1569 = vmul.f32 %v687, %v1555
        %v1570 = vmul.f32 %v688, %v1555
        %v1571 = vmul.f32 %v689, %v1555
        %v1572 = vmul.f32 %v690, %v1555
        %v1573 = vmul.f32 %v691, %v1555
        %v1574 = vmul.f32 %v692, %v1555
        %v1575 = vmul.f32 %v693, %v1555
        %v1576 = vmul.f32 %v694, %v1555
        %v1577 = vmul.f32 %v695, %v1555
        %v1578 = vmul.f32 %v696, %v1555
        %v1579 = vmul.f32 %v697, %v1555
        %v1580 = vadd.f32 %v1527, %v1556
        %v1581 = vadd.f32 %v1528, %v1557
        %v1582 = vadd.f32 %v1529, %v1558
        %v1583 = vadd.f32 %v1530, %v1559
        %v1584 = vadd.f32 %v1531, %v1560
        %v1585 = vadd.f32 %v1532, %v1561
        %v1586 = vadd.f32 %v1533, %v1562
        %v1587 = vadd.f32 %v1534, %v1563
        %v1588 = vadd.f32 %v1535, %v1564
        %v1589 = vadd.f32 %v1536, %v1565
        %v1590 = vadd.f32 %v1537, %v1566
        %v1591 = vadd.f32 %v1538, %v1567
        %v1592 = vadd.f32 %v1539, %v1568
        %v1593 = vadd.f32 %v1540, %v1569
        %v1594 = vadd.f32 %v1541, %v1570
        %v1595 = vadd.f32 %v1542, %v1571
        %v1596 = vadd.f32 %v1543, %v1572
        %v1597 = vadd.f32 %v1544, %v1573
        %v1598 = vadd.f32 %v1545, %v1574
        %v1599 = vadd.f32 %v1546, %v1575
        %v1600 = vadd.f32 %v1547, %v1576
        %v1601 = vadd.f32 %v1548, %v1577
        %v1602 = vadd.f32 %v1549, %v1578
        %v1603 = vadd.f32 %v1550, %v1579
        %v1604 = vld [vmem:[#allocation7 + $0x2] sm:$0x1]
        %v1605 = vlaneseq
        %v1606 = vshrl.u32 %v1605, 7
        %v1607 = vsub.s32 0, %v1606
        %v1608 = vrot.slane %v1604, %v1607
        %v1609 = vmul.f32 %v776, %v1608
        %v1610 = vmul.f32 %v777, %v1608
        %v1611 = vmul.f32 %v778, %v1608
        %v1612 = vmul.f32 %v779, %v1608
        %v1613 = vmul.f32 %v780, %v1608
        %v1614 = vmul.f32 %v781, %v1608
        %v1615 = vmul.f32 %v782, %v1608
        %v1616 = vmul.f32 %v783, %v1608
        %v1617 = vmul.f32 %v784, %v1608
        %v1618 = vmul.f32 %v785, %v1608
        %v1619 = vmul.f32 %v786, %v1608
        %v1620 = vmul.f32 %v787, %v1608
        %v1621 = vmul.f32 %v788, %v1608
        %v1622 = vmul.f32 %v789, %v1608
        %v1623 = vmul.f32 %v790, %v1608
        %v1624 = vmul.f32 %v791, %v1608
        %v1625 = vmul.f32 %v792, %v1608
        %v1626 = vmul.f32 %v793, %v1608
        %v1627 = vmul.f32 %v794, %v1608
        %v1628 = vmul.f32 %v795, %v1608
        %v1629 = vmul.f32 %v796, %v1608
        %v1630 = vmul.f32 %v797, %v1608
        %v1631 = vmul.f32 %v798, %v1608
        %v1632 = vmul.f32 %v799, %v1608
        %v1633 = vadd.f32 %v1580, %v1609
        %v1634 = vadd.f32 %v1581, %v1610
        %v1635 = vadd.f32 %v1582, %v1611
        %v1636 = vadd.f32 %v1583, %v1612
        %v1637 = vadd.f32 %v1584, %v1613
        %v1638 = vadd.f32 %v1585, %v1614
        %v1639 = vadd.f32 %v1586, %v1615
        %v1640 = vadd.f32 %v1587, %v1616
        %v1641 = vadd.f32 %v1588, %v1617
        %v1642 = vadd.f32 %v1589, %v1618
        %v1643 = vadd.f32 %v1590, %v1619
        %v1644 = vadd.f32 %v1591, %v1620
        %v1645 = vadd.f32 %v1592, %v1621
        %v1646 = vadd.f32 %v1593, %v1622
        %v1647 = vadd.f32 %v1594, %v1623
        %v1648 = vadd.f32 %v1595, %v1624
        %v1649 = vadd.f32 %v1596, %v1625
        %v1650 = vadd.f32 %v1597, %v1626
        %v1651 = vadd.f32 %v1598, %v1627
        %v1652 = vadd.f32 %v1599, %v1628
        %v1653 = vadd.f32 %v1600, %v1629
        %v1654 = vadd.f32 %v1601, %v1630
        %v1655 = vadd.f32 %v1602, %v1631
        %v1656 = vadd.f32 %v1603, %v1632
        %v1657 = vld [vmem:[#allocation7 + $0x3] sm:$0x1]
        %v1658 = vlaneseq
        %v1659 = vshrl.u32 %v1658, 7
        %v1660 = vsub.s32 0, %v1659
        %v1661 = vrot.slane %v1657, %v1660
        %v1662 = vmul.f32 %v877, %v1661
        %v1663 = vmul.f32 %v878, %v1661
        %v1664 = vmul.f32 %v879, %v1661
        %v1665 = vmul.f32 %v880, %v1661
        %v1666 = vmul.f32 %v881, %v1661
        %v1667 = vmul.f32 %v882, %v1661
        %v1668 = vmul.f32 %v883, %v1661
        %v1669 = vmul.f32 %v884, %v1661
        %v1670 = vmul.f32 %v885, %v1661
        %v1671 = vmul.f32 %v886, %v1661
        %v1672 = vmul.f32 %v887, %v1661
        %v1673 = vmul.f32 %v888, %v1661
        %v1674 = vmul.f32 %v889, %v1661
        %v1675 = vmul.f32 %v890, %v1661
        %v1676 = vmul.f32 %v891, %v1661
        %v1677 = vmul.f32 %v892, %v1661
        %v1678 = vmul.f32 %v893, %v1661
        %v1679 = vmul.f32 %v894, %v1661
        %v1680 = vmul.f32 %v895, %v1661
        %v1681 = vmul.f32 %v896, %v1661
        %v1682 = vmul.f32 %v897, %v1661
        %v1683 = vmul.f32 %v898, %v1661
        %v1684 = vmul.f32 %v899, %v1661
        %v1685 = vmul.f32 %v900, %v1661
        %v1686 = vadd.f32 %v1633, %v1662
        %v1687 = vadd.f32 %v1634, %v1663
        %v1688 = vadd.f32 %v1635, %v1664
        %v1689 = vadd.f32 %v1636, %v1665
        %v1690 = vadd.f32 %v1637, %v1666
        %v1691 = vadd.f32 %v1638, %v1667
        %v1692 = vadd.f32 %v1639, %v1668
        %v1693 = vadd.f32 %v1640, %v1669
        %v1694 = vadd.f32 %v1641, %v1670
        %v1695 = vadd.f32 %v1642, %v1671
        %v1696 = vadd.f32 %v1643, %v1672
        %v1697 = vadd.f32 %v1644, %v1673
        %v1698 = vadd.f32 %v1645, %v1674
        %v1699 = vadd.f32 %v1646, %v1675
        %v1700 = vadd.f32 %v1647, %v1676
        %v1701 = vadd.f32 %v1648, %v1677
        %v1702 = vadd.f32 %v1649, %v1678
        %v1703 = vadd.f32 %v1650, %v1679
        %v1704 = vadd.f32 %v1651, %v1680
        %v1705 = vadd.f32 %v1652, %v1681
        %v1706 = vadd.f32 %v1653, %v1682
        %v1707 = vadd.f32 %v1654, %v1683
        %v1708 = vadd.f32 %v1655, %v1684
        %v1709 = vadd.f32 %v1656, %v1685
        %v1710 = vld [vmem:[#allocation7 + $0x4] sm:$0x1]
        %v1711 = vlaneseq
        %v1712 = vshrl.u32 %v1711, 7
        %v1713 = vsub.s32 0, %v1712
        %v1714 = vrot.slane %v1710, %v1713
        %v1715 = vmul.f32 %v978, %v1714
        %v1716 = vmul.f32 %v979, %v1714
        %v1717 = vmul.f32 %v980, %v1714
        %v1718 = vmul.f32 %v981, %v1714
        %v1719 = vmul.f32 %v982, %v1714
        %v1720 = vmul.f32 %v983, %v1714
        %v1721 = vmul.f32 %v984, %v1714
        %v1722 = vmul.f32 %v985, %v1714
        %v1723 = vmul.f32 %v986, %v1714
        %v1724 = vmul.f32 %v987, %v1714
        %v1725 = vmul.f32 %v988, %v1714
        %v1726 = vmul.f32 %v989, %v1714
        %v1727 = vmul.f32 %v990, %v1714
        %v1728 = vmul.f32 %v991, %v1714
        %v1729 = vmul.f32 %v992, %v1714
        %v1730 = vmul.f32 %v993, %v1714
        %v1731 = vmul.f32 %v994, %v1714
        %v1732 = vmul.f32 %v995, %v1714
        %v1733 = vmul.f32 %v996, %v1714
        %v1734 = vmul.f32 %v997, %v1714
        %v1735 = vmul.f32 %v998, %v1714
        %v1736 = vmul.f32 %v999, %v1714
        %v1737 = vmul.f32 %v1000, %v1714
        %v1738 = vmul.f32 %v1001, %v1714
        %v1739 = vadd.f32 %v1686, %v1715
        %v1740 = vadd.f32 %v1687, %v1716
        %v1741 = vadd.f32 %v1688, %v1717
        %v1742 = vadd.f32 %v1689, %v1718
        %v1743 = vadd.f32 %v1690, %v1719
        %v1744 = vadd.f32 %v1691, %v1720
        %v1745 = vadd.f32 %v1692, %v1721
        %v1746 = vadd.f32 %v1693, %v1722
        %v1747 = vadd.f32 %v1694, %v1723
        %v1748 = vadd.f32 %v1695, %v1724
        %v1749 = vadd.f32 %v1696, %v1725
        %v1750 = vadd.f32 %v1697, %v1726
        %v1751 = vadd.f32 %v1698, %v1727
        %v1752 = vadd.f32 %v1699, %v1728
        %v1753 = vadd.f32 %v1700, %v1729
        %v1754 = vadd.f32 %v1701, %v1730
        %v1755 = vadd.f32 %v1702, %v1731
        %v1756 = vadd.f32 %v1703, %v1732
        %v1757 = vadd.f32 %v1704, %v1733
        %v1758 = vadd.f32 %v1705, %v1734
        %v1759 = vadd.f32 %v1706, %v1735
        %v1760 = vadd.f32 %v1707, %v1736
        %v1761 = vadd.f32 %v1708, %v1737
        %v1762 = vadd.f32 %v1709, %v1738
        %v1763 = vld [vmem:[#allocation7 + $0x5] sm:$0x1]
        %v1764 = vlaneseq
        %v1765 = vshrl.u32 %v1764, 7
        %v1766 = vsub.s32 0, %v1765
        %v1767 = vrot.slane %v1763, %v1766
        %v1768 = vmul.f32 %v1079, %v1767
        %v1769 = vmul.f32 %v1080, %v1767
        %v1770 = vmul.f32 %v1081, %v1767
        %v1771 = vmul.f32 %v1082, %v1767
        %v1772 = vmul.f32 %v1083, %v1767
        %v1773 = vmul.f32 %v1084, %v1767
        %v1774 = vmul.f32 %v1085, %v1767
        %v1775 = vmul.f32 %v1086, %v1767
        %v1776 = vmul.f32 %v1087, %v1767
        %v1777 = vmul.f32 %v1088, %v1767
        %v1778 = vmul.f32 %v1089, %v1767
        %v1779 = vmul.f32 %v1090, %v1767
        %v1780 = vmul.f32 %v1091, %v1767
        %v1781 = vmul.f32 %v1092, %v1767
        %v1782 = vmul.f32 %v1093, %v1767
        %v1783 = vmul.f32 %v1094, %v1767
        %v1784 = vmul.f32 %v1095, %v1767
        %v1785 = vmul.f32 %v1096, %v1767
        %v1786 = vmul.f32 %v1097, %v1767
        %v1787 = vmul.f32 %v1098, %v1767
        %v1788 = vmul.f32 %v1099, %v1767
        %v1789 = vmul.f32 %v1100, %v1767
        %v1790 = vmul.f32 %v1101, %v1767
        %v1791 = vmul.f32 %v1102, %v1767
        %v1792 = vadd.f32 %v1739, %v1768
        %v1793 = vadd.f32 %v1740, %v1769
        %v1794 = vadd.f32 %v1741, %v1770
        %v1795 = vadd.f32 %v1742, %v1771
        %v1796 = vadd.f32 %v1743, %v1772
        %v1797 = vadd.f32 %v1744, %v1773
        %v1798 = vadd.f32 %v1745, %v1774
        %v1799 = vadd.f32 %v1746, %v1775
        %v1800 = vadd.f32 %v1747, %v1776
        %v1801 = vadd.f32 %v1748, %v1777
        %v1802 = vadd.f32 %v1749, %v1778
        %v1803 = vadd.f32 %v1750, %v1779
        %v1804 = vadd.f32 %v1751, %v1780
        %v1805 = vadd.f32 %v1752, %v1781
        %v1806 = vadd.f32 %v1753, %v1782
        %v1807 = vadd.f32 %v1754, %v1783
        %v1808 = vadd.f32 %v1755, %v1784
        %v1809 = vadd.f32 %v1756, %v1785
        %v1810 = vadd.f32 %v1757, %v1786
        %v1811 = vadd.f32 %v1758, %v1787
        %v1812 = vadd.f32 %v1759, %v1788
        %v1813 = vadd.f32 %v1760, %v1789
        %v1814 = vadd.f32 %v1761, %v1790
        %v1815 = vadd.f32 %v1762, %v1791
        %v1816 = vld [vmem:[#allocation7 + $0x6] sm:$0x1]
        %v1817 = vlaneseq
        %v1818 = vshrl.u32 %v1817, 7
        %v1819 = vsub.s32 0, %v1818
        %v1820 = vrot.slane %v1816, %v1819
        %v1821 = vmul.f32 %v1181, %v1820
        %v1822 = vmul.f32 %v1182, %v1820
        %v1823 = vmul.f32 %v1183, %v1820
        %v1824 = vmul.f32 %v1184, %v1820
        %v1825 = vmul.f32 %v1185, %v1820
        %v1826 = vmul.f32 %v1186, %v1820
        %v1827 = vmul.f32 %v1187, %v1820
        %v1828 = vmul.f32 %v1188, %v1820
        %v1829 = vmul.f32 %v1189, %v1820
        %v1830 = vmul.f32 %v1190, %v1820
        %v1831 = vmul.f32 %v1191, %v1820
        %v1832 = vmul.f32 %v1192, %v1820
        %v1833 = vmul.f32 %v1193, %v1820
        %v1834 = vmul.f32 %v1194, %v1820
        %v1835 = vmul.f32 %v1195, %v1820
        %v1836 = vmul.f32 %v1196, %v1820
        %v1837 = vmul.f32 %v1197, %v1820
        %v1838 = vmul.f32 %v1198, %v1820
        %v1839 = vmul.f32 %v1199, %v1820
        %v1840 = vmul.f32 %v1200, %v1820
        %v1841 = vmul.f32 %v1201, %v1820
        %v1842 = vmul.f32 %v1202, %v1820
        %v1843 = vmul.f32 %v1203, %v1820
        %v1844 = vmul.f32 %v1204, %v1820
        %v1845 = vadd.f32 %v1792, %v1821
        %v1846 = vadd.f32 %v1793, %v1822
        %v1847 = vadd.f32 %v1794, %v1823
        %v1848 = vadd.f32 %v1795, %v1824
        %v1849 = vadd.f32 %v1796, %v1825
        %v1850 = vadd.f32 %v1797, %v1826
        %v1851 = vadd.f32 %v1798, %v1827
        %v1852 = vadd.f32 %v1799, %v1828
        %v1853 = vadd.f32 %v1800, %v1829
        %v1854 = vadd.f32 %v1801, %v1830
        %v1855 = vadd.f32 %v1802, %v1831
        %v1856 = vadd.f32 %v1803, %v1832
        %v1857 = vadd.f32 %v1804, %v1833
        %v1858 = vadd.f32 %v1805, %v1834
        %v1859 = vadd.f32 %v1806, %v1835
        %v1860 = vadd.f32 %v1807, %v1836
        %v1861 = vadd.f32 %v1808, %v1837
        %v1862 = vadd.f32 %v1809, %v1838
        %v1863 = vadd.f32 %v1810, %v1839
        %v1864 = vadd.f32 %v1811, %v1840
        %v1865 = vadd.f32 %v1812, %v1841
        %v1866 = vadd.f32 %v1813, %v1842
        %v1867 = vadd.f32 %v1814, %v1843
        %v1868 = vadd.f32 %v1815, %v1844
        %v1869 = vld [vmem:[#allocation7 + $0x7] sm:$0x1]
        %v1870 = vlaneseq
        %v1871 = vshrl.u32 %v1870, 7
        %v1872 = vsub.s32 0, %v1871
        %v1873 = vrot.slane %v1869, %v1872
        %v1874 = vmul.f32 %v1283, %v1873
        %v1875 = vmul.f32 %v1284, %v1873
        %v1876 = vmul.f32 %v1285, %v1873
        %v1877 = vmul.f32 %v1286, %v1873
        %v1878 = vmul.f32 %v1287, %v1873
        %v1879 = vmul.f32 %v1288, %v1873
        %v1880 = vmul.f32 %v1289, %v1873
        %v1881 = vmul.f32 %v1290, %v1873
        %v1882 = vmul.f32 %v1291, %v1873
        %v1883 = vmul.f32 %v1292, %v1873
        %v1884 = vmul.f32 %v1293, %v1873
        %v1885 = vmul.f32 %v1294, %v1873
        %v1886 = vmul.f32 %v1295, %v1873
        %v1887 = vmul.f32 %v1296, %v1873
        %v1888 = vmul.f32 %v1297, %v1873
        %v1889 = vmul.f32 %v1298, %v1873
        %v1890 = vmul.f32 %v1299, %v1873
        %v1891 = vmul.f32 %v1300, %v1873
        %v1892 = vmul.f32 %v1301, %v1873
        %v1893 = vmul.f32 %v1302, %v1873
        %v1894 = vmul.f32 %v1303, %v1873
        %v1895 = vmul.f32 %v1304, %v1873
        %v1896 = vmul.f32 %v1305, %v1873
        %v1897 = vmul.f32 %v1306, %v1873
        %v1898 = vadd.f32 %v1845, %v1874
        %v1899 = vadd.f32 %v1846, %v1875
        %v1900 = vadd.f32 %v1847, %v1876
        %v1901 = vadd.f32 %v1848, %v1877
        %v1902 = vadd.f32 %v1849, %v1878
        %v1903 = vadd.f32 %v1850, %v1879
        %v1904 = vadd.f32 %v1851, %v1880
        %v1905 = vadd.f32 %v1852, %v1881
        %v1906 = vadd.f32 %v1853, %v1882
        %v1907 = vadd.f32 %v1854, %v1883
        %v1908 = vadd.f32 %v1855, %v1884
        %v1909 = vadd.f32 %v1856, %v1885
        %v1910 = vadd.f32 %v1857, %v1886
        %v1911 = vadd.f32 %v1858, %v1887
        %v1912 = vadd.f32 %v1859, %v1888
        %v1913 = vadd.f32 %v1860, %v1889
        %v1914 = vadd.f32 %v1861, %v1890
        %v1915 = vadd.f32 %v1862, %v1891
        %v1916 = vadd.f32 %v1863, %v1892
        %v1917 = vadd.f32 %v1864, %v1893
        %v1918 = vadd.f32 %v1865, %v1894
        %v1919 = vadd.f32 %v1866, %v1895
        %v1920 = vadd.f32 %v1867, %v1896
        %v1921 = vadd.f32 %v1868, %v1897
        %v1922 = vld [vmem:[#allocation7 + $0x8] sm:$0x1]
        %v1923 = vlaneseq
        %v1924 = vshrl.u32 %v1923, 7
        %v1925 = vsub.s32 0, %v1924
        %v1926 = vrot.slane %v1922, %v1925
        %v1927 = vmul.f32 %v1385, %v1926
        %v1928 = vmul.f32 %v1386, %v1926
        %v1929 = vmul.f32 %v1387, %v1926
        %v1930 = vmul.f32 %v1388, %v1926
        %v1931 = vmul.f32 %v1389, %v1926
        %v1932 = vmul.f32 %v1390, %v1926
        %v1933 = vmul.f32 %v1391, %v1926
        %v1934 = vmul.f32 %v1392, %v1926
        %v1935 = vmul.f32 %v1393, %v1926
        %v1936 = vmul.f32 %v1394, %v1926
        %v1937 = vmul.f32 %v1395, %v1926
        %v1938 = vmul.f32 %v1396, %v1926
        %v1939 = vmul.f32 %v1397, %v1926
        %v1940 = vmul.f32 %v1398, %v1926
        %v1941 = vmul.f32 %v1399, %v1926
        %v1942 = vmul.f32 %v1400, %v1926
        %v1943 = vmul.f32 %v1401, %v1926
        %v1944 = vmul.f32 %v1402, %v1926
        %v1945 = vmul.f32 %v1403, %v1926
        %v1946 = vmul.f32 %v1404, %v1926
        %v1947 = vmul.f32 %v1405, %v1926
        %v1948 = vmul.f32 %v1406, %v1926
        %v1949 = vmul.f32 %v1407, %v1926
        %v1950 = vmul.f32 %v1408, %v1926
        %v1951 = vadd.f32 %v1898, %v1927
        %v1952 = vadd.f32 %v1899, %v1928
        %v1953 = vadd.f32 %v1900, %v1929
        %v1954 = vadd.f32 %v1901, %v1930
        %v1955 = vadd.f32 %v1902, %v1931
        %v1956 = vadd.f32 %v1903, %v1932
        %v1957 = vadd.f32 %v1904, %v1933
        %v1958 = vadd.f32 %v1905, %v1934
        %v1959 = vadd.f32 %v1906, %v1935
        %v1960 = vadd.f32 %v1907, %v1936
        %v1961 = vadd.f32 %v1908, %v1937
        %v1962 = vadd.f32 %v1909, %v1938
        %v1963 = vadd.f32 %v1910, %v1939
        %v1964 = vadd.f32 %v1911, %v1940
        %v1965 = vadd.f32 %v1912, %v1941
        %v1966 = vadd.f32 %v1913, %v1942
        %v1967 = vadd.f32 %v1914, %v1943
        %v1968 = vadd.f32 %v1915, %v1944
        %v1969 = vadd.f32 %v1916, %v1945
        %v1970 = vadd.f32 %v1917, %v1946
        %v1971 = vadd.f32 %v1918, %v1947
        %v1972 = vadd.f32 %v1919, %v1948
        %v1973 = vadd.f32 %v1920, %v1949
        %v1974 = vadd.f32 %v1921, %v1950
        %v1975 = vadd.f32 %v1498, %v1951
        %v1976 = vadd.f32 %v1499, %v1952
        %v1977 = vadd.f32 %v1500, %v1953
        %v1978 = vadd.f32 %v1501, %v1954
        %v1979 = vadd.f32 %v1502, %v1955
        %v1980 = vadd.f32 %v1503, %v1956
        %v1981 = vadd.f32 %v1504, %v1957
        %v1982 = vadd.f32 %v1505, %v1958
        %v1983 = vadd.f32 %v1506, %v1959
        %v1984 = vadd.f32 %v1507, %v1960
        %v1985 = vadd.f32 %v1508, %v1961
        %v1986 = vadd.f32 %v1509, %v1962
        %v1987 = vadd.f32 %v1510, %v1963
        %v1988 = vadd.f32 %v1511, %v1964
        %v1989 = vadd.f32 %v1512, %v1965
        %v1990 = vadd.f32 %v1513, %v1966
        %v1991 = vadd.f32 %v1514, %v1967
        %v1992 = vadd.f32 %v1515, %v1968
        %v1993 = vadd.f32 %v1516, %v1969
        %v1994 = vadd.f32 %v1517, %v1970
        %v1995 = vadd.f32 %v1518, %v1971
        %v1996 = vadd.f32 %v1519, %v1972
        %v1997 = vadd.f32 %v1520, %v1973
        %v1998 = vadd.f32 %v1521, %v1974
        %v1999 = vld [vmem:[#allocation7 + $0x12] sm:$0x1]
        %s2000 = scalar_lea.vmem [#allocation2], 80
        %v2001 = vld [vmem:[%s2000] sm:$0xff]
        %v2002 = vld [vmem:[%s2000 + $0x8] sm:$0xff]
        %v2003 = vld [vmem:[%s2000 + $0x10] sm:$0xff]
        %v2004 = vld [vmem:[%s2000 + $0x18] sm:$0xff]
        %v2005 = vld [vmem:[%s2000 + $0x20] sm:$0xff]
        %v2006 = vld [vmem:[%s2000 + $0x28] sm:$0xff]
        %v2007 = vld [vmem:[%s2000 + $0x30] sm:$0xff]
        %v2008 = vld [vmem:[%s2000 + $0x38] sm:$0xff]
        %v2009 = vld [vmem:[%s2000 + $0x50] sm:$0xff]
        %v2010 = vld [vmem:[%s2000 + $0x58] sm:$0xff]
        %v2011 = vld [vmem:[%s2000 + $0x60] sm:$0xff]
        %v2012 = vld [vmem:[%s2000 + $0x68] sm:$0xff]
        %v2013 = vld [vmem:[%s2000 + $0x70] sm:$0xff]
        %v2014 = vld [vmem:[%s2000 + $0x78] sm:$0xff]
        %v2015 = vld [vmem:[%s2000 + $0x80] sm:$0xff]
        %v2016 = vld [vmem:[%s2000 + $0x88] sm:$0xff]
        %v2017 = vld [vmem:[%s2000 + $0xa0] sm:$0xff]
        %v2018 = vld [vmem:[%s2000 + $0xa8] sm:$0xff]
        %v2019 = vld [vmem:[%s2000 + $0xb0] sm:$0xff]
        %v2020 = vld [vmem:[%s2000 + $0xb8] sm:$0xff]
        %v2021 = vld [vmem:[%s2000 + $0xc0] sm:$0xff]
        %v2022 = vld [vmem:[%s2000 + $0xc8] sm:$0xff]
        %v2023 = vld [vmem:[%s2000 + $0xd0] sm:$0xff]
        %v2024 = vld [vmem:[%s2000 + $0xd8] sm:$0xff]
        %v2025 = vlaneseq
        %v2026 = vshrl.u32 %v2025, 7
        %v2027 = vsub.s32 0, %v2026
        %v2028 = vrot.slane %v1999, %v2027
        %v2029 = vmul.f32 %v2001, %v2028
        %v2030 = vmul.f32 %v2002, %v2028
        %v2031 = vmul.f32 %v2003, %v2028
        %v2032 = vmul.f32 %v2004, %v2028
        %v2033 = vmul.f32 %v2005, %v2028
        %v2034 = vmul.f32 %v2006, %v2028
        %v2035 = vmul.f32 %v2007, %v2028
        %v2036 = vmul.f32 %v2008, %v2028
        %v2037 = vmul.f32 %v2009, %v2028
        %v2038 = vmul.f32 %v2010, %v2028
        %v2039 = vmul.f32 %v2011, %v2028
        %v2040 = vmul.f32 %v2012, %v2028
        %v2041 = vmul.f32 %v2013, %v2028
        %v2042 = vmul.f32 %v2014, %v2028
        %v2043 = vmul.f32 %v2015, %v2028
        %v2044 = vmul.f32 %v2016, %v2028
        %v2045 = vmul.f32 %v2017, %v2028
        %v2046 = vmul.f32 %v2018, %v2028
        %v2047 = vmul.f32 %v2019, %v2028
        %v2048 = vmul.f32 %v2020, %v2028
        %v2049 = vmul.f32 %v2021, %v2028
        %v2050 = vmul.f32 %v2022, %v2028
        %v2051 = vmul.f32 %v2023, %v2028
        %v2052 = vmul.f32 %v2024, %v2028
        %v2053 = vld [vmem:[#allocation7 + $0x13] sm:$0x1]
        %s2054 = scalar_lea.vmem [#allocation2], 400
        %v2055 = vld [vmem:[%s2054] sm:$0xff]
        %v2056 = vld [vmem:[%s2054 + $0x8] sm:$0xff]
        %v2057 = vld [vmem:[%s2054 + $0x10] sm:$0xff]
        %v2058 = vld [vmem:[%s2054 + $0x18] sm:$0xff]
        %v2059 = vld [vmem:[%s2054 + $0x20] sm:$0xff]
        %v2060 = vld [vmem:[%s2054 + $0x28] sm:$0xff]
        %v2061 = vld [vmem:[%s2054 + $0x30] sm:$0xff]
        %v2062 = vld [vmem:[%s2054 + $0x38] sm:$0xff]
        %v2063 = vld [vmem:[%s2054 + $0x50] sm:$0xff]
        %v2064 = vld [vmem:[%s2054 + $0x58] sm:$0xff]
        %v2065 = vld [vmem:[%s2054 + $0x60] sm:$0xff]
        %v2066 = vld [vmem:[%s2054 + $0x68] sm:$0xff]
        %v2067 = vld [vmem:[%s2054 + $0x70] sm:$0xff]
        %v2068 = vld [vmem:[%s2054 + $0x78] sm:$0xff]
        %v2069 = vld [vmem:[%s2054 + $0x80] sm:$0xff]
        %v2070 = vld [vmem:[%s2054 + $0x88] sm:$0xff]
        %v2071 = vld [vmem:[%s2054 + $0xa0] sm:$0xff]
        %v2072 = vld [vmem:[%s2054 + $0xa8] sm:$0xff]
        %v2073 = vld [vmem:[%s2054 + $0xb0] sm:$0xff]
        %v2074 = vld [vmem:[%s2054 + $0xb8] sm:$0xff]
        %v2075 = vld [vmem:[%s2054 + $0xc0] sm:$0xff]
        %v2076 = vld [vmem:[%s2054 + $0xc8] sm:$0xff]
        %v2077 = vld [vmem:[%s2054 + $0xd0] sm:$0xff]
        %v2078 = vld [vmem:[%s2054 + $0xd8] sm:$0xff]
        %v2079 = vlaneseq
        %v2080 = vshrl.u32 %v2079, 7
        %v2081 = vsub.s32 0, %v2080
        %v2082 = vrot.slane %v2053, %v2081
        %v2083 = vmul.f32 %v2055, %v2082
        %v2084 = vmul.f32 %v2056, %v2082
        %v2085 = vmul.f32 %v2057, %v2082
        %v2086 = vmul.f32 %v2058, %v2082
        %v2087 = vmul.f32 %v2059, %v2082
        %v2088 = vmul.f32 %v2060, %v2082
        %v2089 = vmul.f32 %v2061, %v2082
        %v2090 = vmul.f32 %v2062, %v2082
        %v2091 = vmul.f32 %v2063, %v2082
        %v2092 = vmul.f32 %v2064, %v2082
        %v2093 = vmul.f32 %v2065, %v2082
        %v2094 = vmul.f32 %v2066, %v2082
        %v2095 = vmul.f32 %v2067, %v2082
        %v2096 = vmul.f32 %v2068, %v2082
        %v2097 = vmul.f32 %v2069, %v2082
        %v2098 = vmul.f32 %v2070, %v2082
        %v2099 = vmul.f32 %v2071, %v2082
        %v2100 = vmul.f32 %v2072, %v2082
        %v2101 = vmul.f32 %v2073, %v2082
        %v2102 = vmul.f32 %v2074, %v2082
        %v2103 = vmul.f32 %v2075, %v2082
        %v2104 = vmul.f32 %v2076, %v2082
        %v2105 = vmul.f32 %v2077, %v2082
        %v2106 = vmul.f32 %v2078, %v2082
        %v2107 = vadd.f32 %v2029, %v2083
        %v2108 = vadd.f32 %v2030, %v2084
        %v2109 = vadd.f32 %v2031, %v2085
        %v2110 = vadd.f32 %v2032, %v2086
        %v2111 = vadd.f32 %v2033, %v2087
        %v2112 = vadd.f32 %v2034, %v2088
        %v2113 = vadd.f32 %v2035, %v2089
        %v2114 = vadd.f32 %v2036, %v2090
        %v2115 = vadd.f32 %v2037, %v2091
        %v2116 = vadd.f32 %v2038, %v2092
        %v2117 = vadd.f32 %v2039, %v2093
        %v2118 = vadd.f32 %v2040, %v2094
        %v2119 = vadd.f32 %v2041, %v2095
        %v2120 = vadd.f32 %v2042, %v2096
        %v2121 = vadd.f32 %v2043, %v2097
        %v2122 = vadd.f32 %v2044, %v2098
        %v2123 = vadd.f32 %v2045, %v2099
        %v2124 = vadd.f32 %v2046, %v2100
        %v2125 = vadd.f32 %v2047, %v2101
        %v2126 = vadd.f32 %v2048, %v2102
        %v2127 = vadd.f32 %v2049, %v2103
        %v2128 = vadd.f32 %v2050, %v2104
        %v2129 = vadd.f32 %v2051, %v2105
        %v2130 = vadd.f32 %v2052, %v2106
        %v2131 = vld [vmem:[#allocation7 + $0x14] sm:$0x1]
        %s2132 = scalar_lea.vmem [#allocation2], 720
        %v2133 = vld [vmem:[%s2132] sm:$0xff]
        %v2134 = vld [vmem:[%s2132 + $0x8] sm:$0xff]
        %v2135 = vld [vmem:[%s2132 + $0x10] sm:$0xff]
        %v2136 = vld [vmem:[%s2132 + $0x18] sm:$0xff]
        %v2137 = vld [vmem:[%s2132 + $0x20] sm:$0xff]
        %v2138 = vld [vmem:[%s2132 + $0x28] sm:$0xff]
        %v2139 = vld [vmem:[%s2132 + $0x30] sm:$0xff]
        %v2140 = vld [vmem:[%s2132 + $0x38] sm:$0xff]
        %v2141 = vld [vmem:[%s2132 + $0x50] sm:$0xff]
        %v2142 = vld [vmem:[%s2132 + $0x58] sm:$0xff]
        %v2143 = vld [vmem:[%s2132 + $0x60] sm:$0xff]
        %v2144 = vld [vmem:[%s2132 + $0x68] sm:$0xff]
        %v2145 = vld [vmem:[%s2132 + $0x70] sm:$0xff]
        %v2146 = vld [vmem:[%s2132 + $0x78] sm:$0xff]
        %v2147 = vld [vmem:[%s2132 + $0x80] sm:$0xff]
        %v2148 = vld [vmem:[%s2132 + $0x88] sm:$0xff]
        %v2149 = vld [vmem:[%s2132 + $0xa0] sm:$0xff]
        %v2150 = vld [vmem:[%s2132 + $0xa8] sm:$0xff]
        %v2151 = vld [vmem:[%s2132 + $0xb0] sm:$0xff]
        %v2152 = vld [vmem:[%s2132 + $0xb8] sm:$0xff]
        %v2153 = vld [vmem:[%s2132 + $0xc0] sm:$0xff]
        %v2154 = vld [vmem:[%s2132 + $0xc8] sm:$0xff]
        %v2155 = vld [vmem:[%s2132 + $0xd0] sm:$0xff]
        %v2156 = vld [vmem:[%s2132 + $0xd8] sm:$0xff]
        %v2157 = vlaneseq
        %v2158 = vshrl.u32 %v2157, 7
        %v2159 = vsub.s32 0, %v2158
        %v2160 = vrot.slane %v2131, %v2159
        %v2161 = vmul.f32 %v2133, %v2160
        %v2162 = vmul.f32 %v2134, %v2160
        %v2163 = vmul.f32 %v2135, %v2160
        %v2164 = vmul.f32 %v2136, %v2160
        %v2165 = vmul.f32 %v2137, %v2160
        %v2166 = vmul.f32 %v2138, %v2160
        %v2167 = vmul.f32 %v2139, %v2160
        %v2168 = vmul.f32 %v2140, %v2160
        %v2169 = vmul.f32 %v2141, %v2160
        %v2170 = vmul.f32 %v2142, %v2160
        %v2171 = vmul.f32 %v2143, %v2160
        %v2172 = vmul.f32 %v2144, %v2160
        %v2173 = vmul.f32 %v2145, %v2160
        %v2174 = vmul.f32 %v2146, %v2160
        %v2175 = vmul.f32 %v2147, %v2160
        %v2176 = vmul.f32 %v2148, %v2160
        %v2177 = vmul.f32 %v2149, %v2160
        %v2178 = vmul.f32 %v2150, %v2160
        %v2179 = vmul.f32 %v2151, %v2160
        %v2180 = vmul.f32 %v2152, %v2160
        %v2181 = vmul.f32 %v2153, %v2160
        %v2182 = vmul.f32 %v2154, %v2160
        %v2183 = vmul.f32 %v2155, %v2160
        %v2184 = vmul.f32 %v2156, %v2160
        %v2185 = vadd.f32 %v2107, %v2161
        %v2186 = vadd.f32 %v2108, %v2162
        %v2187 = vadd.f32 %v2109, %v2163
        %v2188 = vadd.f32 %v2110, %v2164
        %v2189 = vadd.f32 %v2111, %v2165
        %v2190 = vadd.f32 %v2112, %v2166
        %v2191 = vadd.f32 %v2113, %v2167
        %v2192 = vadd.f32 %v2114, %v2168
        %v2193 = vadd.f32 %v2115, %v2169
        %v2194 = vadd.f32 %v2116, %v2170
        %v2195 = vadd.f32 %v2117, %v2171
        %v2196 = vadd.f32 %v2118, %v2172
        %v2197 = vadd.f32 %v2119, %v2173
        %v2198 = vadd.f32 %v2120, %v2174
        %v2199 = vadd.f32 %v2121, %v2175
        %v2200 = vadd.f32 %v2122, %v2176
        %v2201 = vadd.f32 %v2123, %v2177
        %v2202 = vadd.f32 %v2124, %v2178
        %v2203 = vadd.f32 %v2125, %v2179
        %v2204 = vadd.f32 %v2126, %v2180
        %v2205 = vadd.f32 %v2127, %v2181
        %v2206 = vadd.f32 %v2128, %v2182
        %v2207 = vadd.f32 %v2129, %v2183
        %v2208 = vadd.f32 %v2130, %v2184
        %v2209 = vld [vmem:[#allocation7 + $0x15] sm:$0x1]
        %s2210 = scalar_lea.vmem [#allocation2], 88
        %v2211 = vld [vmem:[%s2210] sm:$0xff]
        %v2212 = vld [vmem:[%s2210 + $0x8] sm:$0xff]
        %v2213 = vld [vmem:[%s2210 + $0x10] sm:$0xff]
        %v2214 = vld [vmem:[%s2210 + $0x18] sm:$0xff]
        %v2215 = vld [vmem:[%s2210 + $0x20] sm:$0xff]
        %v2216 = vld [vmem:[%s2210 + $0x28] sm:$0xff]
        %v2217 = vld [vmem:[%s2210 + $0x30] sm:$0xff]
        %v2218 = vld [vmem:[%s2210 + $0x38] sm:$0xff]
        %v2219 = vld [vmem:[%s2210 + $0x50] sm:$0xff]
        %v2220 = vld [vmem:[%s2210 + $0x58] sm:$0xff]
        %v2221 = vld [vmem:[%s2210 + $0x60] sm:$0xff]
        %v2222 = vld [vmem:[%s2210 + $0x68] sm:$0xff]
        %v2223 = vld [vmem:[%s2210 + $0x70] sm:$0xff]
        %v2224 = vld [vmem:[%s2210 + $0x78] sm:$0xff]
        %v2225 = vld [vmem:[%s2210 + $0x80] sm:$0xff]
        %v2226 = vld [vmem:[%s2210 + $0x88] sm:$0xff]
        %v2227 = vld [vmem:[%s2210 + $0xa0] sm:$0xff]
        %v2228 = vld [vmem:[%s2210 + $0xa8] sm:$0xff]
        %v2229 = vld [vmem:[%s2210 + $0xb0] sm:$0xff]
        %v2230 = vld [vmem:[%s2210 + $0xb8] sm:$0xff]
        %v2231 = vld [vmem:[%s2210 + $0xc0] sm:$0xff]
        %v2232 = vld [vmem:[%s2210 + $0xc8] sm:$0xff]
        %v2233 = vld [vmem:[%s2210 + $0xd0] sm:$0xff]
        %v2234 = vld [vmem:[%s2210 + $0xd8] sm:$0xff]
        %v2235 = vlaneseq
        %v2236 = vshrl.u32 %v2235, 7
        %v2237 = vsub.s32 0, %v2236
        %v2238 = vrot.slane %v2209, %v2237
        %v2239 = vmul.f32 %v2211, %v2238
        %v2240 = vmul.f32 %v2212, %v2238
        %v2241 = vmul.f32 %v2213, %v2238
        %v2242 = vmul.f32 %v2214, %v2238
        %v2243 = vmul.f32 %v2215, %v2238
        %v2244 = vmul.f32 %v2216, %v2238
        %v2245 = vmul.f32 %v2217, %v2238
        %v2246 = vmul.f32 %v2218, %v2238
        %v2247 = vmul.f32 %v2219, %v2238
        %v2248 = vmul.f32 %v2220, %v2238
        %v2249 = vmul.f32 %v2221, %v2238
        %v2250 = vmul.f32 %v2222, %v2238
        %v2251 = vmul.f32 %v2223, %v2238
        %v2252 = vmul.f32 %v2224, %v2238
        %v2253 = vmul.f32 %v2225, %v2238
        %v2254 = vmul.f32 %v2226, %v2238
        %v2255 = vmul.f32 %v2227, %v2238
        %v2256 = vmul.f32 %v2228, %v2238
        %v2257 = vmul.f32 %v2229, %v2238
        %v2258 = vmul.f32 %v2230, %v2238
        %v2259 = vmul.f32 %v2231, %v2238
        %v2260 = vmul.f32 %v2232, %v2238
        %v2261 = vmul.f32 %v2233, %v2238
        %v2262 = vmul.f32 %v2234, %v2238
        %v2263 = vadd.f32 %v2185, %v2239
        %v2264 = vadd.f32 %v2186, %v2240
        %v2265 = vadd.f32 %v2187, %v2241
        %v2266 = vadd.f32 %v2188, %v2242
        %v2267 = vadd.f32 %v2189, %v2243
        %v2268 = vadd.f32 %v2190, %v2244
        %v2269 = vadd.f32 %v2191, %v2245
        %v2270 = vadd.f32 %v2192, %v2246
        %v2271 = vadd.f32 %v2193, %v2247
        %v2272 = vadd.f32 %v2194, %v2248
        %v2273 = vadd.f32 %v2195, %v2249
        %v2274 = vadd.f32 %v2196, %v2250
        %v2275 = vadd.f32 %v2197, %v2251
        %v2276 = vadd.f32 %v2198, %v2252
        %v2277 = vadd.f32 %v2199, %v2253
        %v2278 = vadd.f32 %v2200, %v2254
        %v2279 = vadd.f32 %v2201, %v2255
        %v2280 = vadd.f32 %v2202, %v2256
        %v2281 = vadd.f32 %v2203, %v2257
        %v2282 = vadd.f32 %v2204, %v2258
        %v2283 = vadd.f32 %v2205, %v2259
        %v2284 = vadd.f32 %v2206, %v2260
        %v2285 = vadd.f32 %v2207, %v2261
        %v2286 = vadd.f32 %v2208, %v2262
        %v2287 = vld [vmem:[#allocation7 + $0x16] sm:$0x1]
        %s2288 = scalar_lea.vmem [#allocation2], 408
        %v2289 = vld [vmem:[%s2288] sm:$0xff]
        %v2290 = vld [vmem:[%s2288 + $0x8] sm:$0xff]
        %v2291 = vld [vmem:[%s2288 + $0x10] sm:$0xff]
        %v2292 = vld [vmem:[%s2288 + $0x18] sm:$0xff]
        %v2293 = vld [vmem:[%s2288 + $0x20] sm:$0xff]
        %v2294 = vld [vmem:[%s2288 + $0x28] sm:$0xff]
        %v2295 = vld [vmem:[%s2288 + $0x30] sm:$0xff]
        %v2296 = vld [vmem:[%s2288 + $0x38] sm:$0xff]
        %v2297 = vld [vmem:[%s2288 + $0x50] sm:$0xff]
        %v2298 = vld [vmem:[%s2288 + $0x58] sm:$0xff]
        %v2299 = vld [vmem:[%s2288 + $0x60] sm:$0xff]
        %v2300 = vld [vmem:[%s2288 + $0x68] sm:$0xff]
        %v2301 = vld [vmem:[%s2288 + $0x70] sm:$0xff]
        %v2302 = vld [vmem:[%s2288 + $0x78] sm:$0xff]
        %v2303 = vld [vmem:[%s2288 + $0x80] sm:$0xff]
        %v2304 = vld [vmem:[%s2288 + $0x88] sm:$0xff]
        %v2305 = vld [vmem:[%s2288 + $0xa0] sm:$0xff]
        %v2306 = vld [vmem:[%s2288 + $0xa8] sm:$0xff]
        %v2307 = vld [vmem:[%s2288 + $0xb0] sm:$0xff]
        %v2308 = vld [vmem:[%s2288 + $0xb8] sm:$0xff]
        %v2309 = vld [vmem:[%s2288 + $0xc0] sm:$0xff]
        %v2310 = vld [vmem:[%s2288 + $0xc8] sm:$0xff]
        %v2311 = vld [vmem:[%s2288 + $0xd0] sm:$0xff]
        %v2312 = vld [vmem:[%s2288 + $0xd8] sm:$0xff]
        %v2313 = vlaneseq
        %v2314 = vshrl.u32 %v2313, 7
        %v2315 = vsub.s32 0, %v2314
        %v2316 = vrot.slane %v2287, %v2315
        %v2317 = vmul.f32 %v2289, %v2316
        %v2318 = vmul.f32 %v2290, %v2316
        %v2319 = vmul.f32 %v2291, %v2316
        %v2320 = vmul.f32 %v2292, %v2316
        %v2321 = vmul.f32 %v2293, %v2316
        %v2322 = vmul.f32 %v2294, %v2316
        %v2323 = vmul.f32 %v2295, %v2316
        %v2324 = vmul.f32 %v2296, %v2316
        %v2325 = vmul.f32 %v2297, %v2316
        %v2326 = vmul.f32 %v2298, %v2316
        %v2327 = vmul.f32 %v2299, %v2316
        %v2328 = vmul.f32 %v2300, %v2316
        %v2329 = vmul.f32 %v2301, %v2316
        %v2330 = vmul.f32 %v2302, %v2316
        %v2331 = vmul.f32 %v2303, %v2316
        %v2332 = vmul.f32 %v2304, %v2316
        %v2333 = vmul.f32 %v2305, %v2316
        %v2334 = vmul.f32 %v2306, %v2316
        %v2335 = vmul.f32 %v2307, %v2316
        %v2336 = vmul.f32 %v2308, %v2316
        %v2337 = vmul.f32 %v2309, %v2316
        %v2338 = vmul.f32 %v2310, %v2316
        %v2339 = vmul.f32 %v2311, %v2316
        %v2340 = vmul.f32 %v2312, %v2316
        %v2341 = vadd.f32 %v2263, %v2317
        %v2342 = vadd.f32 %v2264, %v2318
        %v2343 = vadd.f32 %v2265, %v2319
        %v2344 = vadd.f32 %v2266, %v2320
        %v2345 = vadd.f32 %v2267, %v2321
        %v2346 = vadd.f32 %v2268, %v2322
        %v2347 = vadd.f32 %v2269, %v2323
        %v2348 = vadd.f32 %v2270, %v2324
        %v2349 = vadd.f32 %v2271, %v2325
        %v2350 = vadd.f32 %v2272, %v2326
        %v2351 = vadd.f32 %v2273, %v2327
        %v2352 = vadd.f32 %v2274, %v2328
        %v2353 = vadd.f32 %v2275, %v2329
        %v2354 = vadd.f32 %v2276, %v2330
        %v2355 = vadd.f32 %v2277, %v2331
        %v2356 = vadd.f32 %v2278, %v2332
        %v2357 = vadd.f32 %v2279, %v2333
        %v2358 = vadd.f32 %v2280, %v2334
        %v2359 = vadd.f32 %v2281, %v2335
        %v2360 = vadd.f32 %v2282, %v2336
        %v2361 = vadd.f32 %v2283, %v2337
        %v2362 = vadd.f32 %v2284, %v2338
        %v2363 = vadd.f32 %v2285, %v2339
        %v2364 = vadd.f32 %v2286, %v2340
        %v2365 = vld [vmem:[#allocation7 + $0x17] sm:$0x1]
        %s2366 = scalar_lea.vmem [#allocation2], 728
        %v2367 = vld [vmem:[%s2366] sm:$0xff]
        %v2368 = vld [vmem:[%s2366 + $0x8] sm:$0xff]
        %v2369 = vld [vmem:[%s2366 + $0x10] sm:$0xff]
        %v2370 = vld [vmem:[%s2366 + $0x18] sm:$0xff]
        %v2371 = vld [vmem:[%s2366 + $0x20] sm:$0xff]
        %v2372 = vld [vmem:[%s2366 + $0x28] sm:$0xff]
        %v2373 = vld [vmem:[%s2366 + $0x30] sm:$0xff]
        %v2374 = vld [vmem:[%s2366 + $0x38] sm:$0xff]
        %v2375 = vld [vmem:[%s2366 + $0x50] sm:$0xff]
        %v2376 = vld [vmem:[%s2366 + $0x58] sm:$0xff]
        %v2377 = vld [vmem:[%s2366 + $0x60] sm:$0xff]
        %v2378 = vld [vmem:[%s2366 + $0x68] sm:$0xff]
        %v2379 = vld [vmem:[%s2366 + $0x70] sm:$0xff]
        %v2380 = vld [vmem:[%s2366 + $0x78] sm:$0xff]
        %v2381 = vld [vmem:[%s2366 + $0x80] sm:$0xff]
        %v2382 = vld [vmem:[%s2366 + $0x88] sm:$0xff]
        %v2383 = vld [vmem:[%s2366 + $0xa0] sm:$0xff]
        %v2384 = vld [vmem:[%s2366 + $0xa8] sm:$0xff]
        %v2385 = vld [vmem:[%s2366 + $0xb0] sm:$0xff]
        %v2386 = vld [vmem:[%s2366 + $0xb8] sm:$0xff]
        %v2387 = vld [vmem:[%s2366 + $0xc0] sm:$0xff]
        %v2388 = vld [vmem:[%s2366 + $0xc8] sm:$0xff]
        %v2389 = vld [vmem:[%s2366 + $0xd0] sm:$0xff]
        %v2390 = vld [vmem:[%s2366 + $0xd8] sm:$0xff]
        %v2391 = vlaneseq
        %v2392 = vshrl.u32 %v2391, 7
        %v2393 = vsub.s32 0, %v2392
        %v2394 = vrot.slane %v2365, %v2393
        %v2395 = vmul.f32 %v2367, %v2394
        %v2396 = vmul.f32 %v2368, %v2394
        %v2397 = vmul.f32 %v2369, %v2394
        %v2398 = vmul.f32 %v2370, %v2394
        %v2399 = vmul.f32 %v2371, %v2394
        %v2400 = vmul.f32 %v2372, %v2394
        %v2401 = vmul.f32 %v2373, %v2394
        %v2402 = vmul.f32 %v2374, %v2394
        %v2403 = vmul.f32 %v2375, %v2394
        %v2404 = vmul.f32 %v2376, %v2394
        %v2405 = vmul.f32 %v2377, %v2394
        %v2406 = vmul.f32 %v2378, %v2394
        %v2407 = vmul.f32 %v2379, %v2394
        %v2408 = vmul.f32 %v2380, %v2394
        %v2409 = vmul.f32 %v2381, %v2394
        %v2410 = vmul.f32 %v2382, %v2394
        %v2411 = vmul.f32 %v2383, %v2394
        %v2412 = vmul.f32 %v2384, %v2394
        %v2413 = vmul.f32 %v2385, %v2394
        %v2414 = vmul.f32 %v2386, %v2394
        %v2415 = vmul.f32 %v2387, %v2394
        %v2416 = vmul.f32 %v2388, %v2394
        %v2417 = vmul.f32 %v2389, %v2394
        %v2418 = vmul.f32 %v2390, %v2394
        %v2419 = vadd.f32 %v2341, %v2395
        %v2420 = vadd.f32 %v2342, %v2396
        %v2421 = vadd.f32 %v2343, %v2397
        %v2422 = vadd.f32 %v2344, %v2398
        %v2423 = vadd.f32 %v2345, %v2399
        %v2424 = vadd.f32 %v2346, %v2400
        %v2425 = vadd.f32 %v2347, %v2401
        %v2426 = vadd.f32 %v2348, %v2402
        %v2427 = vadd.f32 %v2349, %v2403
        %v2428 = vadd.f32 %v2350, %v2404
        %v2429 = vadd.f32 %v2351, %v2405
        %v2430 = vadd.f32 %v2352, %v2406
        %v2431 = vadd.f32 %v2353, %v2407
        %v2432 = vadd.f32 %v2354, %v2408
        %v2433 = vadd.f32 %v2355, %v2409
        %v2434 = vadd.f32 %v2356, %v2410
        %v2435 = vadd.f32 %v2357, %v2411
        %v2436 = vadd.f32 %v2358, %v2412
        %v2437 = vadd.f32 %v2359, %v2413
        %v2438 = vadd.f32 %v2360, %v2414
        %v2439 = vadd.f32 %v2361, %v2415
        %v2440 = vadd.f32 %v2362, %v2416
        %v2441 = vadd.f32 %v2363, %v2417
        %v2442 = vadd.f32 %v2364, %v2418
        %v2443 = vld [vmem:[#allocation7 + $0x18] sm:$0x1]
        %s2444 = scalar_lea.vmem [#allocation2], 96
        %v2445 = vld [vmem:[%s2444] sm:$0xff]
        %v2446 = vld [vmem:[%s2444 + $0x8] sm:$0xff]
        %v2447 = vld [vmem:[%s2444 + $0x10] sm:$0xff]
        %v2448 = vld [vmem:[%s2444 + $0x18] sm:$0xff]
        %v2449 = vld [vmem:[%s2444 + $0x20] sm:$0xff]
        %v2450 = vld [vmem:[%s2444 + $0x28] sm:$0xff]
        %v2451 = vld [vmem:[%s2444 + $0x30] sm:$0xff]
        %v2452 = vld [vmem:[%s2444 + $0x38] sm:$0xff]
        %v2453 = vld [vmem:[%s2444 + $0x50] sm:$0xff]
        %v2454 = vld [vmem:[%s2444 + $0x58] sm:$0xff]
        %v2455 = vld [vmem:[%s2444 + $0x60] sm:$0xff]
        %v2456 = vld [vmem:[%s2444 + $0x68] sm:$0xff]
        %v2457 = vld [vmem:[%s2444 + $0x70] sm:$0xff]
        %v2458 = vld [vmem:[%s2444 + $0x78] sm:$0xff]
        %v2459 = vld [vmem:[%s2444 + $0x80] sm:$0xff]
        %v2460 = vld [vmem:[%s2444 + $0x88] sm:$0xff]
        %v2461 = vld [vmem:[%s2444 + $0xa0] sm:$0xff]
        %v2462 = vld [vmem:[%s2444 + $0xa8] sm:$0xff]
        %v2463 = vld [vmem:[%s2444 + $0xb0] sm:$0xff]
        %v2464 = vld [vmem:[%s2444 + $0xb8] sm:$0xff]
        %v2465 = vld [vmem:[%s2444 + $0xc0] sm:$0xff]
        %v2466 = vld [vmem:[%s2444 + $0xc8] sm:$0xff]
        %v2467 = vld [vmem:[%s2444 + $0xd0] sm:$0xff]
        %v2468 = vld [vmem:[%s2444 + $0xd8] sm:$0xff]
        %v2469 = vlaneseq
        %v2470 = vshrl.u32 %v2469, 7
        %v2471 = vsub.s32 0, %v2470
        %v2472 = vrot.slane %v2443, %v2471
        %v2473 = vmul.f32 %v2445, %v2472
        %v2474 = vmul.f32 %v2446, %v2472
        %v2475 = vmul.f32 %v2447, %v2472
        %v2476 = vmul.f32 %v2448, %v2472
        %v2477 = vmul.f32 %v2449, %v2472
        %v2478 = vmul.f32 %v2450, %v2472
        %v2479 = vmul.f32 %v2451, %v2472
        %v2480 = vmul.f32 %v2452, %v2472
        %v2481 = vmul.f32 %v2453, %v2472
        %v2482 = vmul.f32 %v2454, %v2472
        %v2483 = vmul.f32 %v2455, %v2472
        %v2484 = vmul.f32 %v2456, %v2472
        %v2485 = vmul.f32 %v2457, %v2472
        %v2486 = vmul.f32 %v2458, %v2472
        %v2487 = vmul.f32 %v2459, %v2472
        %v2488 = vmul.f32 %v2460, %v2472
        %v2489 = vmul.f32 %v2461, %v2472
        %v2490 = vmul.f32 %v2462, %v2472
        %v2491 = vmul.f32 %v2463, %v2472
        %v2492 = vmul.f32 %v2464, %v2472
        %v2493 = vmul.f32 %v2465, %v2472
        %v2494 = vmul.f32 %v2466, %v2472
        %v2495 = vmul.f32 %v2467, %v2472
        %v2496 = vmul.f32 %v2468, %v2472
        %v2497 = vadd.f32 %v2419, %v2473
        %v2498 = vadd.f32 %v2420, %v2474
        %v2499 = vadd.f32 %v2421, %v2475
        %v2500 = vadd.f32 %v2422, %v2476
        %v2501 = vadd.f32 %v2423, %v2477
        %v2502 = vadd.f32 %v2424, %v2478
        %v2503 = vadd.f32 %v2425, %v2479
        %v2504 = vadd.f32 %v2426, %v2480
        %v2505 = vadd.f32 %v2427, %v2481
        %v2506 = vadd.f32 %v2428, %v2482
        %v2507 = vadd.f32 %v2429, %v2483
        %v2508 = vadd.f32 %v2430, %v2484
        %v2509 = vadd.f32 %v2431, %v2485
        %v2510 = vadd.f32 %v2432, %v2486
        %v2511 = vadd.f32 %v2433, %v2487
        %v2512 = vadd.f32 %v2434, %v2488
        %v2513 = vadd.f32 %v2435, %v2489
        %v2514 = vadd.f32 %v2436, %v2490
        %v2515 = vadd.f32 %v2437, %v2491
        %v2516 = vadd.f32 %v2438, %v2492
        %v2517 = vadd.f32 %v2439, %v2493
        %v2518 = vadd.f32 %v2440, %v2494
        %v2519 = vadd.f32 %v2441, %v2495
        %v2520 = vadd.f32 %v2442, %v2496
        %v2521 = vld [vmem:[#allocation7 + $0x19] sm:$0x1]
        %s2522 = scalar_lea.vmem [#allocation2], 416
        %v2523 = vld [vmem:[%s2522] sm:$0xff]
        %v2524 = vld [vmem:[%s2522 + $0x8] sm:$0xff]
        %v2525 = vld [vmem:[%s2522 + $0x10] sm:$0xff]
        %v2526 = vld [vmem:[%s2522 + $0x18] sm:$0xff]
        %v2527 = vld [vmem:[%s2522 + $0x20] sm:$0xff]
        %v2528 = vld [vmem:[%s2522 + $0x28] sm:$0xff]
        %v2529 = vld [vmem:[%s2522 + $0x30] sm:$0xff]
        %v2530 = vld [vmem:[%s2522 + $0x38] sm:$0xff]
        %v2531 = vld [vmem:[%s2522 + $0x50] sm:$0xff]
        %v2532 = vld [vmem:[%s2522 + $0x58] sm:$0xff]
        %v2533 = vld [vmem:[%s2522 + $0x60] sm:$0xff]
        %v2534 = vld [vmem:[%s2522 + $0x68] sm:$0xff]
        %v2535 = vld [vmem:[%s2522 + $0x70] sm:$0xff]
        %v2536 = vld [vmem:[%s2522 + $0x78] sm:$0xff]
        %v2537 = vld [vmem:[%s2522 + $0x80] sm:$0xff]
        %v2538 = vld [vmem:[%s2522 + $0x88] sm:$0xff]
        %v2539 = vld [vmem:[%s2522 + $0xa0] sm:$0xff]
        %v2540 = vld [vmem:[%s2522 + $0xa8] sm:$0xff]
        %v2541 = vld [vmem:[%s2522 + $0xb0] sm:$0xff]
        %v2542 = vld [vmem:[%s2522 + $0xb8] sm:$0xff]
        %v2543 = vld [vmem:[%s2522 + $0xc0] sm:$0xff]
        %v2544 = vld [vmem:[%s2522 + $0xc8] sm:$0xff]
        %v2545 = vld [vmem:[%s2522 + $0xd0] sm:$0xff]
        %v2546 = vld [vmem:[%s2522 + $0xd8] sm:$0xff]
        %v2547 = vlaneseq
        %v2548 = vshrl.u32 %v2547, 7
        %v2549 = vsub.s32 0, %v2548
        %v2550 = vrot.slane %v2521, %v2549
        %v2551 = vmul.f32 %v2523, %v2550
        %v2552 = vmul.f32 %v2524, %v2550
        %v2553 = vmul.f32 %v2525, %v2550
        %v2554 = vmul.f32 %v2526, %v2550
        %v2555 = vmul.f32 %v2527, %v2550
        %v2556 = vmul.f32 %v2528, %v2550
        %v2557 = vmul.f32 %v2529, %v2550
        %v2558 = vmul.f32 %v2530, %v2550
        %v2559 = vmul.f32 %v2531, %v2550
        %v2560 = vmul.f32 %v2532, %v2550
        %v2561 = vmul.f32 %v2533, %v2550
        %v2562 = vmul.f32 %v2534, %v2550
        %v2563 = vmul.f32 %v2535, %v2550
        %v2564 = vmul.f32 %v2536, %v2550
        %v2565 = vmul.f32 %v2537, %v2550
        %v2566 = vmul.f32 %v2538, %v2550
        %v2567 = vmul.f32 %v2539, %v2550
        %v2568 = vmul.f32 %v2540, %v2550
        %v2569 = vmul.f32 %v2541, %v2550
        %v2570 = vmul.f32 %v2542, %v2550
        %v2571 = vmul.f32 %v2543, %v2550
        %v2572 = vmul.f32 %v2544, %v2550
        %v2573 = vmul.f32 %v2545, %v2550
        %v2574 = vmul.f32 %v2546, %v2550
        %v2575 = vadd.f32 %v2497, %v2551
        %v2576 = vadd.f32 %v2498, %v2552
        %v2577 = vadd.f32 %v2499, %v2553
        %v2578 = vadd.f32 %v2500, %v2554
        %v2579 = vadd.f32 %v2501, %v2555
        %v2580 = vadd.f32 %v2502, %v2556
        %v2581 = vadd.f32 %v2503, %v2557
        %v2582 = vadd.f32 %v2504, %v2558
        %v2583 = vadd.f32 %v2505, %v2559
        %v2584 = vadd.f32 %v2506, %v2560
        %v2585 = vadd.f32 %v2507, %v2561
        %v2586 = vadd.f32 %v2508, %v2562
        %v2587 = vadd.f32 %v2509, %v2563
        %v2588 = vadd.f32 %v2510, %v2564
        %v2589 = vadd.f32 %v2511, %v2565
        %v2590 = vadd.f32 %v2512, %v2566
        %v2591 = vadd.f32 %v2513, %v2567
        %v2592 = vadd.f32 %v2514, %v2568
        %v2593 = vadd.f32 %v2515, %v2569
        %v2594 = vadd.f32 %v2516, %v2570
        %v2595 = vadd.f32 %v2517, %v2571
        %v2596 = vadd.f32 %v2518, %v2572
        %v2597 = vadd.f32 %v2519, %v2573
        %v2598 = vadd.f32 %v2520, %v2574
        %v2599 = vld [vmem:[#allocation7 + $0x1a] sm:$0x1]
        %s2600 = scalar_lea.vmem [#allocation2], 736
        %v2601 = vld [vmem:[%s2600] sm:$0xff]
        %v2602 = vld [vmem:[%s2600 + $0x8] sm:$0xff]
        %v2603 = vld [vmem:[%s2600 + $0x10] sm:$0xff]
        %v2604 = vld [vmem:[%s2600 + $0x18] sm:$0xff]
        %v2605 = vld [vmem:[%s2600 + $0x20] sm:$0xff]
        %v2606 = vld [vmem:[%s2600 + $0x28] sm:$0xff]
        %v2607 = vld [vmem:[%s2600 + $0x30] sm:$0xff]
        %v2608 = vld [vmem:[%s2600 + $0x38] sm:$0xff]
        %v2609 = vld [vmem:[%s2600 + $0x50] sm:$0xff]
        %v2610 = vld [vmem:[%s2600 + $0x58] sm:$0xff]
        %v2611 = vld [vmem:[%s2600 + $0x60] sm:$0xff]
        %v2612 = vld [vmem:[%s2600 + $0x68] sm:$0xff]
        %v2613 = vld [vmem:[%s2600 + $0x70] sm:$0xff]
        %v2614 = vld [vmem:[%s2600 + $0x78] sm:$0xff]
        %v2615 = vld [vmem:[%s2600 + $0x80] sm:$0xff]
        %v2616 = vld [vmem:[%s2600 + $0x88] sm:$0xff]
        %v2617 = vld [vmem:[%s2600 + $0xa0] sm:$0xff]
        %v2618 = vld [vmem:[%s2600 + $0xa8] sm:$0xff]
        %v2619 = vld [vmem:[%s2600 + $0xb0] sm:$0xff]
        %v2620 = vld [vmem:[%s2600 + $0xb8] sm:$0xff]
        %v2621 = vld [vmem:[%s2600 + $0xc0] sm:$0xff]
        %v2622 = vld [vmem:[%s2600 + $0xc8] sm:$0xff]
        %v2623 = vld [vmem:[%s2600 + $0xd0] sm:$0xff]
        %v2624 = vld [vmem:[%s2600 + $0xd8] sm:$0xff]
        %v2625 = vlaneseq
        %v2626 = vshrl.u32 %v2625, 7
        %v2627 = vsub.s32 0, %v2626
        %v2628 = vrot.slane %v2599, %v2627
        %v2629 = vmul.f32 %v2601, %v2628
        %v2630 = vmul.f32 %v2602, %v2628
        %v2631 = vmul.f32 %v2603, %v2628
        %v2632 = vmul.f32 %v2604, %v2628
        %v2633 = vmul.f32 %v2605, %v2628
        %v2634 = vmul.f32 %v2606, %v2628
        %v2635 = vmul.f32 %v2607, %v2628
        %v2636 = vmul.f32 %v2608, %v2628
        %v2637 = vmul.f32 %v2609, %v2628
        %v2638 = vmul.f32 %v2610, %v2628
        %v2639 = vmul.f32 %v2611, %v2628
        %v2640 = vmul.f32 %v2612, %v2628
        %v2641 = vmul.f32 %v2613, %v2628
        %v2642 = vmul.f32 %v2614, %v2628
        %v2643 = vmul.f32 %v2615, %v2628
        %v2644 = vmul.f32 %v2616, %v2628
        %v2645 = vmul.f32 %v2617, %v2628
        %v2646 = vmul.f32 %v2618, %v2628
        %v2647 = vmul.f32 %v2619, %v2628
        %v2648 = vmul.f32 %v2620, %v2628
        %v2649 = vmul.f32 %v2621, %v2628
        %v2650 = vmul.f32 %v2622, %v2628
        %v2651 = vmul.f32 %v2623, %v2628
        %v2652 = vmul.f32 %v2624, %v2628
        %v2653 = vadd.f32 %v2575, %v2629
        %v2654 = vadd.f32 %v2576, %v2630
        %v2655 = vadd.f32 %v2577, %v2631
        %v2656 = vadd.f32 %v2578, %v2632
        %v2657 = vadd.f32 %v2579, %v2633
        %v2658 = vadd.f32 %v2580, %v2634
        %v2659 = vadd.f32 %v2581, %v2635
        %v2660 = vadd.f32 %v2582, %v2636
        %v2661 = vadd.f32 %v2583, %v2637
        %v2662 = vadd.f32 %v2584, %v2638
        %v2663 = vadd.f32 %v2585, %v2639
        %v2664 = vadd.f32 %v2586, %v2640
        %v2665 = vadd.f32 %v2587, %v2641
        %v2666 = vadd.f32 %v2588, %v2642
        %v2667 = vadd.f32 %v2589, %v2643
        %v2668 = vadd.f32 %v2590, %v2644
        %v2669 = vadd.f32 %v2591, %v2645
        %v2670 = vadd.f32 %v2592, %v2646
        %v2671 = vadd.f32 %v2593, %v2647
        %v2672 = vadd.f32 %v2594, %v2648
        %v2673 = vadd.f32 %v2595, %v2649
        %v2674 = vadd.f32 %v2596, %v2650
        %v2675 = vadd.f32 %v2597, %v2651
        %v2676 = vadd.f32 %v2598, %v2652
        %v2677 = vadd.f32 %v1490, %v2653
        %v2678 = vadd.f32 %v1491, %v2654
        %v2679 = vadd.f32 %v1492, %v2655
        %v2680 = vadd.f32 %v1493, %v2656
        %v2681 = vadd.f32 %v1494, %v2657
        %v2682 = vadd.f32 %v1495, %v2658
        %v2683 = vadd.f32 %v1496, %v2659
        %v2684 = vadd.f32 %v1497, %v2660
        %v2685 = vadd.f32 %v1975, %v2661
        %v2686 = vadd.f32 %v1976, %v2662
        %v2687 = vadd.f32 %v1977, %v2663
        %v2688 = vadd.f32 %v1978, %v2664
        %v2689 = vadd.f32 %v1979, %v2665
        %v2690 = vadd.f32 %v1980, %v2666
        %v2691 = vadd.f32 %v1981, %v2667
        %v2692 = vadd.f32 %v1982, %v2668
        %v2693 = vadd.f32 %v1983, %v2669
        %v2694 = vadd.f32 %v1984, %v2670
        %v2695 = vadd.f32 %v1985, %v2671
        %v2696 = vadd.f32 %v1986, %v2672
        %v2697 = vadd.f32 %v1987, %v2673
        %v2698 = vadd.f32 %v1988, %v2674
        %v2699 = vadd.f32 %v1989, %v2675
        %v2700 = vadd.f32 %v1990, %v2676
        %v2701 = vsub.f32 %v2685, %v2677
        %v2702 = vsub.f32 %v2686, %v2678
        %v2703 = vsub.f32 %v2687, %v2679
        %v2704 = vsub.f32 %v2688, %v2680
        %v2705 = vsub.f32 %v2689, %v2681
        %v2706 = vsub.f32 %v2690, %v2682
        %v2707 = vsub.f32 %v2691, %v2683
        %v2708 = vsub.f32 %v2692, %v2684
        %v2709 = vsub.f32 %v2693, %v2685
        %v2710 = vsub.f32 %v2694, %v2686
        %v2711 = vsub.f32 %v2695, %v2687
        %v2712 = vsub.f32 %v2696, %v2688
        %v2713 = vsub.f32 %v2697, %v2689
        %v2714 = vsub.f32 %v2698, %v2690
        %v2715 = vsub.f32 %v2699, %v2691
        %v2716 = vsub.f32 %v2700, %v2692
        %v2717 = vsub.f32 %v1991, %v2693
        %v2718 = vsub.f32 %v1992, %v2694
        %v2719 = vsub.f32 %v1993, %v2695
        %v2720 = vsub.f32 %v1994, %v2696
        %v2721 = vsub.f32 %v1995, %v2697
        %v2722 = vsub.f32 %v1996, %v2698
        %v2723 = vsub.f32 %v1997, %v2699
        %v2724 = vsub.f32 %v1998, %v2700
        %s2725 = sld [smem:[#allocation10]]
        %s2726 = smul.f32 %s2725, 0.5
        %v2727 = vmul.f32 %v2677, 0.5
        %v2728 = vmul.f32 %v2678, 0.5
        %v2729 = vmul.f32 %v2679, 0.5
        %v2730 = vmul.f32 %v2680, 0.5
        %v2731 = vmul.f32 %v2681, 0.5
        %v2732 = vmul.f32 %v2682, 0.5
        %v2733 = vmul.f32 %v2683, 0.5
        %v2734 = vmul.f32 %v2684, 0.5
        %v2735 = vmul.f32 %v2701, 0.5
        %v2736 = vmul.f32 %v2702, 0.5
        %v2737 = vmul.f32 %v2703, 0.5
        %v2738 = vmul.f32 %v2704, 0.5
        %v2739 = vmul.f32 %v2705, 0.5
        %v2740 = vmul.f32 %v2706, 0.5
        %v2741 = vmul.f32 %v2707, 0.5
        %v2742 = vmul.f32 %v2708, 0.5
        %v2743 = vmul.f32 %v2709, 0.5
        %v2744 = vmul.f32 %v2710, 0.5
        %v2745 = vmul.f32 %v2711, 0.5
        %v2746 = vmul.f32 %v2712, 0.5
        %v2747 = vmul.f32 %v2713, 0.5
        %v2748 = vmul.f32 %v2714, 0.5
        %v2749 = vmul.f32 %v2715, 0.5
        %v2750 = vmul.f32 %v2716, 0.5
        %v2751 = vmul.f32 %v2717, 0.5
        %v2752 = vmul.f32 %v2718, 0.5
        %v2753 = vmul.f32 %v2719, 0.5
        %v2754 = vmul.f32 %v2720, 0.5
        %v2755 = vmul.f32 %v2721, 0.5
        %v2756 = vmul.f32 %v2722, 0.5
        %v2757 = vmul.f32 %v2723, 0.5
        %v2758 = vmul.f32 %v2724, 0.5
        %v2759 = vtanh.pop %v2727
        %v2760 = vtanh.pop %v2728
        %v2761 = vtanh.pop %v2729
        %v2762 = vtanh.pop %v2730
        %v2763 = vtanh.pop %v2731
        %v2764 = vtanh.pop %v2732
        %v2765 = vtanh.pop %v2733
        %v2766 = vtanh.pop %v2734
        %v2767 = vtanh.pop %v2735
        %v2768 = vtanh.pop %v2736
        %v2769 = vtanh.pop %v2737
        %v2770 = vtanh.pop %v2738
        %v2771 = vtanh.pop %v2739
        %v2772 = vtanh.pop %v2740
        %v2773 = vtanh.pop %v2741
        %v2774 = vtanh.pop %v2742
        %v2775 = vtanh.pop %v2743
        %v2776 = vtanh.pop %v2744
        %v2777 = vtanh.pop %v2745
        %v2778 = vtanh.pop %v2746
        %v2779 = vtanh.pop %v2747
        %v2780 = vtanh.pop %v2748
        %v2781 = vtanh.pop %v2749
        %v2782 = vtanh.pop %v2750
        %v2783 = vtanh.pop %v2751
        %v2784 = vtanh.pop %v2752
        %v2785 = vtanh.pop %v2753
        %v2786 = vtanh.pop %v2754
        %v2787 = vtanh.pop %v2755
        %v2788 = vtanh.pop %v2756
        %v2789 = vtanh.pop %v2757
        %v2790 = vtanh.pop %v2758
        %v2791 = vstv %s2726
        %v2792 = vmul.f32 %v2791, %v2759
        %v2793 = vmul.f32 %v2791, %v2760
        %v2794 = vmul.f32 %v2791, %v2761
        %v2795 = vmul.f32 %v2791, %v2762
        %v2796 = vmul.f32 %v2791, %v2763
        %v2797 = vmul.f32 %v2791, %v2764
        %v2798 = vmul.f32 %v2791, %v2765
        %v2799 = vmul.f32 %v2791, %v2766
        %v2800 = vmul.f32 %v2791, %v2767
        %v2801 = vmul.f32 %v2791, %v2768
        %v2802 = vmul.f32 %v2791, %v2769
        %v2803 = vmul.f32 %v2791, %v2770
        %v2804 = vmul.f32 %v2791, %v2771
        %v2805 = vmul.f32 %v2791, %v2772
        %v2806 = vmul.f32 %v2791, %v2773
        %v2807 = vmul.f32 %v2791, %v2774
        %v2808 = vmul.f32 %v2791, %v2775
        %v2809 = vmul.f32 %v2791, %v2776
        %v2810 = vmul.f32 %v2791, %v2777
        %v2811 = vmul.f32 %v2791, %v2778
        %v2812 = vmul.f32 %v2791, %v2779
        %v2813 = vmul.f32 %v2791, %v2780
        %v2814 = vmul.f32 %v2791, %v2781
        %v2815 = vmul.f32 %v2791, %v2782
        %v2816 = vmul.f32 %v2791, %v2783
        %v2817 = vmul.f32 %v2791, %v2784
        %v2818 = vmul.f32 %v2791, %v2785
        %v2819 = vmul.f32 %v2791, %v2786
        %v2820 = vmul.f32 %v2791, %v2787
        %v2821 = vmul.f32 %v2791, %v2788
        %v2822 = vmul.f32 %v2791, %v2789
        %v2823 = vmul.f32 %v2791, %v2790
        %2824 = vst [vmem:[%s287] sm:$0xff] %v2792
        %2825 = vst [vmem:[%s287 + $0x8] sm:$0xff] %v2793
        %2826 = vst [vmem:[%s287 + $0x10] sm:$0xff] %v2794
        %2827 = vst [vmem:[%s287 + $0x18] sm:$0xff] %v2795
        %2828 = vst [vmem:[%s287 + $0x20] sm:$0xff] %v2796
        %2829 = vst [vmem:[%s287 + $0x28] sm:$0xff] %v2797
        %2830 = vst [vmem:[%s287 + $0x30] sm:$0xff] %v2798
        %2831 = vst [vmem:[%s287 + $0x38] sm:$0xff] %v2799
        %2832 = vst [vmem:[%s287 + $0x40] sm:$0xff] %v2800
        %2833 = vst [vmem:[%s287 + $0x48] sm:$0xff] %v2801
        %2834 = vst [vmem:[%s287 + $0x50] sm:$0xff] %v2802
        %2835 = vst [vmem:[%s287 + $0x58] sm:$0xff] %v2803
        %2836 = vst [vmem:[%s287 + $0x60] sm:$0xff] %v2804
        %2837 = vst [vmem:[%s287 + $0x68] sm:$0xff] %v2805
        %2838 = vst [vmem:[%s287 + $0x70] sm:$0xff] %v2806
        %2839 = vst [vmem:[%s287 + $0x78] sm:$0xff] %v2807
        %2840 = vst [vmem:[%s287 + $0x80] sm:$0xff] %v2808
        %2841 = vst [vmem:[%s287 + $0x88] sm:$0xff] %v2809
        %2842 = vst [vmem:[%s287 + $0x90] sm:$0xff] %v2810
        %2843 = vst [vmem:[%s287 + $0x98] sm:$0xff] %v2811
        %2844 = vst [vmem:[%s287 + $0xa0] sm:$0xff] %v2812
        %2845 = vst [vmem:[%s287 + $0xa8] sm:$0xff] %v2813
        %2846 = vst [vmem:[%s287 + $0xb0] sm:$0xff] %v2814
        %2847 = vst [vmem:[%s287 + $0xb8] sm:$0xff] %v2815
        %2848 = vst [vmem:[%s287 + $0xc0] sm:$0xff] %v2816
        %2849 = vst [vmem:[%s287 + $0xc8] sm:$0xff] %v2817
        %2850 = vst [vmem:[%s287 + $0xd0] sm:$0xff] %v2818
        %2851 = vst [vmem:[%s287 + $0xd8] sm:$0xff] %v2819
        %2852 = vst [vmem:[%s287 + $0xe0] sm:$0xff] %v2820
        %2853 = vst [vmem:[%s287 + $0xe8] sm:$0xff] %v2821
        %2854 = vst [vmem:[%s287 + $0xf0] sm:$0xff] %v2822
        %2855 = vst [vmem:[%s287 + $0xf8] sm:$0xff] %v2823
        %v2856 = vld [vmem:[#allocation7 + $0x24] sm:$0x1]
        %v2857 = vld [vmem:[#allocation2] sm:$0xff]
        %v2858 = vld [vmem:[#allocation2 + $0x8] sm:$0xff]
        %v2859 = vld [vmem:[#allocation2 + $0x10] sm:$0xff]
        %v2860 = vld [vmem:[#allocation2 + $0x18] sm:$0xff]
        %v2861 = vld [vmem:[#allocation2 + $0x20] sm:$0xff]
        %v2862 = vld [vmem:[#allocation2 + $0x28] sm:$0xff]
        %v2863 = vld [vmem:[#allocation2 + $0x30] sm:$0xff]
        %v2864 = vld [vmem:[#allocation2 + $0x38] sm:$0xff]
        %v2865 = vld [vmem:[#allocation2 + $0x50] sm:$0xff]
        %v2866 = vld [vmem:[#allocation2 + $0x58] sm:$0xff]
        %v2867 = vld [vmem:[#allocation2 + $0x60] sm:$0xff]
        %v2868 = vld [vmem:[#allocation2 + $0x68] sm:$0xff]
        %v2869 = vld [vmem:[#allocation2 + $0x70] sm:$0xff]
        %v2870 = vld [vmem:[#allocation2 + $0x78] sm:$0xff]
        %v2871 = vld [vmem:[#allocation2 + $0x80] sm:$0xff]
        %v2872 = vld [vmem:[#allocation2 + $0x88] sm:$0xff]
        %v2873 = vld [vmem:[#allocation2 + $0xa0] sm:$0xff]
        %v2874 = vld [vmem:[#allocation2 + $0xa8] sm:$0xff]
        %v2875 = vld [vmem:[#allocation2 + $0xb0] sm:$0xff]
        %v2876 = vld [vmem:[#allocation2 + $0xb8] sm:$0xff]
        %v2877 = vld [vmem:[#allocation2 + $0xc0] sm:$0xff]
        %v2878 = vld [vmem:[#allocation2 + $0xc8] sm:$0xff]
        %v2879 = vld [vmem:[#allocation2 + $0xd0] sm:$0xff]
        %v2880 = vld [vmem:[#allocation2 + $0xd8] sm:$0xff]
        %v2881 = vld [vmem:[#allocation2 + $0xf0] sm:$0xff]
        %v2882 = vld [vmem:[#allocation2 + $0xf8] sm:$0xff]
        %v2883 = vld [vmem:[#allocation2 + $0x100] sm:$0xff]
        %v2884 = vld [vmem:[#allocation2 + $0x108] sm:$0xff]
        %v2885 = vld [vmem:[#allocation2 + $0x110] sm:$0xff]
        %v2886 = vld [vmem:[#allocation2 + $0x118] sm:$0xff]
        %v2887 = vld [vmem:[#allocation2 + $0x120] sm:$0xff]
        %v2888 = vld [vmem:[#allocation2 + $0x128] sm:$0xff]
        %v2889 = vlaneseq
        %v2890 = vshrl.u32 %v2889, 7
        %v2891 = vsub.s32 0, %v2890
        %v2892 = vrot.slane %v2856, %v2891
        %v2893 = vmul.f32 %v2857, %v2892
        %v2894 = vmul.f32 %v2858, %v2892
        %v2895 = vmul.f32 %v2859, %v2892
        %v2896 = vmul.f32 %v2860, %v2892
        %v2897 = vmul.f32 %v2861, %v2892
        %v2898 = vmul.f32 %v2862, %v2892
        %v2899 = vmul.f32 %v2863, %v2892
        %v2900 = vmul.f32 %v2864, %v2892
        %v2901 = vmul.f32 %v2865, %v2892
        %v2902 = vmul.f32 %v2866, %v2892
        %v2903 = vmul.f32 %v2867, %v2892
        %v2904 = vmul.f32 %v2868, %v2892
        %v2905 = vmul.f32 %v2869, %v2892
        %v2906 = vmul.f32 %v2870, %v2892
        %v2907 = vmul.f32 %v2871, %v2892
        %v2908 = vmul.f32 %v2872, %v2892
        %v2909 = vmul.f32 %v2873, %v2892
        %v2910 = vmul.f32 %v2874, %v2892
        %v2911 = vmul.f32 %v2875, %v2892
        %v2912 = vmul.f32 %v2876, %v2892
        %v2913 = vmul.f32 %v2877, %v2892
        %v2914 = vmul.f32 %v2878, %v2892
        %v2915 = vmul.f32 %v2879, %v2892
        %v2916 = vmul.f32 %v2880, %v2892
        %v2917 = vmul.f32 %v2881, %v2892
        %v2918 = vmul.f32 %v2882, %v2892
        %v2919 = vmul.f32 %v2883, %v2892
        %v2920 = vmul.f32 %v2884, %v2892
        %v2921 = vmul.f32 %v2885, %v2892
        %v2922 = vmul.f32 %v2886, %v2892
        %v2923 = vmul.f32 %v2887, %v2892
        %v2924 = vmul.f32 %v2888, %v2892
        %v2925 = vld [vmem:[#allocation7 + $0x25] sm:$0x1]
        %v2926 = vld [vmem:[%s673] sm:$0xff]
        %v2927 = vld [vmem:[%s673 + $0x8] sm:$0xff]
        %v2928 = vld [vmem:[%s673 + $0x10] sm:$0xff]
        %v2929 = vld [vmem:[%s673 + $0x18] sm:$0xff]
        %v2930 = vld [vmem:[%s673 + $0x20] sm:$0xff]
        %v2931 = vld [vmem:[%s673 + $0x28] sm:$0xff]
        %v2932 = vld [vmem:[%s673 + $0x30] sm:$0xff]
        %v2933 = vld [vmem:[%s673 + $0x38] sm:$0xff]
        %v2934 = vld [vmem:[%s673 + $0x50] sm:$0xff]
        %v2935 = vld [vmem:[%s673 + $0x58] sm:$0xff]
        %v2936 = vld [vmem:[%s673 + $0x60] sm:$0xff]
        %v2937 = vld [vmem:[%s673 + $0x68] sm:$0xff]
        %v2938 = vld [vmem:[%s673 + $0x70] sm:$0xff]
        %v2939 = vld [vmem:[%s673 + $0x78] sm:$0xff]
        %v2940 = vld [vmem:[%s673 + $0x80] sm:$0xff]
        %v2941 = vld [vmem:[%s673 + $0x88] sm:$0xff]
        %v2942 = vld [vmem:[%s673 + $0xa0] sm:$0xff]
        %v2943 = vld [vmem:[%s673 + $0xa8] sm:$0xff]
        %v2944 = vld [vmem:[%s673 + $0xb0] sm:$0xff]
        %v2945 = vld [vmem:[%s673 + $0xb8] sm:$0xff]
        %v2946 = vld [vmem:[%s673 + $0xc0] sm:$0xff]
        %v2947 = vld [vmem:[%s673 + $0xc8] sm:$0xff]
        %v2948 = vld [vmem:[%s673 + $0xd0] sm:$0xff]
        %v2949 = vld [vmem:[%s673 + $0xd8] sm:$0xff]
        %v2950 = vld [vmem:[%s673 + $0xf0] sm:$0xff]
        %v2951 = vld [vmem:[%s673 + $0xf8] sm:$0xff]
        %v2952 = vld [vmem:[%s673 + $0x100] sm:$0xff]
        %v2953 = vld [vmem:[%s673 + $0x108] sm:$0xff]
        %v2954 = vld [vmem:[%s673 + $0x110] sm:$0xff]
        %v2955 = vld [vmem:[%s673 + $0x118] sm:$0xff]
        %v2956 = vld [vmem:[%s673 + $0x120] sm:$0xff]
        %v2957 = vld [vmem:[%s673 + $0x128] sm:$0xff]
        %v2958 = vlaneseq
        %v2959 = vshrl.u32 %v2958, 7
        %v2960 = vsub.s32 0, %v2959
        %v2961 = vrot.slane %v2925, %v2960
        %v2962 = vmul.f32 %v2926, %v2961
        %v2963 = vmul.f32 %v2927, %v2961
        %v2964 = vmul.f32 %v2928, %v2961
        %v2965 = vmul.f32 %v2929, %v2961
        %v2966 = vmul.f32 %v2930, %v2961
        %v2967 = vmul.f32 %v2931, %v2961
        %v2968 = vmul.f32 %v2932, %v2961
        %v2969 = vmul.f32 %v2933, %v2961
        %v2970 = vmul.f32 %v2934, %v2961
        %v2971 = vmul.f32 %v2935, %v2961
        %v2972 = vmul.f32 %v2936, %v2961
        %v2973 = vmul.f32 %v2937, %v2961
        %v2974 = vmul.f32 %v2938, %v2961
        %v2975 = vmul.f32 %v2939, %v2961
        %v2976 = vmul.f32 %v2940, %v2961
        %v2977 = vmul.f32 %v2941, %v2961
        %v2978 = vmul.f32 %v2942, %v2961
        %v2979 = vmul.f32 %v2943, %v2961
        %v2980 = vmul.f32 %v2944, %v2961
        %v2981 = vmul.f32 %v2945, %v2961
        %v2982 = vmul.f32 %v2946, %v2961
        %v2983 = vmul.f32 %v2947, %v2961
        %v2984 = vmul.f32 %v2948, %v2961
        %v2985 = vmul.f32 %v2949, %v2961
        %v2986 = vmul.f32 %v2950, %v2961
        %v2987 = vmul.f32 %v2951, %v2961
        %v2988 = vmul.f32 %v2952, %v2961
        %v2989 = vmul.f32 %v2953, %v2961
        %v2990 = vmul.f32 %v2954, %v2961
        %v2991 = vmul.f32 %v2955, %v2961
        %v2992 = vmul.f32 %v2956, %v2961
        %v2993 = vmul.f32 %v2957, %v2961
        %v2994 = vadd.f32 %v2893, %v2962
        %v2995 = vadd.f32 %v2894, %v2963
        %v2996 = vadd.f32 %v2895, %v2964
        %v2997 = vadd.f32 %v2896, %v2965
        %v2998 = vadd.f32 %v2897, %v2966
        %v2999 = vadd.f32 %v2898, %v2967
        %v3000 = vadd.f32 %v2899, %v2968
        %v3001 = vadd.f32 %v2900, %v2969
        %v3002 = vadd.f32 %v2901, %v2970
        %v3003 = vadd.f32 %v2902, %v2971
        %v3004 = vadd.f32 %v2903, %v2972
        %v3005 = vadd.f32 %v2904, %v2973
        %v3006 = vadd.f32 %v2905, %v2974
        %v3007 = vadd.f32 %v2906, %v2975
        %v3008 = vadd.f32 %v2907, %v2976
        %v3009 = vadd.f32 %v2908, %v2977
        %v3010 = vadd.f32 %v2909, %v2978
        %v3011 = vadd.f32 %v2910, %v2979
        %v3012 = vadd.f32 %v2911, %v2980
        %v3013 = vadd.f32 %v2912, %v2981
        %v3014 = vadd.f32 %v2913, %v2982
        %v3015 = vadd.f32 %v2914, %v2983
        %v3016 = vadd.f32 %v2915, %v2984
        %v3017 = vadd.f32 %v2916, %v2985
        %v3018 = vadd.f32 %v2917, %v2986
        %v3019 = vadd.f32 %v2918, %v2987
        %v3020 = vadd.f32 %v2919, %v2988
        %v3021 = vadd.f32 %v2920, %v2989
        %v3022 = vadd.f32 %v2921, %v2990
        %v3023 = vadd.f32 %v2922, %v2991
        %v3024 = vadd.f32 %v2923, %v2992
        %v3025 = vadd.f32 %v2924, %v2993
        %v3026 = vld [vmem:[#allocation7 + $0x26] sm:$0x1]
        %v3027 = vld [vmem:[%s775] sm:$0xff]
        %v3028 = vld [vmem:[%s775 + $0x8] sm:$0xff]
        %v3029 = vld [vmem:[%s775 + $0x10] sm:$0xff]
        %v3030 = vld [vmem:[%s775 + $0x18] sm:$0xff]
        %v3031 = vld [vmem:[%s775 + $0x20] sm:$0xff]
        %v3032 = vld [vmem:[%s775 + $0x28] sm:$0xff]
        %v3033 = vld [vmem:[%s775 + $0x30] sm:$0xff]
        %v3034 = vld [vmem:[%s775 + $0x38] sm:$0xff]
        %v3035 = vld [vmem:[%s775 + $0x50] sm:$0xff]
        %v3036 = vld [vmem:[%s775 + $0x58] sm:$0xff]
        %v3037 = vld [vmem:[%s775 + $0x60] sm:$0xff]
        %v3038 = vld [vmem:[%s775 + $0x68] sm:$0xff]
        %v3039 = vld [vmem:[%s775 + $0x70] sm:$0xff]
        %v3040 = vld [vmem:[%s775 + $0x78] sm:$0xff]
        %v3041 = vld [vmem:[%s775 + $0x80] sm:$0xff]
        %v3042 = vld [vmem:[%s775 + $0x88] sm:$0xff]
        %v3043 = vld [vmem:[%s775 + $0xa0] sm:$0xff]
        %v3044 = vld [vmem:[%s775 + $0xa8] sm:$0xff]
        %v3045 = vld [vmem:[%s775 + $0xb0] sm:$0xff]
        %v3046 = vld [vmem:[%s775 + $0xb8] sm:$0xff]
        %v3047 = vld [vmem:[%s775 + $0xc0] sm:$0xff]
        %v3048 = vld [vmem:[%s775 + $0xc8] sm:$0xff]
        %v3049 = vld [vmem:[%s775 + $0xd0] sm:$0xff]
        %v3050 = vld [vmem:[%s775 + $0xd8] sm:$0xff]
        %v3051 = vld [vmem:[%s775 + $0xf0] sm:$0xff]
        %v3052 = vld [vmem:[%s775 + $0xf8] sm:$0xff]
        %v3053 = vld [vmem:[%s775 + $0x100] sm:$0xff]
        %v3054 = vld [vmem:[%s775 + $0x108] sm:$0xff]
        %v3055 = vld [vmem:[%s775 + $0x110] sm:$0xff]
        %v3056 = vld [vmem:[%s775 + $0x118] sm:$0xff]
        %v3057 = vld [vmem:[%s775 + $0x120] sm:$0xff]
        %v3058 = vld [vmem:[%s775 + $0x128] sm:$0xff]
        %v3059 = vlaneseq
        %v3060 = vshrl.u32 %v3059, 7
        %v3061 = vsub.s32 0, %v3060
        %v3062 = vrot.slane %v3026, %v3061
        %v3063 = vmul.f32 %v3027, %v3062
        %v3064 = vmul.f32 %v3028, %v3062
        %v3065 = vmul.f32 %v3029, %v3062
        %v3066 = vmul.f32 %v3030, %v3062
        %v3067 = vmul.f32 %v3031, %v3062
        %v3068 = vmul.f32 %v3032, %v3062
        %v3069 = vmul.f32 %v3033, %v3062
        %v3070 = vmul.f32 %v3034, %v3062
        %v3071 = vmul.f32 %v3035, %v3062
        %v3072 = vmul.f32 %v3036, %v3062
        %v3073 = vmul.f32 %v3037, %v3062
        %v3074 = vmul.f32 %v3038, %v3062
        %v3075 = vmul.f32 %v3039, %v3062
        %v3076 = vmul.f32 %v3040, %v3062
        %v3077 = vmul.f32 %v3041, %v3062
        %v3078 = vmul.f32 %v3042, %v3062
        %v3079 = vmul.f32 %v3043, %v3062
        %v3080 = vmul.f32 %v3044, %v3062
        %v3081 = vmul.f32 %v3045, %v3062
        %v3082 = vmul.f32 %v3046, %v3062
        %v3083 = vmul.f32 %v3047, %v3062
        %v3084 = vmul.f32 %v3048, %v3062
        %v3085 = vmul.f32 %v3049, %v3062
        %v3086 = vmul.f32 %v3050, %v3062
        %v3087 = vmul.f32 %v3051, %v3062
        %v3088 = vmul.f32 %v3052, %v3062
        %v3089 = vmul.f32 %v3053, %v3062
        %v3090 = vmul.f32 %v3054, %v3062
        %v3091 = vmul.f32 %v3055, %v3062
        %v3092 = vmul.f32 %v3056, %v3062
        %v3093 = vmul.f32 %v3057, %v3062
        %v3094 = vmul.f32 %v3058, %v3062
        %v3095 = vadd.f32 %v2994, %v3063
        %v3096 = vadd.f32 %v2995, %v3064
        %v3097 = vadd.f32 %v2996, %v3065
        %v3098 = vadd.f32 %v2997, %v3066
        %v3099 = vadd.f32 %v2998, %v3067
        %v3100 = vadd.f32 %v2999, %v3068
        %v3101 = vadd.f32 %v3000, %v3069
        %v3102 = vadd.f32 %v3001, %v3070
        %v3103 = vadd.f32 %v3002, %v3071
        %v3104 = vadd.f32 %v3003, %v3072
        %v3105 = vadd.f32 %v3004, %v3073
        %v3106 = vadd.f32 %v3005, %v3074
        %v3107 = vadd.f32 %v3006, %v3075
        %v3108 = vadd.f32 %v3007, %v3076
        %v3109 = vadd.f32 %v3008, %v3077
        %v3110 = vadd.f32 %v3009, %v3078
        %v3111 = vadd.f32 %v3010, %v3079
        %v3112 = vadd.f32 %v3011, %v3080
        %v3113 = vadd.f32 %v3012, %v3081
        %v3114 = vadd.f32 %v3013, %v3082
        %v3115 = vadd.f32 %v3014, %v3083
        %v3116 = vadd.f32 %v3015, %v3084
        %v3117 = vadd.f32 %v3016, %v3085
        %v3118 = vadd.f32 %v3017, %v3086
        %v3119 = vadd.f32 %v3018, %v3087
        %v3120 = vadd.f32 %v3019, %v3088
        %v3121 = vadd.f32 %v3020, %v3089
        %v3122 = vadd.f32 %v3021, %v3090
        %v3123 = vadd.f32 %v3022, %v3091
        %v3124 = vadd.f32 %v3023, %v3092
        %v3125 = vadd.f32 %v3024, %v3093
        %v3126 = vadd.f32 %v3025, %v3094
        %v3127 = vld [vmem:[#allocation7 + $0x27] sm:$0x1]
        %v3128 = vld [vmem:[%s505] sm:$0xff]
        %v3129 = vld [vmem:[%s505 + $0x8] sm:$0xff]
        %v3130 = vld [vmem:[%s505 + $0x10] sm:$0xff]
        %v3131 = vld [vmem:[%s505 + $0x18] sm:$0xff]
        %v3132 = vld [vmem:[%s505 + $0x20] sm:$0xff]
        %v3133 = vld [vmem:[%s505 + $0x28] sm:$0xff]
        %v3134 = vld [vmem:[%s505 + $0x30] sm:$0xff]
        %v3135 = vld [vmem:[%s505 + $0x38] sm:$0xff]
        %v3136 = vld [vmem:[%s505 + $0x50] sm:$0xff]
        %v3137 = vld [vmem:[%s505 + $0x58] sm:$0xff]
        %v3138 = vld [vmem:[%s505 + $0x60] sm:$0xff]
        %v3139 = vld [vmem:[%s505 + $0x68] sm:$0xff]
        %v3140 = vld [vmem:[%s505 + $0x70] sm:$0xff]
        %v3141 = vld [vmem:[%s505 + $0x78] sm:$0xff]
        %v3142 = vld [vmem:[%s505 + $0x80] sm:$0xff]
        %v3143 = vld [vmem:[%s505 + $0x88] sm:$0xff]
        %v3144 = vld [vmem:[%s505 + $0xa0] sm:$0xff]
        %v3145 = vld [vmem:[%s505 + $0xa8] sm:$0xff]
        %v3146 = vld [vmem:[%s505 + $0xb0] sm:$0xff]
        %v3147 = vld [vmem:[%s505 + $0xb8] sm:$0xff]
        %v3148 = vld [vmem:[%s505 + $0xc0] sm:$0xff]
        %v3149 = vld [vmem:[%s505 + $0xc8] sm:$0xff]
        %v3150 = vld [vmem:[%s505 + $0xd0] sm:$0xff]
        %v3151 = vld [vmem:[%s505 + $0xd8] sm:$0xff]
        %v3152 = vld [vmem:[%s505 + $0xf0] sm:$0xff]
        %v3153 = vld [vmem:[%s505 + $0xf8] sm:$0xff]
        %v3154 = vld [vmem:[%s505 + $0x100] sm:$0xff]
        %v3155 = vld [vmem:[%s505 + $0x108] sm:$0xff]
        %v3156 = vld [vmem:[%s505 + $0x110] sm:$0xff]
        %v3157 = vld [vmem:[%s505 + $0x118] sm:$0xff]
        %v3158 = vld [vmem:[%s505 + $0x120] sm:$0xff]
        %v3159 = vld [vmem:[%s505 + $0x128] sm:$0xff]
        %v3160 = vlaneseq
        %v3161 = vshrl.u32 %v3160, 7
        %v3162 = vsub.s32 0, %v3161
        %v3163 = vrot.slane %v3127, %v3162
        %v3164 = vmul.f32 %v3128, %v3163
        %v3165 = vmul.f32 %v3129, %v3163
        %v3166 = vmul.f32 %v3130, %v3163
        %v3167 = vmul.f32 %v3131, %v3163
        %v3168 = vmul.f32 %v3132, %v3163
        %v3169 = vmul.f32 %v3133, %v3163
        %v3170 = vmul.f32 %v3134, %v3163
        %v3171 = vmul.f32 %v3135, %v3163
        %v3172 = vmul.f32 %v3136, %v3163
        %v3173 = vmul.f32 %v3137, %v3163
        %v3174 = vmul.f32 %v3138, %v3163
        %v3175 = vmul.f32 %v3139, %v3163
        %v3176 = vmul.f32 %v3140, %v3163
        %v3177 = vmul.f32 %v3141, %v3163
        %v3178 = vmul.f32 %v3142, %v3163
        %v3179 = vmul.f32 %v3143, %v3163
        %v3180 = vmul.f32 %v3144, %v3163
        %v3181 = vmul.f32 %v3145, %v3163
        %v3182 = vmul.f32 %v3146, %v3163
        %v3183 = vmul.f32 %v3147, %v3163
        %v3184 = vmul.f32 %v3148, %v3163
        %v3185 = vmul.f32 %v3149, %v3163
        %v3186 = vmul.f32 %v3150, %v3163
        %v3187 = vmul.f32 %v3151, %v3163
        %v3188 = vmul.f32 %v3152, %v3163
        %v3189 = vmul.f32 %v3153, %v3163
        %v3190 = vmul.f32 %v3154, %v3163
        %v3191 = vmul.f32 %v3155, %v3163
        %v3192 = vmul.f32 %v3156, %v3163
        %v3193 = vmul.f32 %v3157, %v3163
        %v3194 = vmul.f32 %v3158, %v3163
        %v3195 = vmul.f32 %v3159, %v3163
        %v3196 = vadd.f32 %v3095, %v3164
        %v3197 = vadd.f32 %v3096, %v3165
        %v3198 = vadd.f32 %v3097, %v3166
        %v3199 = vadd.f32 %v3098, %v3167
        %v3200 = vadd.f32 %v3099, %v3168
        %v3201 = vadd.f32 %v3100, %v3169
        %v3202 = vadd.f32 %v3101, %v3170
        %v3203 = vadd.f32 %v3102, %v3171
        %v3204 = vadd.f32 %v3103, %v3172
        %v3205 = vadd.f32 %v3104, %v3173
        %v3206 = vadd.f32 %v3105, %v3174
        %v3207 = vadd.f32 %v3106, %v3175
        %v3208 = vadd.f32 %v3107, %v3176
        %v3209 = vadd.f32 %v3108, %v3177
        %v3210 = vadd.f32 %v3109, %v3178
        %v3211 = vadd.f32 %v3110, %v3179
        %v3212 = vadd.f32 %v3111, %v3180
        %v3213 = vadd.f32 %v3112, %v3181
        %v3214 = vadd.f32 %v3113, %v3182
        %v3215 = vadd.f32 %v3114, %v3183
        %v3216 = vadd.f32 %v3115, %v3184
        %v3217 = vadd.f32 %v3116, %v3185
        %v3218 = vadd.f32 %v3117, %v3186
        %v3219 = vadd.f32 %v3118, %v3187
        %v3220 = vadd.f32 %v3119, %v3188
        %v3221 = vadd.f32 %v3120, %v3189
        %v3222 = vadd.f32 %v3121, %v3190
        %v3223 = vadd.f32 %v3122, %v3191
        %v3224 = vadd.f32 %v3123, %v3192
        %v3225 = vadd.f32 %v3124, %v3193
        %v3226 = vadd.f32 %v3125, %v3194
        %v3227 = vadd.f32 %v3126, %v3195
        %v3228 = vld [vmem:[#allocation7 + $0x28] sm:$0x1]
        %v3229 = vld [vmem:[%s440] sm:$0xff]
        %v3230 = vld [vmem:[%s440 + $0x8] sm:$0xff]
        %v3231 = vld [vmem:[%s440 + $0x10] sm:$0xff]
        %v3232 = vld [vmem:[%s440 + $0x18] sm:$0xff]
        %v3233 = vld [vmem:[%s440 + $0x20] sm:$0xff]
        %v3234 = vld [vmem:[%s440 + $0x28] sm:$0xff]
        %v3235 = vld [vmem:[%s440 + $0x30] sm:$0xff]
        %v3236 = vld [vmem:[%s440 + $0x38] sm:$0xff]
        %v3237 = vld [vmem:[%s440 + $0x50] sm:$0xff]
        %v3238 = vld [vmem:[%s440 + $0x58] sm:$0xff]
        %v3239 = vld [vmem:[%s440 + $0x60] sm:$0xff]
        %v3240 = vld [vmem:[%s440 + $0x68] sm:$0xff]
        %v3241 = vld [vmem:[%s440 + $0x70] sm:$0xff]
        %v3242 = vld [vmem:[%s440 + $0x78] sm:$0xff]
        %v3243 = vld [vmem:[%s440 + $0x80] sm:$0xff]
        %v3244 = vld [vmem:[%s440 + $0x88] sm:$0xff]
        %v3245 = vld [vmem:[%s440 + $0xa0] sm:$0xff]
        %v3246 = vld [vmem:[%s440 + $0xa8] sm:$0xff]
        %v3247 = vld [vmem:[%s440 + $0xb0] sm:$0xff]
        %v3248 = vld [vmem:[%s440 + $0xb8] sm:$0xff]
        %v3249 = vld [vmem:[%s440 + $0xc0] sm:$0xff]
        %v3250 = vld [vmem:[%s440 + $0xc8] sm:$0xff]
        %v3251 = vld [vmem:[%s440 + $0xd0] sm:$0xff]
        %v3252 = vld [vmem:[%s440 + $0xd8] sm:$0xff]
        %v3253 = vld [vmem:[%s440 + $0xf0] sm:$0xff]
        %v3254 = vld [vmem:[%s440 + $0xf8] sm:$0xff]
        %v3255 = vld [vmem:[%s440 + $0x100] sm:$0xff]
        %v3256 = vld [vmem:[%s440 + $0x108] sm:$0xff]
        %v3257 = vld [vmem:[%s440 + $0x110] sm:$0xff]
        %v3258 = vld [vmem:[%s440 + $0x118] sm:$0xff]
        %v3259 = vld [vmem:[%s440 + $0x120] sm:$0xff]
        %v3260 = vld [vmem:[%s440 + $0x128] sm:$0xff]
        %v3261 = vlaneseq
        %v3262 = vshrl.u32 %v3261, 7
        %v3263 = vsub.s32 0, %v3262
        %v3264 = vrot.slane %v3228, %v3263
        %v3265 = vmul.f32 %v3229, %v3264
        %v3266 = vmul.f32 %v3230, %v3264
        %v3267 = vmul.f32 %v3231, %v3264
        %v3268 = vmul.f32 %v3232, %v3264
        %v3269 = vmul.f32 %v3233, %v3264
        %v3270 = vmul.f32 %v3234, %v3264
        %v3271 = vmul.f32 %v3235, %v3264
        %v3272 = vmul.f32 %v3236, %v3264
        %v3273 = vmul.f32 %v3237, %v3264
        %v3274 = vmul.f32 %v3238, %v3264
        %v3275 = vmul.f32 %v3239, %v3264
        %v3276 = vmul.f32 %v3240, %v3264
        %v3277 = vmul.f32 %v3241, %v3264
        %v3278 = vmul.f32 %v3242, %v3264
        %v3279 = vmul.f32 %v3243, %v3264
        %v3280 = vmul.f32 %v3244, %v3264
        %v3281 = vmul.f32 %v3245, %v3264
        %v3282 = vmul.f32 %v3246, %v3264
        %v3283 = vmul.f32 %v3247, %v3264
        %v3284 = vmul.f32 %v3248, %v3264
        %v3285 = vmul.f32 %v3249, %v3264
        %v3286 = vmul.f32 %v3250, %v3264
        %v3287 = vmul.f32 %v3251, %v3264
        %v3288 = vmul.f32 %v3252, %v3264
        %v3289 = vmul.f32 %v3253, %v3264
        %v3290 = vmul.f32 %v3254, %v3264
        %v3291 = vmul.f32 %v3255, %v3264
        %v3292 = vmul.f32 %v3256, %v3264
        %v3293 = vmul.f32 %v3257, %v3264
        %v3294 = vmul.f32 %v3258, %v3264
        %v3295 = vmul.f32 %v3259, %v3264
        %v3296 = vmul.f32 %v3260, %v3264
        %v3297 = vadd.f32 %v3196, %v3265
        %v3298 = vadd.f32 %v3197, %v3266
        %v3299 = vadd.f32 %v3198, %v3267
        %v3300 = vadd.f32 %v3199, %v3268
        %v3301 = vadd.f32 %v3200, %v3269
        %v3302 = vadd.f32 %v3201, %v3270
        %v3303 = vadd.f32 %v3202, %v3271
        %v3304 = vadd.f32 %v3203, %v3272
        %v3305 = vadd.f32 %v3204, %v3273
        %v3306 = vadd.f32 %v3205, %v3274
        %v3307 = vadd.f32 %v3206, %v3275
        %v3308 = vadd.f32 %v3207, %v3276
        %v3309 = vadd.f32 %v3208, %v3277
        %v3310 = vadd.f32 %v3209, %v3278
        %v3311 = vadd.f32 %v3210, %v3279
        %v3312 = vadd.f32 %v3211, %v3280
        %v3313 = vadd.f32 %v3212, %v3281
        %v3314 = vadd.f32 %v3213, %v3282
        %v3315 = vadd.f32 %v3214, %v3283
        %v3316 = vadd.f32 %v3215, %v3284
        %v3317 = vadd.f32 %v3216, %v3285
        %v3318 = vadd.f32 %v3217, %v3286
        %v3319 = vadd.f32 %v3218, %v3287
        %v3320 = vadd.f32 %v3219, %v3288
        %v3321 = vadd.f32 %v3220, %v3289
        %v3322 = vadd.f32 %v3221, %v3290
        %v3323 = vadd.f32 %v3222, %v3291
        %v3324 = vadd.f32 %v3223, %v3292
        %v3325 = vadd.f32 %v3224, %v3293
        %v3326 = vadd.f32 %v3225, %v3294
        %v3327 = vadd.f32 %v3226, %v3295
        %v3328 = vadd.f32 %v3227, %v3296
        %v3329 = vld [vmem:[#allocation7 + $0x29] sm:$0x1]
        %v3330 = vld [vmem:[%s570] sm:$0xff]
        %v3331 = vld [vmem:[%s570 + $0x8] sm:$0xff]
        %v3332 = vld [vmem:[%s570 + $0x10] sm:$0xff]
        %v3333 = vld [vmem:[%s570 + $0x18] sm:$0xff]
        %v3334 = vld [vmem:[%s570 + $0x20] sm:$0xff]
        %v3335 = vld [vmem:[%s570 + $0x28] sm:$0xff]
        %v3336 = vld [vmem:[%s570 + $0x30] sm:$0xff]
        %v3337 = vld [vmem:[%s570 + $0x38] sm:$0xff]
        %v3338 = vld [vmem:[%s570 + $0x50] sm:$0xff]
        %v3339 = vld [vmem:[%s570 + $0x58] sm:$0xff]
        %v3340 = vld [vmem:[%s570 + $0x60] sm:$0xff]
        %v3341 = vld [vmem:[%s570 + $0x68] sm:$0xff]
        %v3342 = vld [vmem:[%s570 + $0x70] sm:$0xff]
        %v3343 = vld [vmem:[%s570 + $0x78] sm:$0xff]
        %v3344 = vld [vmem:[%s570 + $0x80] sm:$0xff]
        %v3345 = vld [vmem:[%s570 + $0x88] sm:$0xff]
        %v3346 = vld [vmem:[%s570 + $0xa0] sm:$0xff]
        %v3347 = vld [vmem:[%s570 + $0xa8] sm:$0xff]
        %v3348 = vld [vmem:[%s570 + $0xb0] sm:$0xff]
        %v3349 = vld [vmem:[%s570 + $0xb8] sm:$0xff]
        %v3350 = vld [vmem:[%s570 + $0xc0] sm:$0xff]
        %v3351 = vld [vmem:[%s570 + $0xc8] sm:$0xff]
        %v3352 = vld [vmem:[%s570 + $0xd0] sm:$0xff]
        %v3353 = vld [vmem:[%s570 + $0xd8] sm:$0xff]
        %v3354 = vld [vmem:[%s570 + $0xf0] sm:$0xff]
        %v3355 = vld [vmem:[%s570 + $0xf8] sm:$0xff]
        %v3356 = vld [vmem:[%s570 + $0x100] sm:$0xff]
        %v3357 = vld [vmem:[%s570 + $0x108] sm:$0xff]
        %v3358 = vld [vmem:[%s570 + $0x110] sm:$0xff]
        %v3359 = vld [vmem:[%s570 + $0x118] sm:$0xff]
        %v3360 = vld [vmem:[%s570 + $0x120] sm:$0xff]
        %v3361 = vld [vmem:[%s570 + $0x128] sm:$0xff]
        %v3362 = vlaneseq
        %v3363 = vshrl.u32 %v3362, 7
        %v3364 = vsub.s32 0, %v3363
        %v3365 = vrot.slane %v3329, %v3364
        %v3366 = vmul.f32 %v3330, %v3365
        %v3367 = vmul.f32 %v3331, %v3365
        %v3368 = vmul.f32 %v3332, %v3365
        %v3369 = vmul.f32 %v3333, %v3365
        %v3370 = vmul.f32 %v3334, %v3365
        %v3371 = vmul.f32 %v3335, %v3365
        %v3372 = vmul.f32 %v3336, %v3365
        %v3373 = vmul.f32 %v3337, %v3365
        %v3374 = vmul.f32 %v3338, %v3365
        %v3375 = vmul.f32 %v3339, %v3365
        %v3376 = vmul.f32 %v3340, %v3365
        %v3377 = vmul.f32 %v3341, %v3365
        %v3378 = vmul.f32 %v3342, %v3365
        %v3379 = vmul.f32 %v3343, %v3365
        %v3380 = vmul.f32 %v3344, %v3365
        %v3381 = vmul.f32 %v3345, %v3365
        %v3382 = vmul.f32 %v3346, %v3365
        %v3383 = vmul.f32 %v3347, %v3365
        %v3384 = vmul.f32 %v3348, %v3365
        %v3385 = vmul.f32 %v3349, %v3365
        %v3386 = vmul.f32 %v3350, %v3365
        %v3387 = vmul.f32 %v3351, %v3365
        %v3388 = vmul.f32 %v3352, %v3365
        %v3389 = vmul.f32 %v3353, %v3365
        %v3390 = vmul.f32 %v3354, %v3365
        %v3391 = vmul.f32 %v3355, %v3365
        %v3392 = vmul.f32 %v3356, %v3365
        %v3393 = vmul.f32 %v3357, %v3365
        %v3394 = vmul.f32 %v3358, %v3365
        %v3395 = vmul.f32 %v3359, %v3365
        %v3396 = vmul.f32 %v3360, %v3365
        %v3397 = vmul.f32 %v3361, %v3365
        %v3398 = vadd.f32 %v3297, %v3366
        %v3399 = vadd.f32 %v3298, %v3367
        %v3400 = vadd.f32 %v3299, %v3368
        %v3401 = vadd.f32 %v3300, %v3369
        %v3402 = vadd.f32 %v3301, %v3370
        %v3403 = vadd.f32 %v3302, %v3371
        %v3404 = vadd.f32 %v3303, %v3372
        %v3405 = vadd.f32 %v3304, %v3373
        %v3406 = vadd.f32 %v3305, %v3374
        %v3407 = vadd.f32 %v3306, %v3375
        %v3408 = vadd.f32 %v3307, %v3376
        %v3409 = vadd.f32 %v3308, %v3377
        %v3410 = vadd.f32 %v3309, %v3378
        %v3411 = vadd.f32 %v3310, %v3379
        %v3412 = vadd.f32 %v3311, %v3380
        %v3413 = vadd.f32 %v3312, %v3381
        %v3414 = vadd.f32 %v3313, %v3382
        %v3415 = vadd.f32 %v3314, %v3383
        %v3416 = vadd.f32 %v3315, %v3384
        %v3417 = vadd.f32 %v3316, %v3385
        %v3418 = vadd.f32 %v3317, %v3386
        %v3419 = vadd.f32 %v3318, %v3387
        %v3420 = vadd.f32 %v3319, %v3388
        %v3421 = vadd.f32 %v3320, %v3389
        %v3422 = vadd.f32 %v3321, %v3390
        %v3423 = vadd.f32 %v3322, %v3391
        %v3424 = vadd.f32 %v3323, %v3392
        %v3425 = vadd.f32 %v3324, %v3393
        %v3426 = vadd.f32 %v3325, %v3394
        %v3427 = vadd.f32 %v3326, %v3395
        %v3428 = vadd.f32 %v3327, %v3396
        %v3429 = vadd.f32 %v3328, %v3397
        %v3430 = vld [vmem:[#allocation7 + $0x2a] sm:$0x1]
        %v3431 = vld [vmem:[%s1180] sm:$0xff]
        %v3432 = vld [vmem:[%s1180 + $0x8] sm:$0xff]
        %v3433 = vld [vmem:[%s1180 + $0x10] sm:$0xff]
        %v3434 = vld [vmem:[%s1180 + $0x18] sm:$0xff]
        %v3435 = vld [vmem:[%s1180 + $0x20] sm:$0xff]
        %v3436 = vld [vmem:[%s1180 + $0x28] sm:$0xff]
        %v3437 = vld [vmem:[%s1180 + $0x30] sm:$0xff]
        %v3438 = vld [vmem:[%s1180 + $0x38] sm:$0xff]
        %v3439 = vld [vmem:[%s1180 + $0x50] sm:$0xff]
        %v3440 = vld [vmem:[%s1180 + $0x58] sm:$0xff]
        %v3441 = vld [vmem:[%s1180 + $0x60] sm:$0xff]
        %v3442 = vld [vmem:[%s1180 + $0x68] sm:$0xff]
        %v3443 = vld [vmem:[%s1180 + $0x70] sm:$0xff]
        %v3444 = vld [vmem:[%s1180 + $0x78] sm:$0xff]
        %v3445 = vld [vmem:[%s1180 + $0x80] sm:$0xff]
        %v3446 = vld [vmem:[%s1180 + $0x88] sm:$0xff]
        %v3447 = vld [vmem:[%s1180 + $0xa0] sm:$0xff]
        %v3448 = vld [vmem:[%s1180 + $0xa8] sm:$0xff]
        %v3449 = vld [vmem:[%s1180 + $0xb0] sm:$0xff]
        %v3450 = vld [vmem:[%s1180 + $0xb8] sm:$0xff]
        %v3451 = vld [vmem:[%s1180 + $0xc0] sm:$0xff]
        %v3452 = vld [vmem:[%s1180 + $0xc8] sm:$0xff]
        %v3453 = vld [vmem:[%s1180 + $0xd0] sm:$0xff]
        %v3454 = vld [vmem:[%s1180 + $0xd8] sm:$0xff]
        %v3455 = vld [vmem:[%s1180 + $0xf0] sm:$0xff]
        %v3456 = vld [vmem:[%s1180 + $0xf8] sm:$0xff]
        %v3457 = vld [vmem:[%s1180 + $0x100] sm:$0xff]
        %v3458 = vld [vmem:[%s1180 + $0x108] sm:$0xff]
        %v3459 = vld [vmem:[%s1180 + $0x110] sm:$0xff]
        %v3460 = vld [vmem:[%s1180 + $0x118] sm:$0xff]
        %v3461 = vld [vmem:[%s1180 + $0x120] sm:$0xff]
        %v3462 = vld [vmem:[%s1180 + $0x128] sm:$0xff]
        %v3463 = vlaneseq
        %v3464 = vshrl.u32 %v3463, 7
        %v3465 = vsub.s32 0, %v3464
        %v3466 = vrot.slane %v3430, %v3465
        %v3467 = vmul.f32 %v3431, %v3466
        %v3468 = vmul.f32 %v3432, %v3466
        %v3469 = vmul.f32 %v3433, %v3466
        %v3470 = vmul.f32 %v3434, %v3466
        %v3471 = vmul.f32 %v3435, %v3466
        %v3472 = vmul.f32 %v3436, %v3466
        %v3473 = vmul.f32 %v3437, %v3466
        %v3474 = vmul.f32 %v3438, %v3466
        %v3475 = vmul.f32 %v3439, %v3466
        %v3476 = vmul.f32 %v3440, %v3466
        %v3477 = vmul.f32 %v3441, %v3466
        %v3478 = vmul.f32 %v3442, %v3466
        %v3479 = vmul.f32 %v3443, %v3466
        %v3480 = vmul.f32 %v3444, %v3466
        %v3481 = vmul.f32 %v3445, %v3466
        %v3482 = vmul.f32 %v3446, %v3466
        %v3483 = vmul.f32 %v3447, %v3466
        %v3484 = vmul.f32 %v3448, %v3466
        %v3485 = vmul.f32 %v3449, %v3466
        %v3486 = vmul.f32 %v3450, %v3466
        %v3487 = vmul.f32 %v3451, %v3466
        %v3488 = vmul.f32 %v3452, %v3466
        %v3489 = vmul.f32 %v3453, %v3466
        %v3490 = vmul.f32 %v3454, %v3466
        %v3491 = vmul.f32 %v3455, %v3466
        %v3492 = vmul.f32 %v3456, %v3466
        %v3493 = vmul.f32 %v3457, %v3466
        %v3494 = vmul.f32 %v3458, %v3466
        %v3495 = vmul.f32 %v3459, %v3466
        %v3496 = vmul.f32 %v3460, %v3466
        %v3497 = vmul.f32 %v3461, %v3466
        %v3498 = vmul.f32 %v3462, %v3466
        %v3499 = vadd.f32 %v3398, %v3467
        %v3500 = vadd.f32 %v3399, %v3468
        %v3501 = vadd.f32 %v3400, %v3469
        %v3502 = vadd.f32 %v3401, %v3470
        %v3503 = vadd.f32 %v3402, %v3471
        %v3504 = vadd.f32 %v3403, %v3472
        %v3505 = vadd.f32 %v3404, %v3473
        %v3506 = vadd.f32 %v3405, %v3474
        %v3507 = vadd.f32 %v3406, %v3475
        %v3508 = vadd.f32 %v3407, %v3476
        %v3509 = vadd.f32 %v3408, %v3477
        %v3510 = vadd.f32 %v3409, %v3478
        %v3511 = vadd.f32 %v3410, %v3479
        %v3512 = vadd.f32 %v3411, %v3480
        %v3513 = vadd.f32 %v3412, %v3481
        %v3514 = vadd.f32 %v3413, %v3482
        %v3515 = vadd.f32 %v3414, %v3483
        %v3516 = vadd.f32 %v3415, %v3484
        %v3517 = vadd.f32 %v3416, %v3485
        %v3518 = vadd.f32 %v3417, %v3486
        %v3519 = vadd.f32 %v3418, %v3487
        %v3520 = vadd.f32 %v3419, %v3488
        %v3521 = vadd.f32 %v3420, %v3489
        %v3522 = vadd.f32 %v3421, %v3490
        %v3523 = vadd.f32 %v3422, %v3491
        %v3524 = vadd.f32 %v3423, %v3492
        %v3525 = vadd.f32 %v3424, %v3493
        %v3526 = vadd.f32 %v3425, %v3494
        %v3527 = vadd.f32 %v3426, %v3495
        %v3528 = vadd.f32 %v3427, %v3496
        %v3529 = vadd.f32 %v3428, %v3497
        %v3530 = vadd.f32 %v3429, %v3498
        %v3531 = vld [vmem:[#allocation7 + $0x2b] sm:$0x1]
        %v3532 = vld [vmem:[%s1282] sm:$0xff]
        %v3533 = vld [vmem:[%s1282 + $0x8] sm:$0xff]
        %v3534 = vld [vmem:[%s1282 + $0x10] sm:$0xff]
        %v3535 = vld [vmem:[%s1282 + $0x18] sm:$0xff]
        %v3536 = vld [vmem:[%s1282 + $0x20] sm:$0xff]
        %v3537 = vld [vmem:[%s1282 + $0x28] sm:$0xff]
        %v3538 = vld [vmem:[%s1282 + $0x30] sm:$0xff]
        %v3539 = vld [vmem:[%s1282 + $0x38] sm:$0xff]
        %v3540 = vld [vmem:[%s1282 + $0x50] sm:$0xff]
        %v3541 = vld [vmem:[%s1282 + $0x58] sm:$0xff]
        %v3542 = vld [vmem:[%s1282 + $0x60] sm:$0xff]
        %v3543 = vld [vmem:[%s1282 + $0x68] sm:$0xff]
        %v3544 = vld [vmem:[%s1282 + $0x70] sm:$0xff]
        %v3545 = vld [vmem:[%s1282 + $0x78] sm:$0xff]
        %v3546 = vld [vmem:[%s1282 + $0x80] sm:$0xff]
        %v3547 = vld [vmem:[%s1282 + $0x88] sm:$0xff]
        %v3548 = vld [vmem:[%s1282 + $0xa0] sm:$0xff]
        %v3549 = vld [vmem:[%s1282 + $0xa8] sm:$0xff]
        %v3550 = vld [vmem:[%s1282 + $0xb0] sm:$0xff]
        %v3551 = vld [vmem:[%s1282 + $0xb8] sm:$0xff]
        %v3552 = vld [vmem:[%s1282 + $0xc0] sm:$0xff]
        %v3553 = vld [vmem:[%s1282 + $0xc8] sm:$0xff]
        %v3554 = vld [vmem:[%s1282 + $0xd0] sm:$0xff]
        %v3555 = vld [vmem:[%s1282 + $0xd8] sm:$0xff]
        %v3556 = vld [vmem:[%s1282 + $0xf0] sm:$0xff]
        %v3557 = vld [vmem:[%s1282 + $0xf8] sm:$0xff]
        %v3558 = vld [vmem:[%s1282 + $0x100] sm:$0xff]
        %v3559 = vld [vmem:[%s1282 + $0x108] sm:$0xff]
        %v3560 = vld [vmem:[%s1282 + $0x110] sm:$0xff]
        %v3561 = vld [vmem:[%s1282 + $0x118] sm:$0xff]
        %v3562 = vld [vmem:[%s1282 + $0x120] sm:$0xff]
        %v3563 = vld [vmem:[%s1282 + $0x128] sm:$0xff]
        %v3564 = vlaneseq
        %v3565 = vshrl.u32 %v3564, 7
        %v3566 = vsub.s32 0, %v3565
        %v3567 = vrot.slane %v3531, %v3566
        %v3568 = vmul.f32 %v3532, %v3567
        %v3569 = vmul.f32 %v3533, %v3567
        %v3570 = vmul.f32 %v3534, %v3567
        %v3571 = vmul.f32 %v3535, %v3567
        %v3572 = vmul.f32 %v3536, %v3567
        %v3573 = vmul.f32 %v3537, %v3567
        %v3574 = vmul.f32 %v3538, %v3567
        %v3575 = vmul.f32 %v3539, %v3567
        %v3576 = vmul.f32 %v3540, %v3567
        %v3577 = vmul.f32 %v3541, %v3567
        %v3578 = vmul.f32 %v3542, %v3567
        %v3579 = vmul.f32 %v3543, %v3567
        %v3580 = vmul.f32 %v3544, %v3567
        %v3581 = vmul.f32 %v3545, %v3567
        %v3582 = vmul.f32 %v3546, %v3567
        %v3583 = vmul.f32 %v3547, %v3567
        %v3584 = vmul.f32 %v3548, %v3567
        %v3585 = vmul.f32 %v3549, %v3567
        %v3586 = vmul.f32 %v3550, %v3567
        %v3587 = vmul.f32 %v3551, %v3567
        %v3588 = vmul.f32 %v3552, %v3567
        %v3589 = vmul.f32 %v3553, %v3567
        %v3590 = vmul.f32 %v3554, %v3567
        %v3591 = vmul.f32 %v3555, %v3567
        %v3592 = vmul.f32 %v3556, %v3567
        %v3593 = vmul.f32 %v3557, %v3567
        %v3594 = vmul.f32 %v3558, %v3567
        %v3595 = vmul.f32 %v3559, %v3567
        %v3596 = vmul.f32 %v3560, %v3567
        %v3597 = vmul.f32 %v3561, %v3567
        %v3598 = vmul.f32 %v3562, %v3567
        %v3599 = vmul.f32 %v3563, %v3567
        %v3600 = vadd.f32 %v3499, %v3568
        %v3601 = vadd.f32 %v3500, %v3569
        %v3602 = vadd.f32 %v3501, %v3570
        %v3603 = vadd.f32 %v3502, %v3571
        %v3604 = vadd.f32 %v3503, %v3572
        %v3605 = vadd.f32 %v3504, %v3573
        %v3606 = vadd.f32 %v3505, %v3574
        %v3607 = vadd.f32 %v3506, %v3575
        %v3608 = vadd.f32 %v3507, %v3576
        %v3609 = vadd.f32 %v3508, %v3577
        %v3610 = vadd.f32 %v3509, %v3578
        %v3611 = vadd.f32 %v3510, %v3579
        %v3612 = vadd.f32 %v3511, %v3580
        %v3613 = vadd.f32 %v3512, %v3581
        %v3614 = vadd.f32 %v3513, %v3582
        %v3615 = vadd.f32 %v3514, %v3583
        %v3616 = vadd.f32 %v3515, %v3584
        %v3617 = vadd.f32 %v3516, %v3585
        %v3618 = vadd.f32 %v3517, %v3586
        %v3619 = vadd.f32 %v3518, %v3587
        %v3620 = vadd.f32 %v3519, %v3588
        %v3621 = vadd.f32 %v3520, %v3589
        %v3622 = vadd.f32 %v3521, %v3590
        %v3623 = vadd.f32 %v3522, %v3591
        %v3624 = vadd.f32 %v3523, %v3592
        %v3625 = vadd.f32 %v3524, %v3593
        %v3626 = vadd.f32 %v3525, %v3594
        %v3627 = vadd.f32 %v3526, %v3595
        %v3628 = vadd.f32 %v3527, %v3596
        %v3629 = vadd.f32 %v3528, %v3597
        %v3630 = vadd.f32 %v3529, %v3598
        %v3631 = vadd.f32 %v3530, %v3599
        %v3632 = vld [vmem:[#allocation7 + $0x2c] sm:$0x1]
        %v3633 = vld [vmem:[%s1384] sm:$0xff]
        %v3634 = vld [vmem:[%s1384 + $0x8] sm:$0xff]
        %v3635 = vld [vmem:[%s1384 + $0x10] sm:$0xff]
        %v3636 = vld [vmem:[%s1384 + $0x18] sm:$0xff]
        %v3637 = vld [vmem:[%s1384 + $0x20] sm:$0xff]
        %v3638 = vld [vmem:[%s1384 + $0x28] sm:$0xff]
        %v3639 = vld [vmem:[%s1384 + $0x30] sm:$0xff]
        %v3640 = vld [vmem:[%s1384 + $0x38] sm:$0xff]
        %v3641 = vld [vmem:[%s1384 + $0x50] sm:$0xff]
        %v3642 = vld [vmem:[%s1384 + $0x58] sm:$0xff]
        %v3643 = vld [vmem:[%s1384 + $0x60] sm:$0xff]
        %v3644 = vld [vmem:[%s1384 + $0x68] sm:$0xff]
        %v3645 = vld [vmem:[%s1384 + $0x70] sm:$0xff]
        %v3646 = vld [vmem:[%s1384 + $0x78] sm:$0xff]
        %v3647 = vld [vmem:[%s1384 + $0x80] sm:$0xff]
        %v3648 = vld [vmem:[%s1384 + $0x88] sm:$0xff]
        %v3649 = vld [vmem:[%s1384 + $0xa0] sm:$0xff]
        %v3650 = vld [vmem:[%s1384 + $0xa8] sm:$0xff]
        %v3651 = vld [vmem:[%s1384 + $0xb0] sm:$0xff]
        %v3652 = vld [vmem:[%s1384 + $0xb8] sm:$0xff]
        %v3653 = vld [vmem:[%s1384 + $0xc0] sm:$0xff]
        %v3654 = vld [vmem:[%s1384 + $0xc8] sm:$0xff]
        %v3655 = vld [vmem:[%s1384 + $0xd0] sm:$0xff]
        %v3656 = vld [vmem:[%s1384 + $0xd8] sm:$0xff]
        %v3657 = vld [vmem:[%s1384 + $0xf0] sm:$0xff]
        %v3658 = vld [vmem:[%s1384 + $0xf8] sm:$0xff]
        %v3659 = vld [vmem:[%s1384 + $0x100] sm:$0xff]
        %v3660 = vld [vmem:[%s1384 + $0x108] sm:$0xff]
        %v3661 = vld [vmem:[%s1384 + $0x110] sm:$0xff]
        %v3662 = vld [vmem:[%s1384 + $0x118] sm:$0xff]
        %v3663 = vld [vmem:[%s1384 + $0x120] sm:$0xff]
        %v3664 = vld [vmem:[%s1384 + $0x128] sm:$0xff]
        %v3665 = vlaneseq
        %v3666 = vshrl.u32 %v3665, 7
        %v3667 = vsub.s32 0, %v3666
        %v3668 = vrot.slane %v3632, %v3667
        %v3669 = vmul.f32 %v3633, %v3668
        %v3670 = vmul.f32 %v3634, %v3668
        %v3671 = vmul.f32 %v3635, %v3668
        %v3672 = vmul.f32 %v3636, %v3668
        %v3673 = vmul.f32 %v3637, %v3668
        %v3674 = vmul.f32 %v3638, %v3668
        %v3675 = vmul.f32 %v3639, %v3668
        %v3676 = vmul.f32 %v3640, %v3668
        %v3677 = vmul.f32 %v3641, %v3668
        %v3678 = vmul.f32 %v3642, %v3668
        %v3679 = vmul.f32 %v3643, %v3668
        %v3680 = vmul.f32 %v3644, %v3668
        %v3681 = vmul.f32 %v3645, %v3668
        %v3682 = vmul.f32 %v3646, %v3668
        %v3683 = vmul.f32 %v3647, %v3668
        %v3684 = vmul.f32 %v3648, %v3668
        %v3685 = vmul.f32 %v3649, %v3668
        %v3686 = vmul.f32 %v3650, %v3668
        %v3687 = vmul.f32 %v3651, %v3668
        %v3688 = vmul.f32 %v3652, %v3668
        %v3689 = vmul.f32 %v3653, %v3668
        %v3690 = vmul.f32 %v3654, %v3668
        %v3691 = vmul.f32 %v3655, %v3668
        %v3692 = vmul.f32 %v3656, %v3668
        %v3693 = vmul.f32 %v3657, %v3668
        %v3694 = vmul.f32 %v3658, %v3668
        %v3695 = vmul.f32 %v3659, %v3668
        %v3696 = vmul.f32 %v3660, %v3668
        %v3697 = vmul.f32 %v3661, %v3668
        %v3698 = vmul.f32 %v3662, %v3668
        %v3699 = vmul.f32 %v3663, %v3668
        %v3700 = vmul.f32 %v3664, %v3668
        %v3701 = vadd.f32 %v3600, %v3669
        %v3702 = vadd.f32 %v3601, %v3670
        %v3703 = vadd.f32 %v3602, %v3671
        %v3704 = vadd.f32 %v3603, %v3672
        %v3705 = vadd.f32 %v3604, %v3673
        %v3706 = vadd.f32 %v3605, %v3674
        %v3707 = vadd.f32 %v3606, %v3675
        %v3708 = vadd.f32 %v3607, %v3676
        %v3709 = vadd.f32 %v3608, %v3677
        %v3710 = vadd.f32 %v3609, %v3678
        %v3711 = vadd.f32 %v3610, %v3679
        %v3712 = vadd.f32 %v3611, %v3680
        %v3713 = vadd.f32 %v3612, %v3681
        %v3714 = vadd.f32 %v3613, %v3682
        %v3715 = vadd.f32 %v3614, %v3683
        %v3716 = vadd.f32 %v3615, %v3684
        %v3717 = vadd.f32 %v3616, %v3685
        %v3718 = vadd.f32 %v3617, %v3686
        %v3719 = vadd.f32 %v3618, %v3687
        %v3720 = vadd.f32 %v3619, %v3688
        %v3721 = vadd.f32 %v3620, %v3689
        %v3722 = vadd.f32 %v3621, %v3690
        %v3723 = vadd.f32 %v3622, %v3691
        %v3724 = vadd.f32 %v3623, %v3692
        %v3725 = vadd.f32 %v3624, %v3693
        %v3726 = vadd.f32 %v3625, %v3694
        %v3727 = vadd.f32 %v3626, %v3695
        %v3728 = vadd.f32 %v3627, %v3696
        %v3729 = vadd.f32 %v3628, %v3697
        %v3730 = vadd.f32 %v3629, %v3698
        %v3731 = vadd.f32 %v3630, %v3699
        %v3732 = vadd.f32 %v3631, %v3700
        %v3733 = vld [vmem:[#allocation9 + $0x1] sm:$0x1]
        %v3734 = vlaneseq
        %v3735 = vshrl.u32 %v3734, 7
        %v3736 = vsub.s32 0, %v3735
        %v3737 = vrot.slane %v3733, %v3736
        %v3738 = vadd.f32 %v3701, %v3737
        %v3739 = vadd.f32 %v3702, %v3737
        %v3740 = vadd.f32 %v3703, %v3737
        %v3741 = vadd.f32 %v3704, %v3737
        %v3742 = vadd.f32 %v3705, %v3737
        %v3743 = vadd.f32 %v3706, %v3737
        %v3744 = vadd.f32 %v3707, %v3737
        %v3745 = vadd.f32 %v3708, %v3737
        %v3746 = vadd.f32 %v3709, %v3737
        %v3747 = vadd.f32 %v3710, %v3737
        %v3748 = vadd.f32 %v3711, %v3737
        %v3749 = vadd.f32 %v3712, %v3737
        %v3750 = vadd.f32 %v3713, %v3737
        %v3751 = vadd.f32 %v3714, %v3737
        %v3752 = vadd.f32 %v3715, %v3737
        %v3753 = vadd.f32 %v3716, %v3737
        %v3754 = vadd.f32 %v3717, %v3737
        %v3755 = vadd.f32 %v3718, %v3737
        %v3756 = vadd.f32 %v3719, %v3737
        %v3757 = vadd.f32 %v3720, %v3737
        %v3758 = vadd.f32 %v3721, %v3737
        %v3759 = vadd.f32 %v3722, %v3737
        %v3760 = vadd.f32 %v3723, %v3737
        %v3761 = vadd.f32 %v3724, %v3737
        %v3762 = vadd.f32 %v3725, %v3737
        %v3763 = vadd.f32 %v3726, %v3737
        %v3764 = vadd.f32 %v3727, %v3737
        %v3765 = vadd.f32 %v3728, %v3737
        %v3766 = vadd.f32 %v3729, %v3737
        %v3767 = vadd.f32 %v3730, %v3737
        %v3768 = vadd.f32 %v3731, %v3737
        %v3769 = vadd.f32 %v3732, %v3737
        %v3770 = vld [vmem:[#allocation7 + $0x1b] sm:$0x1]
        %v3771 = vlaneseq
        %v3772 = vshrl.u32 %v3771, 7
        %v3773 = vsub.s32 0, %v3772
        %v3774 = vrot.slane %v3770, %v3773
        %v3775 = vmul.f32 %v2857, %v3774
        %v3776 = vmul.f32 %v2858, %v3774
        %v3777 = vmul.f32 %v2859, %v3774
        %v3778 = vmul.f32 %v2860, %v3774
        %v3779 = vmul.f32 %v2861, %v3774
        %v3780 = vmul.f32 %v2862, %v3774
        %v3781 = vmul.f32 %v2863, %v3774
        %v3782 = vmul.f32 %v2864, %v3774
        %v3783 = vmul.f32 %v2865, %v3774
        %v3784 = vmul.f32 %v2866, %v3774
        %v3785 = vmul.f32 %v2867, %v3774
        %v3786 = vmul.f32 %v2868, %v3774
        %v3787 = vmul.f32 %v2869, %v3774
        %v3788 = vmul.f32 %v2870, %v3774
        %v3789 = vmul.f32 %v2871, %v3774
        %v3790 = vmul.f32 %v2872, %v3774
        %v3791 = vld [vmem:[#allocation7 + $0x1c] sm:$0x1]
        %v3792 = vlaneseq
        %v3793 = vshrl.u32 %v3792, 7
        %v3794 = vsub.s32 0, %v3793
        %v3795 = vrot.slane %v3791, %v3794
        %v3796 = vmul.f32 %v2926, %v3795
        %v3797 = vmul.f32 %v2927, %v3795
        %v3798 = vmul.f32 %v2928, %v3795
        %v3799 = vmul.f32 %v2929, %v3795
        %v3800 = vmul.f32 %v2930, %v3795
        %v3801 = vmul.f32 %v2931, %v3795
        %v3802 = vmul.f32 %v2932, %v3795
        %v3803 = vmul.f32 %v2933, %v3795
        %v3804 = vmul.f32 %v2934, %v3795
        %v3805 = vmul.f32 %v2935, %v3795
        %v3806 = vmul.f32 %v2936, %v3795
        %v3807 = vmul.f32 %v2937, %v3795
        %v3808 = vmul.f32 %v2938, %v3795
        %v3809 = vmul.f32 %v2939, %v3795
        %v3810 = vmul.f32 %v2940, %v3795
        %v3811 = vmul.f32 %v2941, %v3795
        %v3812 = vadd.f32 %v3775, %v3796
        %v3813 = vadd.f32 %v3776, %v3797
        %v3814 = vadd.f32 %v3777, %v3798
        %v3815 = vadd.f32 %v3778, %v3799
        %v3816 = vadd.f32 %v3779, %v3800
        %v3817 = vadd.f32 %v3780, %v3801
        %v3818 = vadd.f32 %v3781, %v3802
        %v3819 = vadd.f32 %v3782, %v3803
        %v3820 = vadd.f32 %v3783, %v3804
        %v3821 = vadd.f32 %v3784, %v3805
        %v3822 = vadd.f32 %v3785, %v3806
        %v3823 = vadd.f32 %v3786, %v3807
        %v3824 = vadd.f32 %v3787, %v3808
        %v3825 = vadd.f32 %v3788, %v3809
        %v3826 = vadd.f32 %v3789, %v3810
        %v3827 = vadd.f32 %v3790, %v3811
        %v3828 = vld [vmem:[#allocation7 + $0x1d] sm:$0x1]
        %v3829 = vlaneseq
        %v3830 = vshrl.u32 %v3829, 7
        %v3831 = vsub.s32 0, %v3830
        %v3832 = vrot.slane %v3828, %v3831
        %v3833 = vmul.f32 %v3027, %v3832
        %v3834 = vmul.f32 %v3028, %v3832
        %v3835 = vmul.f32 %v3029, %v3832
        %v3836 = vmul.f32 %v3030, %v3832
        %v3837 = vmul.f32 %v3031, %v3832
        %v3838 = vmul.f32 %v3032, %v3832
        %v3839 = vmul.f32 %v3033, %v3832
        %v3840 = vmul.f32 %v3034, %v3832
        %v3841 = vmul.f32 %v3035, %v3832
        %v3842 = vmul.f32 %v3036, %v3832
        %v3843 = vmul.f32 %v3037, %v3832
        %v3844 = vmul.f32 %v3038, %v3832
        %v3845 = vmul.f32 %v3039, %v3832
        %v3846 = vmul.f32 %v3040, %v3832
        %v3847 = vmul.f32 %v3041, %v3832
        %v3848 = vmul.f32 %v3042, %v3832
        %v3849 = vadd.f32 %v3812, %v3833
        %v3850 = vadd.f32 %v3813, %v3834
        %v3851 = vadd.f32 %v3814, %v3835
        %v3852 = vadd.f32 %v3815, %v3836
        %v3853 = vadd.f32 %v3816, %v3837
        %v3854 = vadd.f32 %v3817, %v3838
        %v3855 = vadd.f32 %v3818, %v3839
        %v3856 = vadd.f32 %v3819, %v3840
        %v3857 = vadd.f32 %v3820, %v3841
        %v3858 = vadd.f32 %v3821, %v3842
        %v3859 = vadd.f32 %v3822, %v3843
        %v3860 = vadd.f32 %v3823, %v3844
        %v3861 = vadd.f32 %v3824, %v3845
        %v3862 = vadd.f32 %v3825, %v3846
        %v3863 = vadd.f32 %v3826, %v3847
        %v3864 = vadd.f32 %v3827, %v3848
        %v3865 = vld [vmem:[#allocation7 + $0x1e] sm:$0x1]
        %v3866 = vlaneseq
        %v3867 = vshrl.u32 %v3866, 7
        %v3868 = vsub.s32 0, %v3867
        %v3869 = vrot.slane %v3865, %v3868
        %v3870 = vmul.f32 %v3128, %v3869
        %v3871 = vmul.f32 %v3129, %v3869
        %v3872 = vmul.f32 %v3130, %v3869
        %v3873 = vmul.f32 %v3131, %v3869
        %v3874 = vmul.f32 %v3132, %v3869
        %v3875 = vmul.f32 %v3133, %v3869
        %v3876 = vmul.f32 %v3134, %v3869
        %v3877 = vmul.f32 %v3135, %v3869
        %v3878 = vmul.f32 %v3136, %v3869
        %v3879 = vmul.f32 %v3137, %v3869
        %v3880 = vmul.f32 %v3138, %v3869
        %v3881 = vmul.f32 %v3139, %v3869
        %v3882 = vmul.f32 %v3140, %v3869
        %v3883 = vmul.f32 %v3141, %v3869
        %v3884 = vmul.f32 %v3142, %v3869
        %v3885 = vmul.f32 %v3143, %v3869
        %v3886 = vadd.f32 %v3849, %v3870
        %v3887 = vadd.f32 %v3850, %v3871
        %v3888 = vadd.f32 %v3851, %v3872
        %v3889 = vadd.f32 %v3852, %v3873
        %v3890 = vadd.f32 %v3853, %v3874
        %v3891 = vadd.f32 %v3854, %v3875
        %v3892 = vadd.f32 %v3855, %v3876
        %v3893 = vadd.f32 %v3856, %v3877
        %v3894 = vadd.f32 %v3857, %v3878
        %v3895 = vadd.f32 %v3858, %v3879
        %v3896 = vadd.f32 %v3859, %v3880
        %v3897 = vadd.f32 %v3860, %v3881
        %v3898 = vadd.f32 %v3861, %v3882
        %v3899 = vadd.f32 %v3862, %v3883
        %v3900 = vadd.f32 %v3863, %v3884
        %v3901 = vadd.f32 %v3864, %v3885
        %v3902 = vld [vmem:[#allocation7 + $0x1f] sm:$0x1]
        %v3903 = vlaneseq
        %v3904 = vshrl.u32 %v3903, 7
        %v3905 = vsub.s32 0, %v3904
        %v3906 = vrot.slane %v3902, %v3905
        %v3907 = vmul.f32 %v3229, %v3906
        %v3908 = vmul.f32 %v3230, %v3906
        %v3909 = vmul.f32 %v3231, %v3906
        %v3910 = vmul.f32 %v3232, %v3906
        %v3911 = vmul.f32 %v3233, %v3906
        %v3912 = vmul.f32 %v3234, %v3906
        %v3913 = vmul.f32 %v3235, %v3906
        %v3914 = vmul.f32 %v3236, %v3906
        %v3915 = vmul.f32 %v3237, %v3906
        %v3916 = vmul.f32 %v3238, %v3906
        %v3917 = vmul.f32 %v3239, %v3906
        %v3918 = vmul.f32 %v3240, %v3906
        %v3919 = vmul.f32 %v3241, %v3906
        %v3920 = vmul.f32 %v3242, %v3906
        %v3921 = vmul.f32 %v3243, %v3906
        %v3922 = vmul.f32 %v3244, %v3906
        %v3923 = vadd.f32 %v3886, %v3907
        %v3924 = vadd.f32 %v3887, %v3908
        %v3925 = vadd.f32 %v3888, %v3909
        %v3926 = vadd.f32 %v3889, %v3910
        %v3927 = vadd.f32 %v3890, %v3911
        %v3928 = vadd.f32 %v3891, %v3912
        %v3929 = vadd.f32 %v3892, %v3913
        %v3930 = vadd.f32 %v3893, %v3914
        %v3931 = vadd.f32 %v3894, %v3915
        %v3932 = vadd.f32 %v3895, %v3916
        %v3933 = vadd.f32 %v3896, %v3917
        %v3934 = vadd.f32 %v3897, %v3918
        %v3935 = vadd.f32 %v3898, %v3919
        %v3936 = vadd.f32 %v3899, %v3920
        %v3937 = vadd.f32 %v3900, %v3921
        %v3938 = vadd.f32 %v3901, %v3922
        %v3939 = vld [vmem:[#allocation7 + $0x20] sm:$0x1]
        %v3940 = vlaneseq
        %v3941 = vshrl.u32 %v3940, 7
        %v3942 = vsub.s32 0, %v3941
        %v3943 = vrot.slane %v3939, %v3942
        %v3944 = vmul.f32 %v3330, %v3943
        %v3945 = vmul.f32 %v3331, %v3943
        %v3946 = vmul.f32 %v3332, %v3943
        %v3947 = vmul.f32 %v3333, %v3943
        %v3948 = vmul.f32 %v3334, %v3943
        %v3949 = vmul.f32 %v3335, %v3943
        %v3950 = vmul.f32 %v3336, %v3943
        %v3951 = vmul.f32 %v3337, %v3943
        %v3952 = vmul.f32 %v3338, %v3943
        %v3953 = vmul.f32 %v3339, %v3943
        %v3954 = vmul.f32 %v3340, %v3943
        %v3955 = vmul.f32 %v3341, %v3943
        %v3956 = vmul.f32 %v3342, %v3943
        %v3957 = vmul.f32 %v3343, %v3943
        %v3958 = vmul.f32 %v3344, %v3943
        %v3959 = vmul.f32 %v3345, %v3943
        %v3960 = vadd.f32 %v3923, %v3944
        %v3961 = vadd.f32 %v3924, %v3945
        %v3962 = vadd.f32 %v3925, %v3946
        %v3963 = vadd.f32 %v3926, %v3947
        %v3964 = vadd.f32 %v3927, %v3948
        %v3965 = vadd.f32 %v3928, %v3949
        %v3966 = vadd.f32 %v3929, %v3950
        %v3967 = vadd.f32 %v3930, %v3951
        %v3968 = vadd.f32 %v3931, %v3952
        %v3969 = vadd.f32 %v3932, %v3953
        %v3970 = vadd.f32 %v3933, %v3954
        %v3971 = vadd.f32 %v3934, %v3955
        %v3972 = vadd.f32 %v3935, %v3956
        %v3973 = vadd.f32 %v3936, %v3957
        %v3974 = vadd.f32 %v3937, %v3958
        %v3975 = vadd.f32 %v3938, %v3959
        %v3976 = vld [vmem:[#allocation7 + $0x21] sm:$0x1]
        %v3977 = vlaneseq
        %v3978 = vshrl.u32 %v3977, 7
        %v3979 = vsub.s32 0, %v3978
        %v3980 = vrot.slane %v3976, %v3979
        %v3981 = vmul.f32 %v3431, %v3980
        %v3982 = vmul.f32 %v3432, %v3980
        %v3983 = vmul.f32 %v3433, %v3980
        %v3984 = vmul.f32 %v3434, %v3980
        %v3985 = vmul.f32 %v3435, %v3980
        %v3986 = vmul.f32 %v3436, %v3980
        %v3987 = vmul.f32 %v3437, %v3980
        %v3988 = vmul.f32 %v3438, %v3980
        %v3989 = vmul.f32 %v3439, %v3980
        %v3990 = vmul.f32 %v3440, %v3980
        %v3991 = vmul.f32 %v3441, %v3980
        %v3992 = vmul.f32 %v3442, %v3980
        %v3993 = vmul.f32 %v3443, %v3980
        %v3994 = vmul.f32 %v3444, %v3980
        %v3995 = vmul.f32 %v3445, %v3980
        %v3996 = vmul.f32 %v3446, %v3980
        %v3997 = vadd.f32 %v3960, %v3981
        %v3998 = vadd.f32 %v3961, %v3982
        %v3999 = vadd.f32 %v3962, %v3983
        %v4000 = vadd.f32 %v3963, %v3984
        %v4001 = vadd.f32 %v3964, %v3985
        %v4002 = vadd.f32 %v3965, %v3986
        %v4003 = vadd.f32 %v3966, %v3987
        %v4004 = vadd.f32 %v3967, %v3988
        %v4005 = vadd.f32 %v3968, %v3989
        %v4006 = vadd.f32 %v3969, %v3990
        %v4007 = vadd.f32 %v3970, %v3991
        %v4008 = vadd.f32 %v3971, %v3992
        %v4009 = vadd.f32 %v3972, %v3993
        %v4010 = vadd.f32 %v3973, %v3994
        %v4011 = vadd.f32 %v3974, %v3995
        %v4012 = vadd.f32 %v3975, %v3996
        %v4013 = vld [vmem:[#allocation7 + $0x22] sm:$0x1]
        %v4014 = vlaneseq
        %v4015 = vshrl.u32 %v4014, 7
        %v4016 = vsub.s32 0, %v4015
        %v4017 = vrot.slane %v4013, %v4016
        %v4018 = vmul.f32 %v3532, %v4017
        %v4019 = vmul.f32 %v3533, %v4017
        %v4020 = vmul.f32 %v3534, %v4017
        %v4021 = vmul.f32 %v3535, %v4017
        %v4022 = vmul.f32 %v3536, %v4017
        %v4023 = vmul.f32 %v3537, %v4017
        %v4024 = vmul.f32 %v3538, %v4017
        %v4025 = vmul.f32 %v3539, %v4017
        %v4026 = vmul.f32 %v3540, %v4017
        %v4027 = vmul.f32 %v3541, %v4017
        %v4028 = vmul.f32 %v3542, %v4017
        %v4029 = vmul.f32 %v3543, %v4017
        %v4030 = vmul.f32 %v3544, %v4017
        %v4031 = vmul.f32 %v3545, %v4017
        %v4032 = vmul.f32 %v3546, %v4017
        %v4033 = vmul.f32 %v3547, %v4017
        %v4034 = vadd.f32 %v3997, %v4018
        %v4035 = vadd.f32 %v3998, %v4019
        %v4036 = vadd.f32 %v3999, %v4020
        %v4037 = vadd.f32 %v4000, %v4021
        %v4038 = vadd.f32 %v4001, %v4022
        %v4039 = vadd.f32 %v4002, %v4023
        %v4040 = vadd.f32 %v4003, %v4024
        %v4041 = vadd.f32 %v4004, %v4025
        %v4042 = vadd.f32 %v4005, %v4026
        %v4043 = vadd.f32 %v4006, %v4027
        %v4044 = vadd.f32 %v4007, %v4028
        %v4045 = vadd.f32 %v4008, %v4029
        %v4046 = vadd.f32 %v4009, %v4030
        %v4047 = vadd.f32 %v4010, %v4031
        %v4048 = vadd.f32 %v4011, %v4032
        %v4049 = vadd.f32 %v4012, %v4033
        %v4050 = vld [vmem:[#allocation7 + $0x23] sm:$0x1]
        %v4051 = vlaneseq
        %v4052 = vshrl.u32 %v4051, 7
        %v4053 = vsub.s32 0, %v4052
        %v4054 = vrot.slane %v4050, %v4053
        %v4055 = vmul.f32 %v3633, %v4054
        %v4056 = vmul.f32 %v3634, %v4054
        %v4057 = vmul.f32 %v3635, %v4054
        %v4058 = vmul.f32 %v3636, %v4054
        %v4059 = vmul.f32 %v3637, %v4054
        %v4060 = vmul.f32 %v3638, %v4054
        %v4061 = vmul.f32 %v3639, %v4054
        %v4062 = vmul.f32 %v3640, %v4054
        %v4063 = vmul.f32 %v3641, %v4054
        %v4064 = vmul.f32 %v3642, %v4054
        %v4065 = vmul.f32 %v3643, %v4054
        %v4066 = vmul.f32 %v3644, %v4054
        %v4067 = vmul.f32 %v3645, %v4054
        %v4068 = vmul.f32 %v3646, %v4054
        %v4069 = vmul.f32 %v3647, %v4054
        %v4070 = vmul.f32 %v3648, %v4054
        %v4071 = vadd.f32 %v4034, %v4055
        %v4072 = vadd.f32 %v4035, %v4056
        %v4073 = vadd.f32 %v4036, %v4057
        %v4074 = vadd.f32 %v4037, %v4058
        %v4075 = vadd.f32 %v4038, %v4059
        %v4076 = vadd.f32 %v4039, %v4060
        %v4077 = vadd.f32 %v4040, %v4061
        %v4078 = vadd.f32 %v4041, %v4062
        %v4079 = vadd.f32 %v4042, %v4063
        %v4080 = vadd.f32 %v4043, %v4064
        %v4081 = vadd.f32 %v4044, %v4065
        %v4082 = vadd.f32 %v4045, %v4066
        %v4083 = vadd.f32 %v4046, %v4067
        %v4084 = vadd.f32 %v4047, %v4068
        %v4085 = vadd.f32 %v4048, %v4069
        %v4086 = vadd.f32 %v4049, %v4070
        %v4087 = vadd.f32 %v3754, %v4071
        %v4088 = vadd.f32 %v3755, %v4072
        %v4089 = vadd.f32 %v3756, %v4073
        %v4090 = vadd.f32 %v3757, %v4074
        %v4091 = vadd.f32 %v3758, %v4075
        %v4092 = vadd.f32 %v3759, %v4076
        %v4093 = vadd.f32 %v3760, %v4077
        %v4094 = vadd.f32 %v3761, %v4078
        %v4095 = vadd.f32 %v3762, %v4079
        %v4096 = vadd.f32 %v3763, %v4080
        %v4097 = vadd.f32 %v3764, %v4081
        %v4098 = vadd.f32 %v3765, %v4082
        %v4099 = vadd.f32 %v3766, %v4083
        %v4100 = vadd.f32 %v3767, %v4084
        %v4101 = vadd.f32 %v3768, %v4085
        %v4102 = vadd.f32 %v3769, %v4086
        %v4103 = vld [vmem:[#allocation7 + $0x2d] sm:$0x1]
        %s4104 = scalar_lea.vmem [#allocation2], 160
        %v4105 = vld [vmem:[%s4104] sm:$0xff]
        %v4106 = vld [vmem:[%s4104 + $0x8] sm:$0xff]
        %v4107 = vld [vmem:[%s4104 + $0x10] sm:$0xff]
        %v4108 = vld [vmem:[%s4104 + $0x18] sm:$0xff]
        %v4109 = vld [vmem:[%s4104 + $0x20] sm:$0xff]
        %v4110 = vld [vmem:[%s4104 + $0x28] sm:$0xff]
        %v4111 = vld [vmem:[%s4104 + $0x30] sm:$0xff]
        %v4112 = vld [vmem:[%s4104 + $0x38] sm:$0xff]
        %v4113 = vld [vmem:[%s4104 + $0x50] sm:$0xff]
        %v4114 = vld [vmem:[%s4104 + $0x58] sm:$0xff]
        %v4115 = vld [vmem:[%s4104 + $0x60] sm:$0xff]
        %v4116 = vld [vmem:[%s4104 + $0x68] sm:$0xff]
        %v4117 = vld [vmem:[%s4104 + $0x70] sm:$0xff]
        %v4118 = vld [vmem:[%s4104 + $0x78] sm:$0xff]
        %v4119 = vld [vmem:[%s4104 + $0x80] sm:$0xff]
        %v4120 = vld [vmem:[%s4104 + $0x88] sm:$0xff]
        %v4121 = vlaneseq
        %v4122 = vshrl.u32 %v4121, 7
        %v4123 = vsub.s32 0, %v4122
        %v4124 = vrot.slane %v4103, %v4123
        %v4125 = vmul.f32 %v4105, %v4124
        %v4126 = vmul.f32 %v4106, %v4124
        %v4127 = vmul.f32 %v4107, %v4124
        %v4128 = vmul.f32 %v4108, %v4124
        %v4129 = vmul.f32 %v4109, %v4124
        %v4130 = vmul.f32 %v4110, %v4124
        %v4131 = vmul.f32 %v4111, %v4124
        %v4132 = vmul.f32 %v4112, %v4124
        %v4133 = vmul.f32 %v4113, %v4124
        %v4134 = vmul.f32 %v4114, %v4124
        %v4135 = vmul.f32 %v4115, %v4124
        %v4136 = vmul.f32 %v4116, %v4124
        %v4137 = vmul.f32 %v4117, %v4124
        %v4138 = vmul.f32 %v4118, %v4124
        %v4139 = vmul.f32 %v4119, %v4124
        %v4140 = vmul.f32 %v4120, %v4124
        %v4141 = vld [vmem:[#allocation7 + $0x2e] sm:$0x1]
        %s4142 = scalar_lea.vmem [#allocation2], 480
        %v4143 = vld [vmem:[%s4142] sm:$0xff]
        %v4144 = vld [vmem:[%s4142 + $0x8] sm:$0xff]
        %v4145 = vld [vmem:[%s4142 + $0x10] sm:$0xff]
        %v4146 = vld [vmem:[%s4142 + $0x18] sm:$0xff]
        %v4147 = vld [vmem:[%s4142 + $0x20] sm:$0xff]
        %v4148 = vld [vmem:[%s4142 + $0x28] sm:$0xff]
        %v4149 = vld [vmem:[%s4142 + $0x30] sm:$0xff]
        %v4150 = vld [vmem:[%s4142 + $0x38] sm:$0xff]
        %v4151 = vld [vmem:[%s4142 + $0x50] sm:$0xff]
        %v4152 = vld [vmem:[%s4142 + $0x58] sm:$0xff]
        %v4153 = vld [vmem:[%s4142 + $0x60] sm:$0xff]
        %v4154 = vld [vmem:[%s4142 + $0x68] sm:$0xff]
        %v4155 = vld [vmem:[%s4142 + $0x70] sm:$0xff]
        %v4156 = vld [vmem:[%s4142 + $0x78] sm:$0xff]
        %v4157 = vld [vmem:[%s4142 + $0x80] sm:$0xff]
        %v4158 = vld [vmem:[%s4142 + $0x88] sm:$0xff]
        %v4159 = vlaneseq
        %v4160 = vshrl.u32 %v4159, 7
        %v4161 = vsub.s32 0, %v4160
        %v4162 = vrot.slane %v4141, %v4161
        %v4163 = vmul.f32 %v4143, %v4162
        %v4164 = vmul.f32 %v4144, %v4162
        %v4165 = vmul.f32 %v4145, %v4162
        %v4166 = vmul.f32 %v4146, %v4162
        %v4167 = vmul.f32 %v4147, %v4162
        %v4168 = vmul.f32 %v4148, %v4162
        %v4169 = vmul.f32 %v4149, %v4162
        %v4170 = vmul.f32 %v4150, %v4162
        %v4171 = vmul.f32 %v4151, %v4162
        %v4172 = vmul.f32 %v4152, %v4162
        %v4173 = vmul.f32 %v4153, %v4162
        %v4174 = vmul.f32 %v4154, %v4162
        %v4175 = vmul.f32 %v4155, %v4162
        %v4176 = vmul.f32 %v4156, %v4162
        %v4177 = vmul.f32 %v4157, %v4162
        %v4178 = vmul.f32 %v4158, %v4162
        %v4179 = vadd.f32 %v4125, %v4163
        %v4180 = vadd.f32 %v4126, %v4164
        %v4181 = vadd.f32 %v4127, %v4165
        %v4182 = vadd.f32 %v4128, %v4166
        %v4183 = vadd.f32 %v4129, %v4167
        %v4184 = vadd.f32 %v4130, %v4168
        %v4185 = vadd.f32 %v4131, %v4169
        %v4186 = vadd.f32 %v4132, %v4170
        %v4187 = vadd.f32 %v4133, %v4171
        %v4188 = vadd.f32 %v4134, %v4172
        %v4189 = vadd.f32 %v4135, %v4173
        %v4190 = vadd.f32 %v4136, %v4174
        %v4191 = vadd.f32 %v4137, %v4175
        %v4192 = vadd.f32 %v4138, %v4176
        %v4193 = vadd.f32 %v4139, %v4177
        %v4194 = vadd.f32 %v4140, %v4178
        %v4195 = vld [vmem:[#allocation7 + $0x2f] sm:$0x1]
        %s4196 = scalar_lea.vmem [#allocation2], 800
        %v4197 = vld [vmem:[%s4196] sm:$0xff]
        %v4198 = vld [vmem:[%s4196 + $0x8] sm:$0xff]
        %v4199 = vld [vmem:[%s4196 + $0x10] sm:$0xff]
        %v4200 = vld [vmem:[%s4196 + $0x18] sm:$0xff]
        %v4201 = vld [vmem:[%s4196 + $0x20] sm:$0xff]
        %v4202 = vld [vmem:[%s4196 + $0x28] sm:$0xff]
        %v4203 = vld [vmem:[%s4196 + $0x30] sm:$0xff]
        %v4204 = vld [vmem:[%s4196 + $0x38] sm:$0xff]
        %v4205 = vld [vmem:[%s4196 + $0x50] sm:$0xff]
        %v4206 = vld [vmem:[%s4196 + $0x58] sm:$0xff]
        %v4207 = vld [vmem:[%s4196 + $0x60] sm:$0xff]
        %v4208 = vld [vmem:[%s4196 + $0x68] sm:$0xff]
        %v4209 = vld [vmem:[%s4196 + $0x70] sm:$0xff]
        %v4210 = vld [vmem:[%s4196 + $0x78] sm:$0xff]
        %v4211 = vld [vmem:[%s4196 + $0x80] sm:$0xff]
        %v4212 = vld [vmem:[%s4196 + $0x88] sm:$0xff]
        %v4213 = vlaneseq
        %v4214 = vshrl.u32 %v4213, 7
        %v4215 = vsub.s32 0, %v4214
        %v4216 = vrot.slane %v4195, %v4215
        %v4217 = vmul.f32 %v4197, %v4216
        %v4218 = vmul.f32 %v4198, %v4216
        %v4219 = vmul.f32 %v4199, %v4216
        %v4220 = vmul.f32 %v4200, %v4216
        %v4221 = vmul.f32 %v4201, %v4216
        %v4222 = vmul.f32 %v4202, %v4216
        %v4223 = vmul.f32 %v4203, %v4216
        %v4224 = vmul.f32 %v4204, %v4216
        %v4225 = vmul.f32 %v4205, %v4216
        %v4226 = vmul.f32 %v4206, %v4216
        %v4227 = vmul.f32 %v4207, %v4216
        %v4228 = vmul.f32 %v4208, %v4216
        %v4229 = vmul.f32 %v4209, %v4216
        %v4230 = vmul.f32 %v4210, %v4216
        %v4231 = vmul.f32 %v4211, %v4216
        %v4232 = vmul.f32 %v4212, %v4216
        %v4233 = vadd.f32 %v4179, %v4217
        %v4234 = vadd.f32 %v4180, %v4218
        %v4235 = vadd.f32 %v4181, %v4219
        %v4236 = vadd.f32 %v4182, %v4220
        %v4237 = vadd.f32 %v4183, %v4221
        %v4238 = vadd.f32 %v4184, %v4222
        %v4239 = vadd.f32 %v4185, %v4223
        %v4240 = vadd.f32 %v4186, %v4224
        %v4241 = vadd.f32 %v4187, %v4225
        %v4242 = vadd.f32 %v4188, %v4226
        %v4243 = vadd.f32 %v4189, %v4227
        %v4244 = vadd.f32 %v4190, %v4228
        %v4245 = vadd.f32 %v4191, %v4229
        %v4246 = vadd.f32 %v4192, %v4230
        %v4247 = vadd.f32 %v4193, %v4231
        %v4248 = vadd.f32 %v4194, %v4232
        %v4249 = vld [vmem:[#allocation7 + $0x30] sm:$0x1]
        %s4250 = scalar_lea.vmem [#allocation2], 168
        %v4251 = vld [vmem:[%s4250] sm:$0xff]
        %v4252 = vld [vmem:[%s4250 + $0x8] sm:$0xff]
        %v4253 = vld [vmem:[%s4250 + $0x10] sm:$0xff]
        %v4254 = vld [vmem:[%s4250 + $0x18] sm:$0xff]
        %v4255 = vld [vmem:[%s4250 + $0x20] sm:$0xff]
        %v4256 = vld [vmem:[%s4250 + $0x28] sm:$0xff]
        %v4257 = vld [vmem:[%s4250 + $0x30] sm:$0xff]
        %v4258 = vld [vmem:[%s4250 + $0x38] sm:$0xff]
        %v4259 = vld [vmem:[%s4250 + $0x50] sm:$0xff]
        %v4260 = vld [vmem:[%s4250 + $0x58] sm:$0xff]
        %v4261 = vld [vmem:[%s4250 + $0x60] sm:$0xff]
        %v4262 = vld [vmem:[%s4250 + $0x68] sm:$0xff]
        %v4263 = vld [vmem:[%s4250 + $0x70] sm:$0xff]
        %v4264 = vld [vmem:[%s4250 + $0x78] sm:$0xff]
        %v4265 = vld [vmem:[%s4250 + $0x80] sm:$0xff]
        %v4266 = vld [vmem:[%s4250 + $0x88] sm:$0xff]
        %v4267 = vlaneseq
        %v4268 = vshrl.u32 %v4267, 7
        %v4269 = vsub.s32 0, %v4268
        %v4270 = vrot.slane %v4249, %v4269
        %v4271 = vmul.f32 %v4251, %v4270
        %v4272 = vmul.f32 %v4252, %v4270
        %v4273 = vmul.f32 %v4253, %v4270
        %v4274 = vmul.f32 %v4254, %v4270
        %v4275 = vmul.f32 %v4255, %v4270
        %v4276 = vmul.f32 %v4256, %v4270
        %v4277 = vmul.f32 %v4257, %v4270
        %v4278 = vmul.f32 %v4258, %v4270
        %v4279 = vmul.f32 %v4259, %v4270
        %v4280 = vmul.f32 %v4260, %v4270
        %v4281 = vmul.f32 %v4261, %v4270
        %v4282 = vmul.f32 %v4262, %v4270
        %v4283 = vmul.f32 %v4263, %v4270
        %v4284 = vmul.f32 %v4264, %v4270
        %v4285 = vmul.f32 %v4265, %v4270
        %v4286 = vmul.f32 %v4266, %v4270
        %v4287 = vadd.f32 %v4233, %v4271
        %v4288 = vadd.f32 %v4234, %v4272
        %v4289 = vadd.f32 %v4235, %v4273
        %v4290 = vadd.f32 %v4236, %v4274
        %v4291 = vadd.f32 %v4237, %v4275
        %v4292 = vadd.f32 %v4238, %v4276
        %v4293 = vadd.f32 %v4239, %v4277
        %v4294 = vadd.f32 %v4240, %v4278
        %v4295 = vadd.f32 %v4241, %v4279
        %v4296 = vadd.f32 %v4242, %v4280
        %v4297 = vadd.f32 %v4243, %v4281
        %v4298 = vadd.f32 %v4244, %v4282
        %v4299 = vadd.f32 %v4245, %v4283
        %v4300 = vadd.f32 %v4246, %v4284
        %v4301 = vadd.f32 %v4247, %v4285
        %v4302 = vadd.f32 %v4248, %v4286
        %v4303 = vld [vmem:[#allocation7 + $0x31] sm:$0x1]
        %s4304 = scalar_lea.vmem [#allocation2], 488
        %v4305 = vld [vmem:[%s4304] sm:$0xff]
        %v4306 = vld [vmem:[%s4304 + $0x8] sm:$0xff]
        %v4307 = vld [vmem:[%s4304 + $0x10] sm:$0xff]
        %v4308 = vld [vmem:[%s4304 + $0x18] sm:$0xff]
        %v4309 = vld [vmem:[%s4304 + $0x20] sm:$0xff]
        %v4310 = vld [vmem:[%s4304 + $0x28] sm:$0xff]
        %v4311 = vld [vmem:[%s4304 + $0x30] sm:$0xff]
        %v4312 = vld [vmem:[%s4304 + $0x38] sm:$0xff]
        %v4313 = vld [vmem:[%s4304 + $0x50] sm:$0xff]
        %v4314 = vld [vmem:[%s4304 + $0x58] sm:$0xff]
        %v4315 = vld [vmem:[%s4304 + $0x60] sm:$0xff]
        %v4316 = vld [vmem:[%s4304 + $0x68] sm:$0xff]
        %v4317 = vld [vmem:[%s4304 + $0x70] sm:$0xff]
        %v4318 = vld [vmem:[%s4304 + $0x78] sm:$0xff]
        %v4319 = vld [vmem:[%s4304 + $0x80] sm:$0xff]
        %v4320 = vld [vmem:[%s4304 + $0x88] sm:$0xff]
        %v4321 = vlaneseq
        %v4322 = vshrl.u32 %v4321, 7
        %v4323 = vsub.s32 0, %v4322
        %v4324 = vrot.slane %v4303, %v4323
        %v4325 = vmul.f32 %v4305, %v4324
        %v4326 = vmul.f32 %v4306, %v4324
        %v4327 = vmul.f32 %v4307, %v4324
        %v4328 = vmul.f32 %v4308, %v4324
        %v4329 = vmul.f32 %v4309, %v4324
        %v4330 = vmul.f32 %v4310, %v4324
        %v4331 = vmul.f32 %v4311, %v4324
        %v4332 = vmul.f32 %v4312, %v4324
        %v4333 = vmul.f32 %v4313, %v4324
        %v4334 = vmul.f32 %v4314, %v4324
        %v4335 = vmul.f32 %v4315, %v4324
        %v4336 = vmul.f32 %v4316, %v4324
        %v4337 = vmul.f32 %v4317, %v4324
        %v4338 = vmul.f32 %v4318, %v4324
        %v4339 = vmul.f32 %v4319, %v4324
        %v4340 = vmul.f32 %v4320, %v4324
        %v4341 = vadd.f32 %v4287, %v4325
        %v4342 = vadd.f32 %v4288, %v4326
        %v4343 = vadd.f32 %v4289, %v4327
        %v4344 = vadd.f32 %v4290, %v4328
        %v4345 = vadd.f32 %v4291, %v4329
        %v4346 = vadd.f32 %v4292, %v4330
        %v4347 = vadd.f32 %v4293, %v4331
        %v4348 = vadd.f32 %v4294, %v4332
        %v4349 = vadd.f32 %v4295, %v4333
        %v4350 = vadd.f32 %v4296, %v4334
        %v4351 = vadd.f32 %v4297, %v4335
        %v4352 = vadd.f32 %v4298, %v4336
        %v4353 = vadd.f32 %v4299, %v4337
        %v4354 = vadd.f32 %v4300, %v4338
        %v4355 = vadd.f32 %v4301, %v4339
        %v4356 = vadd.f32 %v4302, %v4340
        %v4357 = vld [vmem:[#allocation7 + $0x32] sm:$0x1]
        %s4358 = scalar_lea.vmem [#allocation2], 808
        %v4359 = vld [vmem:[%s4358] sm:$0xff]
        %v4360 = vld [vmem:[%s4358 + $0x8] sm:$0xff]
        %v4361 = vld [vmem:[%s4358 + $0x10] sm:$0xff]
        %v4362 = vld [vmem:[%s4358 + $0x18] sm:$0xff]
        %v4363 = vld [vmem:[%s4358 + $0x20] sm:$0xff]
        %v4364 = vld [vmem:[%s4358 + $0x28] sm:$0xff]
        %v4365 = vld [vmem:[%s4358 + $0x30] sm:$0xff]
        %v4366 = vld [vmem:[%s4358 + $0x38] sm:$0xff]
        %v4367 = vld [vmem:[%s4358 + $0x50] sm:$0xff]
        %v4368 = vld [vmem:[%s4358 + $0x58] sm:$0xff]
        %v4369 = vld [vmem:[%s4358 + $0x60] sm:$0xff]
        %v4370 = vld [vmem:[%s4358 + $0x68] sm:$0xff]
        %v4371 = vld [vmem:[%s4358 + $0x70] sm:$0xff]
        %v4372 = vld [vmem:[%s4358 + $0x78] sm:$0xff]
        %v4373 = vld [vmem:[%s4358 + $0x80] sm:$0xff]
        %v4374 = vld [vmem:[%s4358 + $0x88] sm:$0xff]
        %v4375 = vlaneseq
        %v4376 = vshrl.u32 %v4375, 7
        %v4377 = vsub.s32 0, %v4376
        %v4378 = vrot.slane %v4357, %v4377
        %v4379 = vmul.f32 %v4359, %v4378
        %v4380 = vmul.f32 %v4360, %v4378
        %v4381 = vmul.f32 %v4361, %v4378
        %v4382 = vmul.f32 %v4362, %v4378
        %v4383 = vmul.f32 %v4363, %v4378
        %v4384 = vmul.f32 %v4364, %v4378
        %v4385 = vmul.f32 %v4365, %v4378
        %v4386 = vmul.f32 %v4366, %v4378
        %v4387 = vmul.f32 %v4367, %v4378
        %v4388 = vmul.f32 %v4368, %v4378
        %v4389 = vmul.f32 %v4369, %v4378
        %v4390 = vmul.f32 %v4370, %v4378
        %v4391 = vmul.f32 %v4371, %v4378
        %v4392 = vmul.f32 %v4372, %v4378
        %v4393 = vmul.f32 %v4373, %v4378
        %v4394 = vmul.f32 %v4374, %v4378
        %v4395 = vadd.f32 %v4341, %v4379
        %v4396 = vadd.f32 %v4342, %v4380
        %v4397 = vadd.f32 %v4343, %v4381
        %v4398 = vadd.f32 %v4344, %v4382
        %v4399 = vadd.f32 %v4345, %v4383
        %v4400 = vadd.f32 %v4346, %v4384
        %v4401 = vadd.f32 %v4347, %v4385
        %v4402 = vadd.f32 %v4348, %v4386
        %v4403 = vadd.f32 %v4349, %v4387
        %v4404 = vadd.f32 %v4350, %v4388
        %v4405 = vadd.f32 %v4351, %v4389
        %v4406 = vadd.f32 %v4352, %v4390
        %v4407 = vadd.f32 %v4353, %v4391
        %v4408 = vadd.f32 %v4354, %v4392
        %v4409 = vadd.f32 %v4355, %v4393
        %v4410 = vadd.f32 %v4356, %v4394
        %v4411 = vld [vmem:[#allocation7 + $0x33] sm:$0x1]
        %s4412 = scalar_lea.vmem [#allocation2], 176
        %v4413 = vld [vmem:[%s4412] sm:$0xff]
        %v4414 = vld [vmem:[%s4412 + $0x8] sm:$0xff]
        %v4415 = vld [vmem:[%s4412 + $0x10] sm:$0xff]
        %v4416 = vld [vmem:[%s4412 + $0x18] sm:$0xff]
        %v4417 = vld [vmem:[%s4412 + $0x20] sm:$0xff]
        %v4418 = vld [vmem:[%s4412 + $0x28] sm:$0xff]
        %v4419 = vld [vmem:[%s4412 + $0x30] sm:$0xff]
        %v4420 = vld [vmem:[%s4412 + $0x38] sm:$0xff]
        %v4421 = vld [vmem:[%s4412 + $0x50] sm:$0xff]
        %v4422 = vld [vmem:[%s4412 + $0x58] sm:$0xff]
        %v4423 = vld [vmem:[%s4412 + $0x60] sm:$0xff]
        %v4424 = vld [vmem:[%s4412 + $0x68] sm:$0xff]
        %v4425 = vld [vmem:[%s4412 + $0x70] sm:$0xff]
        %v4426 = vld [vmem:[%s4412 + $0x78] sm:$0xff]
        %v4427 = vld [vmem:[%s4412 + $0x80] sm:$0xff]
        %v4428 = vld [vmem:[%s4412 + $0x88] sm:$0xff]
        %v4429 = vlaneseq
        %v4430 = vshrl.u32 %v4429, 7
        %v4431 = vsub.s32 0, %v4430
        %v4432 = vrot.slane %v4411, %v4431
        %v4433 = vmul.f32 %v4413, %v4432
        %v4434 = vmul.f32 %v4414, %v4432
        %v4435 = vmul.f32 %v4415, %v4432
        %v4436 = vmul.f32 %v4416, %v4432
        %v4437 = vmul.f32 %v4417, %v4432
        %v4438 = vmul.f32 %v4418, %v4432
        %v4439 = vmul.f32 %v4419, %v4432
        %v4440 = vmul.f32 %v4420, %v4432
        %v4441 = vmul.f32 %v4421, %v4432
        %v4442 = vmul.f32 %v4422, %v4432
        %v4443 = vmul.f32 %v4423, %v4432
        %v4444 = vmul.f32 %v4424, %v4432
        %v4445 = vmul.f32 %v4425, %v4432
        %v4446 = vmul.f32 %v4426, %v4432
        %v4447 = vmul.f32 %v4427, %v4432
        %v4448 = vmul.f32 %v4428, %v4432
        %v4449 = vadd.f32 %v4395, %v4433
        %v4450 = vadd.f32 %v4396, %v4434
        %v4451 = vadd.f32 %v4397, %v4435
        %v4452 = vadd.f32 %v4398, %v4436
        %v4453 = vadd.f32 %v4399, %v4437
        %v4454 = vadd.f32 %v4400, %v4438
        %v4455 = vadd.f32 %v4401, %v4439
        %v4456 = vadd.f32 %v4402, %v4440
        %v4457 = vadd.f32 %v4403, %v4441
        %v4458 = vadd.f32 %v4404, %v4442
        %v4459 = vadd.f32 %v4405, %v4443
        %v4460 = vadd.f32 %v4406, %v4444
        %v4461 = vadd.f32 %v4407, %v4445
        %v4462 = vadd.f32 %v4408, %v4446
        %v4463 = vadd.f32 %v4409, %v4447
        %v4464 = vadd.f32 %v4410, %v4448
        %v4465 = vld [vmem:[#allocation7 + $0x34] sm:$0x1]
        %s4466 = scalar_lea.vmem [#allocation2], 496
        %v4467 = vld [vmem:[%s4466] sm:$0xff]
        %v4468 = vld [vmem:[%s4466 + $0x8] sm:$0xff]
        %v4469 = vld [vmem:[%s4466 + $0x10] sm:$0xff]
        %v4470 = vld [vmem:[%s4466 + $0x18] sm:$0xff]
        %v4471 = vld [vmem:[%s4466 + $0x20] sm:$0xff]
        %v4472 = vld [vmem:[%s4466 + $0x28] sm:$0xff]
        %v4473 = vld [vmem:[%s4466 + $0x30] sm:$0xff]
        %v4474 = vld [vmem:[%s4466 + $0x38] sm:$0xff]
        %v4475 = vld [vmem:[%s4466 + $0x50] sm:$0xff]
        %v4476 = vld [vmem:[%s4466 + $0x58] sm:$0xff]
        %v4477 = vld [vmem:[%s4466 + $0x60] sm:$0xff]
        %v4478 = vld [vmem:[%s4466 + $0x68] sm:$0xff]
        %v4479 = vld [vmem:[%s4466 + $0x70] sm:$0xff]
        %v4480 = vld [vmem:[%s4466 + $0x78] sm:$0xff]
        %v4481 = vld [vmem:[%s4466 + $0x80] sm:$0xff]
        %v4482 = vld [vmem:[%s4466 + $0x88] sm:$0xff]
        %v4483 = vlaneseq
        %v4484 = vshrl.u32 %v4483, 7
        %v4485 = vsub.s32 0, %v4484
        %v4486 = vrot.slane %v4465, %v4485
        %v4487 = vmul.f32 %v4467, %v4486
        %v4488 = vmul.f32 %v4468, %v4486
        %v4489 = vmul.f32 %v4469, %v4486
        %v4490 = vmul.f32 %v4470, %v4486
        %v4491 = vmul.f32 %v4471, %v4486
        %v4492 = vmul.f32 %v4472, %v4486
        %v4493 = vmul.f32 %v4473, %v4486
        %v4494 = vmul.f32 %v4474, %v4486
        %v4495 = vmul.f32 %v4475, %v4486
        %v4496 = vmul.f32 %v4476, %v4486
        %v4497 = vmul.f32 %v4477, %v4486
        %v4498 = vmul.f32 %v4478, %v4486
        %v4499 = vmul.f32 %v4479, %v4486
        %v4500 = vmul.f32 %v4480, %v4486
        %v4501 = vmul.f32 %v4481, %v4486
        %v4502 = vmul.f32 %v4482, %v4486
        %v4503 = vadd.f32 %v4449, %v4487
        %v4504 = vadd.f32 %v4450, %v4488
        %v4505 = vadd.f32 %v4451, %v4489
        %v4506 = vadd.f32 %v4452, %v4490
        %v4507 = vadd.f32 %v4453, %v4491
        %v4508 = vadd.f32 %v4454, %v4492
        %v4509 = vadd.f32 %v4455, %v4493
        %v4510 = vadd.f32 %v4456, %v4494
        %v4511 = vadd.f32 %v4457, %v4495
        %v4512 = vadd.f32 %v4458, %v4496
        %v4513 = vadd.f32 %v4459, %v4497
        %v4514 = vadd.f32 %v4460, %v4498
        %v4515 = vadd.f32 %v4461, %v4499
        %v4516 = vadd.f32 %v4462, %v4500
        %v4517 = vadd.f32 %v4463, %v4501
        %v4518 = vadd.f32 %v4464, %v4502
        %v4519 = vld [vmem:[#allocation7 + $0x35] sm:$0x1]
        %s4520 = scalar_lea.vmem [#allocation2], 816
        %v4521 = vld [vmem:[%s4520] sm:$0xff]
        %v4522 = vld [vmem:[%s4520 + $0x8] sm:$0xff]
        %v4523 = vld [vmem:[%s4520 + $0x10] sm:$0xff]
        %v4524 = vld [vmem:[%s4520 + $0x18] sm:$0xff]
        %v4525 = vld [vmem:[%s4520 + $0x20] sm:$0xff]
        %v4526 = vld [vmem:[%s4520 + $0x28] sm:$0xff]
        %v4527 = vld [vmem:[%s4520 + $0x30] sm:$0xff]
        %v4528 = vld [vmem:[%s4520 + $0x38] sm:$0xff]
        %v4529 = vld [vmem:[%s4520 + $0x50] sm:$0xff]
        %v4530 = vld [vmem:[%s4520 + $0x58] sm:$0xff]
        %v4531 = vld [vmem:[%s4520 + $0x60] sm:$0xff]
        %v4532 = vld [vmem:[%s4520 + $0x68] sm:$0xff]
        %v4533 = vld [vmem:[%s4520 + $0x70] sm:$0xff]
        %v4534 = vld [vmem:[%s4520 + $0x78] sm:$0xff]
        %v4535 = vld [vmem:[%s4520 + $0x80] sm:$0xff]
        %v4536 = vld [vmem:[%s4520 + $0x88] sm:$0xff]
        %v4537 = vlaneseq
        %v4538 = vshrl.u32 %v4537, 7
        %v4539 = vsub.s32 0, %v4538
        %v4540 = vrot.slane %v4519, %v4539
        %v4541 = vmul.f32 %v4521, %v4540
        %v4542 = vmul.f32 %v4522, %v4540
        %v4543 = vmul.f32 %v4523, %v4540
        %v4544 = vmul.f32 %v4524, %v4540
        %v4545 = vmul.f32 %v4525, %v4540
        %v4546 = vmul.f32 %v4526, %v4540
        %v4547 = vmul.f32 %v4527, %v4540
        %v4548 = vmul.f32 %v4528, %v4540
        %v4549 = vmul.f32 %v4529, %v4540
        %v4550 = vmul.f32 %v4530, %v4540
        %v4551 = vmul.f32 %v4531, %v4540
        %v4552 = vmul.f32 %v4532, %v4540
        %v4553 = vmul.f32 %v4533, %v4540
        %v4554 = vmul.f32 %v4534, %v4540
        %v4555 = vmul.f32 %v4535, %v4540
        %v4556 = vmul.f32 %v4536, %v4540
        %v4557 = vadd.f32 %v4503, %v4541
        %v4558 = vadd.f32 %v4504, %v4542
        %v4559 = vadd.f32 %v4505, %v4543
        %v4560 = vadd.f32 %v4506, %v4544
        %v4561 = vadd.f32 %v4507, %v4545
        %v4562 = vadd.f32 %v4508, %v4546
        %v4563 = vadd.f32 %v4509, %v4547
        %v4564 = vadd.f32 %v4510, %v4548
        %v4565 = vadd.f32 %v4511, %v4549
        %v4566 = vadd.f32 %v4512, %v4550
        %v4567 = vadd.f32 %v4513, %v4551
        %v4568 = vadd.f32 %v4514, %v4552
        %v4569 = vadd.f32 %v4515, %v4553
        %v4570 = vadd.f32 %v4516, %v4554
        %v4571 = vadd.f32 %v4517, %v4555
        %v4572 = vadd.f32 %v4518, %v4556
        %v4573 = vadd.f32 %v3738, %v4557
        %v4574 = vadd.f32 %v3739, %v4558
        %v4575 = vadd.f32 %v3740, %v4559
        %v4576 = vadd.f32 %v3741, %v4560
        %v4577 = vadd.f32 %v3742, %v4561
        %v4578 = vadd.f32 %v3743, %v4562
        %v4579 = vadd.f32 %v3744, %v4563
        %v4580 = vadd.f32 %v3745, %v4564
        %v4581 = vadd.f32 %v3746, %v4565
        %v4582 = vadd.f32 %v3747, %v4566
        %v4583 = vadd.f32 %v3748, %v4567
        %v4584 = vadd.f32 %v3749, %v4568
        %v4585 = vadd.f32 %v3750, %v4569
        %v4586 = vadd.f32 %v3751, %v4570
        %v4587 = vadd.f32 %v3752, %v4571
        %v4588 = vadd.f32 %v3753, %v4572
        %v4589 = vsub.f32 %v4087, %v4573
        %v4590 = vsub.f32 %v4088, %v4574
        %v4591 = vsub.f32 %v4089, %v4575
        %v4592 = vsub.f32 %v4090, %v4576
        %v4593 = vsub.f32 %v4091, %v4577
        %v4594 = vsub.f32 %v4092, %v4578
        %v4595 = vsub.f32 %v4093, %v4579
        %v4596 = vsub.f32 %v4094, %v4580
        %v4597 = vsub.f32 %v4095, %v4581
        %v4598 = vsub.f32 %v4096, %v4582
        %v4599 = vsub.f32 %v4097, %v4583
        %v4600 = vsub.f32 %v4098, %v4584
        %v4601 = vsub.f32 %v4099, %v4585
        %v4602 = vsub.f32 %v4100, %v4586
        %v4603 = vsub.f32 %v4101, %v4587
        %v4604 = vsub.f32 %v4102, %v4588
        %s4605 = sld [smem:[#allocation10 + $0x1]]
        %s4606 = smul.f32 %s4605, 0.5
        %v4607 = vmul.f32 %v4573, 0.5
        %v4608 = vmul.f32 %v4574, 0.5
        %v4609 = vmul.f32 %v4575, 0.5
        %v4610 = vmul.f32 %v4576, 0.5
        %v4611 = vmul.f32 %v4577, 0.5
        %v4612 = vmul.f32 %v4578, 0.5
        %v4613 = vmul.f32 %v4579, 0.5
        %v4614 = vmul.f32 %v4580, 0.5
        %v4615 = vmul.f32 %v4581, 0.5
        %v4616 = vmul.f32 %v4582, 0.5
        %v4617 = vmul.f32 %v4583, 0.5
        %v4618 = vmul.f32 %v4584, 0.5
        %v4619 = vmul.f32 %v4585, 0.5
        %v4620 = vmul.f32 %v4586, 0.5
        %v4621 = vmul.f32 %v4587, 0.5
        %v4622 = vmul.f32 %v4588, 0.5
        %v4623 = vmul.f32 %v4589, 0.5
        %v4624 = vmul.f32 %v4590, 0.5
        %v4625 = vmul.f32 %v4591, 0.5
        %v4626 = vmul.f32 %v4592, 0.5
        %v4627 = vmul.f32 %v4593, 0.5
        %v4628 = vmul.f32 %v4594, 0.5
        %v4629 = vmul.f32 %v4595, 0.5
        %v4630 = vmul.f32 %v4596, 0.5
        %v4631 = vmul.f32 %v4597, 0.5
        %v4632 = vmul.f32 %v4598, 0.5
        %v4633 = vmul.f32 %v4599, 0.5
        %v4634 = vmul.f32 %v4600, 0.5
        %v4635 = vmul.f32 %v4601, 0.5
        %v4636 = vmul.f32 %v4602, 0.5
        %v4637 = vmul.f32 %v4603, 0.5
        %v4638 = vmul.f32 %v4604, 0.5
        %v4639 = vtanh.pop %v4607
        %v4640 = vtanh.pop %v4608
        %v4641 = vtanh.pop %v4609
        %v4642 = vtanh.pop %v4610
        %v4643 = vtanh.pop %v4611
        %v4644 = vtanh.pop %v4612
        %v4645 = vtanh.pop %v4613
        %v4646 = vtanh.pop %v4614
        %v4647 = vtanh.pop %v4615
        %v4648 = vtanh.pop %v4616
        %v4649 = vtanh.pop %v4617
        %v4650 = vtanh.pop %v4618
        %v4651 = vtanh.pop %v4619
        %v4652 = vtanh.pop %v4620
        %v4653 = vtanh.pop %v4621
        %v4654 = vtanh.pop %v4622
        %v4655 = vtanh.pop %v4623
        %v4656 = vtanh.pop %v4624
        %v4657 = vtanh.pop %v4625
        %v4658 = vtanh.pop %v4626
        %v4659 = vtanh.pop %v4627
        %v4660 = vtanh.pop %v4628
        %v4661 = vtanh.pop %v4629
        %v4662 = vtanh.pop %v4630
        %v4663 = vtanh.pop %v4631
        %v4664 = vtanh.pop %v4632
        %v4665 = vtanh.pop %v4633
        %v4666 = vtanh.pop %v4634
        %v4667 = vtanh.pop %v4635
        %v4668 = vtanh.pop %v4636
        %v4669 = vtanh.pop %v4637
        %v4670 = vtanh.pop %v4638
        %v4671 = vstv %s4606
        %v4672 = vmul.f32 %v4671, %v4639
        %v4673 = vmul.f32 %v4671, %v4640
        %v4674 = vmul.f32 %v4671, %v4641
        %v4675 = vmul.f32 %v4671, %v4642
        %v4676 = vmul.f32 %v4671, %v4643
        %v4677 = vmul.f32 %v4671, %v4644
        %v4678 = vmul.f32 %v4671, %v4645
        %v4679 = vmul.f32 %v4671, %v4646
        %v4680 = vmul.f32 %v4671, %v4647
        %v4681 = vmul.f32 %v4671, %v4648
        %v4682 = vmul.f32 %v4671, %v4649
        %v4683 = vmul.f32 %v4671, %v4650
        %v4684 = vmul.f32 %v4671, %v4651
        %v4685 = vmul.f32 %v4671, %v4652
        %v4686 = vmul.f32 %v4671, %v4653
        %v4687 = vmul.f32 %v4671, %v4654
        %v4688 = vmul.f32 %v4671, %v4655
        %v4689 = vmul.f32 %v4671, %v4656
        %v4690 = vmul.f32 %v4671, %v4657
        %v4691 = vmul.f32 %v4671, %v4658
        %v4692 = vmul.f32 %v4671, %v4659
        %v4693 = vmul.f32 %v4671, %v4660
        %v4694 = vmul.f32 %v4671, %v4661
        %v4695 = vmul.f32 %v4671, %v4662
        %v4696 = vmul.f32 %v4671, %v4663
        %v4697 = vmul.f32 %v4671, %v4664
        %v4698 = vmul.f32 %v4671, %v4665
        %v4699 = vmul.f32 %v4671, %v4666
        %v4700 = vmul.f32 %v4671, %v4667
        %v4701 = vmul.f32 %v4671, %v4668
        %v4702 = vmul.f32 %v4671, %v4669
        %v4703 = vmul.f32 %v4671, %v4670
        %v4704 = vld [vmem:[%s287] sm:$0xff]
        %v4705 = vld [vmem:[%s287 + $0x8] sm:$0xff]
        %v4706 = vld [vmem:[%s287 + $0x10] sm:$0xff]
        %v4707 = vld [vmem:[%s287 + $0x18] sm:$0xff]
        %v4708 = vld [vmem:[%s287 + $0x20] sm:$0xff]
        %v4709 = vld [vmem:[%s287 + $0x28] sm:$0xff]
        %v4710 = vld [vmem:[%s287 + $0x30] sm:$0xff]
        %v4711 = vld [vmem:[%s287 + $0x38] sm:$0xff]
        %v4712 = vld [vmem:[%s287 + $0x40] sm:$0xff]
        %v4713 = vld [vmem:[%s287 + $0x48] sm:$0xff]
        %v4714 = vld [vmem:[%s287 + $0x50] sm:$0xff]
        %v4715 = vld [vmem:[%s287 + $0x58] sm:$0xff]
        %v4716 = vld [vmem:[%s287 + $0x60] sm:$0xff]
        %v4717 = vld [vmem:[%s287 + $0x68] sm:$0xff]
        %v4718 = vld [vmem:[%s287 + $0x70] sm:$0xff]
        %v4719 = vld [vmem:[%s287 + $0x78] sm:$0xff]
        %v4720 = vld [vmem:[%s287 + $0x80] sm:$0xff]
        %v4721 = vld [vmem:[%s287 + $0x88] sm:$0xff]
        %v4722 = vld [vmem:[%s287 + $0x90] sm:$0xff]
        %v4723 = vld [vmem:[%s287 + $0x98] sm:$0xff]
        %v4724 = vld [vmem:[%s287 + $0xa0] sm:$0xff]
        %v4725 = vld [vmem:[%s287 + $0xa8] sm:$0xff]
        %v4726 = vld [vmem:[%s287 + $0xb0] sm:$0xff]
        %v4727 = vld [vmem:[%s287 + $0xb8] sm:$0xff]
        %v4728 = vld [vmem:[%s287 + $0xc0] sm:$0xff]
        %v4729 = vld [vmem:[%s287 + $0xc8] sm:$0xff]
        %v4730 = vld [vmem:[%s287 + $0xd0] sm:$0xff]
        %v4731 = vld [vmem:[%s287 + $0xd8] sm:$0xff]
        %v4732 = vld [vmem:[%s287 + $0xe0] sm:$0xff]
        %v4733 = vld [vmem:[%s287 + $0xe8] sm:$0xff]
        %v4734 = vld [vmem:[%s287 + $0xf0] sm:$0xff]
        %v4735 = vld [vmem:[%s287 + $0xf8] sm:$0xff]
        %v4736 = vadd.f32 %v4704, %v4672
        %v4737 = vadd.f32 %v4705, %v4673
        %v4738 = vadd.f32 %v4706, %v4674
        %v4739 = vadd.f32 %v4707, %v4675
        %v4740 = vadd.f32 %v4708, %v4676
        %v4741 = vadd.f32 %v4709, %v4677
        %v4742 = vadd.f32 %v4710, %v4678
        %v4743 = vadd.f32 %v4711, %v4679
        %v4744 = vadd.f32 %v4712, %v4680
        %v4745 = vadd.f32 %v4713, %v4681
        %v4746 = vadd.f32 %v4714, %v4682
        %v4747 = vadd.f32 %v4715, %v4683
        %v4748 = vadd.f32 %v4716, %v4684
        %v4749 = vadd.f32 %v4717, %v4685
        %v4750 = vadd.f32 %v4718, %v4686
        %v4751 = vadd.f32 %v4719, %v4687
        %v4752 = vadd.f32 %v4720, %v4688
        %v4753 = vadd.f32 %v4721, %v4689
        %v4754 = vadd.f32 %v4722, %v4690
        %v4755 = vadd.f32 %v4723, %v4691
        %v4756 = vadd.f32 %v4724, %v4692
        %v4757 = vadd.f32 %v4725, %v4693
        %v4758 = vadd.f32 %v4726, %v4694
        %v4759 = vadd.f32 %v4727, %v4695
        %v4760 = vadd.f32 %v4728, %v4696
        %v4761 = vadd.f32 %v4729, %v4697
        %v4762 = vadd.f32 %v4730, %v4698
        %v4763 = vadd.f32 %v4731, %v4699
        %v4764 = vadd.f32 %v4732, %v4700
        %v4765 = vadd.f32 %v4733, %v4701
        %v4766 = vadd.f32 %v4734, %v4702
        %v4767 = vadd.f32 %v4735, %v4703
        %4768 = vst [vmem:[%s287] sm:$0xff] %v4736
        %4769 = vst [vmem:[%s287 + $0x8] sm:$0xff] %v4737
        %4770 = vst [vmem:[%s287 + $0x10] sm:$0xff] %v4738
        %4771 = vst [vmem:[%s287 + $0x18] sm:$0xff] %v4739
        %4772 = vst [vmem:[%s287 + $0x20] sm:$0xff] %v4740
        %4773 = vst [vmem:[%s287 + $0x28] sm:$0xff] %v4741
        %4774 = vst [vmem:[%s287 + $0x30] sm:$0xff] %v4742
        %4775 = vst [vmem:[%s287 + $0x38] sm:$0xff] %v4743
        %4776 = vst [vmem:[%s287 + $0x40] sm:$0xff] %v4744
        %4777 = vst [vmem:[%s287 + $0x48] sm:$0xff] %v4745
        %4778 = vst [vmem:[%s287 + $0x50] sm:$0xff] %v4746
        %4779 = vst [vmem:[%s287 + $0x58] sm:$0xff] %v4747
        %4780 = vst [vmem:[%s287 + $0x60] sm:$0xff] %v4748
        %4781 = vst [vmem:[%s287 + $0x68] sm:$0xff] %v4749
        %4782 = vst [vmem:[%s287 + $0x70] sm:$0xff] %v4750
        %4783 = vst [vmem:[%s287 + $0x78] sm:$0xff] %v4751
        %4784 = vst [vmem:[%s287 + $0x80] sm:$0xff] %v4752
        %4785 = vst [vmem:[%s287 + $0x88] sm:$0xff] %v4753
        %4786 = vst [vmem:[%s287 + $0x90] sm:$0xff] %v4754
        %4787 = vst [vmem:[%s287 + $0x98] sm:$0xff] %v4755
        %4788 = vst [vmem:[%s287 + $0xa0] sm:$0xff] %v4756
        %4789 = vst [vmem:[%s287 + $0xa8] sm:$0xff] %v4757
        %4790 = vst [vmem:[%s287 + $0xb0] sm:$0xff] %v4758
        %4791 = vst [vmem:[%s287 + $0xb8] sm:$0xff] %v4759
        %4792 = vst [vmem:[%s287 + $0xc0] sm:$0xff] %v4760
        %4793 = vst [vmem:[%s287 + $0xc8] sm:$0xff] %v4761
        %4794 = vst [vmem:[%s287 + $0xd0] sm:$0xff] %v4762
        %4795 = vst [vmem:[%s287 + $0xd8] sm:$0xff] %v4763
        %4796 = vst [vmem:[%s287 + $0xe0] sm:$0xff] %v4764
        %4797 = vst [vmem:[%s287 + $0xe8] sm:$0xff] %v4765
        %4798 = vst [vmem:[%s287 + $0xf0] sm:$0xff] %v4766
        %4799 = vst [vmem:[%s287 + $0xf8] sm:$0xff] %v4767
        %v4800 = vld [vmem:[#allocation7 + $0x3f] sm:$0x1]
        %v4801 = vld [vmem:[#allocation2] sm:$0xff]
        %v4802 = vld [vmem:[#allocation2 + $0x8] sm:$0xff]
        %v4803 = vld [vmem:[#allocation2 + $0x10] sm:$0xff]
        %v4804 = vld [vmem:[#allocation2 + $0x18] sm:$0xff]
        %v4805 = vld [vmem:[#allocation2 + $0x20] sm:$0xff]
        %v4806 = vld [vmem:[#allocation2 + $0x28] sm:$0xff]
        %v4807 = vld [vmem:[#allocation2 + $0x30] sm:$0xff]
        %v4808 = vld [vmem:[#allocation2 + $0x38] sm:$0xff]
        %v4809 = vld [vmem:[#allocation2 + $0x50] sm:$0xff]
        %v4810 = vld [vmem:[#allocation2 + $0x58] sm:$0xff]
        %v4811 = vld [vmem:[#allocation2 + $0x60] sm:$0xff]
        %v4812 = vld [vmem:[#allocation2 + $0x68] sm:$0xff]
        %v4813 = vld [vmem:[#allocation2 + $0x70] sm:$0xff]
        %v4814 = vld [vmem:[#allocation2 + $0x78] sm:$0xff]
        %v4815 = vld [vmem:[#allocation2 + $0x80] sm:$0xff]
        %v4816 = vld [vmem:[#allocation2 + $0x88] sm:$0xff]
        %v4817 = vld [vmem:[#allocation2 + $0xa0] sm:$0xff]
        %v4818 = vld [vmem:[#allocation2 + $0xa8] sm:$0xff]
        %v4819 = vld [vmem:[#allocation2 + $0xb0] sm:$0xff]
        %v4820 = vld [vmem:[#allocation2 + $0xb8] sm:$0xff]
        %v4821 = vld [vmem:[#allocation2 + $0xc0] sm:$0xff]
        %v4822 = vld [vmem:[#allocation2 + $0xc8] sm:$0xff]
        %v4823 = vld [vmem:[#allocation2 + $0xd0] sm:$0xff]
        %v4824 = vld [vmem:[#allocation2 + $0xd8] sm:$0xff]
        %v4825 = vld [vmem:[#allocation2 + $0xf0] sm:$0xff]
        %v4826 = vld [vmem:[#allocation2 + $0xf8] sm:$0xff]
        %v4827 = vld [vmem:[#allocation2 + $0x100] sm:$0xff]
        %v4828 = vld [vmem:[#allocation2 + $0x108] sm:$0xff]
        %v4829 = vld [vmem:[#allocation2 + $0x110] sm:$0xff]
        %v4830 = vld [vmem:[#allocation2 + $0x118] sm:$0xff]
        %v4831 = vld [vmem:[#allocation2 + $0x120] sm:$0xff]
        %v4832 = vld [vmem:[#allocation2 + $0x128] sm:$0xff]
        %v4833 = vlaneseq
        %v4834 = vshrl.u32 %v4833, 7
        %v4835 = vsub.s32 0, %v4834
        %v4836 = vrot.slane %v4800, %v4835
        %v4837 = vmul.f32 %v4801, %v4836
        %v4838 = vmul.f32 %v4802, %v4836
        %v4839 = vmul.f32 %v4803, %v4836
        %v4840 = vmul.f32 %v4804, %v4836
        %v4841 = vmul.f32 %v4805, %v4836
        %v4842 = vmul.f32 %v4806, %v4836
        %v4843 = vmul.f32 %v4807, %v4836
        %v4844 = vmul.f32 %v4808, %v4836
        %v4845 = vmul.f32 %v4809, %v4836
        %v4846 = vmul.f32 %v4810, %v4836
        %v4847 = vmul.f32 %v4811, %v4836
        %v4848 = vmul.f32 %v4812, %v4836
        %v4849 = vmul.f32 %v4813, %v4836
        %v4850 = vmul.f32 %v4814, %v4836
        %v4851 = vmul.f32 %v4815, %v4836
        %v4852 = vmul.f32 %v4816, %v4836
        %v4853 = vmul.f32 %v4817, %v4836
        %v4854 = vmul.f32 %v4818, %v4836
        %v4855 = vmul.f32 %v4819, %v4836
        %v4856 = vmul.f32 %v4820, %v4836
        %v4857 = vmul.f32 %v4821, %v4836
        %v4858 = vmul.f32 %v4822, %v4836
        %v4859 = vmul.f32 %v4823, %v4836
        %v4860 = vmul.f32 %v4824, %v4836
        %v4861 = vmul.f32 %v4825, %v4836
        %v4862 = vmul.f32 %v4826, %v4836
        %v4863 = vmul.f32 %v4827, %v4836
        %v4864 = vmul.f32 %v4828, %v4836
        %v4865 = vmul.f32 %v4829, %v4836
        %v4866 = vmul.f32 %v4830, %v4836
        %v4867 = vmul.f32 %v4831, %v4836
        %v4868 = vmul.f32 %v4832, %v4836
        %v4869 = vld [vmem:[#allocation7 + $0x40] sm:$0x1]
        %v4870 = vld [vmem:[%s673] sm:$0xff]
        %v4871 = vld [vmem:[%s673 + $0x8] sm:$0xff]
        %v4872 = vld [vmem:[%s673 + $0x10] sm:$0xff]
        %v4873 = vld [vmem:[%s673 + $0x18] sm:$0xff]
        %v4874 = vld [vmem:[%s673 + $0x20] sm:$0xff]
        %v4875 = vld [vmem:[%s673 + $0x28] sm:$0xff]
        %v4876 = vld [vmem:[%s673 + $0x30] sm:$0xff]
        %v4877 = vld [vmem:[%s673 + $0x38] sm:$0xff]
        %v4878 = vld [vmem:[%s673 + $0x50] sm:$0xff]
        %v4879 = vld [vmem:[%s673 + $0x58] sm:$0xff]
        %v4880 = vld [vmem:[%s673 + $0x60] sm:$0xff]
        %v4881 = vld [vmem:[%s673 + $0x68] sm:$0xff]
        %v4882 = vld [vmem:[%s673 + $0x70] sm:$0xff]
        %v4883 = vld [vmem:[%s673 + $0x78] sm:$0xff]
        %v4884 = vld [vmem:[%s673 + $0x80] sm:$0xff]
        %v4885 = vld [vmem:[%s673 + $0x88] sm:$0xff]
        %v4886 = vld [vmem:[%s673 + $0xa0] sm:$0xff]
        %v4887 = vld [vmem:[%s673 + $0xa8] sm:$0xff]
        %v4888 = vld [vmem:[%s673 + $0xb0] sm:$0xff]
        %v4889 = vld [vmem:[%s673 + $0xb8] sm:$0xff]
        %v4890 = vld [vmem:[%s673 + $0xc0] sm:$0xff]
        %v4891 = vld [vmem:[%s673 + $0xc8] sm:$0xff]
        %v4892 = vld [vmem:[%s673 + $0xd0] sm:$0xff]
        %v4893 = vld [vmem:[%s673 + $0xd8] sm:$0xff]
        %v4894 = vld [vmem:[%s673 + $0xf0] sm:$0xff]
        %v4895 = vld [vmem:[%s673 + $0xf8] sm:$0xff]
        %v4896 = vld [vmem:[%s673 + $0x100] sm:$0xff]
        %v4897 = vld [vmem:[%s673 + $0x108] sm:$0xff]
        %v4898 = vld [vmem:[%s673 + $0x110] sm:$0xff]
        %v4899 = vld [vmem:[%s673 + $0x118] sm:$0xff]
        %v4900 = vld [vmem:[%s673 + $0x120] sm:$0xff]
        %v4901 = vld [vmem:[%s673 + $0x128] sm:$0xff]
        %v4902 = vlaneseq
        %v4903 = vshrl.u32 %v4902, 7
        %v4904 = vsub.s32 0, %v4903
        %v4905 = vrot.slane %v4869, %v4904
        %v4906 = vmul.f32 %v4870, %v4905
        %v4907 = vmul.f32 %v4871, %v4905
        %v4908 = vmul.f32 %v4872, %v4905
        %v4909 = vmul.f32 %v4873, %v4905
        %v4910 = vmul.f32 %v4874, %v4905
        %v4911 = vmul.f32 %v4875, %v4905
        %v4912 = vmul.f32 %v4876, %v4905
        %v4913 = vmul.f32 %v4877, %v4905
        %v4914 = vmul.f32 %v4878, %v4905
        %v4915 = vmul.f32 %v4879, %v4905
        %v4916 = vmul.f32 %v4880, %v4905
        %v4917 = vmul.f32 %v4881, %v4905
        %v4918 = vmul.f32 %v4882, %v4905
        %v4919 = vmul.f32 %v4883, %v4905
        %v4920 = vmul.f32 %v4884, %v4905
        %v4921 = vmul.f32 %v4885, %v4905
        %v4922 = vmul.f32 %v4886, %v4905
        %v4923 = vmul.f32 %v4887, %v4905
        %v4924 = vmul.f32 %v4888, %v4905
        %v4925 = vmul.f32 %v4889, %v4905
        %v4926 = vmul.f32 %v4890, %v4905
        %v4927 = vmul.f32 %v4891, %v4905
        %v4928 = vmul.f32 %v4892, %v4905
        %v4929 = vmul.f32 %v4893, %v4905
        %v4930 = vmul.f32 %v4894, %v4905
        %v4931 = vmul.f32 %v4895, %v4905
        %v4932 = vmul.f32 %v4896, %v4905
        %v4933 = vmul.f32 %v4897, %v4905
        %v4934 = vmul.f32 %v4898, %v4905
        %v4935 = vmul.f32 %v4899, %v4905
        %v4936 = vmul.f32 %v4900, %v4905
        %v4937 = vmul.f32 %v4901, %v4905
        %v4938 = vadd.f32 %v4837, %v4906
        %v4939 = vadd.f32 %v4838, %v4907
        %v4940 = vadd.f32 %v4839, %v4908
        %v4941 = vadd.f32 %v4840, %v4909
        %v4942 = vadd.f32 %v4841, %v4910
        %v4943 = vadd.f32 %v4842, %v4911
        %v4944 = vadd.f32 %v4843, %v4912
        %v4945 = vadd.f32 %v4844, %v4913
        %v4946 = vadd.f32 %v4845, %v4914
        %v4947 = vadd.f32 %v4846, %v4915
        %v4948 = vadd.f32 %v4847, %v4916
        %v4949 = vadd.f32 %v4848, %v4917
        %v4950 = vadd.f32 %v4849, %v4918
        %v4951 = vadd.f32 %v4850, %v4919
        %v4952 = vadd.f32 %v4851, %v4920
        %v4953 = vadd.f32 %v4852, %v4921
        %v4954 = vadd.f32 %v4853, %v4922
        %v4955 = vadd.f32 %v4854, %v4923
        %v4956 = vadd.f32 %v4855, %v4924
        %v4957 = vadd.f32 %v4856, %v4925
        %v4958 = vadd.f32 %v4857, %v4926
        %v4959 = vadd.f32 %v4858, %v4927
        %v4960 = vadd.f32 %v4859, %v4928
        %v4961 = vadd.f32 %v4860, %v4929
        %v4962 = vadd.f32 %v4861, %v4930
        %v4963 = vadd.f32 %v4862, %v4931
        %v4964 = vadd.f32 %v4863, %v4932
        %v4965 = vadd.f32 %v4864, %v4933
        %v4966 = vadd.f32 %v4865, %v4934
        %v4967 = vadd.f32 %v4866, %v4935
        %v4968 = vadd.f32 %v4867, %v4936
        %v4969 = vadd.f32 %v4868, %v4937
        %v4970 = vld [vmem:[#allocation7 + $0x41] sm:$0x1]
        %v4971 = vld [vmem:[%s775] sm:$0xff]
        %v4972 = vld [vmem:[%s775 + $0x8] sm:$0xff]
        %v4973 = vld [vmem:[%s775 + $0x10] sm:$0xff]
        %v4974 = vld [vmem:[%s775 + $0x18] sm:$0xff]
        %v4975 = vld [vmem:[%s775 + $0x20] sm:$0xff]
        %v4976 = vld [vmem:[%s775 + $0x28] sm:$0xff]
        %v4977 = vld [vmem:[%s775 + $0x30] sm:$0xff]
        %v4978 = vld [vmem:[%s775 + $0x38] sm:$0xff]
        %v4979 = vld [vmem:[%s775 + $0x50] sm:$0xff]
        %v4980 = vld [vmem:[%s775 + $0x58] sm:$0xff]
        %v4981 = vld [vmem:[%s775 + $0x60] sm:$0xff]
        %v4982 = vld [vmem:[%s775 + $0x68] sm:$0xff]
        %v4983 = vld [vmem:[%s775 + $0x70] sm:$0xff]
        %v4984 = vld [vmem:[%s775 + $0x78] sm:$0xff]
        %v4985 = vld [vmem:[%s775 + $0x80] sm:$0xff]
        %v4986 = vld [vmem:[%s775 + $0x88] sm:$0xff]
        %v4987 = vld [vmem:[%s775 + $0xa0] sm:$0xff]
        %v4988 = vld [vmem:[%s775 + $0xa8] sm:$0xff]
        %v4989 = vld [vmem:[%s775 + $0xb0] sm:$0xff]
        %v4990 = vld [vmem:[%s775 + $0xb8] sm:$0xff]
        %v4991 = vld [vmem:[%s775 + $0xc0] sm:$0xff]
        %v4992 = vld [vmem:[%s775 + $0xc8] sm:$0xff]
        %v4993 = vld [vmem:[%s775 + $0xd0] sm:$0xff]
        %v4994 = vld [vmem:[%s775 + $0xd8] sm:$0xff]
        %v4995 = vld [vmem:[%s775 + $0xf0] sm:$0xff]
        %v4996 = vld [vmem:[%s775 + $0xf8] sm:$0xff]
        %v4997 = vld [vmem:[%s775 + $0x100] sm:$0xff]
        %v4998 = vld [vmem:[%s775 + $0x108] sm:$0xff]
        %v4999 = vld [vmem:[%s775 + $0x110] sm:$0xff]
        %v5000 = vld [vmem:[%s775 + $0x118] sm:$0xff]
        %v5001 = vld [vmem:[%s775 + $0x120] sm:$0xff]
        %v5002 = vld [vmem:[%s775 + $0x128] sm:$0xff]
        %v5003 = vlaneseq
        %v5004 = vshrl.u32 %v5003, 7
        %v5005 = vsub.s32 0, %v5004
        %v5006 = vrot.slane %v4970, %v5005
        %v5007 = vmul.f32 %v4971, %v5006
        %v5008 = vmul.f32 %v4972, %v5006
        %v5009 = vmul.f32 %v4973, %v5006
        %v5010 = vmul.f32 %v4974, %v5006
        %v5011 = vmul.f32 %v4975, %v5006
        %v5012 = vmul.f32 %v4976, %v5006
        %v5013 = vmul.f32 %v4977, %v5006
        %v5014 = vmul.f32 %v4978, %v5006
        %v5015 = vmul.f32 %v4979, %v5006
        %v5016 = vmul.f32 %v4980, %v5006
        %v5017 = vmul.f32 %v4981, %v5006
        %v5018 = vmul.f32 %v4982, %v5006
        %v5019 = vmul.f32 %v4983, %v5006
        %v5020 = vmul.f32 %v4984, %v5006
        %v5021 = vmul.f32 %v4985, %v5006
        %v5022 = vmul.f32 %v4986, %v5006
        %v5023 = vmul.f32 %v4987, %v5006
        %v5024 = vmul.f32 %v4988, %v5006
        %v5025 = vmul.f32 %v4989, %v5006
        %v5026 = vmul.f32 %v4990, %v5006
        %v5027 = vmul.f32 %v4991, %v5006
        %v5028 = vmul.f32 %v4992, %v5006
        %v5029 = vmul.f32 %v4993, %v5006
        %v5030 = vmul.f32 %v4994, %v5006
        %v5031 = vmul.f32 %v4995, %v5006
        %v5032 = vmul.f32 %v4996, %v5006
        %v5033 = vmul.f32 %v4997, %v5006
        %v5034 = vmul.f32 %v4998, %v5006
        %v5035 = vmul.f32 %v4999, %v5006
        %v5036 = vmul.f32 %v5000, %v5006
        %v5037 = vmul.f32 %v5001, %v5006
        %v5038 = vmul.f32 %v5002, %v5006
        %v5039 = vadd.f32 %v4938, %v5007
        %v5040 = vadd.f32 %v4939, %v5008
        %v5041 = vadd.f32 %v4940, %v5009
        %v5042 = vadd.f32 %v4941, %v5010
        %v5043 = vadd.f32 %v4942, %v5011
        %v5044 = vadd.f32 %v4943, %v5012
        %v5045 = vadd.f32 %v4944, %v5013
        %v5046 = vadd.f32 %v4945, %v5014
        %v5047 = vadd.f32 %v4946, %v5015
        %v5048 = vadd.f32 %v4947, %v5016
        %v5049 = vadd.f32 %v4948, %v5017
        %v5050 = vadd.f32 %v4949, %v5018
        %v5051 = vadd.f32 %v4950, %v5019
        %v5052 = vadd.f32 %v4951, %v5020
        %v5053 = vadd.f32 %v4952, %v5021
        %v5054 = vadd.f32 %v4953, %v5022
        %v5055 = vadd.f32 %v4954, %v5023
        %v5056 = vadd.f32 %v4955, %v5024
        %v5057 = vadd.f32 %v4956, %v5025
        %v5058 = vadd.f32 %v4957, %v5026
        %v5059 = vadd.f32 %v4958, %v5027
        %v5060 = vadd.f32 %v4959, %v5028
        %v5061 = vadd.f32 %v4960, %v5029
        %v5062 = vadd.f32 %v4961, %v5030
        %v5063 = vadd.f32 %v4962, %v5031
        %v5064 = vadd.f32 %v4963, %v5032
        %v5065 = vadd.f32 %v4964, %v5033
        %v5066 = vadd.f32 %v4965, %v5034
        %v5067 = vadd.f32 %v4966, %v5035
        %v5068 = vadd.f32 %v4967, %v5036
        %v5069 = vadd.f32 %v4968, %v5037
        %v5070 = vadd.f32 %v4969, %v5038
        %v5071 = vld [vmem:[#allocation7 + $0x42] sm:$0x1]
        %v5072 = vld [vmem:[%s505] sm:$0xff]
        %v5073 = vld [vmem:[%s505 + $0x8] sm:$0xff]
        %v5074 = vld [vmem:[%s505 + $0x10] sm:$0xff]
        %v5075 = vld [vmem:[%s505 + $0x18] sm:$0xff]
        %v5076 = vld [vmem:[%s505 + $0x20] sm:$0xff]
        %v5077 = vld [vmem:[%s505 + $0x28] sm:$0xff]
        %v5078 = vld [vmem:[%s505 + $0x30] sm:$0xff]
        %v5079 = vld [vmem:[%s505 + $0x38] sm:$0xff]
        %v5080 = vld [vmem:[%s505 + $0x50] sm:$0xff]
        %v5081 = vld [vmem:[%s505 + $0x58] sm:$0xff]
        %v5082 = vld [vmem:[%s505 + $0x60] sm:$0xff]
        %v5083 = vld [vmem:[%s505 + $0x68] sm:$0xff]
        %v5084 = vld [vmem:[%s505 + $0x70] sm:$0xff]
        %v5085 = vld [vmem:[%s505 + $0x78] sm:$0xff]
        %v5086 = vld [vmem:[%s505 + $0x80] sm:$0xff]
        %v5087 = vld [vmem:[%s505 + $0x88] sm:$0xff]
        %v5088 = vld [vmem:[%s505 + $0xa0] sm:$0xff]
        %v5089 = vld [vmem:[%s505 + $0xa8] sm:$0xff]
        %v5090 = vld [vmem:[%s505 + $0xb0] sm:$0xff]
        %v5091 = vld [vmem:[%s505 + $0xb8] sm:$0xff]
        %v5092 = vld [vmem:[%s505 + $0xc0] sm:$0xff]
        %v5093 = vld [vmem:[%s505 + $0xc8] sm:$0xff]
        %v5094 = vld [vmem:[%s505 + $0xd0] sm:$0xff]
        %v5095 = vld [vmem:[%s505 + $0xd8] sm:$0xff]
        %v5096 = vld [vmem:[%s505 + $0xf0] sm:$0xff]
        %v5097 = vld [vmem:[%s505 + $0xf8] sm:$0xff]
        %v5098 = vld [vmem:[%s505 + $0x100] sm:$0xff]
        %v5099 = vld [vmem:[%s505 + $0x108] sm:$0xff]
        %v5100 = vld [vmem:[%s505 + $0x110] sm:$0xff]
        %v5101 = vld [vmem:[%s505 + $0x118] sm:$0xff]
        %v5102 = vld [vmem:[%s505 + $0x120] sm:$0xff]
        %v5103 = vld [vmem:[%s505 + $0x128] sm:$0xff]
        %v5104 = vlaneseq
        %v5105 = vshrl.u32 %v5104, 7
        %v5106 = vsub.s32 0, %v5105
        %v5107 = vrot.slane %v5071, %v5106
        %v5108 = vmul.f32 %v5072, %v5107
        %v5109 = vmul.f32 %v5073, %v5107
        %v5110 = vmul.f32 %v5074, %v5107
        %v5111 = vmul.f32 %v5075, %v5107
        %v5112 = vmul.f32 %v5076, %v5107
        %v5113 = vmul.f32 %v5077, %v5107
        %v5114 = vmul.f32 %v5078, %v5107
        %v5115 = vmul.f32 %v5079, %v5107
        %v5116 = vmul.f32 %v5080, %v5107
        %v5117 = vmul.f32 %v5081, %v5107
        %v5118 = vmul.f32 %v5082, %v5107
        %v5119 = vmul.f32 %v5083, %v5107
        %v5120 = vmul.f32 %v5084, %v5107
        %v5121 = vmul.f32 %v5085, %v5107
        %v5122 = vmul.f32 %v5086, %v5107
        %v5123 = vmul.f32 %v5087, %v5107
        %v5124 = vmul.f32 %v5088, %v5107
        %v5125 = vmul.f32 %v5089, %v5107
        %v5126 = vmul.f32 %v5090, %v5107
        %v5127 = vmul.f32 %v5091, %v5107
        %v5128 = vmul.f32 %v5092, %v5107
        %v5129 = vmul.f32 %v5093, %v5107
        %v5130 = vmul.f32 %v5094, %v5107
        %v5131 = vmul.f32 %v5095, %v5107
        %v5132 = vmul.f32 %v5096, %v5107
        %v5133 = vmul.f32 %v5097, %v5107
        %v5134 = vmul.f32 %v5098, %v5107
        %v5135 = vmul.f32 %v5099, %v5107
        %v5136 = vmul.f32 %v5100, %v5107
        %v5137 = vmul.f32 %v5101, %v5107
        %v5138 = vmul.f32 %v5102, %v5107
        %v5139 = vmul.f32 %v5103, %v5107
        %v5140 = vadd.f32 %v5039, %v5108
        %v5141 = vadd.f32 %v5040, %v5109
        %v5142 = vadd.f32 %v5041, %v5110
        %v5143 = vadd.f32 %v5042, %v5111
        %v5144 = vadd.f32 %v5043, %v5112
        %v5145 = vadd.f32 %v5044, %v5113
        %v5146 = vadd.f32 %v5045, %v5114
        %v5147 = vadd.f32 %v5046, %v5115
        %v5148 = vadd.f32 %v5047, %v5116
        %v5149 = vadd.f32 %v5048, %v5117
        %v5150 = vadd.f32 %v5049, %v5118
        %v5151 = vadd.f32 %v5050, %v5119
        %v5152 = vadd.f32 %v5051, %v5120
        %v5153 = vadd.f32 %v5052, %v5121
        %v5154 = vadd.f32 %v5053, %v5122
        %v5155 = vadd.f32 %v5054, %v5123
        %v5156 = vadd.f32 %v5055, %v5124
        %v5157 = vadd.f32 %v5056, %v5125
        %v5158 = vadd.f32 %v5057, %v5126
        %v5159 = vadd.f32 %v5058, %v5127
        %v5160 = vadd.f32 %v5059, %v5128
        %v5161 = vadd.f32 %v5060, %v5129
        %v5162 = vadd.f32 %v5061, %v5130
        %v5163 = vadd.f32 %v5062, %v5131
        %v5164 = vadd.f32 %v5063, %v5132
        %v5165 = vadd.f32 %v5064, %v5133
        %v5166 = vadd.f32 %v5065, %v5134
        %v5167 = vadd.f32 %v5066, %v5135
        %v5168 = vadd.f32 %v5067, %v5136
        %v5169 = vadd.f32 %v5068, %v5137
        %v5170 = vadd.f32 %v5069, %v5138
        %v5171 = vadd.f32 %v5070, %v5139
        %v5172 = vld [vmem:[#allocation7 + $0x43] sm:$0x1]
        %v5173 = vld [vmem:[%s440] sm:$0xff]
        %v5174 = vld [vmem:[%s440 + $0x8] sm:$0xff]
        %v5175 = vld [vmem:[%s440 + $0x10] sm:$0xff]
        %v5176 = vld [vmem:[%s440 + $0x18] sm:$0xff]
        %v5177 = vld [vmem:[%s440 + $0x20] sm:$0xff]
        %v5178 = vld [vmem:[%s440 + $0x28] sm:$0xff]
        %v5179 = vld [vmem:[%s440 + $0x30] sm:$0xff]
        %v5180 = vld [vmem:[%s440 + $0x38] sm:$0xff]
        %v5181 = vld [vmem:[%s440 + $0x50] sm:$0xff]
        %v5182 = vld [vmem:[%s440 + $0x58] sm:$0xff]
        %v5183 = vld [vmem:[%s440 + $0x60] sm:$0xff]
        %v5184 = vld [vmem:[%s440 + $0x68] sm:$0xff]
        %v5185 = vld [vmem:[%s440 + $0x70] sm:$0xff]
        %v5186 = vld [vmem:[%s440 + $0x78] sm:$0xff]
        %v5187 = vld [vmem:[%s440 + $0x80] sm:$0xff]
        %v5188 = vld [vmem:[%s440 + $0x88] sm:$0xff]
        %v5189 = vld [vmem:[%s440 + $0xa0] sm:$0xff]
        %v5190 = vld [vmem:[%s440 + $0xa8] sm:$0xff]
        %v5191 = vld [vmem:[%s440 + $0xb0] sm:$0xff]
        %v5192 = vld [vmem:[%s440 + $0xb8] sm:$0xff]
        %v5193 = vld [vmem:[%s440 + $0xc0] sm:$0xff]
        %v5194 = vld [vmem:[%s440 + $0xc8] sm:$0xff]
        %v5195 = vld [vmem:[%s440 + $0xd0] sm:$0xff]
        %v5196 = vld [vmem:[%s440 + $0xd8] sm:$0xff]
        %v5197 = vld [vmem:[%s440 + $0xf0] sm:$0xff]
        %v5198 = vld [vmem:[%s440 + $0xf8] sm:$0xff]
        %v5199 = vld [vmem:[%s440 + $0x100] sm:$0xff]
        %v5200 = vld [vmem:[%s440 + $0x108] sm:$0xff]
        %v5201 = vld [vmem:[%s440 + $0x110] sm:$0xff]
        %v5202 = vld [vmem:[%s440 + $0x118] sm:$0xff]
        %v5203 = vld [vmem:[%s440 + $0x120] sm:$0xff]
        %v5204 = vld [vmem:[%s440 + $0x128] sm:$0xff]
        %v5205 = vlaneseq
        %v5206 = vshrl.u32 %v5205, 7
        %v5207 = vsub.s32 0, %v5206
        %v5208 = vrot.slane %v5172, %v5207
        %v5209 = vmul.f32 %v5173, %v5208
        %v5210 = vmul.f32 %v5174, %v5208
        %v5211 = vmul.f32 %v5175, %v5208
        %v5212 = vmul.f32 %v5176, %v5208
        %v5213 = vmul.f32 %v5177, %v5208
        %v5214 = vmul.f32 %v5178, %v5208
        %v5215 = vmul.f32 %v5179, %v5208
        %v5216 = vmul.f32 %v5180, %v5208
        %v5217 = vmul.f32 %v5181, %v5208
        %v5218 = vmul.f32 %v5182, %v5208
        %v5219 = vmul.f32 %v5183, %v5208
        %v5220 = vmul.f32 %v5184, %v5208
        %v5221 = vmul.f32 %v5185, %v5208
        %v5222 = vmul.f32 %v5186, %v5208
        %v5223 = vmul.f32 %v5187, %v5208
        %v5224 = vmul.f32 %v5188, %v5208
        %v5225 = vmul.f32 %v5189, %v5208
        %v5226 = vmul.f32 %v5190, %v5208
        %v5227 = vmul.f32 %v5191, %v5208
        %v5228 = vmul.f32 %v5192, %v5208
        %v5229 = vmul.f32 %v5193, %v5208
        %v5230 = vmul.f32 %v5194, %v5208
        %v5231 = vmul.f32 %v5195, %v5208
        %v5232 = vmul.f32 %v5196, %v5208
        %v5233 = vmul.f32 %v5197, %v5208
        %v5234 = vmul.f32 %v5198, %v5208
        %v5235 = vmul.f32 %v5199, %v5208
        %v5236 = vmul.f32 %v5200, %v5208
        %v5237 = vmul.f32 %v5201, %v5208
        %v5238 = vmul.f32 %v5202, %v5208
        %v5239 = vmul.f32 %v5203, %v5208
        %v5240 = vmul.f32 %v5204, %v5208
        %v5241 = vadd.f32 %v5140, %v5209
        %v5242 = vadd.f32 %v5141, %v5210
        %v5243 = vadd.f32 %v5142, %v5211
        %v5244 = vadd.f32 %v5143, %v5212
        %v5245 = vadd.f32 %v5144, %v5213
        %v5246 = vadd.f32 %v5145, %v5214
        %v5247 = vadd.f32 %v5146, %v5215
        %v5248 = vadd.f32 %v5147, %v5216
        %v5249 = vadd.f32 %v5148, %v5217
        %v5250 = vadd.f32 %v5149, %v5218
        %v5251 = vadd.f32 %v5150, %v5219
        %v5252 = vadd.f32 %v5151, %v5220
        %v5253 = vadd.f32 %v5152, %v5221
        %v5254 = vadd.f32 %v5153, %v5222
        %v5255 = vadd.f32 %v5154, %v5223
        %v5256 = vadd.f32 %v5155, %v5224
        %v5257 = vadd.f32 %v5156, %v5225
        %v5258 = vadd.f32 %v5157, %v5226
        %v5259 = vadd.f32 %v5158, %v5227
        %v5260 = vadd.f32 %v5159, %v5228
        %v5261 = vadd.f32 %v5160, %v5229
        %v5262 = vadd.f32 %v5161, %v5230
        %v5263 = vadd.f32 %v5162, %v5231
        %v5264 = vadd.f32 %v5163, %v5232
        %v5265 = vadd.f32 %v5164, %v5233
        %v5266 = vadd.f32 %v5165, %v5234
        %v5267 = vadd.f32 %v5166, %v5235
        %v5268 = vadd.f32 %v5167, %v5236
        %v5269 = vadd.f32 %v5168, %v5237
        %v5270 = vadd.f32 %v5169, %v5238
        %v5271 = vadd.f32 %v5170, %v5239
        %v5272 = vadd.f32 %v5171, %v5240
        %v5273 = vld [vmem:[#allocation7 + $0x44] sm:$0x1]
        %v5274 = vld [vmem:[%s570] sm:$0xff]
        %v5275 = vld [vmem:[%s570 + $0x8] sm:$0xff]
        %v5276 = vld [vmem:[%s570 + $0x10] sm:$0xff]
        %v5277 = vld [vmem:[%s570 + $0x18] sm:$0xff]
        %v5278 = vld [vmem:[%s570 + $0x20] sm:$0xff]
        %v5279 = vld [vmem:[%s570 + $0x28] sm:$0xff]
        %v5280 = vld [vmem:[%s570 + $0x30] sm:$0xff]
        %v5281 = vld [vmem:[%s570 + $0x38] sm:$0xff]
        %v5282 = vld [vmem:[%s570 + $0x50] sm:$0xff]
        %v5283 = vld [vmem:[%s570 + $0x58] sm:$0xff]
        %v5284 = vld [vmem:[%s570 + $0x60] sm:$0xff]
        %v5285 = vld [vmem:[%s570 + $0x68] sm:$0xff]
        %v5286 = vld [vmem:[%s570 + $0x70] sm:$0xff]
        %v5287 = vld [vmem:[%s570 + $0x78] sm:$0xff]
        %v5288 = vld [vmem:[%s570 + $0x80] sm:$0xff]
        %v5289 = vld [vmem:[%s570 + $0x88] sm:$0xff]
        %v5290 = vld [vmem:[%s570 + $0xa0] sm:$0xff]
        %v5291 = vld [vmem:[%s570 + $0xa8] sm:$0xff]
        %v5292 = vld [vmem:[%s570 + $0xb0] sm:$0xff]
        %v5293 = vld [vmem:[%s570 + $0xb8] sm:$0xff]
        %v5294 = vld [vmem:[%s570 + $0xc0] sm:$0xff]
        %v5295 = vld [vmem:[%s570 + $0xc8] sm:$0xff]
        %v5296 = vld [vmem:[%s570 + $0xd0] sm:$0xff]
        %v5297 = vld [vmem:[%s570 + $0xd8] sm:$0xff]
        %v5298 = vld [vmem:[%s570 + $0xf0] sm:$0xff]
        %v5299 = vld [vmem:[%s570 + $0xf8] sm:$0xff]
        %v5300 = vld [vmem:[%s570 + $0x100] sm:$0xff]
        %v5301 = vld [vmem:[%s570 + $0x108] sm:$0xff]
        %v5302 = vld [vmem:[%s570 + $0x110] sm:$0xff]
        %v5303 = vld [vmem:[%s570 + $0x118] sm:$0xff]
        %v5304 = vld [vmem:[%s570 + $0x120] sm:$0xff]
        %v5305 = vld [vmem:[%s570 + $0x128] sm:$0xff]
        %v5306 = vlaneseq
        %v5307 = vshrl.u32 %v5306, 7
        %v5308 = vsub.s32 0, %v5307
        %v5309 = vrot.slane %v5273, %v5308
        %v5310 = vmul.f32 %v5274, %v5309
        %v5311 = vmul.f32 %v5275, %v5309
        %v5312 = vmul.f32 %v5276, %v5309
        %v5313 = vmul.f32 %v5277, %v5309
        %v5314 = vmul.f32 %v5278, %v5309
        %v5315 = vmul.f32 %v5279, %v5309
        %v5316 = vmul.f32 %v5280, %v5309
        %v5317 = vmul.f32 %v5281, %v5309
        %v5318 = vmul.f32 %v5282, %v5309
        %v5319 = vmul.f32 %v5283, %v5309
        %v5320 = vmul.f32 %v5284, %v5309
        %v5321 = vmul.f32 %v5285, %v5309
        %v5322 = vmul.f32 %v5286, %v5309
        %v5323 = vmul.f32 %v5287, %v5309
        %v5324 = vmul.f32 %v5288, %v5309
        %v5325 = vmul.f32 %v5289, %v5309
        %v5326 = vmul.f32 %v5290, %v5309
        %v5327 = vmul.f32 %v5291, %v5309
        %v5328 = vmul.f32 %v5292, %v5309
        %v5329 = vmul.f32 %v5293, %v5309
        %v5330 = vmul.f32 %v5294, %v5309
        %v5331 = vmul.f32 %v5295, %v5309
        %v5332 = vmul.f32 %v5296, %v5309
        %v5333 = vmul.f32 %v5297, %v5309
        %v5334 = vmul.f32 %v5298, %v5309
        %v5335 = vmul.f32 %v5299, %v5309
        %v5336 = vmul.f32 %v5300, %v5309
        %v5337 = vmul.f32 %v5301, %v5309
        %v5338 = vmul.f32 %v5302, %v5309
        %v5339 = vmul.f32 %v5303, %v5309
        %v5340 = vmul.f32 %v5304, %v5309
        %v5341 = vmul.f32 %v5305, %v5309
        %v5342 = vadd.f32 %v5241, %v5310
        %v5343 = vadd.f32 %v5242, %v5311
        %v5344 = vadd.f32 %v5243, %v5312
        %v5345 = vadd.f32 %v5244, %v5313
        %v5346 = vadd.f32 %v5245, %v5314
        %v5347 = vadd.f32 %v5246, %v5315
        %v5348 = vadd.f32 %v5247, %v5316
        %v5349 = vadd.f32 %v5248, %v5317
        %v5350 = vadd.f32 %v5249, %v5318
        %v5351 = vadd.f32 %v5250, %v5319
        %v5352 = vadd.f32 %v5251, %v5320
        %v5353 = vadd.f32 %v5252, %v5321
        %v5354 = vadd.f32 %v5253, %v5322
        %v5355 = vadd.f32 %v5254, %v5323
        %v5356 = vadd.f32 %v5255, %v5324
        %v5357 = vadd.f32 %v5256, %v5325
        %v5358 = vadd.f32 %v5257, %v5326
        %v5359 = vadd.f32 %v5258, %v5327
        %v5360 = vadd.f32 %v5259, %v5328
        %v5361 = vadd.f32 %v5260, %v5329
        %v5362 = vadd.f32 %v5261, %v5330
        %v5363 = vadd.f32 %v5262, %v5331
        %v5364 = vadd.f32 %v5263, %v5332
        %v5365 = vadd.f32 %v5264, %v5333
        %v5366 = vadd.f32 %v5265, %v5334
        %v5367 = vadd.f32 %v5266, %v5335
        %v5368 = vadd.f32 %v5267, %v5336
        %v5369 = vadd.f32 %v5268, %v5337
        %v5370 = vadd.f32 %v5269, %v5338
        %v5371 = vadd.f32 %v5270, %v5339
        %v5372 = vadd.f32 %v5271, %v5340
        %v5373 = vadd.f32 %v5272, %v5341
        %v5374 = vld [vmem:[#allocation7 + $0x45] sm:$0x1]
        %v5375 = vld [vmem:[%s1180] sm:$0xff]
        %v5376 = vld [vmem:[%s1180 + $0x8] sm:$0xff]
        %v5377 = vld [vmem:[%s1180 + $0x10] sm:$0xff]
        %v5378 = vld [vmem:[%s1180 + $0x18] sm:$0xff]
        %v5379 = vld [vmem:[%s1180 + $0x20] sm:$0xff]
        %v5380 = vld [vmem:[%s1180 + $0x28] sm:$0xff]
        %v5381 = vld [vmem:[%s1180 + $0x30] sm:$0xff]
        %v5382 = vld [vmem:[%s1180 + $0x38] sm:$0xff]
        %v5383 = vld [vmem:[%s1180 + $0x50] sm:$0xff]
        %v5384 = vld [vmem:[%s1180 + $0x58] sm:$0xff]
        %v5385 = vld [vmem:[%s1180 + $0x60] sm:$0xff]
        %v5386 = vld [vmem:[%s1180 + $0x68] sm:$0xff]
        %v5387 = vld [vmem:[%s1180 + $0x70] sm:$0xff]
        %v5388 = vld [vmem:[%s1180 + $0x78] sm:$0xff]
        %v5389 = vld [vmem:[%s1180 + $0x80] sm:$0xff]
        %v5390 = vld [vmem:[%s1180 + $0x88] sm:$0xff]
        %v5391 = vld [vmem:[%s1180 + $0xa0] sm:$0xff]
        %v5392 = vld [vmem:[%s1180 + $0xa8] sm:$0xff]
        %v5393 = vld [vmem:[%s1180 + $0xb0] sm:$0xff]
        %v5394 = vld [vmem:[%s1180 + $0xb8] sm:$0xff]
        %v5395 = vld [vmem:[%s1180 + $0xc0] sm:$0xff]
        %v5396 = vld [vmem:[%s1180 + $0xc8] sm:$0xff]
        %v5397 = vld [vmem:[%s1180 + $0xd0] sm:$0xff]
        %v5398 = vld [vmem:[%s1180 + $0xd8] sm:$0xff]
        %v5399 = vld [vmem:[%s1180 + $0xf0] sm:$0xff]
        %v5400 = vld [vmem:[%s1180 + $0xf8] sm:$0xff]
        %v5401 = vld [vmem:[%s1180 + $0x100] sm:$0xff]
        %v5402 = vld [vmem:[%s1180 + $0x108] sm:$0xff]
        %v5403 = vld [vmem:[%s1180 + $0x110] sm:$0xff]
        %v5404 = vld [vmem:[%s1180 + $0x118] sm:$0xff]
        %v5405 = vld [vmem:[%s1180 + $0x120] sm:$0xff]
        %v5406 = vld [vmem:[%s1180 + $0x128] sm:$0xff]
        %v5407 = vlaneseq
        %v5408 = vshrl.u32 %v5407, 7
        %v5409 = vsub.s32 0, %v5408
        %v5410 = vrot.slane %v5374, %v5409
        %v5411 = vmul.f32 %v5375, %v5410
        %v5412 = vmul.f32 %v5376, %v5410
        %v5413 = vmul.f32 %v5377, %v5410
        %v5414 = vmul.f32 %v5378, %v5410
        %v5415 = vmul.f32 %v5379, %v5410
        %v5416 = vmul.f32 %v5380, %v5410
        %v5417 = vmul.f32 %v5381, %v5410
        %v5418 = vmul.f32 %v5382, %v5410
        %v5419 = vmul.f32 %v5383, %v5410
        %v5420 = vmul.f32 %v5384, %v5410
        %v5421 = vmul.f32 %v5385, %v5410
        %v5422 = vmul.f32 %v5386, %v5410
        %v5423 = vmul.f32 %v5387, %v5410
        %v5424 = vmul.f32 %v5388, %v5410
        %v5425 = vmul.f32 %v5389, %v5410
        %v5426 = vmul.f32 %v5390, %v5410
        %v5427 = vmul.f32 %v5391, %v5410
        %v5428 = vmul.f32 %v5392, %v5410
        %v5429 = vmul.f32 %v5393, %v5410
        %v5430 = vmul.f32 %v5394, %v5410
        %v5431 = vmul.f32 %v5395, %v5410
        %v5432 = vmul.f32 %v5396, %v5410
        %v5433 = vmul.f32 %v5397, %v5410
        %v5434 = vmul.f32 %v5398, %v5410
        %v5435 = vmul.f32 %v5399, %v5410
        %v5436 = vmul.f32 %v5400, %v5410
        %v5437 = vmul.f32 %v5401, %v5410
        %v5438 = vmul.f32 %v5402, %v5410
        %v5439 = vmul.f32 %v5403, %v5410
        %v5440 = vmul.f32 %v5404, %v5410
        %v5441 = vmul.f32 %v5405, %v5410
        %v5442 = vmul.f32 %v5406, %v5410
        %v5443 = vadd.f32 %v5342, %v5411
        %v5444 = vadd.f32 %v5343, %v5412
        %v5445 = vadd.f32 %v5344, %v5413
        %v5446 = vadd.f32 %v5345, %v5414
        %v5447 = vadd.f32 %v5346, %v5415
        %v5448 = vadd.f32 %v5347, %v5416
        %v5449 = vadd.f32 %v5348, %v5417
        %v5450 = vadd.f32 %v5349, %v5418
        %v5451 = vadd.f32 %v5350, %v5419
        %v5452 = vadd.f32 %v5351, %v5420
        %v5453 = vadd.f32 %v5352, %v5421
        %v5454 = vadd.f32 %v5353, %v5422
        %v5455 = vadd.f32 %v5354, %v5423
        %v5456 = vadd.f32 %v5355, %v5424
        %v5457 = vadd.f32 %v5356, %v5425
        %v5458 = vadd.f32 %v5357, %v5426
        %v5459 = vadd.f32 %v5358, %v5427
        %v5460 = vadd.f32 %v5359, %v5428
        %v5461 = vadd.f32 %v5360, %v5429
        %v5462 = vadd.f32 %v5361, %v5430
        %v5463 = vadd.f32 %v5362, %v5431
        %v5464 = vadd.f32 %v5363, %v5432
        %v5465 = vadd.f32 %v5364, %v5433
        %v5466 = vadd.f32 %v5365, %v5434
        %v5467 = vadd.f32 %v5366, %v5435
        %v5468 = vadd.f32 %v5367, %v5436
        %v5469 = vadd.f32 %v5368, %v5437
        %v5470 = vadd.f32 %v5369, %v5438
        %v5471 = vadd.f32 %v5370, %v5439
        %v5472 = vadd.f32 %v5371, %v5440
        %v5473 = vadd.f32 %v5372, %v5441
        %v5474 = vadd.f32 %v5373, %v5442
        %v5475 = vld [vmem:[#allocation7 + $0x46] sm:$0x1]
        %v5476 = vld [vmem:[%s1282] sm:$0xff]
        %v5477 = vld [vmem:[%s1282 + $0x8] sm:$0xff]
        %v5478 = vld [vmem:[%s1282 + $0x10] sm:$0xff]
        %v5479 = vld [vmem:[%s1282 + $0x18] sm:$0xff]
        %v5480 = vld [vmem:[%s1282 + $0x20] sm:$0xff]
        %v5481 = vld [vmem:[%s1282 + $0x28] sm:$0xff]
        %v5482 = vld [vmem:[%s1282 + $0x30] sm:$0xff]
        %v5483 = vld [vmem:[%s1282 + $0x38] sm:$0xff]
        %v5484 = vld [vmem:[%s1282 + $0x50] sm:$0xff]
        %v5485 = vld [vmem:[%s1282 + $0x58] sm:$0xff]
        %v5486 = vld [vmem:[%s1282 + $0x60] sm:$0xff]
        %v5487 = vld [vmem:[%s1282 + $0x68] sm:$0xff]
        %v5488 = vld [vmem:[%s1282 + $0x70] sm:$0xff]
        %v5489 = vld [vmem:[%s1282 + $0x78] sm:$0xff]
        %v5490 = vld [vmem:[%s1282 + $0x80] sm:$0xff]
        %v5491 = vld [vmem:[%s1282 + $0x88] sm:$0xff]
        %v5492 = vld [vmem:[%s1282 + $0xa0] sm:$0xff]
        %v5493 = vld [vmem:[%s1282 + $0xa8] sm:$0xff]
        %v5494 = vld [vmem:[%s1282 + $0xb0] sm:$0xff]
        %v5495 = vld [vmem:[%s1282 + $0xb8] sm:$0xff]
        %v5496 = vld [vmem:[%s1282 + $0xc0] sm:$0xff]
        %v5497 = vld [vmem:[%s1282 + $0xc8] sm:$0xff]
        %v5498 = vld [vmem:[%s1282 + $0xd0] sm:$0xff]
        %v5499 = vld [vmem:[%s1282 + $0xd8] sm:$0xff]
        %v5500 = vld [vmem:[%s1282 + $0xf0] sm:$0xff]
        %v5501 = vld [vmem:[%s1282 + $0xf8] sm:$0xff]
        %v5502 = vld [vmem:[%s1282 + $0x100] sm:$0xff]
        %v5503 = vld [vmem:[%s1282 + $0x108] sm:$0xff]
        %v5504 = vld [vmem:[%s1282 + $0x110] sm:$0xff]
        %v5505 = vld [vmem:[%s1282 + $0x118] sm:$0xff]
        %v5506 = vld [vmem:[%s1282 + $0x120] sm:$0xff]
        %v5507 = vld [vmem:[%s1282 + $0x128] sm:$0xff]
        %v5508 = vlaneseq
        %v5509 = vshrl.u32 %v5508, 7
        %v5510 = vsub.s32 0, %v5509
        %v5511 = vrot.slane %v5475, %v5510
        %v5512 = vmul.f32 %v5476, %v5511
        %v5513 = vmul.f32 %v5477, %v5511
        %v5514 = vmul.f32 %v5478, %v5511
        %v5515 = vmul.f32 %v5479, %v5511
        %v5516 = vmul.f32 %v5480, %v5511
        %v5517 = vmul.f32 %v5481, %v5511
        %v5518 = vmul.f32 %v5482, %v5511
        %v5519 = vmul.f32 %v5483, %v5511
        %v5520 = vmul.f32 %v5484, %v5511
        %v5521 = vmul.f32 %v5485, %v5511
        %v5522 = vmul.f32 %v5486, %v5511
        %v5523 = vmul.f32 %v5487, %v5511
        %v5524 = vmul.f32 %v5488, %v5511
        %v5525 = vmul.f32 %v5489, %v5511
        %v5526 = vmul.f32 %v5490, %v5511
        %v5527 = vmul.f32 %v5491, %v5511
        %v5528 = vmul.f32 %v5492, %v5511
        %v5529 = vmul.f32 %v5493, %v5511
        %v5530 = vmul.f32 %v5494, %v5511
        %v5531 = vmul.f32 %v5495, %v5511
        %v5532 = vmul.f32 %v5496, %v5511
        %v5533 = vmul.f32 %v5497, %v5511
        %v5534 = vmul.f32 %v5498, %v5511
        %v5535 = vmul.f32 %v5499, %v5511
        %v5536 = vmul.f32 %v5500, %v5511
        %v5537 = vmul.f32 %v5501, %v5511
        %v5538 = vmul.f32 %v5502, %v5511
        %v5539 = vmul.f32 %v5503, %v5511
        %v5540 = vmul.f32 %v5504, %v5511
        %v5541 = vmul.f32 %v5505, %v5511
        %v5542 = vmul.f32 %v5506, %v5511
        %v5543 = vmul.f32 %v5507, %v5511
        %v5544 = vadd.f32 %v5443, %v5512
        %v5545 = vadd.f32 %v5444, %v5513
        %v5546 = vadd.f32 %v5445, %v5514
        %v5547 = vadd.f32 %v5446, %v5515
        %v5548 = vadd.f32 %v5447, %v5516
        %v5549 = vadd.f32 %v5448, %v5517
        %v5550 = vadd.f32 %v5449, %v5518
        %v5551 = vadd.f32 %v5450, %v5519
        %v5552 = vadd.f32 %v5451, %v5520
        %v5553 = vadd.f32 %v5452, %v5521
        %v5554 = vadd.f32 %v5453, %v5522
        %v5555 = vadd.f32 %v5454, %v5523
        %v5556 = vadd.f32 %v5455, %v5524
        %v5557 = vadd.f32 %v5456, %v5525
        %v5558 = vadd.f32 %v5457, %v5526
        %v5559 = vadd.f32 %v5458, %v5527
        %v5560 = vadd.f32 %v5459, %v5528
        %v5561 = vadd.f32 %v5460, %v5529
        %v5562 = vadd.f32 %v5461, %v5530
        %v5563 = vadd.f32 %v5462, %v5531
        %v5564 = vadd.f32 %v5463, %v5532
        %v5565 = vadd.f32 %v5464, %v5533
        %v5566 = vadd.f32 %v5465, %v5534
        %v5567 = vadd.f32 %v5466, %v5535
        %v5568 = vadd.f32 %v5467, %v5536
        %v5569 = vadd.f32 %v5468, %v5537
        %v5570 = vadd.f32 %v5469, %v5538
        %v5571 = vadd.f32 %v5470, %v5539
        %v5572 = vadd.f32 %v5471, %v5540
        %v5573 = vadd.f32 %v5472, %v5541
        %v5574 = vadd.f32 %v5473, %v5542
        %v5575 = vadd.f32 %v5474, %v5543
        %v5576 = vld [vmem:[#allocation7 + $0x47] sm:$0x1]
        %v5577 = vld [vmem:[%s1384] sm:$0xff]
        %v5578 = vld [vmem:[%s1384 + $0x8] sm:$0xff]
        %v5579 = vld [vmem:[%s1384 + $0x10] sm:$0xff]
        %v5580 = vld [vmem:[%s1384 + $0x18] sm:$0xff]
        %v5581 = vld [vmem:[%s1384 + $0x20] sm:$0xff]
        %v5582 = vld [vmem:[%s1384 + $0x28] sm:$0xff]
        %v5583 = vld [vmem:[%s1384 + $0x30] sm:$0xff]
        %v5584 = vld [vmem:[%s1384 + $0x38] sm:$0xff]
        %v5585 = vld [vmem:[%s1384 + $0x50] sm:$0xff]
        %v5586 = vld [vmem:[%s1384 + $0x58] sm:$0xff]
        %v5587 = vld [vmem:[%s1384 + $0x60] sm:$0xff]
        %v5588 = vld [vmem:[%s1384 + $0x68] sm:$0xff]
        %v5589 = vld [vmem:[%s1384 + $0x70] sm:$0xff]
        %v5590 = vld [vmem:[%s1384 + $0x78] sm:$0xff]
        %v5591 = vld [vmem:[%s1384 + $0x80] sm:$0xff]
        %v5592 = vld [vmem:[%s1384 + $0x88] sm:$0xff]
        %v5593 = vld [vmem:[%s1384 + $0xa0] sm:$0xff]
        %v5594 = vld [vmem:[%s1384 + $0xa8] sm:$0xff]
        %v5595 = vld [vmem:[%s1384 + $0xb0] sm:$0xff]
        %v5596 = vld [vmem:[%s1384 + $0xb8] sm:$0xff]
        %v5597 = vld [vmem:[%s1384 + $0xc0] sm:$0xff]
        %v5598 = vld [vmem:[%s1384 + $0xc8] sm:$0xff]
        %v5599 = vld [vmem:[%s1384 + $0xd0] sm:$0xff]
        %v5600 = vld [vmem:[%s1384 + $0xd8] sm:$0xff]
        %v5601 = vld [vmem:[%s1384 + $0xf0] sm:$0xff]
        %v5602 = vld [vmem:[%s1384 + $0xf8] sm:$0xff]
        %v5603 = vld [vmem:[%s1384 + $0x100] sm:$0xff]
        %v5604 = vld [vmem:[%s1384 + $0x108] sm:$0xff]
        %v5605 = vld [vmem:[%s1384 + $0x110] sm:$0xff]
        %v5606 = vld [vmem:[%s1384 + $0x118] sm:$0xff]
        %v5607 = vld [vmem:[%s1384 + $0x120] sm:$0xff]
        %v5608 = vld [vmem:[%s1384 + $0x128] sm:$0xff]
        %v5609 = vlaneseq
        %v5610 = vshrl.u32 %v5609, 7
        %v5611 = vsub.s32 0, %v5610
        %v5612 = vrot.slane %v5576, %v5611
        %v5613 = vmul.f32 %v5577, %v5612
        %v5614 = vmul.f32 %v5578, %v5612
        %v5615 = vmul.f32 %v5579, %v5612
        %v5616 = vmul.f32 %v5580, %v5612
        %v5617 = vmul.f32 %v5581, %v5612
        %v5618 = vmul.f32 %v5582, %v5612
        %v5619 = vmul.f32 %v5583, %v5612
        %v5620 = vmul.f32 %v5584, %v5612
        %v5621 = vmul.f32 %v5585, %v5612
        %v5622 = vmul.f32 %v5586, %v5612
        %v5623 = vmul.f32 %v5587, %v5612
        %v5624 = vmul.f32 %v5588, %v5612
        %v5625 = vmul.f32 %v5589, %v5612
        %v5626 = vmul.f32 %v5590, %v5612
        %v5627 = vmul.f32 %v5591, %v5612
        %v5628 = vmul.f32 %v5592, %v5612
        %v5629 = vmul.f32 %v5593, %v5612
        %v5630 = vmul.f32 %v5594, %v5612
        %v5631 = vmul.f32 %v5595, %v5612
        %v5632 = vmul.f32 %v5596, %v5612
        %v5633 = vmul.f32 %v5597, %v5612
        %v5634 = vmul.f32 %v5598, %v5612
        %v5635 = vmul.f32 %v5599, %v5612
        %v5636 = vmul.f32 %v5600, %v5612
        %v5637 = vmul.f32 %v5601, %v5612
        %v5638 = vmul.f32 %v5602, %v5612
        %v5639 = vmul.f32 %v5603, %v5612
        %v5640 = vmul.f32 %v5604, %v5612
        %v5641 = vmul.f32 %v5605, %v5612
        %v5642 = vmul.f32 %v5606, %v5612
        %v5643 = vmul.f32 %v5607, %v5612
        %v5644 = vmul.f32 %v5608, %v5612
        %v5645 = vadd.f32 %v5544, %v5613
        %v5646 = vadd.f32 %v5545, %v5614
        %v5647 = vadd.f32 %v5546, %v5615
        %v5648 = vadd.f32 %v5547, %v5616
        %v5649 = vadd.f32 %v5548, %v5617
        %v5650 = vadd.f32 %v5549, %v5618
        %v5651 = vadd.f32 %v5550, %v5619
        %v5652 = vadd.f32 %v5551, %v5620
        %v5653 = vadd.f32 %v5552, %v5621
        %v5654 = vadd.f32 %v5553, %v5622
        %v5655 = vadd.f32 %v5554, %v5623
        %v5656 = vadd.f32 %v5555, %v5624
        %v5657 = vadd.f32 %v5556, %v5625
        %v5658 = vadd.f32 %v5557, %v5626
        %v5659 = vadd.f32 %v5558, %v5627
        %v5660 = vadd.f32 %v5559, %v5628
        %v5661 = vadd.f32 %v5560, %v5629
        %v5662 = vadd.f32 %v5561, %v5630
        %v5663 = vadd.f32 %v5562, %v5631
        %v5664 = vadd.f32 %v5563, %v5632
        %v5665 = vadd.f32 %v5564, %v5633
        %v5666 = vadd.f32 %v5565, %v5634
        %v5667 = vadd.f32 %v5566, %v5635
        %v5668 = vadd.f32 %v5567, %v5636
        %v5669 = vadd.f32 %v5568, %v5637
        %v5670 = vadd.f32 %v5569, %v5638
        %v5671 = vadd.f32 %v5570, %v5639
        %v5672 = vadd.f32 %v5571, %v5640
        %v5673 = vadd.f32 %v5572, %v5641
        %v5674 = vadd.f32 %v5573, %v5642
        %v5675 = vadd.f32 %v5574, %v5643
        %v5676 = vadd.f32 %v5575, %v5644
        %v5677 = vld [vmem:[#allocation9 + $0x2] sm:$0x1]
        %v5678 = vlaneseq
        %v5679 = vshrl.u32 %v5678, 7
        %v5680 = vsub.s32 0, %v5679
        %v5681 = vrot.slane %v5677, %v5680
        %v5682 = vadd.f32 %v5645, %v5681
        %v5683 = vadd.f32 %v5646, %v5681
        %v5684 = vadd.f32 %v5647, %v5681
        %v5685 = vadd.f32 %v5648, %v5681
        %v5686 = vadd.f32 %v5649, %v5681
        %v5687 = vadd.f32 %v5650, %v5681
        %v5688 = vadd.f32 %v5651, %v5681
        %v5689 = vadd.f32 %v5652, %v5681
        %v5690 = vadd.f32 %v5653, %v5681
        %v5691 = vadd.f32 %v5654, %v5681
        %v5692 = vadd.f32 %v5655, %v5681
        %v5693 = vadd.f32 %v5656, %v5681
        %v5694 = vadd.f32 %v5657, %v5681
        %v5695 = vadd.f32 %v5658, %v5681
        %v5696 = vadd.f32 %v5659, %v5681
        %v5697 = vadd.f32 %v5660, %v5681
        %v5698 = vadd.f32 %v5661, %v5681
        %v5699 = vadd.f32 %v5662, %v5681
        %v5700 = vadd.f32 %v5663, %v5681
        %v5701 = vadd.f32 %v5664, %v5681
        %v5702 = vadd.f32 %v5665, %v5681
        %v5703 = vadd.f32 %v5666, %v5681
        %v5704 = vadd.f32 %v5667, %v5681
        %v5705 = vadd.f32 %v5668, %v5681
        %v5706 = vadd.f32 %v5669, %v5681
        %v5707 = vadd.f32 %v5670, %v5681
        %v5708 = vadd.f32 %v5671, %v5681
        %v5709 = vadd.f32 %v5672, %v5681
        %v5710 = vadd.f32 %v5673, %v5681
        %v5711 = vadd.f32 %v5674, %v5681
        %v5712 = vadd.f32 %v5675, %v5681
        %v5713 = vadd.f32 %v5676, %v5681
        %v5714 = vld [vmem:[#allocation7 + $0x36] sm:$0x1]
        %v5715 = vlaneseq
        %v5716 = vshrl.u32 %v5715, 7
        %v5717 = vsub.s32 0, %v5716
        %v5718 = vrot.slane %v5714, %v5717
        %v5719 = vmul.f32 %v4801, %v5718
        %v5720 = vmul.f32 %v4802, %v5718
        %v5721 = vmul.f32 %v4803, %v5718
        %v5722 = vmul.f32 %v4804, %v5718
        %v5723 = vmul.f32 %v4805, %v5718
        %v5724 = vmul.f32 %v4806, %v5718
        %v5725 = vmul.f32 %v4807, %v5718
        %v5726 = vmul.f32 %v4808, %v5718
        %v5727 = vld [vmem:[#allocation7 + $0x37] sm:$0x1]
        %v5728 = vlaneseq
        %v5729 = vshrl.u32 %v5728, 7
        %v5730 = vsub.s32 0, %v5729
        %v5731 = vrot.slane %v5727, %v5730
        %v5732 = vmul.f32 %v4870, %v5731
        %v5733 = vmul.f32 %v4871, %v5731
        %v5734 = vmul.f32 %v4872, %v5731
        %v5735 = vmul.f32 %v4873, %v5731
        %v5736 = vmul.f32 %v4874, %v5731
        %v5737 = vmul.f32 %v4875, %v5731
        %v5738 = vmul.f32 %v4876, %v5731
        %v5739 = vmul.f32 %v4877, %v5731
        %v5740 = vadd.f32 %v5719, %v5732
        %v5741 = vadd.f32 %v5720, %v5733
        %v5742 = vadd.f32 %v5721, %v5734
        %v5743 = vadd.f32 %v5722, %v5735
        %v5744 = vadd.f32 %v5723, %v5736
        %v5745 = vadd.f32 %v5724, %v5737
        %v5746 = vadd.f32 %v5725, %v5738
        %v5747 = vadd.f32 %v5726, %v5739
        %v5748 = vld [vmem:[#allocation7 + $0x38] sm:$0x1]
        %v5749 = vlaneseq
        %v5750 = vshrl.u32 %v5749, 7
        %v5751 = vsub.s32 0, %v5750
        %v5752 = vrot.slane %v5748, %v5751
        %v5753 = vmul.f32 %v4971, %v5752
        %v5754 = vmul.f32 %v4972, %v5752
        %v5755 = vmul.f32 %v4973, %v5752
        %v5756 = vmul.f32 %v4974, %v5752
        %v5757 = vmul.f32 %v4975, %v5752
        %v5758 = vmul.f32 %v4976, %v5752
        %v5759 = vmul.f32 %v4977, %v5752
        %v5760 = vmul.f32 %v4978, %v5752
        %v5761 = vadd.f32 %v5740, %v5753
        %v5762 = vadd.f32 %v5741, %v5754
        %v5763 = vadd.f32 %v5742, %v5755
        %v5764 = vadd.f32 %v5743, %v5756
        %v5765 = vadd.f32 %v5744, %v5757
        %v5766 = vadd.f32 %v5745, %v5758
        %v5767 = vadd.f32 %v5746, %v5759
        %v5768 = vadd.f32 %v5747, %v5760
        %v5769 = vld [vmem:[#allocation7 + $0x39] sm:$0x1]
        %v5770 = vlaneseq
        %v5771 = vshrl.u32 %v5770, 7
        %v5772 = vsub.s32 0, %v5771
        %v5773 = vrot.slane %v5769, %v5772
        %v5774 = vmul.f32 %v5072, %v5773
        %v5775 = vmul.f32 %v5073, %v5773
        %v5776 = vmul.f32 %v5074, %v5773
        %v5777 = vmul.f32 %v5075, %v5773
        %v5778 = vmul.f32 %v5076, %v5773
        %v5779 = vmul.f32 %v5077, %v5773
        %v5780 = vmul.f32 %v5078, %v5773
        %v5781 = vmul.f32 %v5079, %v5773
        %v5782 = vadd.f32 %v5761, %v5774
        %v5783 = vadd.f32 %v5762, %v5775
        %v5784 = vadd.f32 %v5763, %v5776
        %v5785 = vadd.f32 %v5764, %v5777
        %v5786 = vadd.f32 %v5765, %v5778
        %v5787 = vadd.f32 %v5766, %v5779
        %v5788 = vadd.f32 %v5767, %v5780
        %v5789 = vadd.f32 %v5768, %v5781
        %v5790 = vld [vmem:[#allocation7 + $0x3a] sm:$0x1]
        %v5791 = vlaneseq
        %v5792 = vshrl.u32 %v5791, 7
        %v5793 = vsub.s32 0, %v5792
        %v5794 = vrot.slane %v5790, %v5793
        %v5795 = vmul.f32 %v5173, %v5794
        %v5796 = vmul.f32 %v5174, %v5794
        %v5797 = vmul.f32 %v5175, %v5794
        %v5798 = vmul.f32 %v5176, %v5794
        %v5799 = vmul.f32 %v5177, %v5794
        %v5800 = vmul.f32 %v5178, %v5794
        %v5801 = vmul.f32 %v5179, %v5794
        %v5802 = vmul.f32 %v5180, %v5794
        %v5803 = vadd.f32 %v5782, %v5795
        %v5804 = vadd.f32 %v5783, %v5796
        %v5805 = vadd.f32 %v5784, %v5797
        %v5806 = vadd.f32 %v5785, %v5798
        %v5807 = vadd.f32 %v5786, %v5799
        %v5808 = vadd.f32 %v5787, %v5800
        %v5809 = vadd.f32 %v5788, %v5801
        %v5810 = vadd.f32 %v5789, %v5802
        %v5811 = vld [vmem:[#allocation7 + $0x3b] sm:$0x1]
        %v5812 = vlaneseq
        %v5813 = vshrl.u32 %v5812, 7
        %v5814 = vsub.s32 0, %v5813
        %v5815 = vrot.slane %v5811, %v5814
        %v5816 = vmul.f32 %v5274, %v5815
        %v5817 = vmul.f32 %v5275, %v5815
        %v5818 = vmul.f32 %v5276, %v5815
        %v5819 = vmul.f32 %v5277, %v5815
        %v5820 = vmul.f32 %v5278, %v5815
        %v5821 = vmul.f32 %v5279, %v5815
        %v5822 = vmul.f32 %v5280, %v5815
        %v5823 = vmul.f32 %v5281, %v5815
        %v5824 = vadd.f32 %v5803, %v5816
        %v5825 = vadd.f32 %v5804, %v5817
        %v5826 = vadd.f32 %v5805, %v5818
        %v5827 = vadd.f32 %v5806, %v5819
        %v5828 = vadd.f32 %v5807, %v5820
        %v5829 = vadd.f32 %v5808, %v5821
        %v5830 = vadd.f32 %v5809, %v5822
        %v5831 = vadd.f32 %v5810, %v5823
        %v5832 = vld [vmem:[#allocation7 + $0x3c] sm:$0x1]
        %v5833 = vlaneseq
        %v5834 = vshrl.u32 %v5833, 7
        %v5835 = vsub.s32 0, %v5834
        %v5836 = vrot.slane %v5832, %v5835
        %v5837 = vmul.f32 %v5375, %v5836
        %v5838 = vmul.f32 %v5376, %v5836
        %v5839 = vmul.f32 %v5377, %v5836
        %v5840 = vmul.f32 %v5378, %v5836
        %v5841 = vmul.f32 %v5379, %v5836
        %v5842 = vmul.f32 %v5380, %v5836
        %v5843 = vmul.f32 %v5381, %v5836
        %v5844 = vmul.f32 %v5382, %v5836
        %v5845 = vadd.f32 %v5824, %v5837
        %v5846 = vadd.f32 %v5825, %v5838
        %v5847 = vadd.f32 %v5826, %v5839
        %v5848 = vadd.f32 %v5827, %v5840
        %v5849 = vadd.f32 %v5828, %v5841
        %v5850 = vadd.f32 %v5829, %v5842
        %v5851 = vadd.f32 %v5830, %v5843
        %v5852 = vadd.f32 %v5831, %v5844
        %v5853 = vld [vmem:[#allocation7 + $0x3d] sm:$0x1]
        %v5854 = vlaneseq
        %v5855 = vshrl.u32 %v5854, 7
        %v5856 = vsub.s32 0, %v5855
        %v5857 = vrot.slane %v5853, %v5856
        %v5858 = vmul.f32 %v5476, %v5857
        %v5859 = vmul.f32 %v5477, %v5857
        %v5860 = vmul.f32 %v5478, %v5857
        %v5861 = vmul.f32 %v5479, %v5857
        %v5862 = vmul.f32 %v5480, %v5857
        %v5863 = vmul.f32 %v5481, %v5857
        %v5864 = vmul.f32 %v5482, %v5857
        %v5865 = vmul.f32 %v5483, %v5857
        %v5866 = vadd.f32 %v5845, %v5858
        %v5867 = vadd.f32 %v5846, %v5859
        %v5868 = vadd.f32 %v5847, %v5860
        %v5869 = vadd.f32 %v5848, %v5861
        %v5870 = vadd.f32 %v5849, %v5862
        %v5871 = vadd.f32 %v5850, %v5863
        %v5872 = vadd.f32 %v5851, %v5864
        %v5873 = vadd.f32 %v5852, %v5865
        %v5874 = vld [vmem:[#allocation7 + $0x3e] sm:$0x1]
        %v5875 = vlaneseq
        %v5876 = vshrl.u32 %v5875, 7
        %v5877 = vsub.s32 0, %v5876
        %v5878 = vrot.slane %v5874, %v5877
        %v5879 = vmul.f32 %v5577, %v5878
        %v5880 = vmul.f32 %v5578, %v5878
        %v5881 = vmul.f32 %v5579, %v5878
        %v5882 = vmul.f32 %v5580, %v5878
        %v5883 = vmul.f32 %v5581, %v5878
        %v5884 = vmul.f32 %v5582, %v5878
        %v5885 = vmul.f32 %v5583, %v5878
        %v5886 = vmul.f32 %v5584, %v5878
        %v5887 = vadd.f32 %v5866, %v5879
        %v5888 = vadd.f32 %v5867, %v5880
        %v5889 = vadd.f32 %v5868, %v5881
        %v5890 = vadd.f32 %v5869, %v5882
        %v5891 = vadd.f32 %v5870, %v5883
        %v5892 = vadd.f32 %v5871, %v5884
        %v5893 = vadd.f32 %v5872, %v5885
        %v5894 = vadd.f32 %v5873, %v5886
        %v5895 = vadd.f32 %v5706, %v5887
        %v5896 = vadd.f32 %v5707, %v5888
        %v5897 = vadd.f32 %v5708, %v5889
        %v5898 = vadd.f32 %v5709, %v5890
        %v5899 = vadd.f32 %v5710, %v5891
        %v5900 = vadd.f32 %v5711, %v5892
        %v5901 = vadd.f32 %v5712, %v5893
        %v5902 = vadd.f32 %v5713, %v5894
        %v5903 = vld [vmem:[#allocation7 + $0x48] sm:$0x1]
        %s5904 = scalar_lea.vmem [#allocation2], 240
        %v5905 = vld [vmem:[%s5904] sm:$0xff]
        %v5906 = vld [vmem:[%s5904 + $0x8] sm:$0xff]
        %v5907 = vld [vmem:[%s5904 + $0x10] sm:$0xff]
        %v5908 = vld [vmem:[%s5904 + $0x18] sm:$0xff]
        %v5909 = vld [vmem:[%s5904 + $0x20] sm:$0xff]
        %v5910 = vld [vmem:[%s5904 + $0x28] sm:$0xff]
        %v5911 = vld [vmem:[%s5904 + $0x30] sm:$0xff]
        %v5912 = vld [vmem:[%s5904 + $0x38] sm:$0xff]
        %v5913 = vlaneseq
        %v5914 = vshrl.u32 %v5913, 7
        %v5915 = vsub.s32 0, %v5914
        %v5916 = vrot.slane %v5903, %v5915
        %v5917 = vmul.f32 %v5905, %v5916
        %v5918 = vmul.f32 %v5906, %v5916
        %v5919 = vmul.f32 %v5907, %v5916
        %v5920 = vmul.f32 %v5908, %v5916
        %v5921 = vmul.f32 %v5909, %v5916
        %v5922 = vmul.f32 %v5910, %v5916
        %v5923 = vmul.f32 %v5911, %v5916
        %v5924 = vmul.f32 %v5912, %v5916
        %v5925 = vld [vmem:[#allocation7 + $0x49] sm:$0x1]
        %s5926 = scalar_lea.vmem [#allocation2], 560
        %v5927 = vld [vmem:[%s5926] sm:$0xff]
        %v5928 = vld [vmem:[%s5926 + $0x8] sm:$0xff]
        %v5929 = vld [vmem:[%s5926 + $0x10] sm:$0xff]
        %v5930 = vld [vmem:[%s5926 + $0x18] sm:$0xff]
        %v5931 = vld [vmem:[%s5926 + $0x20] sm:$0xff]
        %v5932 = vld [vmem:[%s5926 + $0x28] sm:$0xff]
        %v5933 = vld [vmem:[%s5926 + $0x30] sm:$0xff]
        %v5934 = vld [vmem:[%s5926 + $0x38] sm:$0xff]
        %v5935 = vlaneseq
        %v5936 = vshrl.u32 %v5935, 7
        %v5937 = vsub.s32 0, %v5936
        %v5938 = vrot.slane %v5925, %v5937
        %v5939 = vmul.f32 %v5927, %v5938
        %v5940 = vmul.f32 %v5928, %v5938
        %v5941 = vmul.f32 %v5929, %v5938
        %v5942 = vmul.f32 %v5930, %v5938
        %v5943 = vmul.f32 %v5931, %v5938
        %v5944 = vmul.f32 %v5932, %v5938
        %v5945 = vmul.f32 %v5933, %v5938
        %v5946 = vmul.f32 %v5934, %v5938
        %v5947 = vadd.f32 %v5917, %v5939
        %v5948 = vadd.f32 %v5918, %v5940
        %v5949 = vadd.f32 %v5919, %v5941
        %v5950 = vadd.f32 %v5920, %v5942
        %v5951 = vadd.f32 %v5921, %v5943
        %v5952 = vadd.f32 %v5922, %v5944
        %v5953 = vadd.f32 %v5923, %v5945
        %v5954 = vadd.f32 %v5924, %v5946
        %v5955 = vld [vmem:[#allocation7 + $0x4a] sm:$0x1]
        %s5956 = scalar_lea.vmem [#allocation2], 880
        %v5957 = vld [vmem:[%s5956] sm:$0xff]
        %v5958 = vld [vmem:[%s5956 + $0x8] sm:$0xff]
        %v5959 = vld [vmem:[%s5956 + $0x10] sm:$0xff]
        %v5960 = vld [vmem:[%s5956 + $0x18] sm:$0xff]
        %v5961 = vld [vmem:[%s5956 + $0x20] sm:$0xff]
        %v5962 = vld [vmem:[%s5956 + $0x28] sm:$0xff]
        %v5963 = vld [vmem:[%s5956 + $0x30] sm:$0xff]
        %v5964 = vld [vmem:[%s5956 + $0x38] sm:$0xff]
        %v5965 = vlaneseq
        %v5966 = vshrl.u32 %v5965, 7
        %v5967 = vsub.s32 0, %v5966
        %v5968 = vrot.slane %v5955, %v5967
        %v5969 = vmul.f32 %v5957, %v5968
        %v5970 = vmul.f32 %v5958, %v5968
        %v5971 = vmul.f32 %v5959, %v5968
        %v5972 = vmul.f32 %v5960, %v5968
        %v5973 = vmul.f32 %v5961, %v5968
        %v5974 = vmul.f32 %v5962, %v5968
        %v5975 = vmul.f32 %v5963, %v5968
        %v5976 = vmul.f32 %v5964, %v5968
        %v5977 = vadd.f32 %v5947, %v5969
        %v5978 = vadd.f32 %v5948, %v5970
        %v5979 = vadd.f32 %v5949, %v5971
        %v5980 = vadd.f32 %v5950, %v5972
        %v5981 = vadd.f32 %v5951, %v5973
        %v5982 = vadd.f32 %v5952, %v5974
        %v5983 = vadd.f32 %v5953, %v5975
        %v5984 = vadd.f32 %v5954, %v5976
        %v5985 = vld [vmem:[#allocation7 + $0x4b] sm:$0x1]
        %s5986 = scalar_lea.vmem [#allocation2], 248
        %v5987 = vld [vmem:[%s5986] sm:$0xff]
        %v5988 = vld [vmem:[%s5986 + $0x8] sm:$0xff]
        %v5989 = vld [vmem:[%s5986 + $0x10] sm:$0xff]
        %v5990 = vld [vmem:[%s5986 + $0x18] sm:$0xff]
        %v5991 = vld [vmem:[%s5986 + $0x20] sm:$0xff]
        %v5992 = vld [vmem:[%s5986 + $0x28] sm:$0xff]
        %v5993 = vld [vmem:[%s5986 + $0x30] sm:$0xff]
        %v5994 = vld [vmem:[%s5986 + $0x38] sm:$0xff]
        %v5995 = vlaneseq
        %v5996 = vshrl.u32 %v5995, 7
        %v5997 = vsub.s32 0, %v5996
        %v5998 = vrot.slane %v5985, %v5997
        %v5999 = vmul.f32 %v5987, %v5998
        %v6000 = vmul.f32 %v5988, %v5998
        %v6001 = vmul.f32 %v5989, %v5998
        %v6002 = vmul.f32 %v5990, %v5998
        %v6003 = vmul.f32 %v5991, %v5998
        %v6004 = vmul.f32 %v5992, %v5998
        %v6005 = vmul.f32 %v5993, %v5998
        %v6006 = vmul.f32 %v5994, %v5998
        %v6007 = vadd.f32 %v5977, %v5999
        %v6008 = vadd.f32 %v5978, %v6000
        %v6009 = vadd.f32 %v5979, %v6001
        %v6010 = vadd.f32 %v5980, %v6002
        %v6011 = vadd.f32 %v5981, %v6003
        %v6012 = vadd.f32 %v5982, %v6004
        %v6013 = vadd.f32 %v5983, %v6005
        %v6014 = vadd.f32 %v5984, %v6006
        %v6015 = vld [vmem:[#allocation7 + $0x4c] sm:$0x1]
        %s6016 = scalar_lea.vmem [#allocation2], 568
        %v6017 = vld [vmem:[%s6016] sm:$0xff]
        %v6018 = vld [vmem:[%s6016 + $0x8] sm:$0xff]
        %v6019 = vld [vmem:[%s6016 + $0x10] sm:$0xff]
        %v6020 = vld [vmem:[%s6016 + $0x18] sm:$0xff]
        %v6021 = vld [vmem:[%s6016 + $0x20] sm:$0xff]
        %v6022 = vld [vmem:[%s6016 + $0x28] sm:$0xff]
        %v6023 = vld [vmem:[%s6016 + $0x30] sm:$0xff]
        %v6024 = vld [vmem:[%s6016 + $0x38] sm:$0xff]
        %v6025 = vlaneseq
        %v6026 = vshrl.u32 %v6025, 7
        %v6027 = vsub.s32 0, %v6026
        %v6028 = vrot.slane %v6015, %v6027
        %v6029 = vmul.f32 %v6017, %v6028
        %v6030 = vmul.f32 %v6018, %v6028
        %v6031 = vmul.f32 %v6019, %v6028
        %v6032 = vmul.f32 %v6020, %v6028
        %v6033 = vmul.f32 %v6021, %v6028
        %v6034 = vmul.f32 %v6022, %v6028
        %v6035 = vmul.f32 %v6023, %v6028
        %v6036 = vmul.f32 %v6024, %v6028
        %v6037 = vadd.f32 %v6007, %v6029
        %v6038 = vadd.f32 %v6008, %v6030
        %v6039 = vadd.f32 %v6009, %v6031
        %v6040 = vadd.f32 %v6010, %v6032
        %v6041 = vadd.f32 %v6011, %v6033
        %v6042 = vadd.f32 %v6012, %v6034
        %v6043 = vadd.f32 %v6013, %v6035
        %v6044 = vadd.f32 %v6014, %v6036
        %v6045 = vld [vmem:[#allocation7 + $0x4d] sm:$0x1]
        %s6046 = scalar_lea.vmem [#allocation2], 888
        %v6047 = vld [vmem:[%s6046] sm:$0xff]
        %v6048 = vld [vmem:[%s6046 + $0x8] sm:$0xff]
        %v6049 = vld [vmem:[%s6046 + $0x10] sm:$0xff]
        %v6050 = vld [vmem:[%s6046 + $0x18] sm:$0xff]
        %v6051 = vld [vmem:[%s6046 + $0x20] sm:$0xff]
        %v6052 = vld [vmem:[%s6046 + $0x28] sm:$0xff]
        %v6053 = vld [vmem:[%s6046 + $0x30] sm:$0xff]
        %v6054 = vld [vmem:[%s6046 + $0x38] sm:$0xff]
        %v6055 = vlaneseq
        %v6056 = vshrl.u32 %v6055, 7
        %v6057 = vsub.s32 0, %v6056
        %v6058 = vrot.slane %v6045, %v6057
        %v6059 = vmul.f32 %v6047, %v6058
        %v6060 = vmul.f32 %v6048, %v6058
        %v6061 = vmul.f32 %v6049, %v6058
        %v6062 = vmul.f32 %v6050, %v6058
        %v6063 = vmul.f32 %v6051, %v6058
        %v6064 = vmul.f32 %v6052, %v6058
        %v6065 = vmul.f32 %v6053, %v6058
        %v6066 = vmul.f32 %v6054, %v6058
        %v6067 = vadd.f32 %v6037, %v6059
        %v6068 = vadd.f32 %v6038, %v6060
        %v6069 = vadd.f32 %v6039, %v6061
        %v6070 = vadd.f32 %v6040, %v6062
        %v6071 = vadd.f32 %v6041, %v6063
        %v6072 = vadd.f32 %v6042, %v6064
        %v6073 = vadd.f32 %v6043, %v6065
        %v6074 = vadd.f32 %v6044, %v6066
        %v6075 = vld [vmem:[#allocation7 + $0x4e] sm:$0x1]
        %s6076 = scalar_lea.vmem [#allocation2], 256
        %v6077 = vld [vmem:[%s6076] sm:$0xff]
        %v6078 = vld [vmem:[%s6076 + $0x8] sm:$0xff]
        %v6079 = vld [vmem:[%s6076 + $0x10] sm:$0xff]
        %v6080 = vld [vmem:[%s6076 + $0x18] sm:$0xff]
        %v6081 = vld [vmem:[%s6076 + $0x20] sm:$0xff]
        %v6082 = vld [vmem:[%s6076 + $0x28] sm:$0xff]
        %v6083 = vld [vmem:[%s6076 + $0x30] sm:$0xff]
        %v6084 = vld [vmem:[%s6076 + $0x38] sm:$0xff]
        %v6085 = vlaneseq
        %v6086 = vshrl.u32 %v6085, 7
        %v6087 = vsub.s32 0, %v6086
        %v6088 = vrot.slane %v6075, %v6087
        %v6089 = vmul.f32 %v6077, %v6088
        %v6090 = vmul.f32 %v6078, %v6088
        %v6091 = vmul.f32 %v6079, %v6088
        %v6092 = vmul.f32 %v6080, %v6088
        %v6093 = vmul.f32 %v6081, %v6088
        %v6094 = vmul.f32 %v6082, %v6088
        %v6095 = vmul.f32 %v6083, %v6088
        %v6096 = vmul.f32 %v6084, %v6088
        %v6097 = vadd.f32 %v6067, %v6089
        %v6098 = vadd.f32 %v6068, %v6090
        %v6099 = vadd.f32 %v6069, %v6091
        %v6100 = vadd.f32 %v6070, %v6092
        %v6101 = vadd.f32 %v6071, %v6093
        %v6102 = vadd.f32 %v6072, %v6094
        %v6103 = vadd.f32 %v6073, %v6095
        %v6104 = vadd.f32 %v6074, %v6096
        %v6105 = vld [vmem:[#allocation7 + $0x4f] sm:$0x1]
        %s6106 = scalar_lea.vmem [#allocation2], 576
        %v6107 = vld [vmem:[%s6106] sm:$0xff]
        %v6108 = vld [vmem:[%s6106 + $0x8] sm:$0xff]
        %v6109 = vld [vmem:[%s6106 + $0x10] sm:$0xff]
        %v6110 = vld [vmem:[%s6106 + $0x18] sm:$0xff]
        %v6111 = vld [vmem:[%s6106 + $0x20] sm:$0xff]
        %v6112 = vld [vmem:[%s6106 + $0x28] sm:$0xff]
        %v6113 = vld [vmem:[%s6106 + $0x30] sm:$0xff]
        %v6114 = vld [vmem:[%s6106 + $0x38] sm:$0xff]
        %v6115 = vlaneseq
        %v6116 = vshrl.u32 %v6115, 7
        %v6117 = vsub.s32 0, %v6116
        %v6118 = vrot.slane %v6105, %v6117
        %v6119 = vmul.f32 %v6107, %v6118
        %v6120 = vmul.f32 %v6108, %v6118
        %v6121 = vmul.f32 %v6109, %v6118
        %v6122 = vmul.f32 %v6110, %v6118
        %v6123 = vmul.f32 %v6111, %v6118
        %v6124 = vmul.f32 %v6112, %v6118
        %v6125 = vmul.f32 %v6113, %v6118
        %v6126 = vmul.f32 %v6114, %v6118
        %v6127 = vadd.f32 %v6097, %v6119
        %v6128 = vadd.f32 %v6098, %v6120
        %v6129 = vadd.f32 %v6099, %v6121
        %v6130 = vadd.f32 %v6100, %v6122
        %v6131 = vadd.f32 %v6101, %v6123
        %v6132 = vadd.f32 %v6102, %v6124
        %v6133 = vadd.f32 %v6103, %v6125
        %v6134 = vadd.f32 %v6104, %v6126
        %v6135 = vld [vmem:[#allocation7 + $0x50] sm:$0x1]
        %s6136 = scalar_lea.vmem [#allocation2], 896
        %v6137 = vld [vmem:[%s6136] sm:$0xff]
        %v6138 = vld [vmem:[%s6136 + $0x8] sm:$0xff]
        %v6139 = vld [vmem:[%s6136 + $0x10] sm:$0xff]
        %v6140 = vld [vmem:[%s6136 + $0x18] sm:$0xff]
        %v6141 = vld [vmem:[%s6136 + $0x20] sm:$0xff]
        %v6142 = vld [vmem:[%s6136 + $0x28] sm:$0xff]
        %v6143 = vld [vmem:[%s6136 + $0x30] sm:$0xff]
        %v6144 = vld [vmem:[%s6136 + $0x38] sm:$0xff]
        %v6145 = vlaneseq
        %v6146 = vshrl.u32 %v6145, 7
        %v6147 = vsub.s32 0, %v6146
        %v6148 = vrot.slane %v6135, %v6147
        %v6149 = vmul.f32 %v6137, %v6148
        %v6150 = vmul.f32 %v6138, %v6148
        %v6151 = vmul.f32 %v6139, %v6148
        %v6152 = vmul.f32 %v6140, %v6148
        %v6153 = vmul.f32 %v6141, %v6148
        %v6154 = vmul.f32 %v6142, %v6148
        %v6155 = vmul.f32 %v6143, %v6148
        %v6156 = vmul.f32 %v6144, %v6148
        %v6157 = vadd.f32 %v6127, %v6149
        %v6158 = vadd.f32 %v6128, %v6150
        %v6159 = vadd.f32 %v6129, %v6151
        %v6160 = vadd.f32 %v6130, %v6152
        %v6161 = vadd.f32 %v6131, %v6153
        %v6162 = vadd.f32 %v6132, %v6154
        %v6163 = vadd.f32 %v6133, %v6155
        %v6164 = vadd.f32 %v6134, %v6156
        %v6165 = vadd.f32 %v5682, %v6157
        %v6166 = vadd.f32 %v5683, %v6158
        %v6167 = vadd.f32 %v5684, %v6159
        %v6168 = vadd.f32 %v5685, %v6160
        %v6169 = vadd.f32 %v5686, %v6161
        %v6170 = vadd.f32 %v5687, %v6162
        %v6171 = vadd.f32 %v5688, %v6163
        %v6172 = vadd.f32 %v5689, %v6164
        %v6173 = vsub.f32 %v5895, %v6165
        %v6174 = vsub.f32 %v5896, %v6166
        %v6175 = vsub.f32 %v5897, %v6167
        %v6176 = vsub.f32 %v5898, %v6168
        %v6177 = vsub.f32 %v5899, %v6169
        %v6178 = vsub.f32 %v5900, %v6170
        %v6179 = vsub.f32 %v5901, %v6171
        %v6180 = vsub.f32 %v5902, %v6172
        %s6181 = sld [smem:[#allocation10 + $0x2]]
        %s6182 = smul.f32 %s6181, 0.5
        %v6183 = vmul.f32 %v6165, 0.5
        %v6184 = vmul.f32 %v6166, 0.5
        %v6185 = vmul.f32 %v6167, 0.5
        %v6186 = vmul.f32 %v6168, 0.5
        %v6187 = vmul.f32 %v6169, 0.5
        %v6188 = vmul.f32 %v6170, 0.5
        %v6189 = vmul.f32 %v6171, 0.5
        %v6190 = vmul.f32 %v6172, 0.5
        %v6191 = vmul.f32 %v5690, 0.5
        %v6192 = vmul.f32 %v5691, 0.5
        %v6193 = vmul.f32 %v5692, 0.5
        %v6194 = vmul.f32 %v5693, 0.5
        %v6195 = vmul.f32 %v5694, 0.5
        %v6196 = vmul.f32 %v5695, 0.5
        %v6197 = vmul.f32 %v5696, 0.5
        %v6198 = vmul.f32 %v5697, 0.5
        %v6199 = vmul.f32 %v5698, 0.5
        %v6200 = vmul.f32 %v5699, 0.5
        %v6201 = vmul.f32 %v5700, 0.5
        %v6202 = vmul.f32 %v5701, 0.5
        %v6203 = vmul.f32 %v5702, 0.5
        %v6204 = vmul.f32 %v5703, 0.5
        %v6205 = vmul.f32 %v5704, 0.5
        %v6206 = vmul.f32 %v5705, 0.5
        %v6207 = vmul.f32 %v6173, 0.5
        %v6208 = vmul.f32 %v6174, 0.5
        %v6209 = vmul.f32 %v6175, 0.5
        %v6210 = vmul.f32 %v6176, 0.5
        %v6211 = vmul.f32 %v6177, 0.5
        %v6212 = vmul.f32 %v6178, 0.5
        %v6213 = vmul.f32 %v6179, 0.5
        %v6214 = vmul.f32 %v6180, 0.5
        %v6215 = vtanh.pop %v6183
        %v6216 = vtanh.pop %v6184
        %v6217 = vtanh.pop %v6185
        %v6218 = vtanh.pop %v6186
        %v6219 = vtanh.pop %v6187
        %v6220 = vtanh.pop %v6188
        %v6221 = vtanh.pop %v6189
        %v6222 = vtanh.pop %v6190
        %v6223 = vtanh.pop %v6191
        %v6224 = vtanh.pop %v6192
        %v6225 = vtanh.pop %v6193
        %v6226 = vtanh.pop %v6194
        %v6227 = vtanh.pop %v6195
        %v6228 = vtanh.pop %v6196
        %v6229 = vtanh.pop %v6197
        %v6230 = vtanh.pop %v6198
        %v6231 = vtanh.pop %v6199
        %v6232 = vtanh.pop %v6200
        %v6233 = vtanh.pop %v6201
        %v6234 = vtanh.pop %v6202
        %v6235 = vtanh.pop %v6203
        %v6236 = vtanh.pop %v6204
        %v6237 = vtanh.pop %v6205
        %v6238 = vtanh.pop %v6206
        %v6239 = vtanh.pop %v6207
        %v6240 = vtanh.pop %v6208
        %v6241 = vtanh.pop %v6209
        %v6242 = vtanh.pop %v6210
        %v6243 = vtanh.pop %v6211
        %v6244 = vtanh.pop %v6212
        %v6245 = vtanh.pop %v6213
        %v6246 = vtanh.pop %v6214
        %v6247 = vstv %s6182
        %v6248 = vmul.f32 %v6247, %v6215
        %v6249 = vmul.f32 %v6247, %v6216
        %v6250 = vmul.f32 %v6247, %v6217
        %v6251 = vmul.f32 %v6247, %v6218
        %v6252 = vmul.f32 %v6247, %v6219
        %v6253 = vmul.f32 %v6247, %v6220
        %v6254 = vmul.f32 %v6247, %v6221
        %v6255 = vmul.f32 %v6247, %v6222
        %v6256 = vmul.f32 %v6247, %v6223
        %v6257 = vmul.f32 %v6247, %v6224
        %v6258 = vmul.f32 %v6247, %v6225
        %v6259 = vmul.f32 %v6247, %v6226
        %v6260 = vmul.f32 %v6247, %v6227
        %v6261 = vmul.f32 %v6247, %v6228
        %v6262 = vmul.f32 %v6247, %v6229
        %v6263 = vmul.f32 %v6247, %v6230
        %v6264 = vmul.f32 %v6247, %v6231
        %v6265 = vmul.f32 %v6247, %v6232
        %v6266 = vmul.f32 %v6247, %v6233
        %v6267 = vmul.f32 %v6247, %v6234
        %v6268 = vmul.f32 %v6247, %v6235
        %v6269 = vmul.f32 %v6247, %v6236
        %v6270 = vmul.f32 %v6247, %v6237
        %v6271 = vmul.f32 %v6247, %v6238
        %v6272 = vmul.f32 %v6247, %v6239
        %v6273 = vmul.f32 %v6247, %v6240
        %v6274 = vmul.f32 %v6247, %v6241
        %v6275 = vmul.f32 %v6247, %v6242
        %v6276 = vmul.f32 %v6247, %v6243
        %v6277 = vmul.f32 %v6247, %v6244
        %v6278 = vmul.f32 %v6247, %v6245
        %v6279 = vmul.f32 %v6247, %v6246
        %v6280 = vld [vmem:[%s287] sm:$0xff]
        %v6281 = vld [vmem:[%s287 + $0x8] sm:$0xff]
        %v6282 = vld [vmem:[%s287 + $0x10] sm:$0xff]
        %v6283 = vld [vmem:[%s287 + $0x18] sm:$0xff]
        %v6284 = vld [vmem:[%s287 + $0x20] sm:$0xff]
        %v6285 = vld [vmem:[%s287 + $0x28] sm:$0xff]
        %v6286 = vld [vmem:[%s287 + $0x30] sm:$0xff]
        %v6287 = vld [vmem:[%s287 + $0x38] sm:$0xff]
        %v6288 = vld [vmem:[%s287 + $0x40] sm:$0xff]
        %v6289 = vld [vmem:[%s287 + $0x48] sm:$0xff]
        %v6290 = vld [vmem:[%s287 + $0x50] sm:$0xff]
        %v6291 = vld [vmem:[%s287 + $0x58] sm:$0xff]
        %v6292 = vld [vmem:[%s287 + $0x60] sm:$0xff]
        %v6293 = vld [vmem:[%s287 + $0x68] sm:$0xff]
        %v6294 = vld [vmem:[%s287 + $0x70] sm:$0xff]
        %v6295 = vld [vmem:[%s287 + $0x78] sm:$0xff]
        %v6296 = vld [vmem:[%s287 + $0x80] sm:$0xff]
        %v6297 = vld [vmem:[%s287 + $0x88] sm:$0xff]
        %v6298 = vld [vmem:[%s287 + $0x90] sm:$0xff]
        %v6299 = vld [vmem:[%s287 + $0x98] sm:$0xff]
        %v6300 = vld [vmem:[%s287 + $0xa0] sm:$0xff]
        %v6301 = vld [vmem:[%s287 + $0xa8] sm:$0xff]
        %v6302 = vld [vmem:[%s287 + $0xb0] sm:$0xff]
        %v6303 = vld [vmem:[%s287 + $0xb8] sm:$0xff]
        %v6304 = vld [vmem:[%s287 + $0xc0] sm:$0xff]
        %v6305 = vld [vmem:[%s287 + $0xc8] sm:$0xff]
        %v6306 = vld [vmem:[%s287 + $0xd0] sm:$0xff]
        %v6307 = vld [vmem:[%s287 + $0xd8] sm:$0xff]
        %v6308 = vld [vmem:[%s287 + $0xe0] sm:$0xff]
        %v6309 = vld [vmem:[%s287 + $0xe8] sm:$0xff]
        %v6310 = vld [vmem:[%s287 + $0xf0] sm:$0xff]
        %v6311 = vld [vmem:[%s287 + $0xf8] sm:$0xff]
        %v6312 = vadd.f32 %v6280, %v6248
        %v6313 = vadd.f32 %v6281, %v6249
        %v6314 = vadd.f32 %v6282, %v6250
        %v6315 = vadd.f32 %v6283, %v6251
        %v6316 = vadd.f32 %v6284, %v6252
        %v6317 = vadd.f32 %v6285, %v6253
        %v6318 = vadd.f32 %v6286, %v6254
        %v6319 = vadd.f32 %v6287, %v6255
        %v6320 = vadd.f32 %v6288, %v6256
        %v6321 = vadd.f32 %v6289, %v6257
        %v6322 = vadd.f32 %v6290, %v6258
        %v6323 = vadd.f32 %v6291, %v6259
        %v6324 = vadd.f32 %v6292, %v6260
        %v6325 = vadd.f32 %v6293, %v6261
        %v6326 = vadd.f32 %v6294, %v6262
        %v6327 = vadd.f32 %v6295, %v6263
        %v6328 = vadd.f32 %v6296, %v6264
        %v6329 = vadd.f32 %v6297, %v6265
        %v6330 = vadd.f32 %v6298, %v6266
        %v6331 = vadd.f32 %v6299, %v6267
        %v6332 = vadd.f32 %v6300, %v6268
        %v6333 = vadd.f32 %v6301, %v6269
        %v6334 = vadd.f32 %v6302, %v6270
        %v6335 = vadd.f32 %v6303, %v6271
        %v6336 = vadd.f32 %v6304, %v6272
        %v6337 = vadd.f32 %v6305, %v6273
        %v6338 = vadd.f32 %v6306, %v6274
        %v6339 = vadd.f32 %v6307, %v6275
        %v6340 = vadd.f32 %v6308, %v6276
        %v6341 = vadd.f32 %v6309, %v6277
        %v6342 = vadd.f32 %v6310, %v6278
        %v6343 = vadd.f32 %v6311, %v6279
        %6344 = vst [vmem:[%s287] sm:$0xff] %v6312
        %6345 = vst [vmem:[%s287 + $0x8] sm:$0xff] %v6313
        %6346 = vst [vmem:[%s287 + $0x10] sm:$0xff] %v6314
        %6347 = vst [vmem:[%s287 + $0x18] sm:$0xff] %v6315
        %6348 = vst [vmem:[%s287 + $0x20] sm:$0xff] %v6316
        %6349 = vst [vmem:[%s287 + $0x28] sm:$0xff] %v6317
        %6350 = vst [vmem:[%s287 + $0x30] sm:$0xff] %v6318
        %6351 = vst [vmem:[%s287 + $0x38] sm:$0xff] %v6319
        %6352 = vst [vmem:[%s287 + $0x40] sm:$0xff] %v6320
        %6353 = vst [vmem:[%s287 + $0x48] sm:$0xff] %v6321
        %6354 = vst [vmem:[%s287 + $0x50] sm:$0xff] %v6322
        %6355 = vst [vmem:[%s287 + $0x58] sm:$0xff] %v6323
        %6356 = vst [vmem:[%s287 + $0x60] sm:$0xff] %v6324
        %6357 = vst [vmem:[%s287 + $0x68] sm:$0xff] %v6325
        %6358 = vst [vmem:[%s287 + $0x70] sm:$0xff] %v6326
        %6359 = vst [vmem:[%s287 + $0x78] sm:$0xff] %v6327
        %6360 = vst [vmem:[%s287 + $0x80] sm:$0xff] %v6328
        %6361 = vst [vmem:[%s287 + $0x88] sm:$0xff] %v6329
        %6362 = vst [vmem:[%s287 + $0x90] sm:$0xff] %v6330
        %6363 = vst [vmem:[%s287 + $0x98] sm:$0xff] %v6331
        %6364 = vst [vmem:[%s287 + $0xa0] sm:$0xff] %v6332
        %6365 = vst [vmem:[%s287 + $0xa8] sm:$0xff] %v6333
        %6366 = vst [vmem:[%s287 + $0xb0] sm:$0xff] %v6334
        %6367 = vst [vmem:[%s287 + $0xb8] sm:$0xff] %v6335
        %6368 = vst [vmem:[%s287 + $0xc0] sm:$0xff] %v6336
        %6369 = vst [vmem:[%s287 + $0xc8] sm:$0xff] %v6337
        %6370 = vst [vmem:[%s287 + $0xd0] sm:$0xff] %v6338
        %6371 = vst [vmem:[%s287 + $0xd8] sm:$0xff] %v6339
        %6372 = vst [vmem:[%s287 + $0xe0] sm:$0xff] %v6340
        %6373 = vst [vmem:[%s287 + $0xe8] sm:$0xff] %v6341
        %6374 = vst [vmem:[%s287 + $0xf0] sm:$0xff] %v6342
        %6375 = vst [vmem:[%s287 + $0xf8] sm:$0xff] %v6343
        %v6376 = vld [vmem:[%s287] sm:$0xff]
        %v6377 = vld [vmem:[%s287 + $0x8] sm:$0xff]
        %v6378 = vld [vmem:[%s287 + $0x10] sm:$0xff]
        %v6379 = vld [vmem:[%s287 + $0x18] sm:$0xff]
        %v6380 = vld [vmem:[%s287 + $0x20] sm:$0xff]
        %v6381 = vld [vmem:[%s287 + $0x28] sm:$0xff]
        %v6382 = vld [vmem:[%s287 + $0x30] sm:$0xff]
        %v6383 = vld [vmem:[%s287 + $0x38] sm:$0xff]
        %v6384 = vld [vmem:[%s287 + $0x40] sm:$0xff]
        %v6385 = vld [vmem:[%s287 + $0x48] sm:$0xff]
        %v6386 = vld [vmem:[%s287 + $0x50] sm:$0xff]
        %v6387 = vld [vmem:[%s287 + $0x58] sm:$0xff]
        %v6388 = vld [vmem:[%s287 + $0x60] sm:$0xff]
        %v6389 = vld [vmem:[%s287 + $0x68] sm:$0xff]
        %v6390 = vld [vmem:[%s287 + $0x70] sm:$0xff]
        %v6391 = vld [vmem:[%s287 + $0x78] sm:$0xff]
        %v6392 = vld [vmem:[%s287 + $0x80] sm:$0xff]
        %v6393 = vld [vmem:[%s287 + $0x88] sm:$0xff]
        %v6394 = vld [vmem:[%s287 + $0x90] sm:$0xff]
        %v6395 = vld [vmem:[%s287 + $0x98] sm:$0xff]
        %v6396 = vld [vmem:[%s287 + $0xa0] sm:$0xff]
        %v6397 = vld [vmem:[%s287 + $0xa8] sm:$0xff]
        %v6398 = vld [vmem:[%s287 + $0xb0] sm:$0xff]
        %v6399 = vld [vmem:[%s287 + $0xb8] sm:$0xff]
        %v6400 = vld [vmem:[%s287 + $0xc0] sm:$0xff]
        %v6401 = vld [vmem:[%s287 + $0xc8] sm:$0xff]
        %v6402 = vld [vmem:[%s287 + $0xd0] sm:$0xff]
        %v6403 = vld [vmem:[%s287 + $0xd8] sm:$0xff]
        %v6404 = vld [vmem:[%s287 + $0xe0] sm:$0xff]
        %v6405 = vld [vmem:[%s287 + $0xe8] sm:$0xff]
        %v6406 = vld [vmem:[%s287 + $0xf0] sm:$0xff]
        %v6407 = vld [vmem:[%s287 + $0xf8] sm:$0xff]
        %v6408 = vld [vmem:[%s250] sm:$0xff]
        %v6409 = vld [vmem:[%s250 + $0x8] sm:$0xff]
        %v6410 = vld [vmem:[%s250 + $0x10] sm:$0xff]
        %v6411 = vld [vmem:[%s250 + $0x18] sm:$0xff]
        %v6412 = vld [vmem:[%s250 + $0x20] sm:$0xff]
        %v6413 = vld [vmem:[%s250 + $0x28] sm:$0xff]
        %v6414 = vld [vmem:[%s250 + $0x30] sm:$0xff]
        %v6415 = vld [vmem:[%s250 + $0x38] sm:$0xff]
        %v6416 = vld [vmem:[%s250 + $0x40] sm:$0xff]
        %v6417 = vld [vmem:[%s250 + $0x48] sm:$0xff]
        %v6418 = vld [vmem:[%s250 + $0x50] sm:$0xff]
        %v6419 = vld [vmem:[%s250 + $0x58] sm:$0xff]
        %v6420 = vld [vmem:[%s250 + $0x60] sm:$0xff]
        %v6421 = vld [vmem:[%s250 + $0x68] sm:$0xff]
        %v6422 = vld [vmem:[%s250 + $0x70] sm:$0xff]
        %v6423 = vld [vmem:[%s250 + $0x78] sm:$0xff]
        %v6424 = vld [vmem:[%s250 + $0x80] sm:$0xff]
        %v6425 = vld [vmem:[%s250 + $0x88] sm:$0xff]
        %v6426 = vld [vmem:[%s250 + $0x90] sm:$0xff]
        %v6427 = vld [vmem:[%s250 + $0x98] sm:$0xff]
        %v6428 = vld [vmem:[%s250 + $0xa0] sm:$0xff]
        %v6429 = vld [vmem:[%s250 + $0xa8] sm:$0xff]
        %v6430 = vld [vmem:[%s250 + $0xb0] sm:$0xff]
        %v6431 = vld [vmem:[%s250 + $0xb8] sm:$0xff]
        %v6432 = vld [vmem:[%s250 + $0xc0] sm:$0xff]
        %v6433 = vld [vmem:[%s250 + $0xc8] sm:$0xff]
        %v6434 = vld [vmem:[%s250 + $0xd0] sm:$0xff]
        %v6435 = vld [vmem:[%s250 + $0xd8] sm:$0xff]
        %v6436 = vld [vmem:[%s250 + $0xe0] sm:$0xff]
        %v6437 = vld [vmem:[%s250 + $0xe8] sm:$0xff]
        %v6438 = vld [vmem:[%s250 + $0xf0] sm:$0xff]
        %v6439 = vld [vmem:[%s250 + $0xf8] sm:$0xff]
        %v6440 = vmul.f32 %v6376, %v6408
        %v6441 = vmul.f32 %v6377, %v6409
        %v6442 = vmul.f32 %v6378, %v6410
        %v6443 = vmul.f32 %v6379, %v6411
        %v6444 = vmul.f32 %v6380, %v6412
        %v6445 = vmul.f32 %v6381, %v6413
        %v6446 = vmul.f32 %v6382, %v6414
        %v6447 = vmul.f32 %v6383, %v6415
        %v6448 = vmul.f32 %v6384, %v6416
        %v6449 = vmul.f32 %v6385, %v6417
        %v6450 = vmul.f32 %v6386, %v6418
        %v6451 = vmul.f32 %v6387, %v6419
        %v6452 = vmul.f32 %v6388, %v6420
        %v6453 = vmul.f32 %v6389, %v6421
        %v6454 = vmul.f32 %v6390, %v6422
        %v6455 = vmul.f32 %v6391, %v6423
        %v6456 = vmul.f32 %v6392, %v6424
        %v6457 = vmul.f32 %v6393, %v6425
        %v6458 = vmul.f32 %v6394, %v6426
        %v6459 = vmul.f32 %v6395, %v6427
        %v6460 = vmul.f32 %v6396, %v6428
        %v6461 = vmul.f32 %v6397, %v6429
        %v6462 = vmul.f32 %v6398, %v6430
        %v6463 = vmul.f32 %v6399, %v6431
        %v6464 = vmul.f32 %v6400, %v6432
        %v6465 = vmul.f32 %v6401, %v6433
        %v6466 = vmul.f32 %v6402, %v6434
        %v6467 = vmul.f32 %v6403, %v6435
        %v6468 = vmul.f32 %v6404, %v6436
        %v6469 = vmul.f32 %v6405, %v6437
        %v6470 = vmul.f32 %v6406, %v6438
        %v6471 = vmul.f32 %v6407, %v6439
        %6472 = vst [vmem:[%s287] sm:$0xff] %v6440
        %6473 = vst [vmem:[%s287 + $0x8] sm:$0xff] %v6441
        %6474 = vst [vmem:[%s287 + $0x10] sm:$0xff] %v6442
        %6475 = vst [vmem:[%s287 + $0x18] sm:$0xff] %v6443
        %6476 = vst [vmem:[%s287 + $0x20] sm:$0xff] %v6444
        %6477 = vst [vmem:[%s287 + $0x28] sm:$0xff] %v6445
        %6478 = vst [vmem:[%s287 + $0x30] sm:$0xff] %v6446
        %6479 = vst [vmem:[%s287 + $0x38] sm:$0xff] %v6447
        %6480 = vst [vmem:[%s287 + $0x40] sm:$0xff] %v6448
        %6481 = vst [vmem:[%s287 + $0x48] sm:$0xff] %v6449
        %6482 = vst [vmem:[%s287 + $0x50] sm:$0xff] %v6450
        %6483 = vst [vmem:[%s287 + $0x58] sm:$0xff] %v6451
        %6484 = vst [vmem:[%s287 + $0x60] sm:$0xff] %v6452
        %6485 = vst [vmem:[%s287 + $0x68] sm:$0xff] %v6453
        %6486 = vst [vmem:[%s287 + $0x70] sm:$0xff] %v6454
        %6487 = vst [vmem:[%s287 + $0x78] sm:$0xff] %v6455
        %6488 = vst [vmem:[%s287 + $0x80] sm:$0xff] %v6456
        %6489 = vst [vmem:[%s287 + $0x88] sm:$0xff] %v6457
        %6490 = vst [vmem:[%s287 + $0x90] sm:$0xff] %v6458
        %6491 = vst [vmem:[%s287 + $0x98] sm:$0xff] %v6459
        %6492 = vst [vmem:[%s287 + $0xa0] sm:$0xff] %v6460
        %6493 = vst [vmem:[%s287 + $0xa8] sm:$0xff] %v6461
        %6494 = vst [vmem:[%s287 + $0xb0] sm:$0xff] %v6462
        %6495 = vst [vmem:[%s287 + $0xb8] sm:$0xff] %v6463
        %6496 = vst [vmem:[%s287 + $0xc0] sm:$0xff] %v6464
        %6497 = vst [vmem:[%s287 + $0xc8] sm:$0xff] %v6465
        %6498 = vst [vmem:[%s287 + $0xd0] sm:$0xff] %v6466
        %6499 = vst [vmem:[%s287 + $0xd8] sm:$0xff] %v6467
        %6500 = vst [vmem:[%s287 + $0xe0] sm:$0xff] %v6468
        %6501 = vst [vmem:[%s287 + $0xe8] sm:$0xff] %v6469
        %6502 = vst [vmem:[%s287 + $0xf0] sm:$0xff] %v6470
        %6503 = vst [vmem:[%s287 + $0xf8] sm:$0xff] %v6471
        %s6504 = sand.u32 %s146, 1
        %s6505 = scalar_lea.sflag [#allocation5], %s6504
        %s6506 = sand.u32 %s146, 1
        %s6507 = smul.addr %s6506, 256
        %s6508 = scalar_lea.vmem [#allocation11], %s6507
        // Predicated region
        $region53: #{tpu_custom_call.1} parent=35 // pred_check
          %p6509 = pneg %p156
        $region54: #{tpu_custom_call.1} parent=35 // pred_check_branch
          %6511 = sbr.rel (%p6509) target = $region56
        $region55: #{tpu_custom_call.1} parent=35 // pred_region
          %s6513 = ssub.s32 4096, 4096
          %6514 = vsyncadd %s6505, %s6513
          %s6515 = smul.addr %s28, 32
          %s6516 = sadd.s32 %s27, %s6515
          %s6517 = smul.addr %s6516, 128
          %s6518 = scalar_lea.hbm %s4, %s6517
          %s6519 = sshll.u32 %s6508, 4
          %s6520 = int_to_ptr.vmem [resolvable:$true] %s6519
          %6525 = dma.vmem_to_hbm [thread:$0]  %s6520, 4096, %s6518, %s6505, 128, 128, 8
        $region56: #{tpu_custom_call.1} parent=35 // pred_fallthru
          _
      $region36: #{tpu_custom_call.1} parent=5 // pred_fallthru
        _
      %p6526 = scmp.le.s32.totalorder 2, %s18
      // Predicated region
      $region57: #{tpu_custom_call.1} parent=5 // pred_check
        %p6527 = pneg %p6526
      $region58: #{tpu_custom_call.1} parent=5 // pred_check_branch
        %6529 = sbr.rel (%p6527) target = $region60
      $region59: #{tpu_custom_call.1} parent=5 // pred_region
        %s6530 = ssub.s32 %s18, 2
        // Predicated region
        $region61: #{tpu_custom_call.1} parent=59 // pred_check
          %p6531 = pneg %p162
        $region62: #{tpu_custom_call.1} parent=59 // pred_check_branch
          %6533 = sbr.rel (%p6531) target = $region64
        $region63: #{tpu_custom_call.1} parent=59 // pred_region
          %s6534 = sand.u32 %s147, 1
          %s6535 = scalar_lea.sflag [#allocation5], %s6534
          %s6536 = sand.u32 %s147, 1
          %s6537 = smul.addr %s6536, 256
          %s6538 = scalar_lea.vmem [#allocation11], %s6537
          %6539 = dma.done %s6535, 4096
        $region64: #{tpu_custom_call.1} parent=59 // pred_fallthru
          _
      $region60: #{tpu_custom_call.1} parent=5 // pred_fallthru
        _
    $region6: #{tpu_custom_call.1} parent=1 // loop_footer
      %s22 = sadd.s32 1, %s18
    $region7: #{tpu_custom_call.1} parent=1 // loop_footer_branch
      %17 = sbr.rel target = $region3
    $region8: #{tpu_custom_call.1} parent=1 // loop_exit
      _
    %6540 = vsyncpa [#allocation4], 1
    %s6541 = scalar_lea.sflag [#allocation4], 1
    %6542 = vsyncpa %s6541, 1
    %6543 = vsyncpa [#allocation8], 1
    %6544 = vsyncpa [#allocation5], 1
    %s6545 = scalar_lea.sflag [#allocation5], 1
    %6546 = vsyncpa %s6545, 1
    %6547 = vsyncpa [#allocation6], 1
    %s6548 = scalar_lea.sflag [#allocation6], 1
    %6549 = vsyncpa %s6548, 1

</llo_original>
